<compile_context>
chip_gen: v6e
topology: v6e:2x2x1
jax: 0.10.0
libtpu: 0.0.40
codegen_flags: <defaults>
</compile_context>

<pallas_src>
import functools

import jax
import jax.numpy as jnp
from jax.experimental import pallas as pl
from jax.experimental.pallas import tpu as pltpu


BOTTLENECK = 128
FEAT_DIM = 2560
NUM_CLASSES = 100


def _round_up(x, m):
    return ((x + m - 1) // m) * m


def _fused_kernel(x_ref, wf_ref, bf_ref, w1_ref, b1_ref,
                  w2_ref, b2_ref, wc_ref, bc_ref, out_ref, acc_ref):
    k = pl.program_id(0)

    # Zero the feature accumulator on the first reduction step.
    @pl.when(k == 0)
    def _init():
        acc_ref[...] = jnp.zeros_like(acc_ref)

    # Streamed K-tile of pretrained.get_features: bf16 inputs, f32 accumulation.
    acc_ref[...] += jnp.dot(x_ref[...], wf_ref[...],
                            preferred_element_type=jnp.float32)

    # On the last reduction step run the (small) adapter + classifier in f32.
    @pl.when(k == pl.num_programs(0) - 1)
    def _finalize():
        feats = acc_ref[...] + bf_ref[...]
        # adapter: Linear(2560 -> 128) + ReLU   (Dropout = identity in eval)
        h = jnp.dot(feats, w1_ref[...],
                    preferred_element_type=jnp.float32) + b1_ref[...]
        h = jnp.maximum(h, 0.0)
        # adapter: Linear(128 -> 2560) + ReLU   (Dropout = identity in eval)
        a = jnp.dot(h, w2_ref[...],
                    preferred_element_type=jnp.float32) + b2_ref[...]
        a = jnp.maximum(a, 0.0)
        # classifier: Linear(2560 -> 128-padded classes), lane-dense store.
        out_ref[...] = (jnp.dot(a, wc_ref[...],
                                preferred_element_type=jnp.float32)
                        + bc_ref[...]).astype(out_ref.dtype)


def _vmem_limit_bytes(b_pad, tk, c_pad):
    bf16, f32 = 2, 4
    # Double-buffered streamed tiles (x and wf slices).
    streamed = 2 * (tk * FEAT_DIM * bf16 + b_pad * tk * bf16)
    # Resident small weights (Pallas still allocates 2 buffers per input).
    resident = 2 * (FEAT_DIM * f32
                    + FEAT_DIM * BOTTLENECK * f32 + BOTTLENECK * f32
                    + BOTTLENECK * FEAT_DIM * f32 + FEAT_DIM * f32
                    + FEAT_DIM * c_pad * f32 + c_pad * f32)
    out_b = 2 * b_pad * c_pad * f32
    scratch = b_pad * FEAT_DIM * f32
    total = streamed + resident + out_b + scratch + (8 << 20)  # compiler headroom
    # Floor for safety, cap well under v7x's 64 MiB physical VMEM.
    return int(min(max(total, 32 << 20), 48 << 20))


@functools.partial(jax.jit, static_argnames=("tk",))
def baseline_adapter_transformer(x_nchw, params, *, tk=512):
    """x_nchw: (B, C, H, W) float32. Returns logits (B, NUM_CLASSES) float32."""
    B = x_nchw.shape[0]
    d_in = x_nchw.shape[1] * x_nchw.shape[2] * x_nchw.shape[3]
    x_flat = x_nchw.reshape(B, d_in)  # row-major flatten, same as torch .view

    wf, bf, w1, b1, w2, b2, wc, bc = params

    # Padding: batch -> multiple of 8 sublanes, reduction -> multiple of tk,
    # classifier lanes -> multiple of 128 (zero padding is exact for matmul).
    b_pad = _round_up(B, 8)
    n_k = pl.cdiv(d_in, tk)
    k_pad = n_k * tk
    c_pad = _round_up(NUM_CLASSES, 128)

    x_p = jnp.zeros((b_pad, k_pad), jnp.bfloat16)
    x_p = x_p.at[:B, :d_in].set(x_flat.astype(jnp.bfloat16))
    wf_p = jnp.zeros((k_pad, FEAT_DIM), jnp.bfloat16)
    wf_p = wf_p.at[:d_in, :].set(wf.astype(jnp.bfloat16))
    wc_p = jnp.zeros((FEAT_DIM, c_pad), jnp.float32).at[:, :NUM_CLASSES].set(wc)
    bc_p = jnp.zeros((1, c_pad), jnp.float32).at[:, :NUM_CLASSES].set(bc)

    grid_spec = pltpu.PrefetchScalarGridSpec(
        num_scalar_prefetch=0,
        grid=(n_k,),
        in_specs=[
            # Streamed along the reduction axis:
            pl.BlockSpec((b_pad, tk), lambda k: (0, k)),        # x tile
            pl.BlockSpec((tk, FEAT_DIM), lambda k: (k, 0)),     # wf tile
            # Resident (constant block index => DMA'd once, reused every step):
            pl.BlockSpec((1, FEAT_DIM), lambda k: (0, 0)),      # bf
            pl.BlockSpec((FEAT_DIM, BOTTLENECK), lambda k: (0, 0)),  # w1
            pl.BlockSpec((1, BOTTLENECK), lambda k: (0, 0)),    # b1
            pl.BlockSpec((BOTTLENECK, FEAT_DIM), lambda k: (0, 0)),  # w2
            pl.BlockSpec((1, FEAT_DIM), lambda k: (0, 0)),      # b2
            pl.BlockSpec((FEAT_DIM, c_pad), lambda k: (0, 0)),  # wc (lane-padded)
            pl.BlockSpec((1, c_pad), lambda k: (0, 0)),         # bc (lane-padded)
        ],
        out_specs=pl.BlockSpec((b_pad, c_pad), lambda k: (0, 0)),
        scratch_shapes=[pltpu.VMEM((b_pad, FEAT_DIM), jnp.float32)],
    )

    out_padded = pl.pallas_call(
        _fused_kernel,
        out_shape=jax.ShapeDtypeStruct((b_pad, c_pad), jnp.float32),
        grid_spec=grid_spec,
        compiler_params=pltpu.CompilerParams(
            dimension_semantics=("arbitrary",),  # reduction axis
            vmem_limit_bytes=_vmem_limit_bytes(b_pad, tk, c_pad),
        ),
    )(x_p, wf_p, bf, w1, b1, w2, b2, wc_p, bc_p)

    return out_padded[:B, :NUM_CLASSES]


def init_params(key, d_in):
    """Deterministic parameter init. Weights stored as (in, out), float32."""
    ks = jax.random.split(key, 8)
    scale = lambda fan_in: 1.0 / jnp.sqrt(jnp.float32(fan_in))
    wf = jax.random.normal(ks[0], (d_in, FEAT_DIM), jnp.float32) * scale(d_in)
    bf = jax.random.normal(ks[1], (1, FEAT_DIM), jnp.float32) * 0.01
    w1 = jax.random.normal(ks[2], (FEAT_DIM, BOTTLENECK), jnp.float32) * scale(FEAT_DIM)
    b1 = jax.random.normal(ks[3], (1, BOTTLENECK), jnp.float32) * 0.01
    w2 = jax.random.normal(ks[4], (BOTTLENECK, FEAT_DIM), jnp.float32) * scale(BOTTLENECK)
    b2 = jax.random.normal(ks[5], (1, FEAT_DIM), jnp.float32) * 0.01
    wc = jax.random.normal(ks[6], (FEAT_DIM, NUM_CLASSES), jnp.float32) * scale(FEAT_DIM)
    bc = jax.random.normal(ks[7], (1, NUM_CLASSES), jnp.float32) * 0.01
    return (wf, bf, w1, b1, w2, b2, wc, bc)


def _reference(x_nchw, params):
    """Pure-JAX reference mirroring the kernel's bf16 cast of the first matmul."""
    wf, bf, w1, b1, w2, b2, wc, bc = params
    B = x_nchw.shape[0]
    x = x_nchw.reshape(B, -1)
    feats = jnp.dot(x.astype(jnp.bfloat16), wf.astype(jnp.bfloat16),
                    preferred_element_type=jnp.float32) + bf
    h = jnp.maximum(feats @ w1 + b1, 0.0)
    a = jnp.maximum(h @ w2 + b2, 0.0)
    return a @ wc + bc


if __name__ == "__main__":
    key = jax.random.PRNGKey(0)
    kx, kp = jax.random.split(key)

    # Small NCHW input consistent with an image-classification backbone.
    B, C, H, W = 2, 4, 16, 16
    x = jax.random.normal(kx, (B, C, H, W), jnp.float32)

    params = init_params(kp, C * H * W)

    logits = baseline_adapter_transformer(x, params)
    logits = jax.block_until_ready(logits)

    ref = _reference(x, params)
    assert logits.shape == (B, NUM_CLASSES), logits.shape
    assert jnp.allclose(logits, ref, atol=2e-2, rtol=2e-2), (
        float(jnp.max(jnp.abs(logits - ref))))

    print("KERNEL_OK")
</pallas_src>

<mosaic_0001>
module attributes {stable_mosaic.version = 11 : i64} {
  func.func @_fused_kernel(%arg0: i32, %arg1: memref<8x512xbf16, #tpu.memory_space<vmem>>, %arg2: memref<512x2560xbf16, #tpu.memory_space<vmem>>, %arg3: memref<1x2560xf32, #tpu.memory_space<vmem>>, %arg4: memref<2560x128xf32, #tpu.memory_space<vmem>>, %arg5: memref<1x128xf32, #tpu.memory_space<vmem>>, %arg6: memref<128x2560xf32, #tpu.memory_space<vmem>>, %arg7: memref<1x2560xf32, #tpu.memory_space<vmem>>, %arg8: memref<2560x128xf32, #tpu.memory_space<vmem>>, %arg9: memref<1x128xf32, #tpu.memory_space<vmem>>, %arg10: memref<8x128xf32, #tpu.memory_space<vmem>>, %arg11: memref<8x2560xf32, #tpu.memory_space<vmem>>) attributes {dimension_semantics = [#tpu.dimension_semantics<arbitrary>], iteration_bounds = array<i64: 2>, scalar_prefetch = 0 : i64, scratch_operands = 1 : i64, tpu.core_type = #tpu.core_type<tc>, window_params = [{transform_indices = @transform_0, window_bounds = array<i64: 8, 512>}, {transform_indices = @transform_1, window_bounds = array<i64: 512, 2560>}, {pipeline_mode = #tpu.pipeline_mode<synchronous>, transform_indices = @transform_2, window_bounds = array<i64: 1, 2560>}, {pipeline_mode = #tpu.pipeline_mode<synchronous>, transform_indices = @transform_3, window_bounds = array<i64: 2560, 128>}, {pipeline_mode = #tpu.pipeline_mode<synchronous>, transform_indices = @transform_4, window_bounds = array<i64: 1, 128>}, {pipeline_mode = #tpu.pipeline_mode<synchronous>, transform_indices = @transform_5, window_bounds = array<i64: 128, 2560>}, {pipeline_mode = #tpu.pipeline_mode<synchronous>, transform_indices = @transform_6, window_bounds = array<i64: 1, 2560>}, {pipeline_mode = #tpu.pipeline_mode<synchronous>, transform_indices = @transform_7, window_bounds = array<i64: 2560, 128>}, {pipeline_mode = #tpu.pipeline_mode<synchronous>, transform_indices = @transform_8, window_bounds = array<i64: 1, 128>}, {pipeline_mode = #tpu.pipeline_mode<synchronous>, transform_indices = @transform_9, window_bounds = array<i64: 8, 128>}]} {
    %c0_i32 = arith.constant 0 : i32
    %0 = arith.cmpi eq, %arg0, %c0_i32 : i32
    %1 = arith.extui %0 : i1 to i32
    %c0_i32_0 = arith.constant 0 : i32
    %2 = arith.cmpi ne, %1, %c0_i32_0 : i32
    scf.if %2 {
      %cst_9 = arith.constant 0.000000e+00 : f32
      %12 = vector.broadcast %cst_9 : f32 to vector<8x2560xf32>
      %c0_10 = arith.constant 0 : index
      %c0_11 = arith.constant 0 : index
      %13 = vector.load %arg11[%c0_10, %c0_11] : memref<8x2560xf32, #tpu.memory_space<vmem>>, vector<8x2560xf32>
      tpu.vector_store %arg11[%c0_10, %c0_11], %12 {strides = array<i32>} : memref<8x2560xf32, #tpu.memory_space<vmem>>, vector<8x2560xf32>,
    } else {
    }
    %c0 = arith.constant 0 : index
    %c0_1 = arith.constant 0 : index
    %3 = vector.load %arg11[%c0, %c0_1] : memref<8x2560xf32, #tpu.memory_space<vmem>>, vector<8x2560xf32>
    %c0_2 = arith.constant 0 : index
    %c0_3 = arith.constant 0 : index
    %4 = vector.load %arg1[%c0_2, %c0_3] : memref<8x512xbf16, #tpu.memory_space<vmem>>, vector<8x512xbf16>
    %c0_4 = arith.constant 0 : index
    %c0_5 = arith.constant 0 : index
    %5 = vector.load %arg2[%c0_4, %c0_5] : memref<512x2560xbf16, #tpu.memory_space<vmem>>, vector<512x2560xbf16>
    %cst = arith.constant dense<0.000000e+00> : vector<8x2560xf32>
    %6 = tpu.matmul %4, %5, %cst {dimension_numbers = #tpu.dot_dimension_numbers<[1], [0], [0], [1], [0, 0, 1, 1], [], []>} : vector<8x512xbf16>, vector<512x2560xbf16>, vector<8x2560xf32> -> vector<8x2560xf32>
    %7 = arith.addf %3, %6 : vector<8x2560xf32>
    %c0_6 = arith.constant 0 : index
    %c0_7 = arith.constant 0 : index
    %8 = vector.load %arg11[%c0_6, %c0_7] : memref<8x2560xf32, #tpu.memory_space<vmem>>, vector<8x2560xf32>
    tpu.vector_store %arg11[%c0_6, %c0_7], %7 {strides = array<i32>} : memref<8x2560xf32, #tpu.memory_space<vmem>>, vector<8x2560xf32>,
    %c1_i32 = arith.constant 1 : i32
    %9 = arith.cmpi eq, %arg0, %c1_i32 : i32
    %10 = arith.extui %9 : i1 to i32
    %c0_i32_8 = arith.constant 0 : i32
    %11 = arith.cmpi ne, %10, %c0_i32_8 : i32
    scf.if %11 {
      %c0_9 = arith.constant 0 : index
      %c0_10 = arith.constant 0 : index
      %12 = vector.load %arg11[%c0_9, %c0_10] : memref<8x2560xf32, #tpu.memory_space<vmem>>, vector<8x2560xf32>
      %c0_11 = arith.constant 0 : index
      %c0_12 = arith.constant 0 : index
      %13 = vector.load %arg3[%c0_11, %c0_12] : memref<1x2560xf32, #tpu.memory_space<vmem>>, vector<1x2560xf32>
      %14 = vector.broadcast %13 : vector<1x2560xf32> to vector<8x2560xf32>
      %15 = arith.addf %12, %14 : vector<8x2560xf32>
      %c0_13 = arith.constant 0 : index
      %c0_14 = arith.constant 0 : index
      %16 = vector.load %arg4[%c0_13, %c0_14] : memref<2560x128xf32, #tpu.memory_space<vmem>>, vector<2560x128xf32>
      %cst_15 = arith.constant dense<0.000000e+00> : vector<8x128xf32>
      %17 = tpu.matmul %15, %16, %cst_15 {dimension_numbers = #tpu.dot_dimension_numbers<[1], [0], [0], [1], [0, 0, 1, 1], [], []>} : vector<8x2560xf32>, vector<2560x128xf32>, vector<8x128xf32> -> vector<8x128xf32>
      %c0_16 = arith.constant 0 : index
      %c0_17 = arith.constant 0 : index
      %18 = vector.load %arg5[%c0_16, %c0_17] : memref<1x128xf32, #tpu.memory_space<vmem>>, vector<1x128xf32>
      %19 = vector.broadcast %18 : vector<1x128xf32> to vector<8x128xf32>
      %20 = arith.addf %17, %19 : vector<8x128xf32>
      %cst_18 = arith.constant 0.000000e+00 : f32
      %21 = vector.broadcast %cst_18 : f32 to vector<8x128xf32>
      %22 = arith.maximumf %20, %21 : vector<8x128xf32>
      %c0_19 = arith.constant 0 : index
      %c0_20 = arith.constant 0 : index
      %23 = vector.load %arg6[%c0_19, %c0_20] : memref<128x2560xf32, #tpu.memory_space<vmem>>, vector<128x2560xf32>
      %cst_21 = arith.constant dense<0.000000e+00> : vector<8x2560xf32>
      %24 = tpu.matmul %22, %23, %cst_21 {dimension_numbers = #tpu.dot_dimension_numbers<[1], [0], [0], [1], [0, 0, 1, 1], [], []>} : vector<8x128xf32>, vector<128x2560xf32>, vector<8x2560xf32> -> vector<8x2560xf32>
      %c0_22 = arith.constant 0 : index
      %c0_23 = arith.constant 0 : index
      %25 = vector.load %arg7[%c0_22, %c0_23] : memref<1x2560xf32, #tpu.memory_space<vmem>>, vector<1x2560xf32>
      %26 = vector.broadcast %25 : vector<1x2560xf32> to vector<8x2560xf32>
      %27 = arith.addf %24, %26 : vector<8x2560xf32>
      %cst_24 = arith.constant 0.000000e+00 : f32
      %28 = vector.broadcast %cst_24 : f32 to vector<8x2560xf32>
      %29 = arith.maximumf %27, %28 : vector<8x2560xf32>
      %c0_25 = arith.constant 0 : index
      %c0_26 = arith.constant 0 : index
      %30 = vector.load %arg8[%c0_25, %c0_26] : memref<2560x128xf32, #tpu.memory_space<vmem>>, vector<2560x128xf32>
      %cst_27 = arith.constant dense<0.000000e+00> : vector<8x128xf32>
      %31 = tpu.matmul %29, %30, %cst_27 {dimension_numbers = #tpu.dot_dimension_numbers<[1], [0], [0], [1], [0, 0, 1, 1], [], []>} : vector<8x2560xf32>, vector<2560x128xf32>, vector<8x128xf32> -> vector<8x128xf32>
      %c0_28 = arith.constant 0 : index
      %c0_29 = arith.constant 0 : index
      %32 = vector.load %arg9[%c0_28, %c0_29] : memref<1x128xf32, #tpu.memory_space<vmem>>, vector<1x128xf32>
      %33 = vector.broadcast %32 : vector<1x128xf32> to vector<8x128xf32>
      %34 = arith.addf %31, %33 : vector<8x128xf32>
      %c0_30 = arith.constant 0 : index
      %c0_31 = arith.constant 0 : index
      %35 = vector.load %arg10[%c0_30, %c0_31] : memref<8x128xf32, #tpu.memory_space<vmem>>, vector<8x128xf32>
      tpu.vector_store %arg10[%c0_30, %c0_31], %34 {strides = array<i32>} : memref<8x128xf32, #tpu.memory_space<vmem>>, vector<8x128xf32>,
    } else {
    }
    return
  }
  func.func @transform_0(%arg0: i32) -> (i32, i32) {
    %c0_i32 = arith.constant 0 : i32
    %c0_i32_0 = arith.constant 0 : i32
    return %c0_i32, %arg0 : i32, i32
  }
  func.func @transform_1(%arg0: i32) -> (i32, i32) {
    %c0_i32 = arith.constant 0 : i32
    %c0_i32_0 = arith.constant 0 : i32
    return %arg0, %c0_i32 : i32, i32
  }
  func.func @transform_2(%arg0: i32) -> (i32, i32) {
    %c0_i32 = arith.constant 0 : i32
    %c0_i32_0 = arith.constant 0 : i32
    %c0_i32_1 = arith.constant 0 : i32
    return %c0_i32, %c0_i32_0 : i32, i32
  }
  func.func @transform_3(%arg0: i32) -> (i32, i32) {
    %c0_i32 = arith.constant 0 : i32
    %c0_i32_0 = arith.constant 0 : i32
    %c0_i32_1 = arith.constant 0 : i32
    return %c0_i32, %c0_i32_0 : i32, i32
  }
  func.func @transform_4(%arg0: i32) -> (i32, i32) {
    %c0_i32 = arith.constant 0 : i32
    %c0_i32_0 = arith.constant 0 : i32
    %c0_i32_1 = arith.constant 0 : i32
    return %c0_i32, %c0_i32_0 : i32, i32
  }
  func.func @transform_5(%arg0: i32) -> (i32, i32) {
    %c0_i32 = arith.constant 0 : i32
    %c0_i32_0 = arith.constant 0 : i32
    %c0_i32_1 = arith.constant 0 : i32
    return %c0_i32, %c0_i32_0 : i32, i32
  }
  func.func @transform_6(%arg0: i32) -> (i32, i32) {
    %c0_i32 = arith.constant 0 : i32
    %c0_i32_0 = arith.constant 0 : i32
    %c0_i32_1 = arith.constant 0 : i32
    return %c0_i32, %c0_i32_0 : i32, i32
  }
  func.func @transform_7(%arg0: i32) -> (i32, i32) {
    %c0_i32 = arith.constant 0 : i32
    %c0_i32_0 = arith.constant 0 : i32
    %c0_i32_1 = arith.constant 0 : i32
    return %c0_i32, %c0_i32_0 : i32, i32
  }
  func.func @transform_8(%arg0: i32) -> (i32, i32) {
    %c0_i32 = arith.constant 0 : i32
    %c0_i32_0 = arith.constant 0 : i32
    %c0_i32_1 = arith.constant 0 : i32
    return %c0_i32, %c0_i32_0 : i32, i32
  }
  func.func @transform_9(%arg0: i32) -> (i32, i32) {
    %c0_i32 = arith.constant 0 : i32
    %c0_i32_0 = arith.constant 0 : i32
    %c0_i32_1 = arith.constant 0 : i32
    return %c0_i32, %c0_i32_0 : i32, i32
  }
}

</mosaic_0001>

<llo_original>
// kernel: baseline_adapter_transformer.1
$region0: #{baseline_adapter_transformer.1}
  #allocation0 [shape = 'u32[]', space=smem, size = 0x4, offset = 0x4, fixed_abs, tag = 'smem constant byte address 0x4 - core index']
  #allocation1 [shape = 'u32[144,128]{1,0:T(1,128)}', space=vmem, size = 0x12000, scoped, tag = 'internal scratch']
  #allocation2 [shape = 'f32[8,2560]{1,0:T(8,128)}', space=vmem, size = 0x14000, scoped, tag = 'scratch operand']
  %s0 = inlined_call_operand.vmem [shape: bf16[8,1024], index: 0, kind: input, shape index: {}]
  %s1 = inlined_call_operand.vmem [shape: bf16[1024,2560], index: 1, kind: input, shape index: {}]
  %s2 = inlined_call_operand.vmem [shape: f32[1,2560], index: 2, kind: input, shape index: {}]
  %s3 = inlined_call_operand.vmem [shape: f32[2560,128], index: 3, kind: input, shape index: {}]
  %s4 = inlined_call_operand.vmem [shape: f32[1,128], index: 4, kind: input, shape index: {}]
  %s5 = inlined_call_operand.vmem [shape: f32[128,2560], index: 5, kind: input, shape index: {}]
  %s6 = inlined_call_operand.vmem [shape: f32[1,2560], index: 6, kind: input, shape index: {}]
  %s7 = inlined_call_operand.vmem [shape: f32[2560,128], index: 7, kind: input, shape index: {}]
  %s8 = inlined_call_operand.vmem [shape: f32[1,128], index: 8, kind: input, shape index: {}]
  %s9 = inlined_call_operand.vmem [shape: f32[8,128], index: 9, kind: output, shape index: {}]
  %s10 = sld [smem:[#allocation0]]
  $region77: #{baseline_adapter_transformer.1} parent=0
    _
  %s12 = ssub.s32 1, %s10
  %s13 = scalar_select 0, %s12, %s10
  loop: start=0, step=1, limit=4
  $region2: #{baseline_adapter_transformer.1} parent=0 // loop_pre_header
    _
  $region3: #{baseline_adapter_transformer.1} parent=0 // loop_header
    %s15 = sphi 0, %s19
    %p16 = scmp.ge.s32.totalorder %s15, 4
    %s25 = sphi 0, %s27
    %s28 = sphi 0, %s25
    %s29 = sphi 0, %s28
    %s45 = sphi 0, %s29
    %s51 = sphi 0, %s53
    %s54 = sphi 0, %s51
    %s55 = sphi 0, %s54
    %s71 = sphi 0, %s55
    %s75 = sphi 0, %s75
    %s77 = sphi 0, %s75
    %s78 = sphi 0, %s77
    %s92 = sphi 0, %s78
    %s96 = sphi 0, %s96
    %s98 = sphi 0, %s96
    %s99 = sphi 0, %s98
    %s113 = sphi 0, %s99
    %s117 = sphi 0, %s117
    %s119 = sphi 0, %s117
    %s120 = sphi 0, %s119
    %s134 = sphi 0, %s120
    %s138 = sphi 0, %s138
    %s140 = sphi 0, %s138
    %s141 = sphi 0, %s140
    %s155 = sphi 0, %s141
    %s159 = sphi 0, %s159
    %s161 = sphi 0, %s159
    %s162 = sphi 0, %s161
    %s176 = sphi 0, %s162
    %s180 = sphi 0, %s180
    %s182 = sphi 0, %s180
    %s183 = sphi 0, %s182
    %s197 = sphi 0, %s183
    %s201 = sphi 0, %s201
    %s203 = sphi 0, %s201
    %s204 = sphi 0, %s203
    %s218 = sphi 0, %s204
    %s222 = sphi 0, %s222
    %s224 = sphi 0, %s222
    %s225 = sphi 0, %s224
    %s239 = sphi 0, %s225
  $region4: #{baseline_adapter_transformer.1} parent=0 // loop_header_branch
    %18 = sbr.rel (%p16) target = $region8
  $region5: #{baseline_adapter_transformer.1} parent=0 // loop_body
    %s20 = ssub.s32 %s15, 1
    %s21 = ssub.s32 %s15, 2
    %s22 = sadd.s32 %s15, 1
    %s23 = ssub.s32 %s15, %s22
    %p24 = scmp.eq.s32.totalorder %s23, 0
    %s26 = sadd.s32 %s25, 1
    %s27 = scalar_select %p24, %s25, %s26
    %p30 = pneg %p24
    %p31 = scmp.eq.s32.totalorder %s15, 1
    %p32 = por %p30, %p31
    %p33 = scmp.ne.s32.totalorder %s25, %s28
    %p34 = scmp.eq.s32.totalorder %s15, 0
    %p35 = por %p33, %p34
    %p36 = scmp.ne.s32.totalorder %s25, %s28
    %p37 = scmp.eq.s32.totalorder %s20, 1
    %p38 = por %p36, %p37
    %p39 = scmp.ne.s32.totalorder %s28, %s29
    %p40 = scmp.eq.s32.totalorder %s20, 0
    %p41 = por %p39, %p40
    %p42 = scmp.ne.s32.totalorder %s28, %s29
    %p43 = scmp.eq.s32.totalorder %s21, 1
    %p44 = por %p42, %p43
    %p46 = scmp.ne.s32.totalorder %s29, %s45
    %p47 = scmp.eq.s32.totalorder %s21, 0
    %p48 = por %p46, %p47
    %s49 = ssub.s32 %s15, %s22
    %p50 = scmp.eq.s32.totalorder %s49, 0
    %s52 = sadd.s32 %s51, 1
    %s53 = scalar_select %p50, %s51, %s52
    %p56 = pneg %p50
    %p57 = scmp.eq.s32.totalorder %s15, 1
    %p58 = por %p56, %p57
    %p59 = scmp.ne.s32.totalorder %s51, %s54
    %p60 = scmp.eq.s32.totalorder %s15, 0
    %p61 = por %p59, %p60
    %p62 = scmp.ne.s32.totalorder %s51, %s54
    %p63 = scmp.eq.s32.totalorder %s20, 1
    %p64 = por %p62, %p63
    %p65 = scmp.ne.s32.totalorder %s54, %s55
    %p66 = scmp.eq.s32.totalorder %s20, 0
    %p67 = por %p65, %p66
    %p68 = scmp.ne.s32.totalorder %s54, %s55
    %p69 = scmp.eq.s32.totalorder %s21, 1
    %p70 = por %p68, %p69
    %p72 = scmp.ne.s32.totalorder %s55, %s71
    %p73 = scmp.eq.s32.totalorder %s21, 0
    %p74 = por %p72, %p73
    %s76 = sadd.s32 %s75, 1
    %p79 = scmp.eq.s32.totalorder %s15, 1
    %p80 = scmp.ne.s32.totalorder %s75, %s77
    %p81 = scmp.eq.s32.totalorder %s15, 0
    %p82 = por %p80, %p81
    %p83 = scmp.ne.s32.totalorder %s75, %s77
    %p84 = scmp.eq.s32.totalorder %s20, 1
    %p85 = por %p83, %p84
    %p86 = scmp.ne.s32.totalorder %s77, %s78
    %p87 = scmp.eq.s32.totalorder %s20, 0
    %p88 = por %p86, %p87
    %p89 = scmp.ne.s32.totalorder %s77, %s78
    %p90 = scmp.eq.s32.totalorder %s21, 1
    %p91 = por %p89, %p90
    %p93 = scmp.ne.s32.totalorder %s78, %s92
    %p94 = scmp.eq.s32.totalorder %s21, 0
    %p95 = por %p93, %p94
    %s97 = sadd.s32 %s96, 1
    %p100 = scmp.eq.s32.totalorder %s15, 1
    %p101 = scmp.ne.s32.totalorder %s96, %s98
    %p102 = scmp.eq.s32.totalorder %s15, 0
    %p103 = por %p101, %p102
    %p104 = scmp.ne.s32.totalorder %s96, %s98
    %p105 = scmp.eq.s32.totalorder %s20, 1
    %p106 = por %p104, %p105
    %p107 = scmp.ne.s32.totalorder %s98, %s99
    %p108 = scmp.eq.s32.totalorder %s20, 0
    %p109 = por %p107, %p108
    %p110 = scmp.ne.s32.totalorder %s98, %s99
    %p111 = scmp.eq.s32.totalorder %s21, 1
    %p112 = por %p110, %p111
    %p114 = scmp.ne.s32.totalorder %s99, %s113
    %p115 = scmp.eq.s32.totalorder %s21, 0
    %p116 = por %p114, %p115
    %s118 = sadd.s32 %s117, 1
    %p121 = scmp.eq.s32.totalorder %s15, 1
    %p122 = scmp.ne.s32.totalorder %s117, %s119
    %p123 = scmp.eq.s32.totalorder %s15, 0
    %p124 = por %p122, %p123
    %p125 = scmp.ne.s32.totalorder %s117, %s119
    %p126 = scmp.eq.s32.totalorder %s20, 1
    %p127 = por %p125, %p126
    %p128 = scmp.ne.s32.totalorder %s119, %s120
    %p129 = scmp.eq.s32.totalorder %s20, 0
    %p130 = por %p128, %p129
    %p131 = scmp.ne.s32.totalorder %s119, %s120
    %p132 = scmp.eq.s32.totalorder %s21, 1
    %p133 = por %p131, %p132
    %p135 = scmp.ne.s32.totalorder %s120, %s134
    %p136 = scmp.eq.s32.totalorder %s21, 0
    %p137 = por %p135, %p136
    %s139 = sadd.s32 %s138, 1
    %p142 = scmp.eq.s32.totalorder %s15, 1
    %p143 = scmp.ne.s32.totalorder %s138, %s140
    %p144 = scmp.eq.s32.totalorder %s15, 0
    %p145 = por %p143, %p144
    %p146 = scmp.ne.s32.totalorder %s138, %s140
    %p147 = scmp.eq.s32.totalorder %s20, 1
    %p148 = por %p146, %p147
    %p149 = scmp.ne.s32.totalorder %s140, %s141
    %p150 = scmp.eq.s32.totalorder %s20, 0
    %p151 = por %p149, %p150
    %p152 = scmp.ne.s32.totalorder %s140, %s141
    %p153 = scmp.eq.s32.totalorder %s21, 1
    %p154 = por %p152, %p153
    %p156 = scmp.ne.s32.totalorder %s141, %s155
    %p157 = scmp.eq.s32.totalorder %s21, 0
    %p158 = por %p156, %p157
    %s160 = sadd.s32 %s159, 1
    %p163 = scmp.eq.s32.totalorder %s15, 1
    %p164 = scmp.ne.s32.totalorder %s159, %s161
    %p165 = scmp.eq.s32.totalorder %s15, 0
    %p166 = por %p164, %p165
    %p167 = scmp.ne.s32.totalorder %s159, %s161
    %p168 = scmp.eq.s32.totalorder %s20, 1
    %p169 = por %p167, %p168
    %p170 = scmp.ne.s32.totalorder %s161, %s162
    %p171 = scmp.eq.s32.totalorder %s20, 0
    %p172 = por %p170, %p171
    %p173 = scmp.ne.s32.totalorder %s161, %s162
    %p174 = scmp.eq.s32.totalorder %s21, 1
    %p175 = por %p173, %p174
    %p177 = scmp.ne.s32.totalorder %s162, %s176
    %p178 = scmp.eq.s32.totalorder %s21, 0
    %p179 = por %p177, %p178
    %s181 = sadd.s32 %s180, 1
    %p184 = scmp.eq.s32.totalorder %s15, 1
    %p185 = scmp.ne.s32.totalorder %s180, %s182
    %p186 = scmp.eq.s32.totalorder %s15, 0
    %p187 = por %p185, %p186
    %p188 = scmp.ne.s32.totalorder %s180, %s182
    %p189 = scmp.eq.s32.totalorder %s20, 1
    %p190 = por %p188, %p189
    %p191 = scmp.ne.s32.totalorder %s182, %s183
    %p192 = scmp.eq.s32.totalorder %s20, 0
    %p193 = por %p191, %p192
    %p194 = scmp.ne.s32.totalorder %s182, %s183
    %p195 = scmp.eq.s32.totalorder %s21, 1
    %p196 = por %p194, %p195
    %p198 = scmp.ne.s32.totalorder %s183, %s197
    %p199 = scmp.eq.s32.totalorder %s21, 0
    %p200 = por %p198, %p199
    %s202 = sadd.s32 %s201, 1
    %p205 = scmp.eq.s32.totalorder %s15, 1
    %p206 = scmp.ne.s32.totalorder %s201, %s203
    %p207 = scmp.eq.s32.totalorder %s15, 0
    %p208 = por %p206, %p207
    %p209 = scmp.ne.s32.totalorder %s201, %s203
    %p210 = scmp.eq.s32.totalorder %s20, 1
    %p211 = por %p209, %p210
    %p212 = scmp.ne.s32.totalorder %s203, %s204
    %p213 = scmp.eq.s32.totalorder %s20, 0
    %p214 = por %p212, %p213
    %p215 = scmp.ne.s32.totalorder %s203, %s204
    %p216 = scmp.eq.s32.totalorder %s21, 1
    %p217 = por %p215, %p216
    %p219 = scmp.ne.s32.totalorder %s204, %s218
    %p220 = scmp.eq.s32.totalorder %s21, 0
    %p221 = por %p219, %p220
    %s223 = sadd.s32 %s222, 1
    %p226 = scmp.eq.s32.totalorder %s15, 1
    %p227 = scmp.ne.s32.totalorder %s222, %s224
    %p228 = scmp.eq.s32.totalorder %s15, 0
    %p229 = por %p227, %p228
    %p230 = scmp.ne.s32.totalorder %s222, %s224
    %p231 = scmp.eq.s32.totalorder %s20, 1
    %p232 = por %p230, %p231
    %p233 = scmp.ne.s32.totalorder %s224, %s225
    %p234 = scmp.eq.s32.totalorder %s20, 0
    %p235 = por %p233, %p234
    %p236 = scmp.ne.s32.totalorder %s224, %s225
    %p237 = scmp.eq.s32.totalorder %s21, 1
    %p238 = por %p236, %p237
    %p240 = scmp.ne.s32.totalorder %s225, %s239
    %p241 = scmp.eq.s32.totalorder %s21, 0
    %p242 = por %p240, %p241
    %p243 = scmp.le.s32.totalorder 1, %s15
    %p244 = scmp.lt.s32.totalorder %s15, 3
    %p245 = pnand %p243, %p244
    %p246 = pneg %p245
    // Predicated region
    $region9: #{baseline_adapter_transformer.1} parent=5 // pred_check
      _
    $region10: #{baseline_adapter_transformer.1} parent=5 // pred_check_branch
      %248 = sbr.rel (%p245) target = $region12
    $region11: #{baseline_adapter_transformer.1} parent=5 // pred_region
      %s249 = ssub.s32 %s15, 1
      // Predicated region
      $region13: #{baseline_adapter_transformer.1} parent=11 // pred_check
        %p250 = pneg %p88
      $region14: #{baseline_adapter_transformer.1} parent=11 // pred_check_branch
        %252 = sbr.rel (%p250) target = $region16
      $region15: #{baseline_adapter_transformer.1} parent=11 // pred_region
        _
      $region16: #{baseline_adapter_transformer.1} parent=11 // pred_fallthru
        _
      // Predicated region
      $region17: #{baseline_adapter_transformer.1} parent=11 // pred_check
        %p253 = pneg %p109
      $region18: #{baseline_adapter_transformer.1} parent=11 // pred_check_branch
        %255 = sbr.rel (%p253) target = $region20
      $region19: #{baseline_adapter_transformer.1} parent=11 // pred_region
        _
      $region20: #{baseline_adapter_transformer.1} parent=11 // pred_fallthru
        _
      // Predicated region
      $region21: #{baseline_adapter_transformer.1} parent=11 // pred_check
        %p256 = pneg %p130
      $region22: #{baseline_adapter_transformer.1} parent=11 // pred_check_branch
        %258 = sbr.rel (%p256) target = $region24
      $region23: #{baseline_adapter_transformer.1} parent=11 // pred_region
        _
      $region24: #{baseline_adapter_transformer.1} parent=11 // pred_fallthru
        _
      // Predicated region
      $region25: #{baseline_adapter_transformer.1} parent=11 // pred_check
        %p259 = pneg %p151
      $region26: #{baseline_adapter_transformer.1} parent=11 // pred_check_branch
        %261 = sbr.rel (%p259) target = $region28
      $region27: #{baseline_adapter_transformer.1} parent=11 // pred_region
        _
      $region28: #{baseline_adapter_transformer.1} parent=11 // pred_fallthru
        _
      // Predicated region
      $region29: #{baseline_adapter_transformer.1} parent=11 // pred_check
        %p262 = pneg %p172
      $region30: #{baseline_adapter_transformer.1} parent=11 // pred_check_branch
        %264 = sbr.rel (%p262) target = $region32
      $region31: #{baseline_adapter_transformer.1} parent=11 // pred_region
        _
      $region32: #{baseline_adapter_transformer.1} parent=11 // pred_fallthru
        _
      // Predicated region
      $region33: #{baseline_adapter_transformer.1} parent=11 // pred_check
        %p265 = pneg %p193
      $region34: #{baseline_adapter_transformer.1} parent=11 // pred_check_branch
        %267 = sbr.rel (%p265) target = $region36
      $region35: #{baseline_adapter_transformer.1} parent=11 // pred_region
        _
      $region36: #{baseline_adapter_transformer.1} parent=11 // pred_fallthru
        _
      // Predicated region
      $region37: #{baseline_adapter_transformer.1} parent=11 // pred_check
        %p268 = pneg %p214
      $region38: #{baseline_adapter_transformer.1} parent=11 // pred_check_branch
        %270 = sbr.rel (%p268) target = $region40
      $region39: #{baseline_adapter_transformer.1} parent=11 // pred_region
        _
      $region40: #{baseline_adapter_transformer.1} parent=11 // pred_fallthru
        _
    $region12: #{baseline_adapter_transformer.1} parent=5 // pred_fallthru
      _
    %p271 = scmp.lt.s32.totalorder %s15, 2
    // Predicated region
    $region41: #{baseline_adapter_transformer.1} parent=5 // pred_check
      %p272 = pneg %p271
    $region42: #{baseline_adapter_transformer.1} parent=5 // pred_check_branch
      %274 = sbr.rel (%p272) target = $region44
    $region43: #{baseline_adapter_transformer.1} parent=5 // pred_region
      // Predicated region
      $region45: #{baseline_adapter_transformer.1} parent=43 // pred_check
        %p275 = pneg %p35
      $region46: #{baseline_adapter_transformer.1} parent=43 // pred_check_branch
        %277 = sbr.rel (%p275) target = $region48
      $region47: #{baseline_adapter_transformer.1} parent=43 // pred_region
        %s278 = smul.u32 4, %s15
        %p279 = scmp.lt.s32.totalorder %s278, 7
        %s280 = scalar_select %p279, %s278, 7
        %s281 = smul.addr %s280, 4
        %s282 = scalar_lea.vmem %s0, %s281
        %s283 = smul.u32 4, %s15
      $region48: #{baseline_adapter_transformer.1} parent=43 // pred_fallthru
        _
      // Predicated region
      $region49: #{baseline_adapter_transformer.1} parent=43 // pred_check
        %p284 = pneg %p61
      $region50: #{baseline_adapter_transformer.1} parent=43 // pred_check_branch
        %286 = sbr.rel (%p284) target = $region52
      $region51: #{baseline_adapter_transformer.1} parent=43 // pred_region
        %s287 = smul.u32 64, %s15
        %p288 = scmp.lt.s32.totalorder %s287, 127
        %s289 = scalar_select %p288, %s287, 127
        %s290 = smul.addr %s289, 20
        %s291 = smul.addr %s290, 4
        %s292 = scalar_lea.vmem %s1, %s291
        %s293 = smul.u32 64, %s15
      $region52: #{baseline_adapter_transformer.1} parent=43 // pred_fallthru
        _
    $region44: #{baseline_adapter_transformer.1} parent=5 // pred_fallthru
      _
    %p294 = scmp.le.s32.totalorder 1, %s15
    %p295 = scmp.lt.s32.totalorder %s15, 3
    %p296 = pnand %p294, %p295
    %p297 = pneg %p296
    // Predicated region
    $region53: #{baseline_adapter_transformer.1} parent=5 // pred_check
      _
    $region54: #{baseline_adapter_transformer.1} parent=5 // pred_check_branch
      %299 = sbr.rel (%p296) target = $region56
    $region55: #{baseline_adapter_transformer.1} parent=5 // pred_region
      %s300 = ssub.s32 %s15, 1
      %s301 = smul.u32 4, %s20
      %p302 = scmp.lt.s32.totalorder %s301, 7
      %s303 = scalar_select %p302, %s301, 7
      %s304 = smul.addr %s303, 4
      %s305 = scalar_lea.vmem %s0, %s304
      %p306 = pneg %p41
      %p307 = pneg %p38
      %s308 = smul.u32 64, %s20
      %p309 = scmp.lt.s32.totalorder %s308, 127
      %s310 = scalar_select %p309, %s308, 127
      %s311 = smul.addr %s310, 20
      %s312 = smul.addr %s311, 4
      %s313 = scalar_lea.vmem %s1, %s312
      %p314 = pneg %p67
      %p315 = pneg %p64
      %p316 = pneg %p88
      %p317 = pneg %p85
      %p318 = pneg %p109
      %p319 = pneg %p106
      %p320 = pneg %p130
      %p321 = pneg %p127
      %p322 = pneg %p151
      %p323 = pneg %p148
      %p324 = pneg %p172
      %p325 = pneg %p169
      %p326 = pneg %p193
      %p327 = pneg %p190
      %p328 = pneg %p214
      %p329 = pneg %p211
      %p330 = pneg %p235
      %p331 = pneg %p232
      %s332 = smul.u32 4, %s20
      %p333 = scmp.lt.s32.totalorder %s332, 7
      %s334 = scalar_select %p333, %s332, 7
      %s335 = smul.addr %s334, 4
      %s336 = scalar_lea.vmem %s0, %s335
      %s337 = smul.u32 4, %s20
      %s338 = smul.u32 64, %s20
      %p339 = scmp.lt.s32.totalorder %s338, 127
      %s340 = scalar_select %p339, %s338, 127
      %s341 = smul.addr %s340, 20
      %s342 = smul.addr %s341, 4
      %s343 = scalar_lea.vmem %s1, %s342
      %s344 = smul.u32 64, %s20
      %p345 = scmp.eq.s32.totalorder %s20, 0
      // Predicated region
      $region57: #{baseline_adapter_transformer.1} parent=55 // pred_check
        %p346 = pneg %p345
      $region58: #{baseline_adapter_transformer.1} parent=55 // pred_check_branch
        %348 = sbr.rel (%p346) target = $region60
      $region59: #{baseline_adapter_transformer.1} parent=55 // pred_region
        %349 = vst [vmem:[#allocation2] sm:$0xff] 0.0
        %350 = vst [vmem:[#allocation2 + $0x8] sm:$0xff] 0.0
        %351 = vst [vmem:[#allocation2 + $0x10] sm:$0xff] 0.0
        %352 = vst [vmem:[#allocation2 + $0x18] sm:$0xff] 0.0
        %353 = vst [vmem:[#allocation2 + $0x20] sm:$0xff] 0.0
        %354 = vst [vmem:[#allocation2 + $0x28] sm:$0xff] 0.0
        %355 = vst [vmem:[#allocation2 + $0x30] sm:$0xff] 0.0
        %356 = vst [vmem:[#allocation2 + $0x38] sm:$0xff] 0.0
        %357 = vst [vmem:[#allocation2 + $0x40] sm:$0xff] 0.0
        %358 = vst [vmem:[#allocation2 + $0x48] sm:$0xff] 0.0
        %359 = vst [vmem:[#allocation2 + $0x50] sm:$0xff] 0.0
        %360 = vst [vmem:[#allocation2 + $0x58] sm:$0xff] 0.0
        %361 = vst [vmem:[#allocation2 + $0x60] sm:$0xff] 0.0
        %362 = vst [vmem:[#allocation2 + $0x68] sm:$0xff] 0.0
        %363 = vst [vmem:[#allocation2 + $0x70] sm:$0xff] 0.0
        %364 = vst [vmem:[#allocation2 + $0x78] sm:$0xff] 0.0
        %365 = vst [vmem:[#allocation2 + $0x80] sm:$0xff] 0.0
        %366 = vst [vmem:[#allocation2 + $0x88] sm:$0xff] 0.0
        %367 = vst [vmem:[#allocation2 + $0x90] sm:$0xff] 0.0
        %368 = vst [vmem:[#allocation2 + $0x98] sm:$0xff] 0.0
      $region60: #{baseline_adapter_transformer.1} parent=55 // pred_fallthru
        _
      %v369 = vld [vmem:[#allocation2] sm:$0xff]
      %v370 = vld [vmem:[#allocation2 + $0x8] sm:$0xff]
      %v371 = vld [vmem:[#allocation2 + $0x10] sm:$0xff]
      %v372 = vld [vmem:[#allocation2 + $0x18] sm:$0xff]
      %v373 = vld [vmem:[#allocation2 + $0x20] sm:$0xff]
      %v374 = vld [vmem:[#allocation2 + $0x28] sm:$0xff]
      %v375 = vld [vmem:[#allocation2 + $0x30] sm:$0xff]
      %v376 = vld [vmem:[#allocation2 + $0x38] sm:$0xff]
      %v377 = vld [vmem:[#allocation2 + $0x40] sm:$0xff]
      %v378 = vld [vmem:[#allocation2 + $0x48] sm:$0xff]
      %v379 = vld [vmem:[#allocation2 + $0x50] sm:$0xff]
      %v380 = vld [vmem:[#allocation2 + $0x58] sm:$0xff]
      %v381 = vld [vmem:[#allocation2 + $0x60] sm:$0xff]
      %v382 = vld [vmem:[#allocation2 + $0x68] sm:$0xff]
      %v383 = vld [vmem:[#allocation2 + $0x70] sm:$0xff]
      %v384 = vld [vmem:[#allocation2 + $0x78] sm:$0xff]
      %v385 = vld [vmem:[#allocation2 + $0x80] sm:$0xff]
      %v386 = vld [vmem:[#allocation2 + $0x88] sm:$0xff]
      %v387 = vld [vmem:[#allocation2 + $0x90] sm:$0xff]
      %v388 = vld [vmem:[#allocation2 + $0x98] sm:$0xff]
      %v389 = vld [vmem:[%s336] sm:$0xff]
      %v390 = vld [vmem:[%s336 + $0x8] sm:$0xff]
      %v391 = vld [vmem:[%s343] sm:$0xff]
      %v392 = vld [vmem:[%s343 + $0x8] sm:$0xff]
      %v393 = vld [vmem:[%s343 + $0x10] sm:$0xff]
      %v394 = vld [vmem:[%s343 + $0x18] sm:$0xff]
      %v395 = vld [vmem:[%s343 + $0x20] sm:$0xff]
      %v396 = vld [vmem:[%s343 + $0x28] sm:$0xff]
      %v397 = vld [vmem:[%s343 + $0x30] sm:$0xff]
      %v398 = vld [vmem:[%s343 + $0x38] sm:$0xff]
      %v399 = vld [vmem:[%s343 + $0x40] sm:$0xff]
      %v400 = vld [vmem:[%s343 + $0x48] sm:$0xff]
      %v401 = vld [vmem:[%s343 + $0x50] sm:$0xff]
      %v402 = vld [vmem:[%s343 + $0x58] sm:$0xff]
      %v403 = vld [vmem:[%s343 + $0x60] sm:$0xff]
      %v404 = vld [vmem:[%s343 + $0x68] sm:$0xff]
      %v405 = vld [vmem:[%s343 + $0x70] sm:$0xff]
      %v406 = vld [vmem:[%s343 + $0x78] sm:$0xff]
      %v407 = vld [vmem:[%s343 + $0x80] sm:$0xff]
      %v408 = vld [vmem:[%s343 + $0x88] sm:$0xff]
      %v409 = vld [vmem:[%s343 + $0x90] sm:$0xff]
      %v410 = vld [vmem:[%s343 + $0x98] sm:$0xff]
      %v411 = vld [vmem:[%s343 + $0xa0] sm:$0xff]
      %v412 = vld [vmem:[%s343 + $0xa8] sm:$0xff]
      %v413 = vld [vmem:[%s343 + $0xb0] sm:$0xff]
      %v414 = vld [vmem:[%s343 + $0xb8] sm:$0xff]
      %v415 = vld [vmem:[%s343 + $0xc0] sm:$0xff]
      %v416 = vld [vmem:[%s343 + $0xc8] sm:$0xff]
      %v417 = vld [vmem:[%s343 + $0xd0] sm:$0xff]
      %v418 = vld [vmem:[%s343 + $0xd8] sm:$0xff]
      %v419 = vld [vmem:[%s343 + $0xe0] sm:$0xff]
      %v420 = vld [vmem:[%s343 + $0xe8] sm:$0xff]
      %v421 = vld [vmem:[%s343 + $0xf0] sm:$0xff]
      %v422 = vld [vmem:[%s343 + $0xf8] sm:$0xff]
      %v423 = vld [vmem:[%s343 + $0x100] sm:$0xff]
      %v424 = vld [vmem:[%s343 + $0x108] sm:$0xff]
      %v425 = vld [vmem:[%s343 + $0x110] sm:$0xff]
      %v426 = vld [vmem:[%s343 + $0x118] sm:$0xff]
      %v427 = vld [vmem:[%s343 + $0x120] sm:$0xff]
      %v428 = vld [vmem:[%s343 + $0x128] sm:$0xff]
      %v429 = vld [vmem:[%s343 + $0x130] sm:$0xff]
      %v430 = vld [vmem:[%s343 + $0x138] sm:$0xff]
      %v431 = vld [vmem:[%s343 + $0x140] sm:$0xff]
      %v432 = vld [vmem:[%s343 + $0x148] sm:$0xff]
      %v433 = vld [vmem:[%s343 + $0x150] sm:$0xff]
      %v434 = vld [vmem:[%s343 + $0x158] sm:$0xff]
      %v435 = vld [vmem:[%s343 + $0x160] sm:$0xff]
      %v436 = vld [vmem:[%s343 + $0x168] sm:$0xff]
      %v437 = vld [vmem:[%s343 + $0x170] sm:$0xff]
      %v438 = vld [vmem:[%s343 + $0x178] sm:$0xff]
      %v439 = vld [vmem:[%s343 + $0x180] sm:$0xff]
      %v440 = vld [vmem:[%s343 + $0x188] sm:$0xff]
      %v441 = vld [vmem:[%s343 + $0x190] sm:$0xff]
      %v442 = vld [vmem:[%s343 + $0x198] sm:$0xff]
      %v443 = vld [vmem:[%s343 + $0x1a0] sm:$0xff]
      %v444 = vld [vmem:[%s343 + $0x1a8] sm:$0xff]
      %v445 = vld [vmem:[%s343 + $0x1b0] sm:$0xff]
      %v446 = vld [vmem:[%s343 + $0x1b8] sm:$0xff]
      %v447 = vld [vmem:[%s343 + $0x1c0] sm:$0xff]
      %v448 = vld [vmem:[%s343 + $0x1c8] sm:$0xff]
      %v449 = vld [vmem:[%s343 + $0x1d0] sm:$0xff]
      %v450 = vld [vmem:[%s343 + $0x1d8] sm:$0xff]
      %v451 = vld [vmem:[%s343 + $0x1e0] sm:$0xff]
      %v452 = vld [vmem:[%s343 + $0x1e8] sm:$0xff]
      %v453 = vld [vmem:[%s343 + $0x1f0] sm:$0xff]
      %v454 = vld [vmem:[%s343 + $0x1f8] sm:$0xff]
      %v455 = vld [vmem:[%s343 + $0x200] sm:$0xff]
      %v456 = vld [vmem:[%s343 + $0x208] sm:$0xff]
      %v457 = vld [vmem:[%s343 + $0x210] sm:$0xff]
      %v458 = vld [vmem:[%s343 + $0x218] sm:$0xff]
      %v459 = vld [vmem:[%s343 + $0x220] sm:$0xff]
      %v460 = vld [vmem:[%s343 + $0x228] sm:$0xff]
      %v461 = vld [vmem:[%s343 + $0x230] sm:$0xff]
      %v462 = vld [vmem:[%s343 + $0x238] sm:$0xff]
      %v463 = vld [vmem:[%s343 + $0x240] sm:$0xff]
      %v464 = vld [vmem:[%s343 + $0x248] sm:$0xff]
      %v465 = vld [vmem:[%s343 + $0x250] sm:$0xff]
      %v466 = vld [vmem:[%s343 + $0x258] sm:$0xff]
      %v467 = vld [vmem:[%s343 + $0x260] sm:$0xff]
      %v468 = vld [vmem:[%s343 + $0x268] sm:$0xff]
      %v469 = vld [vmem:[%s343 + $0x270] sm:$0xff]
      %v470 = vld [vmem:[%s343 + $0x278] sm:$0xff]
      %v471 = vld [vmem:[%s343 + $0x280] sm:$0xff]
      %v472 = vld [vmem:[%s343 + $0x288] sm:$0xff]
      %v473 = vld [vmem:[%s343 + $0x290] sm:$0xff]
      %v474 = vld [vmem:[%s343 + $0x298] sm:$0xff]
      %v475 = vld [vmem:[%s343 + $0x2a0] sm:$0xff]
      %v476 = vld [vmem:[%s343 + $0x2a8] sm:$0xff]
      %v477 = vld [vmem:[%s343 + $0x2b0] sm:$0xff]
      %v478 = vld [vmem:[%s343 + $0x2b8] sm:$0xff]
      %v479 = vld [vmem:[%s343 + $0x2c0] sm:$0xff]
      %v480 = vld [vmem:[%s343 + $0x2c8] sm:$0xff]
      %v481 = vld [vmem:[%s343 + $0x2d0] sm:$0xff]
      %v482 = vld [vmem:[%s343 + $0x2d8] sm:$0xff]
      %v483 = vld [vmem:[%s343 + $0x2e0] sm:$0xff]
      %v484 = vld [vmem:[%s343 + $0x2e8] sm:$0xff]
      %v485 = vld [vmem:[%s343 + $0x2f0] sm:$0xff]
      %v486 = vld [vmem:[%s343 + $0x2f8] sm:$0xff]
      %v487 = vld [vmem:[%s343 + $0x300] sm:$0xff]
      %v488 = vld [vmem:[%s343 + $0x308] sm:$0xff]
      %v489 = vld [vmem:[%s343 + $0x310] sm:$0xff]
      %v490 = vld [vmem:[%s343 + $0x318] sm:$0xff]
      %v491 = vld [vmem:[%s343 + $0x320] sm:$0xff]
      %v492 = vld [vmem:[%s343 + $0x328] sm:$0xff]
      %v493 = vld [vmem:[%s343 + $0x330] sm:$0xff]
      %v494 = vld [vmem:[%s343 + $0x338] sm:$0xff]
      %v495 = vld [vmem:[%s343 + $0x340] sm:$0xff]
      %v496 = vld [vmem:[%s343 + $0x348] sm:$0xff]
      %v497 = vld [vmem:[%s343 + $0x350] sm:$0xff]
      %v498 = vld [vmem:[%s343 + $0x358] sm:$0xff]
      %v499 = vld [vmem:[%s343 + $0x360] sm:$0xff]
      %v500 = vld [vmem:[%s343 + $0x368] sm:$0xff]
      %v501 = vld [vmem:[%s343 + $0x370] sm:$0xff]
      %v502 = vld [vmem:[%s343 + $0x378] sm:$0xff]
      %v503 = vld [vmem:[%s343 + $0x380] sm:$0xff]
      %v504 = vld [vmem:[%s343 + $0x388] sm:$0xff]
      %v505 = vld [vmem:[%s343 + $0x390] sm:$0xff]
      %v506 = vld [vmem:[%s343 + $0x398] sm:$0xff]
      %v507 = vld [vmem:[%s343 + $0x3a0] sm:$0xff]
      %v508 = vld [vmem:[%s343 + $0x3a8] sm:$0xff]
      %v509 = vld [vmem:[%s343 + $0x3b0] sm:$0xff]
      %v510 = vld [vmem:[%s343 + $0x3b8] sm:$0xff]
      %v511 = vld [vmem:[%s343 + $0x3c0] sm:$0xff]
      %v512 = vld [vmem:[%s343 + $0x3c8] sm:$0xff]
      %v513 = vld [vmem:[%s343 + $0x3d0] sm:$0xff]
      %v514 = vld [vmem:[%s343 + $0x3d8] sm:$0xff]
      %v515 = vld [vmem:[%s343 + $0x3e0] sm:$0xff]
      %v516 = vld [vmem:[%s343 + $0x3e8] sm:$0xff]
      %v517 = vld [vmem:[%s343 + $0x3f0] sm:$0xff]
      %v518 = vld [vmem:[%s343 + $0x3f8] sm:$0xff]
      %v519 = vld [vmem:[%s343 + $0x400] sm:$0xff]
      %v520 = vld [vmem:[%s343 + $0x408] sm:$0xff]
      %v521 = vld [vmem:[%s343 + $0x410] sm:$0xff]
      %v522 = vld [vmem:[%s343 + $0x418] sm:$0xff]
      %v523 = vld [vmem:[%s343 + $0x420] sm:$0xff]
      %v524 = vld [vmem:[%s343 + $0x428] sm:$0xff]
      %v525 = vld [vmem:[%s343 + $0x430] sm:$0xff]
      %v526 = vld [vmem:[%s343 + $0x438] sm:$0xff]
      %v527 = vld [vmem:[%s343 + $0x440] sm:$0xff]
      %v528 = vld [vmem:[%s343 + $0x448] sm:$0xff]
      %v529 = vld [vmem:[%s343 + $0x450] sm:$0xff]
      %v530 = vld [vmem:[%s343 + $0x458] sm:$0xff]
      %v531 = vld [vmem:[%s343 + $0x460] sm:$0xff]
      %v532 = vld [vmem:[%s343 + $0x468] sm:$0xff]
      %v533 = vld [vmem:[%s343 + $0x470] sm:$0xff]
      %v534 = vld [vmem:[%s343 + $0x478] sm:$0xff]
      %v535 = vld [vmem:[%s343 + $0x480] sm:$0xff]
      %v536 = vld [vmem:[%s343 + $0x488] sm:$0xff]
      %v537 = vld [vmem:[%s343 + $0x490] sm:$0xff]
      %v538 = vld [vmem:[%s343 + $0x498] sm:$0xff]
      %v539 = vld [vmem:[%s343 + $0x4a0] sm:$0xff]
      %v540 = vld [vmem:[%s343 + $0x4a8] sm:$0xff]
      %v541 = vld [vmem:[%s343 + $0x4b0] sm:$0xff]
      %v542 = vld [vmem:[%s343 + $0x4b8] sm:$0xff]
      %v543 = vld [vmem:[%s343 + $0x4c0] sm:$0xff]
      %v544 = vld [vmem:[%s343 + $0x4c8] sm:$0xff]
      %v545 = vld [vmem:[%s343 + $0x4d0] sm:$0xff]
      %v546 = vld [vmem:[%s343 + $0x4d8] sm:$0xff]
      %v547 = vld [vmem:[%s343 + $0x4e0] sm:$0xff]
      %v548 = vld [vmem:[%s343 + $0x4e8] sm:$0xff]
      %v549 = vld [vmem:[%s343 + $0x4f0] sm:$0xff]
      %v550 = vld [vmem:[%s343 + $0x4f8] sm:$0xff]
      %v551 = vld [vmem:[%s343 + $0x500] sm:$0xff]
      %v552 = vld [vmem:[%s343 + $0x508] sm:$0xff]
      %v553 = vld [vmem:[%s343 + $0x510] sm:$0xff]
      %v554 = vld [vmem:[%s343 + $0x518] sm:$0xff]
      %v555 = vld [vmem:[%s343 + $0x520] sm:$0xff]
      %v556 = vld [vmem:[%s343 + $0x528] sm:$0xff]
      %v557 = vld [vmem:[%s343 + $0x530] sm:$0xff]
      %v558 = vld [vmem:[%s343 + $0x538] sm:$0xff]
      %v559 = vld [vmem:[%s343 + $0x540] sm:$0xff]
      %v560 = vld [vmem:[%s343 + $0x548] sm:$0xff]
      %v561 = vld [vmem:[%s343 + $0x550] sm:$0xff]
      %v562 = vld [vmem:[%s343 + $0x558] sm:$0xff]
      %v563 = vld [vmem:[%s343 + $0x560] sm:$0xff]
      %v564 = vld [vmem:[%s343 + $0x568] sm:$0xff]
      %v565 = vld [vmem:[%s343 + $0x570] sm:$0xff]
      %v566 = vld [vmem:[%s343 + $0x578] sm:$0xff]
      %v567 = vld [vmem:[%s343 + $0x580] sm:$0xff]
      %v568 = vld [vmem:[%s343 + $0x588] sm:$0xff]
      %v569 = vld [vmem:[%s343 + $0x590] sm:$0xff]
      %v570 = vld [vmem:[%s343 + $0x598] sm:$0xff]
      %v571 = vld [vmem:[%s343 + $0x5a0] sm:$0xff]
      %v572 = vld [vmem:[%s343 + $0x5a8] sm:$0xff]
      %v573 = vld [vmem:[%s343 + $0x5b0] sm:$0xff]
      %v574 = vld [vmem:[%s343 + $0x5b8] sm:$0xff]
      %v575 = vld [vmem:[%s343 + $0x5c0] sm:$0xff]
      %v576 = vld [vmem:[%s343 + $0x5c8] sm:$0xff]
      %v577 = vld [vmem:[%s343 + $0x5d0] sm:$0xff]
      %v578 = vld [vmem:[%s343 + $0x5d8] sm:$0xff]
      %v579 = vld [vmem:[%s343 + $0x5e0] sm:$0xff]
      %v580 = vld [vmem:[%s343 + $0x5e8] sm:$0xff]
      %v581 = vld [vmem:[%s343 + $0x5f0] sm:$0xff]
      %v582 = vld [vmem:[%s343 + $0x5f8] sm:$0xff]
      %v583 = vld [vmem:[%s343 + $0x600] sm:$0xff]
      %v584 = vld [vmem:[%s343 + $0x608] sm:$0xff]
      %v585 = vld [vmem:[%s343 + $0x610] sm:$0xff]
      %v586 = vld [vmem:[%s343 + $0x618] sm:$0xff]
      %v587 = vld [vmem:[%s343 + $0x620] sm:$0xff]
      %v588 = vld [vmem:[%s343 + $0x628] sm:$0xff]
      %v589 = vld [vmem:[%s343 + $0x630] sm:$0xff]
      %v590 = vld [vmem:[%s343 + $0x638] sm:$0xff]
      %v591 = vld [vmem:[%s343 + $0x640] sm:$0xff]
      %v592 = vld [vmem:[%s343 + $0x648] sm:$0xff]
      %v593 = vld [vmem:[%s343 + $0x650] sm:$0xff]
      %v594 = vld [vmem:[%s343 + $0x658] sm:$0xff]
      %v595 = vld [vmem:[%s343 + $0x660] sm:$0xff]
      %v596 = vld [vmem:[%s343 + $0x668] sm:$0xff]
      %v597 = vld [vmem:[%s343 + $0x670] sm:$0xff]
      %v598 = vld [vmem:[%s343 + $0x678] sm:$0xff]
      %v599 = vld [vmem:[%s343 + $0x680] sm:$0xff]
      %v600 = vld [vmem:[%s343 + $0x688] sm:$0xff]
      %v601 = vld [vmem:[%s343 + $0x690] sm:$0xff]
      %v602 = vld [vmem:[%s343 + $0x698] sm:$0xff]
      %v603 = vld [vmem:[%s343 + $0x6a0] sm:$0xff]
      %v604 = vld [vmem:[%s343 + $0x6a8] sm:$0xff]
      %v605 = vld [vmem:[%s343 + $0x6b0] sm:$0xff]
      %v606 = vld [vmem:[%s343 + $0x6b8] sm:$0xff]
      %v607 = vld [vmem:[%s343 + $0x6c0] sm:$0xff]
      %v608 = vld [vmem:[%s343 + $0x6c8] sm:$0xff]
      %v609 = vld [vmem:[%s343 + $0x6d0] sm:$0xff]
      %v610 = vld [vmem:[%s343 + $0x6d8] sm:$0xff]
      %v611 = vld [vmem:[%s343 + $0x6e0] sm:$0xff]
      %v612 = vld [vmem:[%s343 + $0x6e8] sm:$0xff]
      %v613 = vld [vmem:[%s343 + $0x6f0] sm:$0xff]
      %v614 = vld [vmem:[%s343 + $0x6f8] sm:$0xff]
      %v615 = vld [vmem:[%s343 + $0x700] sm:$0xff]
      %v616 = vld [vmem:[%s343 + $0x708] sm:$0xff]
      %v617 = vld [vmem:[%s343 + $0x710] sm:$0xff]
      %v618 = vld [vmem:[%s343 + $0x718] sm:$0xff]
      %v619 = vld [vmem:[%s343 + $0x720] sm:$0xff]
      %v620 = vld [vmem:[%s343 + $0x728] sm:$0xff]
      %v621 = vld [vmem:[%s343 + $0x730] sm:$0xff]
      %v622 = vld [vmem:[%s343 + $0x738] sm:$0xff]
      %v623 = vld [vmem:[%s343 + $0x740] sm:$0xff]
      %v624 = vld [vmem:[%s343 + $0x748] sm:$0xff]
      %v625 = vld [vmem:[%s343 + $0x750] sm:$0xff]
      %v626 = vld [vmem:[%s343 + $0x758] sm:$0xff]
      %v627 = vld [vmem:[%s343 + $0x760] sm:$0xff]
      %v628 = vld [vmem:[%s343 + $0x768] sm:$0xff]
      %v629 = vld [vmem:[%s343 + $0x770] sm:$0xff]
      %v630 = vld [vmem:[%s343 + $0x778] sm:$0xff]
      %v631 = vld [vmem:[%s343 + $0x780] sm:$0xff]
      %v632 = vld [vmem:[%s343 + $0x788] sm:$0xff]
      %v633 = vld [vmem:[%s343 + $0x790] sm:$0xff]
      %v634 = vld [vmem:[%s343 + $0x798] sm:$0xff]
      %v635 = vld [vmem:[%s343 + $0x7a0] sm:$0xff]
      %v636 = vld [vmem:[%s343 + $0x7a8] sm:$0xff]
      %v637 = vld [vmem:[%s343 + $0x7b0] sm:$0xff]
      %v638 = vld [vmem:[%s343 + $0x7b8] sm:$0xff]
      %v639 = vld [vmem:[%s343 + $0x7c0] sm:$0xff]
      %v640 = vld [vmem:[%s343 + $0x7c8] sm:$0xff]
      %v641 = vld [vmem:[%s343 + $0x7d0] sm:$0xff]
      %v642 = vld [vmem:[%s343 + $0x7d8] sm:$0xff]
      %v643 = vld [vmem:[%s343 + $0x7e0] sm:$0xff]
      %v644 = vld [vmem:[%s343 + $0x7e8] sm:$0xff]
      %v645 = vld [vmem:[%s343 + $0x7f0] sm:$0xff]
      %v646 = vld [vmem:[%s343 + $0x7f8] sm:$0xff]
      %v647 = vld [vmem:[%s343 + $0x800] sm:$0xff]
      %v648 = vld [vmem:[%s343 + $0x808] sm:$0xff]
      %v649 = vld [vmem:[%s343 + $0x810] sm:$0xff]
      %v650 = vld [vmem:[%s343 + $0x818] sm:$0xff]
      %v651 = vld [vmem:[%s343 + $0x820] sm:$0xff]
      %v652 = vld [vmem:[%s343 + $0x828] sm:$0xff]
      %v653 = vld [vmem:[%s343 + $0x830] sm:$0xff]
      %v654 = vld [vmem:[%s343 + $0x838] sm:$0xff]
      %v655 = vld [vmem:[%s343 + $0x840] sm:$0xff]
      %v656 = vld [vmem:[%s343 + $0x848] sm:$0xff]
      %v657 = vld [vmem:[%s343 + $0x850] sm:$0xff]
      %v658 = vld [vmem:[%s343 + $0x858] sm:$0xff]
      %v659 = vld [vmem:[%s343 + $0x860] sm:$0xff]
      %v660 = vld [vmem:[%s343 + $0x868] sm:$0xff]
      %v661 = vld [vmem:[%s343 + $0x870] sm:$0xff]
      %v662 = vld [vmem:[%s343 + $0x878] sm:$0xff]
      %v663 = vld [vmem:[%s343 + $0x880] sm:$0xff]
      %v664 = vld [vmem:[%s343 + $0x888] sm:$0xff]
      %v665 = vld [vmem:[%s343 + $0x890] sm:$0xff]
      %v666 = vld [vmem:[%s343 + $0x898] sm:$0xff]
      %v667 = vld [vmem:[%s343 + $0x8a0] sm:$0xff]
      %v668 = vld [vmem:[%s343 + $0x8a8] sm:$0xff]
      %v669 = vld [vmem:[%s343 + $0x8b0] sm:$0xff]
      %v670 = vld [vmem:[%s343 + $0x8b8] sm:$0xff]
      %v671 = vld [vmem:[%s343 + $0x8c0] sm:$0xff]
      %v672 = vld [vmem:[%s343 + $0x8c8] sm:$0xff]
      %v673 = vld [vmem:[%s343 + $0x8d0] sm:$0xff]
      %v674 = vld [vmem:[%s343 + $0x8d8] sm:$0xff]
      %v675 = vld [vmem:[%s343 + $0x8e0] sm:$0xff]
      %v676 = vld [vmem:[%s343 + $0x8e8] sm:$0xff]
      %v677 = vld [vmem:[%s343 + $0x8f0] sm:$0xff]
      %v678 = vld [vmem:[%s343 + $0x8f8] sm:$0xff]
      %v679 = vld [vmem:[%s343 + $0x900] sm:$0xff]
      %v680 = vld [vmem:[%s343 + $0x908] sm:$0xff]
      %v681 = vld [vmem:[%s343 + $0x910] sm:$0xff]
      %v682 = vld [vmem:[%s343 + $0x918] sm:$0xff]
      %v683 = vld [vmem:[%s343 + $0x920] sm:$0xff]
      %v684 = vld [vmem:[%s343 + $0x928] sm:$0xff]
      %v685 = vld [vmem:[%s343 + $0x930] sm:$0xff]
      %v686 = vld [vmem:[%s343 + $0x938] sm:$0xff]
      %v687 = vld [vmem:[%s343 + $0x940] sm:$0xff]
      %v688 = vld [vmem:[%s343 + $0x948] sm:$0xff]
      %v689 = vld [vmem:[%s343 + $0x950] sm:$0xff]
      %v690 = vld [vmem:[%s343 + $0x958] sm:$0xff]
      %v691 = vld [vmem:[%s343 + $0x960] sm:$0xff]
      %v692 = vld [vmem:[%s343 + $0x968] sm:$0xff]
      %v693 = vld [vmem:[%s343 + $0x970] sm:$0xff]
      %v694 = vld [vmem:[%s343 + $0x978] sm:$0xff]
      %v695 = vld [vmem:[%s343 + $0x980] sm:$0xff]
      %v696 = vld [vmem:[%s343 + $0x988] sm:$0xff]
      %v697 = vld [vmem:[%s343 + $0x990] sm:$0xff]
      %v698 = vld [vmem:[%s343 + $0x998] sm:$0xff]
      %v699 = vld [vmem:[%s343 + $0x9a0] sm:$0xff]
      %v700 = vld [vmem:[%s343 + $0x9a8] sm:$0xff]
      %v701 = vld [vmem:[%s343 + $0x9b0] sm:$0xff]
      %v702 = vld [vmem:[%s343 + $0x9b8] sm:$0xff]
      %v703 = vld [vmem:[%s343 + $0x9c0] sm:$0xff]
      %v704 = vld [vmem:[%s343 + $0x9c8] sm:$0xff]
      %v705 = vld [vmem:[%s343 + $0x9d0] sm:$0xff]
      %v706 = vld [vmem:[%s343 + $0x9d8] sm:$0xff]
      %v707 = vld [vmem:[%s343 + $0x9e0] sm:$0xff]
      %v708 = vld [vmem:[%s343 + $0x9e8] sm:$0xff]
      %v709 = vld [vmem:[%s343 + $0x9f0] sm:$0xff]
      %v710 = vld [vmem:[%s343 + $0x9f8] sm:$0xff]
      %v711 = vld [vmem:[%s343 + $0xa00] sm:$0xff]
      %v712 = vld [vmem:[%s343 + $0xa08] sm:$0xff]
      %v713 = vld [vmem:[%s343 + $0xa10] sm:$0xff]
      %v714 = vld [vmem:[%s343 + $0xa18] sm:$0xff]
      %v715 = vld [vmem:[%s343 + $0xa20] sm:$0xff]
      %v716 = vld [vmem:[%s343 + $0xa28] sm:$0xff]
      %v717 = vld [vmem:[%s343 + $0xa30] sm:$0xff]
      %v718 = vld [vmem:[%s343 + $0xa38] sm:$0xff]
      %v719 = vld [vmem:[%s343 + $0xa40] sm:$0xff]
      %v720 = vld [vmem:[%s343 + $0xa48] sm:$0xff]
      %v721 = vld [vmem:[%s343 + $0xa50] sm:$0xff]
      %v722 = vld [vmem:[%s343 + $0xa58] sm:$0xff]
      %v723 = vld [vmem:[%s343 + $0xa60] sm:$0xff]
      %v724 = vld [vmem:[%s343 + $0xa68] sm:$0xff]
      %v725 = vld [vmem:[%s343 + $0xa70] sm:$0xff]
      %v726 = vld [vmem:[%s343 + $0xa78] sm:$0xff]
      %v727 = vld [vmem:[%s343 + $0xa80] sm:$0xff]
      %v728 = vld [vmem:[%s343 + $0xa88] sm:$0xff]
      %v729 = vld [vmem:[%s343 + $0xa90] sm:$0xff]
      %v730 = vld [vmem:[%s343 + $0xa98] sm:$0xff]
      %v731 = vld [vmem:[%s343 + $0xaa0] sm:$0xff]
      %v732 = vld [vmem:[%s343 + $0xaa8] sm:$0xff]
      %v733 = vld [vmem:[%s343 + $0xab0] sm:$0xff]
      %v734 = vld [vmem:[%s343 + $0xab8] sm:$0xff]
      %v735 = vld [vmem:[%s343 + $0xac0] sm:$0xff]
      %v736 = vld [vmem:[%s343 + $0xac8] sm:$0xff]
      %v737 = vld [vmem:[%s343 + $0xad0] sm:$0xff]
      %v738 = vld [vmem:[%s343 + $0xad8] sm:$0xff]
      %v739 = vld [vmem:[%s343 + $0xae0] sm:$0xff]
      %v740 = vld [vmem:[%s343 + $0xae8] sm:$0xff]
      %v741 = vld [vmem:[%s343 + $0xaf0] sm:$0xff]
      %v742 = vld [vmem:[%s343 + $0xaf8] sm:$0xff]
      %v743 = vld [vmem:[%s343 + $0xb00] sm:$0xff]
      %v744 = vld [vmem:[%s343 + $0xb08] sm:$0xff]
      %v745 = vld [vmem:[%s343 + $0xb10] sm:$0xff]
      %v746 = vld [vmem:[%s343 + $0xb18] sm:$0xff]
      %v747 = vld [vmem:[%s343 + $0xb20] sm:$0xff]
      %v748 = vld [vmem:[%s343 + $0xb28] sm:$0xff]
      %v749 = vld [vmem:[%s343 + $0xb30] sm:$0xff]
      %v750 = vld [vmem:[%s343 + $0xb38] sm:$0xff]
      %v751 = vld [vmem:[%s343 + $0xb40] sm:$0xff]
      %v752 = vld [vmem:[%s343 + $0xb48] sm:$0xff]
      %v753 = vld [vmem:[%s343 + $0xb50] sm:$0xff]
      %v754 = vld [vmem:[%s343 + $0xb58] sm:$0xff]
      %v755 = vld [vmem:[%s343 + $0xb60] sm:$0xff]
      %v756 = vld [vmem:[%s343 + $0xb68] sm:$0xff]
      %v757 = vld [vmem:[%s343 + $0xb70] sm:$0xff]
      %v758 = vld [vmem:[%s343 + $0xb78] sm:$0xff]
      %v759 = vld [vmem:[%s343 + $0xb80] sm:$0xff]
      %v760 = vld [vmem:[%s343 + $0xb88] sm:$0xff]
      %v761 = vld [vmem:[%s343 + $0xb90] sm:$0xff]
      %v762 = vld [vmem:[%s343 + $0xb98] sm:$0xff]
      %v763 = vld [vmem:[%s343 + $0xba0] sm:$0xff]
      %v764 = vld [vmem:[%s343 + $0xba8] sm:$0xff]
      %v765 = vld [vmem:[%s343 + $0xbb0] sm:$0xff]
      %v766 = vld [vmem:[%s343 + $0xbb8] sm:$0xff]
      %v767 = vld [vmem:[%s343 + $0xbc0] sm:$0xff]
      %v768 = vld [vmem:[%s343 + $0xbc8] sm:$0xff]
      %v769 = vld [vmem:[%s343 + $0xbd0] sm:$0xff]
      %v770 = vld [vmem:[%s343 + $0xbd8] sm:$0xff]
      %v771 = vld [vmem:[%s343 + $0xbe0] sm:$0xff]
      %v772 = vld [vmem:[%s343 + $0xbe8] sm:$0xff]
      %v773 = vld [vmem:[%s343 + $0xbf0] sm:$0xff]
      %v774 = vld [vmem:[%s343 + $0xbf8] sm:$0xff]
      %v775 = vld [vmem:[%s343 + $0xc00] sm:$0xff]
      %v776 = vld [vmem:[%s343 + $0xc08] sm:$0xff]
      %v777 = vld [vmem:[%s343 + $0xc10] sm:$0xff]
      %v778 = vld [vmem:[%s343 + $0xc18] sm:$0xff]
      %v779 = vld [vmem:[%s343 + $0xc20] sm:$0xff]
      %v780 = vld [vmem:[%s343 + $0xc28] sm:$0xff]
      %v781 = vld [vmem:[%s343 + $0xc30] sm:$0xff]
      %v782 = vld [vmem:[%s343 + $0xc38] sm:$0xff]
      %v783 = vld [vmem:[%s343 + $0xc40] sm:$0xff]
      %v784 = vld [vmem:[%s343 + $0xc48] sm:$0xff]
      %v785 = vld [vmem:[%s343 + $0xc50] sm:$0xff]
      %v786 = vld [vmem:[%s343 + $0xc58] sm:$0xff]
      %v787 = vld [vmem:[%s343 + $0xc60] sm:$0xff]
      %v788 = vld [vmem:[%s343 + $0xc68] sm:$0xff]
      %v789 = vld [vmem:[%s343 + $0xc70] sm:$0xff]
      %v790 = vld [vmem:[%s343 + $0xc78] sm:$0xff]
      %v791 = vld [vmem:[%s343 + $0xc80] sm:$0xff]
      %v792 = vld [vmem:[%s343 + $0xc88] sm:$0xff]
      %v793 = vld [vmem:[%s343 + $0xc90] sm:$0xff]
      %v794 = vld [vmem:[%s343 + $0xc98] sm:$0xff]
      %v795 = vld [vmem:[%s343 + $0xca0] sm:$0xff]
      %v796 = vld [vmem:[%s343 + $0xca8] sm:$0xff]
      %v797 = vld [vmem:[%s343 + $0xcb0] sm:$0xff]
      %v798 = vld [vmem:[%s343 + $0xcb8] sm:$0xff]
      %v799 = vld [vmem:[%s343 + $0xcc0] sm:$0xff]
      %v800 = vld [vmem:[%s343 + $0xcc8] sm:$0xff]
      %v801 = vld [vmem:[%s343 + $0xcd0] sm:$0xff]
      %v802 = vld [vmem:[%s343 + $0xcd8] sm:$0xff]
      %v803 = vld [vmem:[%s343 + $0xce0] sm:$0xff]
      %v804 = vld [vmem:[%s343 + $0xce8] sm:$0xff]
      %v805 = vld [vmem:[%s343 + $0xcf0] sm:$0xff]
      %v806 = vld [vmem:[%s343 + $0xcf8] sm:$0xff]
      %v807 = vld [vmem:[%s343 + $0xd00] sm:$0xff]
      %v808 = vld [vmem:[%s343 + $0xd08] sm:$0xff]
      %v809 = vld [vmem:[%s343 + $0xd10] sm:$0xff]
      %v810 = vld [vmem:[%s343 + $0xd18] sm:$0xff]
      %v811 = vld [vmem:[%s343 + $0xd20] sm:$0xff]
      %v812 = vld [vmem:[%s343 + $0xd28] sm:$0xff]
      %v813 = vld [vmem:[%s343 + $0xd30] sm:$0xff]
      %v814 = vld [vmem:[%s343 + $0xd38] sm:$0xff]
      %v815 = vld [vmem:[%s343 + $0xd40] sm:$0xff]
      %v816 = vld [vmem:[%s343 + $0xd48] sm:$0xff]
      %v817 = vld [vmem:[%s343 + $0xd50] sm:$0xff]
      %v818 = vld [vmem:[%s343 + $0xd58] sm:$0xff]
      %v819 = vld [vmem:[%s343 + $0xd60] sm:$0xff]
      %v820 = vld [vmem:[%s343 + $0xd68] sm:$0xff]
      %v821 = vld [vmem:[%s343 + $0xd70] sm:$0xff]
      %v822 = vld [vmem:[%s343 + $0xd78] sm:$0xff]
      %v823 = vld [vmem:[%s343 + $0xd80] sm:$0xff]
      %v824 = vld [vmem:[%s343 + $0xd88] sm:$0xff]
      %v825 = vld [vmem:[%s343 + $0xd90] sm:$0xff]
      %v826 = vld [vmem:[%s343 + $0xd98] sm:$0xff]
      %v827 = vld [vmem:[%s343 + $0xda0] sm:$0xff]
      %v828 = vld [vmem:[%s343 + $0xda8] sm:$0xff]
      %v829 = vld [vmem:[%s343 + $0xdb0] sm:$0xff]
      %v830 = vld [vmem:[%s343 + $0xdb8] sm:$0xff]
      %v831 = vld [vmem:[%s343 + $0xdc0] sm:$0xff]
      %v832 = vld [vmem:[%s343 + $0xdc8] sm:$0xff]
      %v833 = vld [vmem:[%s343 + $0xdd0] sm:$0xff]
      %v834 = vld [vmem:[%s343 + $0xdd8] sm:$0xff]
      %v835 = vld [vmem:[%s343 + $0xde0] sm:$0xff]
      %v836 = vld [vmem:[%s343 + $0xde8] sm:$0xff]
      %v837 = vld [vmem:[%s343 + $0xdf0] sm:$0xff]
      %v838 = vld [vmem:[%s343 + $0xdf8] sm:$0xff]
      %v839 = vld [vmem:[%s343 + $0xe00] sm:$0xff]
      %v840 = vld [vmem:[%s343 + $0xe08] sm:$0xff]
      %v841 = vld [vmem:[%s343 + $0xe10] sm:$0xff]
      %v842 = vld [vmem:[%s343 + $0xe18] sm:$0xff]
      %v843 = vld [vmem:[%s343 + $0xe20] sm:$0xff]
      %v844 = vld [vmem:[%s343 + $0xe28] sm:$0xff]
      %v845 = vld [vmem:[%s343 + $0xe30] sm:$0xff]
      %v846 = vld [vmem:[%s343 + $0xe38] sm:$0xff]
      %v847 = vld [vmem:[%s343 + $0xe40] sm:$0xff]
      %v848 = vld [vmem:[%s343 + $0xe48] sm:$0xff]
      %v849 = vld [vmem:[%s343 + $0xe50] sm:$0xff]
      %v850 = vld [vmem:[%s343 + $0xe58] sm:$0xff]
      %v851 = vld [vmem:[%s343 + $0xe60] sm:$0xff]
      %v852 = vld [vmem:[%s343 + $0xe68] sm:$0xff]
      %v853 = vld [vmem:[%s343 + $0xe70] sm:$0xff]
      %v854 = vld [vmem:[%s343 + $0xe78] sm:$0xff]
      %v855 = vld [vmem:[%s343 + $0xe80] sm:$0xff]
      %v856 = vld [vmem:[%s343 + $0xe88] sm:$0xff]
      %v857 = vld [vmem:[%s343 + $0xe90] sm:$0xff]
      %v858 = vld [vmem:[%s343 + $0xe98] sm:$0xff]
      %v859 = vld [vmem:[%s343 + $0xea0] sm:$0xff]
      %v860 = vld [vmem:[%s343 + $0xea8] sm:$0xff]
      %v861 = vld [vmem:[%s343 + $0xeb0] sm:$0xff]
      %v862 = vld [vmem:[%s343 + $0xeb8] sm:$0xff]
      %v863 = vld [vmem:[%s343 + $0xec0] sm:$0xff]
      %v864 = vld [vmem:[%s343 + $0xec8] sm:$0xff]
      %v865 = vld [vmem:[%s343 + $0xed0] sm:$0xff]
      %v866 = vld [vmem:[%s343 + $0xed8] sm:$0xff]
      %v867 = vld [vmem:[%s343 + $0xee0] sm:$0xff]
      %v868 = vld [vmem:[%s343 + $0xee8] sm:$0xff]
      %v869 = vld [vmem:[%s343 + $0xef0] sm:$0xff]
      %v870 = vld [vmem:[%s343 + $0xef8] sm:$0xff]
      %v871 = vld [vmem:[%s343 + $0xf00] sm:$0xff]
      %v872 = vld [vmem:[%s343 + $0xf08] sm:$0xff]
      %v873 = vld [vmem:[%s343 + $0xf10] sm:$0xff]
      %v874 = vld [vmem:[%s343 + $0xf18] sm:$0xff]
      %v875 = vld [vmem:[%s343 + $0xf20] sm:$0xff]
      %v876 = vld [vmem:[%s343 + $0xf28] sm:$0xff]
      %v877 = vld [vmem:[%s343 + $0xf30] sm:$0xff]
      %v878 = vld [vmem:[%s343 + $0xf38] sm:$0xff]
      %v879 = vld [vmem:[%s343 + $0xf40] sm:$0xff]
      %v880 = vld [vmem:[%s343 + $0xf48] sm:$0xff]
      %v881 = vld [vmem:[%s343 + $0xf50] sm:$0xff]
      %v882 = vld [vmem:[%s343 + $0xf58] sm:$0xff]
      %v883 = vld [vmem:[%s343 + $0xf60] sm:$0xff]
      %v884 = vld [vmem:[%s343 + $0xf68] sm:$0xff]
      %v885 = vld [vmem:[%s343 + $0xf70] sm:$0xff]
      %v886 = vld [vmem:[%s343 + $0xf78] sm:$0xff]
      %v887 = vld [vmem:[%s343 + $0xf80] sm:$0xff]
      %v888 = vld [vmem:[%s343 + $0xf88] sm:$0xff]
      %v889 = vld [vmem:[%s343 + $0xf90] sm:$0xff]
      %v890 = vld [vmem:[%s343 + $0xf98] sm:$0xff]
      %v891 = vld [vmem:[%s343 + $0xfa0] sm:$0xff]
      %v892 = vld [vmem:[%s343 + $0xfa8] sm:$0xff]
      %v893 = vld [vmem:[%s343 + $0xfb0] sm:$0xff]
      %v894 = vld [vmem:[%s343 + $0xfb8] sm:$0xff]
      %v895 = vld [vmem:[%s343 + $0xfc0] sm:$0xff]
      %v896 = vld [vmem:[%s343 + $0xfc8] sm:$0xff]
      %v897 = vld [vmem:[%s343 + $0xfd0] sm:$0xff]
      %v898 = vld [vmem:[%s343 + $0xfd8] sm:$0xff]
      %v899 = vld [vmem:[%s343 + $0xfe0] sm:$0xff]
      %v900 = vld [vmem:[%s343 + $0xfe8] sm:$0xff]
      %v901 = vld [vmem:[%s343 + $0xff0] sm:$0xff]
      %v902 = vld [vmem:[%s343 + $0xff8] sm:$0xff]
      %v903 = vld [vmem:[%s343 + $0x1000] sm:$0xff]
      %v904 = vld [vmem:[%s343 + $0x1008] sm:$0xff]
      %v905 = vld [vmem:[%s343 + $0x1010] sm:$0xff]
      %v906 = vld [vmem:[%s343 + $0x1018] sm:$0xff]
      %v907 = vld [vmem:[%s343 + $0x1020] sm:$0xff]
      %v908 = vld [vmem:[%s343 + $0x1028] sm:$0xff]
      %v909 = vld [vmem:[%s343 + $0x1030] sm:$0xff]
      %v910 = vld [vmem:[%s343 + $0x1038] sm:$0xff]
      %v911 = vld [vmem:[%s343 + $0x1040] sm:$0xff]
      %v912 = vld [vmem:[%s343 + $0x1048] sm:$0xff]
      %v913 = vld [vmem:[%s343 + $0x1050] sm:$0xff]
      %v914 = vld [vmem:[%s343 + $0x1058] sm:$0xff]
      %v915 = vld [vmem:[%s343 + $0x1060] sm:$0xff]
      %v916 = vld [vmem:[%s343 + $0x1068] sm:$0xff]
      %v917 = vld [vmem:[%s343 + $0x1070] sm:$0xff]
      %v918 = vld [vmem:[%s343 + $0x1078] sm:$0xff]
      %v919 = vld [vmem:[%s343 + $0x1080] sm:$0xff]
      %v920 = vld [vmem:[%s343 + $0x1088] sm:$0xff]
      %v921 = vld [vmem:[%s343 + $0x1090] sm:$0xff]
      %v922 = vld [vmem:[%s343 + $0x1098] sm:$0xff]
      %v923 = vld [vmem:[%s343 + $0x10a0] sm:$0xff]
      %v924 = vld [vmem:[%s343 + $0x10a8] sm:$0xff]
      %v925 = vld [vmem:[%s343 + $0x10b0] sm:$0xff]
      %v926 = vld [vmem:[%s343 + $0x10b8] sm:$0xff]
      %v927 = vld [vmem:[%s343 + $0x10c0] sm:$0xff]
      %v928 = vld [vmem:[%s343 + $0x10c8] sm:$0xff]
      %v929 = vld [vmem:[%s343 + $0x10d0] sm:$0xff]
      %v930 = vld [vmem:[%s343 + $0x10d8] sm:$0xff]
      %v931 = vld [vmem:[%s343 + $0x10e0] sm:$0xff]
      %v932 = vld [vmem:[%s343 + $0x10e8] sm:$0xff]
      %v933 = vld [vmem:[%s343 + $0x10f0] sm:$0xff]
      %v934 = vld [vmem:[%s343 + $0x10f8] sm:$0xff]
      %v935 = vld [vmem:[%s343 + $0x1100] sm:$0xff]
      %v936 = vld [vmem:[%s343 + $0x1108] sm:$0xff]
      %v937 = vld [vmem:[%s343 + $0x1110] sm:$0xff]
      %v938 = vld [vmem:[%s343 + $0x1118] sm:$0xff]
      %v939 = vld [vmem:[%s343 + $0x1120] sm:$0xff]
      %v940 = vld [vmem:[%s343 + $0x1128] sm:$0xff]
      %v941 = vld [vmem:[%s343 + $0x1130] sm:$0xff]
      %v942 = vld [vmem:[%s343 + $0x1138] sm:$0xff]
      %v943 = vld [vmem:[%s343 + $0x1140] sm:$0xff]
      %v944 = vld [vmem:[%s343 + $0x1148] sm:$0xff]
      %v945 = vld [vmem:[%s343 + $0x1150] sm:$0xff]
      %v946 = vld [vmem:[%s343 + $0x1158] sm:$0xff]
      %v947 = vld [vmem:[%s343 + $0x1160] sm:$0xff]
      %v948 = vld [vmem:[%s343 + $0x1168] sm:$0xff]
      %v949 = vld [vmem:[%s343 + $0x1170] sm:$0xff]
      %v950 = vld [vmem:[%s343 + $0x1178] sm:$0xff]
      %v951 = vld [vmem:[%s343 + $0x1180] sm:$0xff]
      %v952 = vld [vmem:[%s343 + $0x1188] sm:$0xff]
      %v953 = vld [vmem:[%s343 + $0x1190] sm:$0xff]
      %v954 = vld [vmem:[%s343 + $0x1198] sm:$0xff]
      %v955 = vld [vmem:[%s343 + $0x11a0] sm:$0xff]
      %v956 = vld [vmem:[%s343 + $0x11a8] sm:$0xff]
      %v957 = vld [vmem:[%s343 + $0x11b0] sm:$0xff]
      %v958 = vld [vmem:[%s343 + $0x11b8] sm:$0xff]
      %v959 = vld [vmem:[%s343 + $0x11c0] sm:$0xff]
      %v960 = vld [vmem:[%s343 + $0x11c8] sm:$0xff]
      %v961 = vld [vmem:[%s343 + $0x11d0] sm:$0xff]
      %v962 = vld [vmem:[%s343 + $0x11d8] sm:$0xff]
      %v963 = vld [vmem:[%s343 + $0x11e0] sm:$0xff]
      %v964 = vld [vmem:[%s343 + $0x11e8] sm:$0xff]
      %v965 = vld [vmem:[%s343 + $0x11f0] sm:$0xff]
      %v966 = vld [vmem:[%s343 + $0x11f8] sm:$0xff]
      %v967 = vld [vmem:[%s343 + $0x1200] sm:$0xff]
      %v968 = vld [vmem:[%s343 + $0x1208] sm:$0xff]
      %v969 = vld [vmem:[%s343 + $0x1210] sm:$0xff]
      %v970 = vld [vmem:[%s343 + $0x1218] sm:$0xff]
      %v971 = vld [vmem:[%s343 + $0x1220] sm:$0xff]
      %v972 = vld [vmem:[%s343 + $0x1228] sm:$0xff]
      %v973 = vld [vmem:[%s343 + $0x1230] sm:$0xff]
      %v974 = vld [vmem:[%s343 + $0x1238] sm:$0xff]
      %v975 = vld [vmem:[%s343 + $0x1240] sm:$0xff]
      %v976 = vld [vmem:[%s343 + $0x1248] sm:$0xff]
      %v977 = vld [vmem:[%s343 + $0x1250] sm:$0xff]
      %v978 = vld [vmem:[%s343 + $0x1258] sm:$0xff]
      %v979 = vld [vmem:[%s343 + $0x1260] sm:$0xff]
      %v980 = vld [vmem:[%s343 + $0x1268] sm:$0xff]
      %v981 = vld [vmem:[%s343 + $0x1270] sm:$0xff]
      %v982 = vld [vmem:[%s343 + $0x1278] sm:$0xff]
      %v983 = vld [vmem:[%s343 + $0x1280] sm:$0xff]
      %v984 = vld [vmem:[%s343 + $0x1288] sm:$0xff]
      %v985 = vld [vmem:[%s343 + $0x1290] sm:$0xff]
      %v986 = vld [vmem:[%s343 + $0x1298] sm:$0xff]
      %v987 = vld [vmem:[%s343 + $0x12a0] sm:$0xff]
      %v988 = vld [vmem:[%s343 + $0x12a8] sm:$0xff]
      %v989 = vld [vmem:[%s343 + $0x12b0] sm:$0xff]
      %v990 = vld [vmem:[%s343 + $0x12b8] sm:$0xff]
      %v991 = vld [vmem:[%s343 + $0x12c0] sm:$0xff]
      %v992 = vld [vmem:[%s343 + $0x12c8] sm:$0xff]
      %v993 = vld [vmem:[%s343 + $0x12d0] sm:$0xff]
      %v994 = vld [vmem:[%s343 + $0x12d8] sm:$0xff]
      %v995 = vld [vmem:[%s343 + $0x12e0] sm:$0xff]
      %v996 = vld [vmem:[%s343 + $0x12e8] sm:$0xff]
      %v997 = vld [vmem:[%s343 + $0x12f0] sm:$0xff]
      %v998 = vld [vmem:[%s343 + $0x12f8] sm:$0xff]
      %v999 = vld [vmem:[%s343 + $0x1300] sm:$0xff]
      %v1000 = vld [vmem:[%s343 + $0x1308] sm:$0xff]
      %v1001 = vld [vmem:[%s343 + $0x1310] sm:$0xff]
      %v1002 = vld [vmem:[%s343 + $0x1318] sm:$0xff]
      %v1003 = vld [vmem:[%s343 + $0x1320] sm:$0xff]
      %v1004 = vld [vmem:[%s343 + $0x1328] sm:$0xff]
      %v1005 = vld [vmem:[%s343 + $0x1330] sm:$0xff]
      %v1006 = vld [vmem:[%s343 + $0x1338] sm:$0xff]
      %v1007 = vld [vmem:[%s343 + $0x1340] sm:$0xff]
      %v1008 = vld [vmem:[%s343 + $0x1348] sm:$0xff]
      %v1009 = vld [vmem:[%s343 + $0x1350] sm:$0xff]
      %v1010 = vld [vmem:[%s343 + $0x1358] sm:$0xff]
      %v1011 = vld [vmem:[%s343 + $0x1360] sm:$0xff]
      %v1012 = vld [vmem:[%s343 + $0x1368] sm:$0xff]
      %v1013 = vld [vmem:[%s343 + $0x1370] sm:$0xff]
      %v1014 = vld [vmem:[%s343 + $0x1378] sm:$0xff]
      %v1015 = vld [vmem:[%s343 + $0x1380] sm:$0xff]
      %v1016 = vld [vmem:[%s343 + $0x1388] sm:$0xff]
      %v1017 = vld [vmem:[%s343 + $0x1390] sm:$0xff]
      %v1018 = vld [vmem:[%s343 + $0x1398] sm:$0xff]
      %v1019 = vld [vmem:[%s343 + $0x13a0] sm:$0xff]
      %v1020 = vld [vmem:[%s343 + $0x13a8] sm:$0xff]
      %v1021 = vld [vmem:[%s343 + $0x13b0] sm:$0xff]
      %v1022 = vld [vmem:[%s343 + $0x13b8] sm:$0xff]
      %v1023 = vld [vmem:[%s343 + $0x13c0] sm:$0xff]
      %v1024 = vld [vmem:[%s343 + $0x13c8] sm:$0xff]
      %v1025 = vld [vmem:[%s343 + $0x13d0] sm:$0xff]
      %v1026 = vld [vmem:[%s343 + $0x13d8] sm:$0xff]
      %v1027 = vld [vmem:[%s343 + $0x13e0] sm:$0xff]
      %v1028 = vld [vmem:[%s343 + $0x13e8] sm:$0xff]
      %v1029 = vld [vmem:[%s343 + $0x13f0] sm:$0xff]
      %v1030 = vld [vmem:[%s343 + $0x13f8] sm:$0xff]
      %v1033 = vunpack.c.l.b16 %v389
      %v1034 = vunpack.c.h.b16 %v389
      %v1035 = vunpack.c.l.b16 %v390
      %v1036 = vunpack.c.h.b16 %v390
      %v1037 = vpack.c.b16 %v1033, %v1033
      %v1038 = vpack.c.b16 %v1034, %v1034
      %v1039 = vpack.c.b16 %v1035, %v1035
      %v1040 = vpack.c.b16 %v1036, %v1036
      %v1685 = vunpack.c.l.b16 %v391
      %v1686 = vunpack.c.h.b16 %v391
      %v1687 = vunpack.c.l.b16 %v392
      %v1688 = vunpack.c.h.b16 %v392
      %v1689 = vunpack.c.l.b16 %v393
      %v1690 = vunpack.c.h.b16 %v393
      %v1691 = vunpack.c.l.b16 %v394
      %v1692 = vunpack.c.h.b16 %v394
      %v1693 = vunpack.c.l.b16 %v395
      %v1694 = vunpack.c.h.b16 %v395
      %v1695 = vunpack.c.l.b16 %v396
      %v1696 = vunpack.c.h.b16 %v396
      %v1697 = vunpack.c.l.b16 %v397
      %v1698 = vunpack.c.h.b16 %v397
      %v1699 = vunpack.c.l.b16 %v398
      %v1700 = vunpack.c.h.b16 %v398
      %v1701 = vunpack.c.l.b16 %v399
      %v1702 = vunpack.c.h.b16 %v399
      %v1703 = vunpack.c.l.b16 %v400
      %v1704 = vunpack.c.h.b16 %v400
      %v1705 = vunpack.c.l.b16 %v401
      %v1706 = vunpack.c.h.b16 %v401
      %v1707 = vunpack.c.l.b16 %v402
      %v1708 = vunpack.c.h.b16 %v402
      %v1709 = vunpack.c.l.b16 %v403
      %v1710 = vunpack.c.h.b16 %v403
      %v1711 = vunpack.c.l.b16 %v404
      %v1712 = vunpack.c.h.b16 %v404
      %v1713 = vunpack.c.l.b16 %v405
      %v1714 = vunpack.c.h.b16 %v405
      %v1715 = vunpack.c.l.b16 %v406
      %v1716 = vunpack.c.h.b16 %v406
      %v1717 = vunpack.c.l.b16 %v407
      %v1718 = vunpack.c.h.b16 %v407
      %v1719 = vunpack.c.l.b16 %v408
      %v1720 = vunpack.c.h.b16 %v408
      %v1721 = vunpack.c.l.b16 %v409
      %v1722 = vunpack.c.h.b16 %v409
      %v1723 = vunpack.c.l.b16 %v410
      %v1724 = vunpack.c.h.b16 %v410
      %v1725 = vunpack.c.l.b16 %v411
      %v1726 = vunpack.c.h.b16 %v411
      %v1727 = vunpack.c.l.b16 %v412
      %v1728 = vunpack.c.h.b16 %v412
      %v1729 = vunpack.c.l.b16 %v413
      %v1730 = vunpack.c.h.b16 %v413
      %v1731 = vunpack.c.l.b16 %v414
      %v1732 = vunpack.c.h.b16 %v414
      %v1733 = vunpack.c.l.b16 %v415
      %v1734 = vunpack.c.h.b16 %v415
      %v1735 = vunpack.c.l.b16 %v416
      %v1736 = vunpack.c.h.b16 %v416
      %v1737 = vunpack.c.l.b16 %v417
      %v1738 = vunpack.c.h.b16 %v417
      %v1739 = vunpack.c.l.b16 %v418
      %v1740 = vunpack.c.h.b16 %v418
      %v1741 = vunpack.c.l.b16 %v419
      %v1742 = vunpack.c.h.b16 %v419
      %v1743 = vunpack.c.l.b16 %v420
      %v1744 = vunpack.c.h.b16 %v420
      %v1745 = vunpack.c.l.b16 %v421
      %v1746 = vunpack.c.h.b16 %v421
      %v1747 = vunpack.c.l.b16 %v422
      %v1748 = vunpack.c.h.b16 %v422
      %v1749 = vunpack.c.l.b16 %v423
      %v1750 = vunpack.c.h.b16 %v423
      %v1751 = vunpack.c.l.b16 %v424
      %v1752 = vunpack.c.h.b16 %v424
      %v1753 = vunpack.c.l.b16 %v425
      %v1754 = vunpack.c.h.b16 %v425
      %v1755 = vunpack.c.l.b16 %v426
      %v1756 = vunpack.c.h.b16 %v426
      %v1757 = vunpack.c.l.b16 %v427
      %v1758 = vunpack.c.h.b16 %v427
      %v1759 = vunpack.c.l.b16 %v428
      %v1760 = vunpack.c.h.b16 %v428
      %v1761 = vunpack.c.l.b16 %v429
      %v1762 = vunpack.c.h.b16 %v429
      %v1763 = vunpack.c.l.b16 %v430
      %v1764 = vunpack.c.h.b16 %v430
      %v1765 = vunpack.c.l.b16 %v431
      %v1766 = vunpack.c.h.b16 %v431
      %v1767 = vunpack.c.l.b16 %v432
      %v1768 = vunpack.c.h.b16 %v432
      %v1769 = vunpack.c.l.b16 %v433
      %v1770 = vunpack.c.h.b16 %v433
      %v1771 = vunpack.c.l.b16 %v434
      %v1772 = vunpack.c.h.b16 %v434
      %v1773 = vunpack.c.l.b16 %v435
      %v1774 = vunpack.c.h.b16 %v435
      %v1775 = vunpack.c.l.b16 %v436
      %v1776 = vunpack.c.h.b16 %v436
      %v1777 = vunpack.c.l.b16 %v437
      %v1778 = vunpack.c.h.b16 %v437
      %v1779 = vunpack.c.l.b16 %v438
      %v1780 = vunpack.c.h.b16 %v438
      %v1781 = vunpack.c.l.b16 %v439
      %v1782 = vunpack.c.h.b16 %v439
      %v1783 = vunpack.c.l.b16 %v440
      %v1784 = vunpack.c.h.b16 %v440
      %v1785 = vunpack.c.l.b16 %v441
      %v1786 = vunpack.c.h.b16 %v441
      %v1787 = vunpack.c.l.b16 %v442
      %v1788 = vunpack.c.h.b16 %v442
      %v1789 = vunpack.c.l.b16 %v443
      %v1790 = vunpack.c.h.b16 %v443
      %v1791 = vunpack.c.l.b16 %v444
      %v1792 = vunpack.c.h.b16 %v444
      %v1793 = vunpack.c.l.b16 %v445
      %v1794 = vunpack.c.h.b16 %v445
      %v1795 = vunpack.c.l.b16 %v446
      %v1796 = vunpack.c.h.b16 %v446
      %v1797 = vunpack.c.l.b16 %v447
      %v1798 = vunpack.c.h.b16 %v447
      %v1799 = vunpack.c.l.b16 %v448
      %v1800 = vunpack.c.h.b16 %v448
      %v1801 = vunpack.c.l.b16 %v449
      %v1802 = vunpack.c.h.b16 %v449
      %v1803 = vunpack.c.l.b16 %v450
      %v1804 = vunpack.c.h.b16 %v450
      %v1805 = vunpack.c.l.b16 %v451
      %v1806 = vunpack.c.h.b16 %v451
      %v1807 = vunpack.c.l.b16 %v452
      %v1808 = vunpack.c.h.b16 %v452
      %v1809 = vunpack.c.l.b16 %v453
      %v1810 = vunpack.c.h.b16 %v453
      %v1811 = vunpack.c.l.b16 %v454
      %v1812 = vunpack.c.h.b16 %v454
      %v1813 = vunpack.c.l.b16 %v455
      %v1814 = vunpack.c.h.b16 %v455
      %v1815 = vunpack.c.l.b16 %v456
      %v1816 = vunpack.c.h.b16 %v456
      %v1817 = vunpack.c.l.b16 %v457
      %v1818 = vunpack.c.h.b16 %v457
      %v1819 = vunpack.c.l.b16 %v458
      %v1820 = vunpack.c.h.b16 %v458
      %v1821 = vunpack.c.l.b16 %v459
      %v1822 = vunpack.c.h.b16 %v459
      %v1823 = vunpack.c.l.b16 %v460
      %v1824 = vunpack.c.h.b16 %v460
      %v1825 = vunpack.c.l.b16 %v461
      %v1826 = vunpack.c.h.b16 %v461
      %v1827 = vunpack.c.l.b16 %v462
      %v1828 = vunpack.c.h.b16 %v462
      %v1829 = vunpack.c.l.b16 %v463
      %v1830 = vunpack.c.h.b16 %v463
      %v1831 = vunpack.c.l.b16 %v464
      %v1832 = vunpack.c.h.b16 %v464
      %v1833 = vunpack.c.l.b16 %v465
      %v1834 = vunpack.c.h.b16 %v465
      %v1835 = vunpack.c.l.b16 %v466
      %v1836 = vunpack.c.h.b16 %v466
      %v1837 = vunpack.c.l.b16 %v467
      %v1838 = vunpack.c.h.b16 %v467
      %v1839 = vunpack.c.l.b16 %v468
      %v1840 = vunpack.c.h.b16 %v468
      %v1841 = vunpack.c.l.b16 %v469
      %v1842 = vunpack.c.h.b16 %v469
      %v1843 = vunpack.c.l.b16 %v470
      %v1844 = vunpack.c.h.b16 %v470
      %v1845 = vunpack.c.l.b16 %v471
      %v1846 = vunpack.c.h.b16 %v471
      %v1847 = vunpack.c.l.b16 %v472
      %v1848 = vunpack.c.h.b16 %v472
      %v1849 = vunpack.c.l.b16 %v473
      %v1850 = vunpack.c.h.b16 %v473
      %v1851 = vunpack.c.l.b16 %v474
      %v1852 = vunpack.c.h.b16 %v474
      %v1853 = vunpack.c.l.b16 %v475
      %v1854 = vunpack.c.h.b16 %v475
      %v1855 = vunpack.c.l.b16 %v476
      %v1856 = vunpack.c.h.b16 %v476
      %v1857 = vunpack.c.l.b16 %v477
      %v1858 = vunpack.c.h.b16 %v477
      %v1859 = vunpack.c.l.b16 %v478
      %v1860 = vunpack.c.h.b16 %v478
      %v1861 = vunpack.c.l.b16 %v479
      %v1862 = vunpack.c.h.b16 %v479
      %v1863 = vunpack.c.l.b16 %v480
      %v1864 = vunpack.c.h.b16 %v480
      %v1865 = vunpack.c.l.b16 %v481
      %v1866 = vunpack.c.h.b16 %v481
      %v1867 = vunpack.c.l.b16 %v482
      %v1868 = vunpack.c.h.b16 %v482
      %v1869 = vunpack.c.l.b16 %v483
      %v1870 = vunpack.c.h.b16 %v483
      %v1871 = vunpack.c.l.b16 %v484
      %v1872 = vunpack.c.h.b16 %v484
      %v1873 = vunpack.c.l.b16 %v485
      %v1874 = vunpack.c.h.b16 %v485
      %v1875 = vunpack.c.l.b16 %v486
      %v1876 = vunpack.c.h.b16 %v486
      %v1877 = vunpack.c.l.b16 %v487
      %v1878 = vunpack.c.h.b16 %v487
      %v1879 = vunpack.c.l.b16 %v488
      %v1880 = vunpack.c.h.b16 %v488
      %v1881 = vunpack.c.l.b16 %v489
      %v1882 = vunpack.c.h.b16 %v489
      %v1883 = vunpack.c.l.b16 %v490
      %v1884 = vunpack.c.h.b16 %v490
      %v1885 = vunpack.c.l.b16 %v491
      %v1886 = vunpack.c.h.b16 %v491
      %v1887 = vunpack.c.l.b16 %v492
      %v1888 = vunpack.c.h.b16 %v492
      %v1889 = vunpack.c.l.b16 %v493
      %v1890 = vunpack.c.h.b16 %v493
      %v1891 = vunpack.c.l.b16 %v494
      %v1892 = vunpack.c.h.b16 %v494
      %v1893 = vunpack.c.l.b16 %v495
      %v1894 = vunpack.c.h.b16 %v495
      %v1895 = vunpack.c.l.b16 %v496
      %v1896 = vunpack.c.h.b16 %v496
      %v1897 = vunpack.c.l.b16 %v497
      %v1898 = vunpack.c.h.b16 %v497
      %v1899 = vunpack.c.l.b16 %v498
      %v1900 = vunpack.c.h.b16 %v498
      %v1901 = vunpack.c.l.b16 %v499
      %v1902 = vunpack.c.h.b16 %v499
      %v1903 = vunpack.c.l.b16 %v500
      %v1904 = vunpack.c.h.b16 %v500
      %v1905 = vunpack.c.l.b16 %v501
      %v1906 = vunpack.c.h.b16 %v501
      %v1907 = vunpack.c.l.b16 %v502
      %v1908 = vunpack.c.h.b16 %v502
      %v1909 = vunpack.c.l.b16 %v503
      %v1910 = vunpack.c.h.b16 %v503
      %v1911 = vunpack.c.l.b16 %v504
      %v1912 = vunpack.c.h.b16 %v504
      %v1913 = vunpack.c.l.b16 %v505
      %v1914 = vunpack.c.h.b16 %v505
      %v1915 = vunpack.c.l.b16 %v506
      %v1916 = vunpack.c.h.b16 %v506
      %v1917 = vunpack.c.l.b16 %v507
      %v1918 = vunpack.c.h.b16 %v507
      %v1919 = vunpack.c.l.b16 %v508
      %v1920 = vunpack.c.h.b16 %v508
      %v1921 = vunpack.c.l.b16 %v509
      %v1922 = vunpack.c.h.b16 %v509
      %v1923 = vunpack.c.l.b16 %v510
      %v1924 = vunpack.c.h.b16 %v510
      %v1925 = vunpack.c.l.b16 %v511
      %v1926 = vunpack.c.h.b16 %v511
      %v1927 = vunpack.c.l.b16 %v512
      %v1928 = vunpack.c.h.b16 %v512
      %v1929 = vunpack.c.l.b16 %v513
      %v1930 = vunpack.c.h.b16 %v513
      %v1931 = vunpack.c.l.b16 %v514
      %v1932 = vunpack.c.h.b16 %v514
      %v1933 = vunpack.c.l.b16 %v515
      %v1934 = vunpack.c.h.b16 %v515
      %v1935 = vunpack.c.l.b16 %v516
      %v1936 = vunpack.c.h.b16 %v516
      %v1937 = vunpack.c.l.b16 %v517
      %v1938 = vunpack.c.h.b16 %v517
      %v1939 = vunpack.c.l.b16 %v518
      %v1940 = vunpack.c.h.b16 %v518
      %v1941 = vunpack.c.l.b16 %v519
      %v1942 = vunpack.c.h.b16 %v519
      %v1943 = vunpack.c.l.b16 %v520
      %v1944 = vunpack.c.h.b16 %v520
      %v1945 = vunpack.c.l.b16 %v521
      %v1946 = vunpack.c.h.b16 %v521
      %v1947 = vunpack.c.l.b16 %v522
      %v1948 = vunpack.c.h.b16 %v522
      %v1949 = vunpack.c.l.b16 %v523
      %v1950 = vunpack.c.h.b16 %v523
      %v1951 = vunpack.c.l.b16 %v524
      %v1952 = vunpack.c.h.b16 %v524
      %v1953 = vunpack.c.l.b16 %v525
      %v1954 = vunpack.c.h.b16 %v525
      %v1955 = vunpack.c.l.b16 %v526
      %v1956 = vunpack.c.h.b16 %v526
      %v1957 = vunpack.c.l.b16 %v527
      %v1958 = vunpack.c.h.b16 %v527
      %v1959 = vunpack.c.l.b16 %v528
      %v1960 = vunpack.c.h.b16 %v528
      %v1961 = vunpack.c.l.b16 %v529
      %v1962 = vunpack.c.h.b16 %v529
      %v1963 = vunpack.c.l.b16 %v530
      %v1964 = vunpack.c.h.b16 %v530
      %v1965 = vunpack.c.l.b16 %v531
      %v1966 = vunpack.c.h.b16 %v531
      %v1967 = vunpack.c.l.b16 %v532
      %v1968 = vunpack.c.h.b16 %v532
      %v1969 = vunpack.c.l.b16 %v533
      %v1970 = vunpack.c.h.b16 %v533
      %v1971 = vunpack.c.l.b16 %v534
      %v1972 = vunpack.c.h.b16 %v534
      %v1973 = vunpack.c.l.b16 %v535
      %v1974 = vunpack.c.h.b16 %v535
      %v1975 = vunpack.c.l.b16 %v536
      %v1976 = vunpack.c.h.b16 %v536
      %v1977 = vunpack.c.l.b16 %v537
      %v1978 = vunpack.c.h.b16 %v537
      %v1979 = vunpack.c.l.b16 %v538
      %v1980 = vunpack.c.h.b16 %v538
      %v1981 = vunpack.c.l.b16 %v539
      %v1982 = vunpack.c.h.b16 %v539
      %v1983 = vunpack.c.l.b16 %v540
      %v1984 = vunpack.c.h.b16 %v540
      %v1985 = vunpack.c.l.b16 %v541
      %v1986 = vunpack.c.h.b16 %v541
      %v1987 = vunpack.c.l.b16 %v542
      %v1988 = vunpack.c.h.b16 %v542
      %v1989 = vunpack.c.l.b16 %v543
      %v1990 = vunpack.c.h.b16 %v543
      %v1991 = vunpack.c.l.b16 %v544
      %v1992 = vunpack.c.h.b16 %v544
      %v1993 = vunpack.c.l.b16 %v545
      %v1994 = vunpack.c.h.b16 %v545
      %v1995 = vunpack.c.l.b16 %v546
      %v1996 = vunpack.c.h.b16 %v546
      %v1997 = vunpack.c.l.b16 %v547
      %v1998 = vunpack.c.h.b16 %v547
      %v1999 = vunpack.c.l.b16 %v548
      %v2000 = vunpack.c.h.b16 %v548
      %v2001 = vunpack.c.l.b16 %v549
      %v2002 = vunpack.c.h.b16 %v549
      %v2003 = vunpack.c.l.b16 %v550
      %v2004 = vunpack.c.h.b16 %v550
      %v2005 = vunpack.c.l.b16 %v551
      %v2006 = vunpack.c.h.b16 %v551
      %v2007 = vunpack.c.l.b16 %v552
      %v2008 = vunpack.c.h.b16 %v552
      %v2009 = vunpack.c.l.b16 %v553
      %v2010 = vunpack.c.h.b16 %v553
      %v2011 = vunpack.c.l.b16 %v554
      %v2012 = vunpack.c.h.b16 %v554
      %v2013 = vunpack.c.l.b16 %v555
      %v2014 = vunpack.c.h.b16 %v555
      %v2015 = vunpack.c.l.b16 %v556
      %v2016 = vunpack.c.h.b16 %v556
      %v2017 = vunpack.c.l.b16 %v557
      %v2018 = vunpack.c.h.b16 %v557
      %v2019 = vunpack.c.l.b16 %v558
      %v2020 = vunpack.c.h.b16 %v558
      %v2021 = vunpack.c.l.b16 %v559
      %v2022 = vunpack.c.h.b16 %v559
      %v2023 = vunpack.c.l.b16 %v560
      %v2024 = vunpack.c.h.b16 %v560
      %v2025 = vunpack.c.l.b16 %v561
      %v2026 = vunpack.c.h.b16 %v561
      %v2027 = vunpack.c.l.b16 %v562
      %v2028 = vunpack.c.h.b16 %v562
      %v2029 = vunpack.c.l.b16 %v563
      %v2030 = vunpack.c.h.b16 %v563
      %v2031 = vunpack.c.l.b16 %v564
      %v2032 = vunpack.c.h.b16 %v564
      %v2033 = vunpack.c.l.b16 %v565
      %v2034 = vunpack.c.h.b16 %v565
      %v2035 = vunpack.c.l.b16 %v566
      %v2036 = vunpack.c.h.b16 %v566
      %v2037 = vunpack.c.l.b16 %v567
      %v2038 = vunpack.c.h.b16 %v567
      %v2039 = vunpack.c.l.b16 %v568
      %v2040 = vunpack.c.h.b16 %v568
      %v2041 = vunpack.c.l.b16 %v569
      %v2042 = vunpack.c.h.b16 %v569
      %v2043 = vunpack.c.l.b16 %v570
      %v2044 = vunpack.c.h.b16 %v570
      %v2045 = vunpack.c.l.b16 %v571
      %v2046 = vunpack.c.h.b16 %v571
      %v2047 = vunpack.c.l.b16 %v572
      %v2048 = vunpack.c.h.b16 %v572
      %v2049 = vunpack.c.l.b16 %v573
      %v2050 = vunpack.c.h.b16 %v573
      %v2051 = vunpack.c.l.b16 %v574
      %v2052 = vunpack.c.h.b16 %v574
      %v2053 = vunpack.c.l.b16 %v575
      %v2054 = vunpack.c.h.b16 %v575
      %v2055 = vunpack.c.l.b16 %v576
      %v2056 = vunpack.c.h.b16 %v576
      %v2057 = vunpack.c.l.b16 %v577
      %v2058 = vunpack.c.h.b16 %v577
      %v2059 = vunpack.c.l.b16 %v578
      %v2060 = vunpack.c.h.b16 %v578
      %v2061 = vunpack.c.l.b16 %v579
      %v2062 = vunpack.c.h.b16 %v579
      %v2063 = vunpack.c.l.b16 %v580
      %v2064 = vunpack.c.h.b16 %v580
      %v2065 = vunpack.c.l.b16 %v581
      %v2066 = vunpack.c.h.b16 %v581
      %v2067 = vunpack.c.l.b16 %v582
      %v2068 = vunpack.c.h.b16 %v582
      %v2069 = vunpack.c.l.b16 %v583
      %v2070 = vunpack.c.h.b16 %v583
      %v2071 = vunpack.c.l.b16 %v584
      %v2072 = vunpack.c.h.b16 %v584
      %v2073 = vunpack.c.l.b16 %v585
      %v2074 = vunpack.c.h.b16 %v585
      %v2075 = vunpack.c.l.b16 %v586
      %v2076 = vunpack.c.h.b16 %v586
      %v2077 = vunpack.c.l.b16 %v587
      %v2078 = vunpack.c.h.b16 %v587
      %v2079 = vunpack.c.l.b16 %v588
      %v2080 = vunpack.c.h.b16 %v588
      %v2081 = vunpack.c.l.b16 %v589
      %v2082 = vunpack.c.h.b16 %v589
      %v2083 = vunpack.c.l.b16 %v590
      %v2084 = vunpack.c.h.b16 %v590
      %v2085 = vunpack.c.l.b16 %v591
      %v2086 = vunpack.c.h.b16 %v591
      %v2087 = vunpack.c.l.b16 %v592
      %v2088 = vunpack.c.h.b16 %v592
      %v2089 = vunpack.c.l.b16 %v593
      %v2090 = vunpack.c.h.b16 %v593
      %v2091 = vunpack.c.l.b16 %v594
      %v2092 = vunpack.c.h.b16 %v594
      %v2093 = vunpack.c.l.b16 %v595
      %v2094 = vunpack.c.h.b16 %v595
      %v2095 = vunpack.c.l.b16 %v596
      %v2096 = vunpack.c.h.b16 %v596
      %v2097 = vunpack.c.l.b16 %v597
      %v2098 = vunpack.c.h.b16 %v597
      %v2099 = vunpack.c.l.b16 %v598
      %v2100 = vunpack.c.h.b16 %v598
      %v2101 = vunpack.c.l.b16 %v599
      %v2102 = vunpack.c.h.b16 %v599
      %v2103 = vunpack.c.l.b16 %v600
      %v2104 = vunpack.c.h.b16 %v600
      %v2105 = vunpack.c.l.b16 %v601
      %v2106 = vunpack.c.h.b16 %v601
      %v2107 = vunpack.c.l.b16 %v602
      %v2108 = vunpack.c.h.b16 %v602
      %v2109 = vunpack.c.l.b16 %v603
      %v2110 = vunpack.c.h.b16 %v603
      %v2111 = vunpack.c.l.b16 %v604
      %v2112 = vunpack.c.h.b16 %v604
      %v2113 = vunpack.c.l.b16 %v605
      %v2114 = vunpack.c.h.b16 %v605
      %v2115 = vunpack.c.l.b16 %v606
      %v2116 = vunpack.c.h.b16 %v606
      %v2117 = vunpack.c.l.b16 %v607
      %v2118 = vunpack.c.h.b16 %v607
      %v2119 = vunpack.c.l.b16 %v608
      %v2120 = vunpack.c.h.b16 %v608
      %v2121 = vunpack.c.l.b16 %v609
      %v2122 = vunpack.c.h.b16 %v609
      %v2123 = vunpack.c.l.b16 %v610
      %v2124 = vunpack.c.h.b16 %v610
      %v2125 = vunpack.c.l.b16 %v611
      %v2126 = vunpack.c.h.b16 %v611
      %v2127 = vunpack.c.l.b16 %v612
      %v2128 = vunpack.c.h.b16 %v612
      %v2129 = vunpack.c.l.b16 %v613
      %v2130 = vunpack.c.h.b16 %v613
      %v2131 = vunpack.c.l.b16 %v614
      %v2132 = vunpack.c.h.b16 %v614
      %v2133 = vunpack.c.l.b16 %v615
      %v2134 = vunpack.c.h.b16 %v615
      %v2135 = vunpack.c.l.b16 %v616
      %v2136 = vunpack.c.h.b16 %v616
      %v2137 = vunpack.c.l.b16 %v617
      %v2138 = vunpack.c.h.b16 %v617
      %v2139 = vunpack.c.l.b16 %v618
      %v2140 = vunpack.c.h.b16 %v618
      %v2141 = vunpack.c.l.b16 %v619
      %v2142 = vunpack.c.h.b16 %v619
      %v2143 = vunpack.c.l.b16 %v620
      %v2144 = vunpack.c.h.b16 %v620
      %v2145 = vunpack.c.l.b16 %v621
      %v2146 = vunpack.c.h.b16 %v621
      %v2147 = vunpack.c.l.b16 %v622
      %v2148 = vunpack.c.h.b16 %v622
      %v2149 = vunpack.c.l.b16 %v623
      %v2150 = vunpack.c.h.b16 %v623
      %v2151 = vunpack.c.l.b16 %v624
      %v2152 = vunpack.c.h.b16 %v624
      %v2153 = vunpack.c.l.b16 %v625
      %v2154 = vunpack.c.h.b16 %v625
      %v2155 = vunpack.c.l.b16 %v626
      %v2156 = vunpack.c.h.b16 %v626
      %v2157 = vunpack.c.l.b16 %v627
      %v2158 = vunpack.c.h.b16 %v627
      %v2159 = vunpack.c.l.b16 %v628
      %v2160 = vunpack.c.h.b16 %v628
      %v2161 = vunpack.c.l.b16 %v629
      %v2162 = vunpack.c.h.b16 %v629
      %v2163 = vunpack.c.l.b16 %v630
      %v2164 = vunpack.c.h.b16 %v630
      %v2165 = vunpack.c.l.b16 %v631
      %v2166 = vunpack.c.h.b16 %v631
      %v2167 = vunpack.c.l.b16 %v632
      %v2168 = vunpack.c.h.b16 %v632
      %v2169 = vunpack.c.l.b16 %v633
      %v2170 = vunpack.c.h.b16 %v633
      %v2171 = vunpack.c.l.b16 %v634
      %v2172 = vunpack.c.h.b16 %v634
      %v2173 = vunpack.c.l.b16 %v635
      %v2174 = vunpack.c.h.b16 %v635
      %v2175 = vunpack.c.l.b16 %v636
      %v2176 = vunpack.c.h.b16 %v636
      %v2177 = vunpack.c.l.b16 %v637
      %v2178 = vunpack.c.h.b16 %v637
      %v2179 = vunpack.c.l.b16 %v638
      %v2180 = vunpack.c.h.b16 %v638
      %v2181 = vunpack.c.l.b16 %v639
      %v2182 = vunpack.c.h.b16 %v639
      %v2183 = vunpack.c.l.b16 %v640
      %v2184 = vunpack.c.h.b16 %v640
      %v2185 = vunpack.c.l.b16 %v641
      %v2186 = vunpack.c.h.b16 %v641
      %v2187 = vunpack.c.l.b16 %v642
      %v2188 = vunpack.c.h.b16 %v642
      %v2189 = vunpack.c.l.b16 %v643
      %v2190 = vunpack.c.h.b16 %v643
      %v2191 = vunpack.c.l.b16 %v644
      %v2192 = vunpack.c.h.b16 %v644
      %v2193 = vunpack.c.l.b16 %v645
      %v2194 = vunpack.c.h.b16 %v645
      %v2195 = vunpack.c.l.b16 %v646
      %v2196 = vunpack.c.h.b16 %v646
      %v2197 = vunpack.c.l.b16 %v647
      %v2198 = vunpack.c.h.b16 %v647
      %v2199 = vunpack.c.l.b16 %v648
      %v2200 = vunpack.c.h.b16 %v648
      %v2201 = vunpack.c.l.b16 %v649
      %v2202 = vunpack.c.h.b16 %v649
      %v2203 = vunpack.c.l.b16 %v650
      %v2204 = vunpack.c.h.b16 %v650
      %v2205 = vunpack.c.l.b16 %v651
      %v2206 = vunpack.c.h.b16 %v651
      %v2207 = vunpack.c.l.b16 %v652
      %v2208 = vunpack.c.h.b16 %v652
      %v2209 = vunpack.c.l.b16 %v653
      %v2210 = vunpack.c.h.b16 %v653
      %v2211 = vunpack.c.l.b16 %v654
      %v2212 = vunpack.c.h.b16 %v654
      %v2213 = vunpack.c.l.b16 %v655
      %v2214 = vunpack.c.h.b16 %v655
      %v2215 = vunpack.c.l.b16 %v656
      %v2216 = vunpack.c.h.b16 %v656
      %v2217 = vunpack.c.l.b16 %v657
      %v2218 = vunpack.c.h.b16 %v657
      %v2219 = vunpack.c.l.b16 %v658
      %v2220 = vunpack.c.h.b16 %v658
      %v2221 = vunpack.c.l.b16 %v659
      %v2222 = vunpack.c.h.b16 %v659
      %v2223 = vunpack.c.l.b16 %v660
      %v2224 = vunpack.c.h.b16 %v660
      %v2225 = vunpack.c.l.b16 %v661
      %v2226 = vunpack.c.h.b16 %v661
      %v2227 = vunpack.c.l.b16 %v662
      %v2228 = vunpack.c.h.b16 %v662
      %v2229 = vunpack.c.l.b16 %v663
      %v2230 = vunpack.c.h.b16 %v663
      %v2231 = vunpack.c.l.b16 %v664
      %v2232 = vunpack.c.h.b16 %v664
      %v2233 = vunpack.c.l.b16 %v665
      %v2234 = vunpack.c.h.b16 %v665
      %v2235 = vunpack.c.l.b16 %v666
      %v2236 = vunpack.c.h.b16 %v666
      %v2237 = vunpack.c.l.b16 %v667
      %v2238 = vunpack.c.h.b16 %v667
      %v2239 = vunpack.c.l.b16 %v668
      %v2240 = vunpack.c.h.b16 %v668
      %v2241 = vunpack.c.l.b16 %v669
      %v2242 = vunpack.c.h.b16 %v669
      %v2243 = vunpack.c.l.b16 %v670
      %v2244 = vunpack.c.h.b16 %v670
      %v2245 = vunpack.c.l.b16 %v671
      %v2246 = vunpack.c.h.b16 %v671
      %v2247 = vunpack.c.l.b16 %v672
      %v2248 = vunpack.c.h.b16 %v672
      %v2249 = vunpack.c.l.b16 %v673
      %v2250 = vunpack.c.h.b16 %v673
      %v2251 = vunpack.c.l.b16 %v674
      %v2252 = vunpack.c.h.b16 %v674
      %v2253 = vunpack.c.l.b16 %v675
      %v2254 = vunpack.c.h.b16 %v675
      %v2255 = vunpack.c.l.b16 %v676
      %v2256 = vunpack.c.h.b16 %v676
      %v2257 = vunpack.c.l.b16 %v677
      %v2258 = vunpack.c.h.b16 %v677
      %v2259 = vunpack.c.l.b16 %v678
      %v2260 = vunpack.c.h.b16 %v678
      %v2261 = vunpack.c.l.b16 %v679
      %v2262 = vunpack.c.h.b16 %v679
      %v2263 = vunpack.c.l.b16 %v680
      %v2264 = vunpack.c.h.b16 %v680
      %v2265 = vunpack.c.l.b16 %v681
      %v2266 = vunpack.c.h.b16 %v681
      %v2267 = vunpack.c.l.b16 %v682
      %v2268 = vunpack.c.h.b16 %v682
      %v2269 = vunpack.c.l.b16 %v683
      %v2270 = vunpack.c.h.b16 %v683
      %v2271 = vunpack.c.l.b16 %v684
      %v2272 = vunpack.c.h.b16 %v684
      %v2273 = vunpack.c.l.b16 %v685
      %v2274 = vunpack.c.h.b16 %v685
      %v2275 = vunpack.c.l.b16 %v686
      %v2276 = vunpack.c.h.b16 %v686
      %v2277 = vunpack.c.l.b16 %v687
      %v2278 = vunpack.c.h.b16 %v687
      %v2279 = vunpack.c.l.b16 %v688
      %v2280 = vunpack.c.h.b16 %v688
      %v2281 = vunpack.c.l.b16 %v689
      %v2282 = vunpack.c.h.b16 %v689
      %v2283 = vunpack.c.l.b16 %v690
      %v2284 = vunpack.c.h.b16 %v690
      %v2285 = vunpack.c.l.b16 %v691
      %v2286 = vunpack.c.h.b16 %v691
      %v2287 = vunpack.c.l.b16 %v692
      %v2288 = vunpack.c.h.b16 %v692
      %v2289 = vunpack.c.l.b16 %v693
      %v2290 = vunpack.c.h.b16 %v693
      %v2291 = vunpack.c.l.b16 %v694
      %v2292 = vunpack.c.h.b16 %v694
      %v2293 = vunpack.c.l.b16 %v695
      %v2294 = vunpack.c.h.b16 %v695
      %v2295 = vunpack.c.l.b16 %v696
      %v2296 = vunpack.c.h.b16 %v696
      %v2297 = vunpack.c.l.b16 %v697
      %v2298 = vunpack.c.h.b16 %v697
      %v2299 = vunpack.c.l.b16 %v698
      %v2300 = vunpack.c.h.b16 %v698
      %v2301 = vunpack.c.l.b16 %v699
      %v2302 = vunpack.c.h.b16 %v699
      %v2303 = vunpack.c.l.b16 %v700
      %v2304 = vunpack.c.h.b16 %v700
      %v2305 = vunpack.c.l.b16 %v701
      %v2306 = vunpack.c.h.b16 %v701
      %v2307 = vunpack.c.l.b16 %v702
      %v2308 = vunpack.c.h.b16 %v702
      %v2309 = vunpack.c.l.b16 %v703
      %v2310 = vunpack.c.h.b16 %v703
      %v2311 = vunpack.c.l.b16 %v704
      %v2312 = vunpack.c.h.b16 %v704
      %v2313 = vunpack.c.l.b16 %v705
      %v2314 = vunpack.c.h.b16 %v705
      %v2315 = vunpack.c.l.b16 %v706
      %v2316 = vunpack.c.h.b16 %v706
      %v2317 = vunpack.c.l.b16 %v707
      %v2318 = vunpack.c.h.b16 %v707
      %v2319 = vunpack.c.l.b16 %v708
      %v2320 = vunpack.c.h.b16 %v708
      %v2321 = vunpack.c.l.b16 %v709
      %v2322 = vunpack.c.h.b16 %v709
      %v2323 = vunpack.c.l.b16 %v710
      %v2324 = vunpack.c.h.b16 %v710
      %v2325 = vunpack.c.l.b16 %v711
      %v2326 = vunpack.c.h.b16 %v711
      %v2327 = vunpack.c.l.b16 %v712
      %v2328 = vunpack.c.h.b16 %v712
      %v2329 = vunpack.c.l.b16 %v713
      %v2330 = vunpack.c.h.b16 %v713
      %v2331 = vunpack.c.l.b16 %v714
      %v2332 = vunpack.c.h.b16 %v714
      %v2333 = vunpack.c.l.b16 %v715
      %v2334 = vunpack.c.h.b16 %v715
      %v2335 = vunpack.c.l.b16 %v716
      %v2336 = vunpack.c.h.b16 %v716
      %v2337 = vunpack.c.l.b16 %v717
      %v2338 = vunpack.c.h.b16 %v717
      %v2339 = vunpack.c.l.b16 %v718
      %v2340 = vunpack.c.h.b16 %v718
      %v2341 = vunpack.c.l.b16 %v719
      %v2342 = vunpack.c.h.b16 %v719
      %v2343 = vunpack.c.l.b16 %v720
      %v2344 = vunpack.c.h.b16 %v720
      %v2345 = vunpack.c.l.b16 %v721
      %v2346 = vunpack.c.h.b16 %v721
      %v2347 = vunpack.c.l.b16 %v722
      %v2348 = vunpack.c.h.b16 %v722
      %v2349 = vunpack.c.l.b16 %v723
      %v2350 = vunpack.c.h.b16 %v723
      %v2351 = vunpack.c.l.b16 %v724
      %v2352 = vunpack.c.h.b16 %v724
      %v2353 = vunpack.c.l.b16 %v725
      %v2354 = vunpack.c.h.b16 %v725
      %v2355 = vunpack.c.l.b16 %v726
      %v2356 = vunpack.c.h.b16 %v726
      %v2357 = vunpack.c.l.b16 %v727
      %v2358 = vunpack.c.h.b16 %v727
      %v2359 = vunpack.c.l.b16 %v728
      %v2360 = vunpack.c.h.b16 %v728
      %v2361 = vunpack.c.l.b16 %v729
      %v2362 = vunpack.c.h.b16 %v729
      %v2363 = vunpack.c.l.b16 %v730
      %v2364 = vunpack.c.h.b16 %v730
      %v2365 = vunpack.c.l.b16 %v731
      %v2366 = vunpack.c.h.b16 %v731
      %v2367 = vunpack.c.l.b16 %v732
      %v2368 = vunpack.c.h.b16 %v732
      %v2369 = vunpack.c.l.b16 %v733
      %v2370 = vunpack.c.h.b16 %v733
      %v2371 = vunpack.c.l.b16 %v734
      %v2372 = vunpack.c.h.b16 %v734
      %v2373 = vunpack.c.l.b16 %v735
      %v2374 = vunpack.c.h.b16 %v735
      %v2375 = vunpack.c.l.b16 %v736
      %v2376 = vunpack.c.h.b16 %v736
      %v2377 = vunpack.c.l.b16 %v737
      %v2378 = vunpack.c.h.b16 %v737
      %v2379 = vunpack.c.l.b16 %v738
      %v2380 = vunpack.c.h.b16 %v738
      %v2381 = vunpack.c.l.b16 %v739
      %v2382 = vunpack.c.h.b16 %v739
      %v2383 = vunpack.c.l.b16 %v740
      %v2384 = vunpack.c.h.b16 %v740
      %v2385 = vunpack.c.l.b16 %v741
      %v2386 = vunpack.c.h.b16 %v741
      %v2387 = vunpack.c.l.b16 %v742
      %v2388 = vunpack.c.h.b16 %v742
      %v2389 = vunpack.c.l.b16 %v743
      %v2390 = vunpack.c.h.b16 %v743
      %v2391 = vunpack.c.l.b16 %v744
      %v2392 = vunpack.c.h.b16 %v744
      %v2393 = vunpack.c.l.b16 %v745
      %v2394 = vunpack.c.h.b16 %v745
      %v2395 = vunpack.c.l.b16 %v746
      %v2396 = vunpack.c.h.b16 %v746
      %v2397 = vunpack.c.l.b16 %v747
      %v2398 = vunpack.c.h.b16 %v747
      %v2399 = vunpack.c.l.b16 %v748
      %v2400 = vunpack.c.h.b16 %v748
      %v2401 = vunpack.c.l.b16 %v749
      %v2402 = vunpack.c.h.b16 %v749
      %v2403 = vunpack.c.l.b16 %v750
      %v2404 = vunpack.c.h.b16 %v750
      %v2405 = vunpack.c.l.b16 %v751
      %v2406 = vunpack.c.h.b16 %v751
      %v2407 = vunpack.c.l.b16 %v752
      %v2408 = vunpack.c.h.b16 %v752
      %v2409 = vunpack.c.l.b16 %v753
      %v2410 = vunpack.c.h.b16 %v753
      %v2411 = vunpack.c.l.b16 %v754
      %v2412 = vunpack.c.h.b16 %v754
      %v2413 = vunpack.c.l.b16 %v755
      %v2414 = vunpack.c.h.b16 %v755
      %v2415 = vunpack.c.l.b16 %v756
      %v2416 = vunpack.c.h.b16 %v756
      %v2417 = vunpack.c.l.b16 %v757
      %v2418 = vunpack.c.h.b16 %v757
      %v2419 = vunpack.c.l.b16 %v758
      %v2420 = vunpack.c.h.b16 %v758
      %v2421 = vunpack.c.l.b16 %v759
      %v2422 = vunpack.c.h.b16 %v759
      %v2423 = vunpack.c.l.b16 %v760
      %v2424 = vunpack.c.h.b16 %v760
      %v2425 = vunpack.c.l.b16 %v761
      %v2426 = vunpack.c.h.b16 %v761
      %v2427 = vunpack.c.l.b16 %v762
      %v2428 = vunpack.c.h.b16 %v762
      %v2429 = vunpack.c.l.b16 %v763
      %v2430 = vunpack.c.h.b16 %v763
      %v2431 = vunpack.c.l.b16 %v764
      %v2432 = vunpack.c.h.b16 %v764
      %v2433 = vunpack.c.l.b16 %v765
      %v2434 = vunpack.c.h.b16 %v765
      %v2435 = vunpack.c.l.b16 %v766
      %v2436 = vunpack.c.h.b16 %v766
      %v2437 = vunpack.c.l.b16 %v767
      %v2438 = vunpack.c.h.b16 %v767
      %v2439 = vunpack.c.l.b16 %v768
      %v2440 = vunpack.c.h.b16 %v768
      %v2441 = vunpack.c.l.b16 %v769
      %v2442 = vunpack.c.h.b16 %v769
      %v2443 = vunpack.c.l.b16 %v770
      %v2444 = vunpack.c.h.b16 %v770
      %v2445 = vunpack.c.l.b16 %v771
      %v2446 = vunpack.c.h.b16 %v771
      %v2447 = vunpack.c.l.b16 %v772
      %v2448 = vunpack.c.h.b16 %v772
      %v2449 = vunpack.c.l.b16 %v773
      %v2450 = vunpack.c.h.b16 %v773
      %v2451 = vunpack.c.l.b16 %v774
      %v2452 = vunpack.c.h.b16 %v774
      %v2453 = vunpack.c.l.b16 %v775
      %v2454 = vunpack.c.h.b16 %v775
      %v2455 = vunpack.c.l.b16 %v776
      %v2456 = vunpack.c.h.b16 %v776
      %v2457 = vunpack.c.l.b16 %v777
      %v2458 = vunpack.c.h.b16 %v777
      %v2459 = vunpack.c.l.b16 %v778
      %v2460 = vunpack.c.h.b16 %v778
      %v2461 = vunpack.c.l.b16 %v779
      %v2462 = vunpack.c.h.b16 %v779
      %v2463 = vunpack.c.l.b16 %v780
      %v2464 = vunpack.c.h.b16 %v780
      %v2465 = vunpack.c.l.b16 %v781
      %v2466 = vunpack.c.h.b16 %v781
      %v2467 = vunpack.c.l.b16 %v782
      %v2468 = vunpack.c.h.b16 %v782
      %v2469 = vunpack.c.l.b16 %v783
      %v2470 = vunpack.c.h.b16 %v783
      %v2471 = vunpack.c.l.b16 %v784
      %v2472 = vunpack.c.h.b16 %v784
      %v2473 = vunpack.c.l.b16 %v785
      %v2474 = vunpack.c.h.b16 %v785
      %v2475 = vunpack.c.l.b16 %v786
      %v2476 = vunpack.c.h.b16 %v786
      %v2477 = vunpack.c.l.b16 %v787
      %v2478 = vunpack.c.h.b16 %v787
      %v2479 = vunpack.c.l.b16 %v788
      %v2480 = vunpack.c.h.b16 %v788
      %v2481 = vunpack.c.l.b16 %v789
      %v2482 = vunpack.c.h.b16 %v789
      %v2483 = vunpack.c.l.b16 %v790
      %v2484 = vunpack.c.h.b16 %v790
      %v2485 = vunpack.c.l.b16 %v791
      %v2486 = vunpack.c.h.b16 %v791
      %v2487 = vunpack.c.l.b16 %v792
      %v2488 = vunpack.c.h.b16 %v792
      %v2489 = vunpack.c.l.b16 %v793
      %v2490 = vunpack.c.h.b16 %v793
      %v2491 = vunpack.c.l.b16 %v794
      %v2492 = vunpack.c.h.b16 %v794
      %v2493 = vunpack.c.l.b16 %v795
      %v2494 = vunpack.c.h.b16 %v795
      %v2495 = vunpack.c.l.b16 %v796
      %v2496 = vunpack.c.h.b16 %v796
      %v2497 = vunpack.c.l.b16 %v797
      %v2498 = vunpack.c.h.b16 %v797
      %v2499 = vunpack.c.l.b16 %v798
      %v2500 = vunpack.c.h.b16 %v798
      %v2501 = vunpack.c.l.b16 %v799
      %v2502 = vunpack.c.h.b16 %v799
      %v2503 = vunpack.c.l.b16 %v800
      %v2504 = vunpack.c.h.b16 %v800
      %v2505 = vunpack.c.l.b16 %v801
      %v2506 = vunpack.c.h.b16 %v801
      %v2507 = vunpack.c.l.b16 %v802
      %v2508 = vunpack.c.h.b16 %v802
      %v2509 = vunpack.c.l.b16 %v803
      %v2510 = vunpack.c.h.b16 %v803
      %v2511 = vunpack.c.l.b16 %v804
      %v2512 = vunpack.c.h.b16 %v804
      %v2513 = vunpack.c.l.b16 %v805
      %v2514 = vunpack.c.h.b16 %v805
      %v2515 = vunpack.c.l.b16 %v806
      %v2516 = vunpack.c.h.b16 %v806
      %v2517 = vunpack.c.l.b16 %v807
      %v2518 = vunpack.c.h.b16 %v807
      %v2519 = vunpack.c.l.b16 %v808
      %v2520 = vunpack.c.h.b16 %v808
      %v2521 = vunpack.c.l.b16 %v809
      %v2522 = vunpack.c.h.b16 %v809
      %v2523 = vunpack.c.l.b16 %v810
      %v2524 = vunpack.c.h.b16 %v810
      %v2525 = vunpack.c.l.b16 %v811
      %v2526 = vunpack.c.h.b16 %v811
      %v2527 = vunpack.c.l.b16 %v812
      %v2528 = vunpack.c.h.b16 %v812
      %v2529 = vunpack.c.l.b16 %v813
      %v2530 = vunpack.c.h.b16 %v813
      %v2531 = vunpack.c.l.b16 %v814
      %v2532 = vunpack.c.h.b16 %v814
      %v2533 = vunpack.c.l.b16 %v815
      %v2534 = vunpack.c.h.b16 %v815
      %v2535 = vunpack.c.l.b16 %v816
      %v2536 = vunpack.c.h.b16 %v816
      %v2537 = vunpack.c.l.b16 %v817
      %v2538 = vunpack.c.h.b16 %v817
      %v2539 = vunpack.c.l.b16 %v818
      %v2540 = vunpack.c.h.b16 %v818
      %v2541 = vunpack.c.l.b16 %v819
      %v2542 = vunpack.c.h.b16 %v819
      %v2543 = vunpack.c.l.b16 %v820
      %v2544 = vunpack.c.h.b16 %v820
      %v2545 = vunpack.c.l.b16 %v821
      %v2546 = vunpack.c.h.b16 %v821
      %v2547 = vunpack.c.l.b16 %v822
      %v2548 = vunpack.c.h.b16 %v822
      %v2549 = vunpack.c.l.b16 %v823
      %v2550 = vunpack.c.h.b16 %v823
      %v2551 = vunpack.c.l.b16 %v824
      %v2552 = vunpack.c.h.b16 %v824
      %v2553 = vunpack.c.l.b16 %v825
      %v2554 = vunpack.c.h.b16 %v825
      %v2555 = vunpack.c.l.b16 %v826
      %v2556 = vunpack.c.h.b16 %v826
      %v2557 = vunpack.c.l.b16 %v827
      %v2558 = vunpack.c.h.b16 %v827
      %v2559 = vunpack.c.l.b16 %v828
      %v2560 = vunpack.c.h.b16 %v828
      %v2561 = vunpack.c.l.b16 %v829
      %v2562 = vunpack.c.h.b16 %v829
      %v2563 = vunpack.c.l.b16 %v830
      %v2564 = vunpack.c.h.b16 %v830
      %v2565 = vunpack.c.l.b16 %v831
      %v2566 = vunpack.c.h.b16 %v831
      %v2567 = vunpack.c.l.b16 %v832
      %v2568 = vunpack.c.h.b16 %v832
      %v2569 = vunpack.c.l.b16 %v833
      %v2570 = vunpack.c.h.b16 %v833
      %v2571 = vunpack.c.l.b16 %v834
      %v2572 = vunpack.c.h.b16 %v834
      %v2573 = vunpack.c.l.b16 %v835
      %v2574 = vunpack.c.h.b16 %v835
      %v2575 = vunpack.c.l.b16 %v836
      %v2576 = vunpack.c.h.b16 %v836
      %v2577 = vunpack.c.l.b16 %v837
      %v2578 = vunpack.c.h.b16 %v837
      %v2579 = vunpack.c.l.b16 %v838
      %v2580 = vunpack.c.h.b16 %v838
      %v2581 = vunpack.c.l.b16 %v839
      %v2582 = vunpack.c.h.b16 %v839
      %v2583 = vunpack.c.l.b16 %v840
      %v2584 = vunpack.c.h.b16 %v840
      %v2585 = vunpack.c.l.b16 %v841
      %v2586 = vunpack.c.h.b16 %v841
      %v2587 = vunpack.c.l.b16 %v842
      %v2588 = vunpack.c.h.b16 %v842
      %v2589 = vunpack.c.l.b16 %v843
      %v2590 = vunpack.c.h.b16 %v843
      %v2591 = vunpack.c.l.b16 %v844
      %v2592 = vunpack.c.h.b16 %v844
      %v2593 = vunpack.c.l.b16 %v845
      %v2594 = vunpack.c.h.b16 %v845
      %v2595 = vunpack.c.l.b16 %v846
      %v2596 = vunpack.c.h.b16 %v846
      %v2597 = vunpack.c.l.b16 %v847
      %v2598 = vunpack.c.h.b16 %v847
      %v2599 = vunpack.c.l.b16 %v848
      %v2600 = vunpack.c.h.b16 %v848
      %v2601 = vunpack.c.l.b16 %v849
      %v2602 = vunpack.c.h.b16 %v849
      %v2603 = vunpack.c.l.b16 %v850
      %v2604 = vunpack.c.h.b16 %v850
      %v2605 = vunpack.c.l.b16 %v851
      %v2606 = vunpack.c.h.b16 %v851
      %v2607 = vunpack.c.l.b16 %v852
      %v2608 = vunpack.c.h.b16 %v852
      %v2609 = vunpack.c.l.b16 %v853
      %v2610 = vunpack.c.h.b16 %v853
      %v2611 = vunpack.c.l.b16 %v854
      %v2612 = vunpack.c.h.b16 %v854
      %v2613 = vunpack.c.l.b16 %v855
      %v2614 = vunpack.c.h.b16 %v855
      %v2615 = vunpack.c.l.b16 %v856
      %v2616 = vunpack.c.h.b16 %v856
      %v2617 = vunpack.c.l.b16 %v857
      %v2618 = vunpack.c.h.b16 %v857
      %v2619 = vunpack.c.l.b16 %v858
      %v2620 = vunpack.c.h.b16 %v858
      %v2621 = vunpack.c.l.b16 %v859
      %v2622 = vunpack.c.h.b16 %v859
      %v2623 = vunpack.c.l.b16 %v860
      %v2624 = vunpack.c.h.b16 %v860
      %v2625 = vunpack.c.l.b16 %v861
      %v2626 = vunpack.c.h.b16 %v861
      %v2627 = vunpack.c.l.b16 %v862
      %v2628 = vunpack.c.h.b16 %v862
      %v2629 = vunpack.c.l.b16 %v863
      %v2630 = vunpack.c.h.b16 %v863
      %v2631 = vunpack.c.l.b16 %v864
      %v2632 = vunpack.c.h.b16 %v864
      %v2633 = vunpack.c.l.b16 %v865
      %v2634 = vunpack.c.h.b16 %v865
      %v2635 = vunpack.c.l.b16 %v866
      %v2636 = vunpack.c.h.b16 %v866
      %v2637 = vunpack.c.l.b16 %v867
      %v2638 = vunpack.c.h.b16 %v867
      %v2639 = vunpack.c.l.b16 %v868
      %v2640 = vunpack.c.h.b16 %v868
      %v2641 = vunpack.c.l.b16 %v869
      %v2642 = vunpack.c.h.b16 %v869
      %v2643 = vunpack.c.l.b16 %v870
      %v2644 = vunpack.c.h.b16 %v870
      %v2645 = vunpack.c.l.b16 %v871
      %v2646 = vunpack.c.h.b16 %v871
      %v2647 = vunpack.c.l.b16 %v872
      %v2648 = vunpack.c.h.b16 %v872
      %v2649 = vunpack.c.l.b16 %v873
      %v2650 = vunpack.c.h.b16 %v873
      %v2651 = vunpack.c.l.b16 %v874
      %v2652 = vunpack.c.h.b16 %v874
      %v2653 = vunpack.c.l.b16 %v875
      %v2654 = vunpack.c.h.b16 %v875
      %v2655 = vunpack.c.l.b16 %v876
      %v2656 = vunpack.c.h.b16 %v876
      %v2657 = vunpack.c.l.b16 %v877
      %v2658 = vunpack.c.h.b16 %v877
      %v2659 = vunpack.c.l.b16 %v878
      %v2660 = vunpack.c.h.b16 %v878
      %v2661 = vunpack.c.l.b16 %v879
      %v2662 = vunpack.c.h.b16 %v879
      %v2663 = vunpack.c.l.b16 %v880
      %v2664 = vunpack.c.h.b16 %v880
      %v2665 = vunpack.c.l.b16 %v881
      %v2666 = vunpack.c.h.b16 %v881
      %v2667 = vunpack.c.l.b16 %v882
      %v2668 = vunpack.c.h.b16 %v882
      %v2669 = vunpack.c.l.b16 %v883
      %v2670 = vunpack.c.h.b16 %v883
      %v2671 = vunpack.c.l.b16 %v884
      %v2672 = vunpack.c.h.b16 %v884
      %v2673 = vunpack.c.l.b16 %v885
      %v2674 = vunpack.c.h.b16 %v885
      %v2675 = vunpack.c.l.b16 %v886
      %v2676 = vunpack.c.h.b16 %v886
      %v2677 = vunpack.c.l.b16 %v887
      %v2678 = vunpack.c.h.b16 %v887
      %v2679 = vunpack.c.l.b16 %v888
      %v2680 = vunpack.c.h.b16 %v888
      %v2681 = vunpack.c.l.b16 %v889
      %v2682 = vunpack.c.h.b16 %v889
      %v2683 = vunpack.c.l.b16 %v890
      %v2684 = vunpack.c.h.b16 %v890
      %v2685 = vunpack.c.l.b16 %v891
      %v2686 = vunpack.c.h.b16 %v891
      %v2687 = vunpack.c.l.b16 %v892
      %v2688 = vunpack.c.h.b16 %v892
      %v2689 = vunpack.c.l.b16 %v893
      %v2690 = vunpack.c.h.b16 %v893
      %v2691 = vunpack.c.l.b16 %v894
      %v2692 = vunpack.c.h.b16 %v894
      %v2693 = vunpack.c.l.b16 %v895
      %v2694 = vunpack.c.h.b16 %v895
      %v2695 = vunpack.c.l.b16 %v896
      %v2696 = vunpack.c.h.b16 %v896
      %v2697 = vunpack.c.l.b16 %v897
      %v2698 = vunpack.c.h.b16 %v897
      %v2699 = vunpack.c.l.b16 %v898
      %v2700 = vunpack.c.h.b16 %v898
      %v2701 = vunpack.c.l.b16 %v899
      %v2702 = vunpack.c.h.b16 %v899
      %v2703 = vunpack.c.l.b16 %v900
      %v2704 = vunpack.c.h.b16 %v900
      %v2705 = vunpack.c.l.b16 %v901
      %v2706 = vunpack.c.h.b16 %v901
      %v2707 = vunpack.c.l.b16 %v902
      %v2708 = vunpack.c.h.b16 %v902
      %v2709 = vunpack.c.l.b16 %v903
      %v2710 = vunpack.c.h.b16 %v903
      %v2711 = vunpack.c.l.b16 %v904
      %v2712 = vunpack.c.h.b16 %v904
      %v2713 = vunpack.c.l.b16 %v905
      %v2714 = vunpack.c.h.b16 %v905
      %v2715 = vunpack.c.l.b16 %v906
      %v2716 = vunpack.c.h.b16 %v906
      %v2717 = vunpack.c.l.b16 %v907
      %v2718 = vunpack.c.h.b16 %v907
      %v2719 = vunpack.c.l.b16 %v908
      %v2720 = vunpack.c.h.b16 %v908
      %v2721 = vunpack.c.l.b16 %v909
      %v2722 = vunpack.c.h.b16 %v909
      %v2723 = vunpack.c.l.b16 %v910
      %v2724 = vunpack.c.h.b16 %v910
      %v2725 = vunpack.c.l.b16 %v911
      %v2726 = vunpack.c.h.b16 %v911
      %v2727 = vunpack.c.l.b16 %v912
      %v2728 = vunpack.c.h.b16 %v912
      %v2729 = vunpack.c.l.b16 %v913
      %v2730 = vunpack.c.h.b16 %v913
      %v2731 = vunpack.c.l.b16 %v914
      %v2732 = vunpack.c.h.b16 %v914
      %v2733 = vunpack.c.l.b16 %v915
      %v2734 = vunpack.c.h.b16 %v915
      %v2735 = vunpack.c.l.b16 %v916
      %v2736 = vunpack.c.h.b16 %v916
      %v2737 = vunpack.c.l.b16 %v917
      %v2738 = vunpack.c.h.b16 %v917
      %v2739 = vunpack.c.l.b16 %v918
      %v2740 = vunpack.c.h.b16 %v918
      %v2741 = vunpack.c.l.b16 %v919
      %v2742 = vunpack.c.h.b16 %v919
      %v2743 = vunpack.c.l.b16 %v920
      %v2744 = vunpack.c.h.b16 %v920
      %v2745 = vunpack.c.l.b16 %v921
      %v2746 = vunpack.c.h.b16 %v921
      %v2747 = vunpack.c.l.b16 %v922
      %v2748 = vunpack.c.h.b16 %v922
      %v2749 = vunpack.c.l.b16 %v923
      %v2750 = vunpack.c.h.b16 %v923
      %v2751 = vunpack.c.l.b16 %v924
      %v2752 = vunpack.c.h.b16 %v924
      %v2753 = vunpack.c.l.b16 %v925
      %v2754 = vunpack.c.h.b16 %v925
      %v2755 = vunpack.c.l.b16 %v926
      %v2756 = vunpack.c.h.b16 %v926
      %v2757 = vunpack.c.l.b16 %v927
      %v2758 = vunpack.c.h.b16 %v927
      %v2759 = vunpack.c.l.b16 %v928
      %v2760 = vunpack.c.h.b16 %v928
      %v2761 = vunpack.c.l.b16 %v929
      %v2762 = vunpack.c.h.b16 %v929
      %v2763 = vunpack.c.l.b16 %v930
      %v2764 = vunpack.c.h.b16 %v930
      %v2765 = vunpack.c.l.b16 %v931
      %v2766 = vunpack.c.h.b16 %v931
      %v2767 = vunpack.c.l.b16 %v932
      %v2768 = vunpack.c.h.b16 %v932
      %v2769 = vunpack.c.l.b16 %v933
      %v2770 = vunpack.c.h.b16 %v933
      %v2771 = vunpack.c.l.b16 %v934
      %v2772 = vunpack.c.h.b16 %v934
      %v2773 = vunpack.c.l.b16 %v935
      %v2774 = vunpack.c.h.b16 %v935
      %v2775 = vunpack.c.l.b16 %v936
      %v2776 = vunpack.c.h.b16 %v936
      %v2777 = vunpack.c.l.b16 %v937
      %v2778 = vunpack.c.h.b16 %v937
      %v2779 = vunpack.c.l.b16 %v938
      %v2780 = vunpack.c.h.b16 %v938
      %v2781 = vunpack.c.l.b16 %v939
      %v2782 = vunpack.c.h.b16 %v939
      %v2783 = vunpack.c.l.b16 %v940
      %v2784 = vunpack.c.h.b16 %v940
      %v2785 = vunpack.c.l.b16 %v941
      %v2786 = vunpack.c.h.b16 %v941
      %v2787 = vunpack.c.l.b16 %v942
      %v2788 = vunpack.c.h.b16 %v942
      %v2789 = vunpack.c.l.b16 %v943
      %v2790 = vunpack.c.h.b16 %v943
      %v2791 = vunpack.c.l.b16 %v944
      %v2792 = vunpack.c.h.b16 %v944
      %v2793 = vunpack.c.l.b16 %v945
      %v2794 = vunpack.c.h.b16 %v945
      %v2795 = vunpack.c.l.b16 %v946
      %v2796 = vunpack.c.h.b16 %v946
      %v2797 = vunpack.c.l.b16 %v947
      %v2798 = vunpack.c.h.b16 %v947
      %v2799 = vunpack.c.l.b16 %v948
      %v2800 = vunpack.c.h.b16 %v948
      %v2801 = vunpack.c.l.b16 %v949
      %v2802 = vunpack.c.h.b16 %v949
      %v2803 = vunpack.c.l.b16 %v950
      %v2804 = vunpack.c.h.b16 %v950
      %v2805 = vunpack.c.l.b16 %v951
      %v2806 = vunpack.c.h.b16 %v951
      %v2807 = vunpack.c.l.b16 %v952
      %v2808 = vunpack.c.h.b16 %v952
      %v2809 = vunpack.c.l.b16 %v953
      %v2810 = vunpack.c.h.b16 %v953
      %v2811 = vunpack.c.l.b16 %v954
      %v2812 = vunpack.c.h.b16 %v954
      %v2813 = vunpack.c.l.b16 %v955
      %v2814 = vunpack.c.h.b16 %v955
      %v2815 = vunpack.c.l.b16 %v956
      %v2816 = vunpack.c.h.b16 %v956
      %v2817 = vunpack.c.l.b16 %v957
      %v2818 = vunpack.c.h.b16 %v957
      %v2819 = vunpack.c.l.b16 %v958
      %v2820 = vunpack.c.h.b16 %v958
      %v2821 = vunpack.c.l.b16 %v959
      %v2822 = vunpack.c.h.b16 %v959
      %v2823 = vunpack.c.l.b16 %v960
      %v2824 = vunpack.c.h.b16 %v960
      %v2825 = vunpack.c.l.b16 %v961
      %v2826 = vunpack.c.h.b16 %v961
      %v2827 = vunpack.c.l.b16 %v962
      %v2828 = vunpack.c.h.b16 %v962
      %v2829 = vunpack.c.l.b16 %v963
      %v2830 = vunpack.c.h.b16 %v963
      %v2831 = vunpack.c.l.b16 %v964
      %v2832 = vunpack.c.h.b16 %v964
      %v2833 = vunpack.c.l.b16 %v965
      %v2834 = vunpack.c.h.b16 %v965
      %v2835 = vunpack.c.l.b16 %v966
      %v2836 = vunpack.c.h.b16 %v966
      %v2837 = vunpack.c.l.b16 %v967
      %v2838 = vunpack.c.h.b16 %v967
      %v2839 = vunpack.c.l.b16 %v968
      %v2840 = vunpack.c.h.b16 %v968
      %v2841 = vunpack.c.l.b16 %v969
      %v2842 = vunpack.c.h.b16 %v969
      %v2843 = vunpack.c.l.b16 %v970
      %v2844 = vunpack.c.h.b16 %v970
      %v2845 = vunpack.c.l.b16 %v971
      %v2846 = vunpack.c.h.b16 %v971
      %v2847 = vunpack.c.l.b16 %v972
      %v2848 = vunpack.c.h.b16 %v972
      %v2849 = vunpack.c.l.b16 %v973
      %v2850 = vunpack.c.h.b16 %v973
      %v2851 = vunpack.c.l.b16 %v974
      %v2852 = vunpack.c.h.b16 %v974
      %v2853 = vunpack.c.l.b16 %v975
      %v2854 = vunpack.c.h.b16 %v975
      %v2855 = vunpack.c.l.b16 %v976
      %v2856 = vunpack.c.h.b16 %v976
      %v2857 = vunpack.c.l.b16 %v977
      %v2858 = vunpack.c.h.b16 %v977
      %v2859 = vunpack.c.l.b16 %v978
      %v2860 = vunpack.c.h.b16 %v978
      %v2861 = vunpack.c.l.b16 %v979
      %v2862 = vunpack.c.h.b16 %v979
      %v2863 = vunpack.c.l.b16 %v980
      %v2864 = vunpack.c.h.b16 %v980
      %v2865 = vunpack.c.l.b16 %v981
      %v2866 = vunpack.c.h.b16 %v981
      %v2867 = vunpack.c.l.b16 %v982
      %v2868 = vunpack.c.h.b16 %v982
      %v2869 = vunpack.c.l.b16 %v983
      %v2870 = vunpack.c.h.b16 %v983
      %v2871 = vunpack.c.l.b16 %v984
      %v2872 = vunpack.c.h.b16 %v984
      %v2873 = vunpack.c.l.b16 %v985
      %v2874 = vunpack.c.h.b16 %v985
      %v2875 = vunpack.c.l.b16 %v986
      %v2876 = vunpack.c.h.b16 %v986
      %v2877 = vunpack.c.l.b16 %v987
      %v2878 = vunpack.c.h.b16 %v987
      %v2879 = vunpack.c.l.b16 %v988
      %v2880 = vunpack.c.h.b16 %v988
      %v2881 = vunpack.c.l.b16 %v989
      %v2882 = vunpack.c.h.b16 %v989
      %v2883 = vunpack.c.l.b16 %v990
      %v2884 = vunpack.c.h.b16 %v990
      %v2885 = vunpack.c.l.b16 %v991
      %v2886 = vunpack.c.h.b16 %v991
      %v2887 = vunpack.c.l.b16 %v992
      %v2888 = vunpack.c.h.b16 %v992
      %v2889 = vunpack.c.l.b16 %v993
      %v2890 = vunpack.c.h.b16 %v993
      %v2891 = vunpack.c.l.b16 %v994
      %v2892 = vunpack.c.h.b16 %v994
      %v2893 = vunpack.c.l.b16 %v995
      %v2894 = vunpack.c.h.b16 %v995
      %v2895 = vunpack.c.l.b16 %v996
      %v2896 = vunpack.c.h.b16 %v996
      %v2897 = vunpack.c.l.b16 %v997
      %v2898 = vunpack.c.h.b16 %v997
      %v2899 = vunpack.c.l.b16 %v998
      %v2900 = vunpack.c.h.b16 %v998
      %v2901 = vunpack.c.l.b16 %v999
      %v2902 = vunpack.c.h.b16 %v999
      %v2903 = vunpack.c.l.b16 %v1000
      %v2904 = vunpack.c.h.b16 %v1000
      %v2905 = vunpack.c.l.b16 %v1001
      %v2906 = vunpack.c.h.b16 %v1001
      %v2907 = vunpack.c.l.b16 %v1002
      %v2908 = vunpack.c.h.b16 %v1002
      %v2909 = vunpack.c.l.b16 %v1003
      %v2910 = vunpack.c.h.b16 %v1003
      %v2911 = vunpack.c.l.b16 %v1004
      %v2912 = vunpack.c.h.b16 %v1004
      %v2913 = vunpack.c.l.b16 %v1005
      %v2914 = vunpack.c.h.b16 %v1005
      %v2915 = vunpack.c.l.b16 %v1006
      %v2916 = vunpack.c.h.b16 %v1006
      %v2917 = vunpack.c.l.b16 %v1007
      %v2918 = vunpack.c.h.b16 %v1007
      %v2919 = vunpack.c.l.b16 %v1008
      %v2920 = vunpack.c.h.b16 %v1008
      %v2921 = vunpack.c.l.b16 %v1009
      %v2922 = vunpack.c.h.b16 %v1009
      %v2923 = vunpack.c.l.b16 %v1010
      %v2924 = vunpack.c.h.b16 %v1010
      %v2925 = vunpack.c.l.b16 %v1011
      %v2926 = vunpack.c.h.b16 %v1011
      %v2927 = vunpack.c.l.b16 %v1012
      %v2928 = vunpack.c.h.b16 %v1012
      %v2929 = vunpack.c.l.b16 %v1013
      %v2930 = vunpack.c.h.b16 %v1013
      %v2931 = vunpack.c.l.b16 %v1014
      %v2932 = vunpack.c.h.b16 %v1014
      %v2933 = vunpack.c.l.b16 %v1015
      %v2934 = vunpack.c.h.b16 %v1015
      %v2935 = vunpack.c.l.b16 %v1016
      %v2936 = vunpack.c.h.b16 %v1016
      %v2937 = vunpack.c.l.b16 %v1017
      %v2938 = vunpack.c.h.b16 %v1017
      %v2939 = vunpack.c.l.b16 %v1018
      %v2940 = vunpack.c.h.b16 %v1018
      %v2941 = vunpack.c.l.b16 %v1019
      %v2942 = vunpack.c.h.b16 %v1019
      %v2943 = vunpack.c.l.b16 %v1020
      %v2944 = vunpack.c.h.b16 %v1020
      %v2945 = vunpack.c.l.b16 %v1021
      %v2946 = vunpack.c.h.b16 %v1021
      %v2947 = vunpack.c.l.b16 %v1022
      %v2948 = vunpack.c.h.b16 %v1022
      %v2949 = vunpack.c.l.b16 %v1023
      %v2950 = vunpack.c.h.b16 %v1023
      %v2951 = vunpack.c.l.b16 %v1024
      %v2952 = vunpack.c.h.b16 %v1024
      %v2953 = vunpack.c.l.b16 %v1025
      %v2954 = vunpack.c.h.b16 %v1025
      %v2955 = vunpack.c.l.b16 %v1026
      %v2956 = vunpack.c.h.b16 %v1026
      %v2957 = vunpack.c.l.b16 %v1027
      %v2958 = vunpack.c.h.b16 %v1027
      %v2959 = vunpack.c.l.b16 %v1028
      %v2960 = vunpack.c.h.b16 %v1028
      %v2961 = vunpack.c.l.b16 %v1029
      %v2962 = vunpack.c.h.b16 %v1029
      %v2963 = vunpack.c.l.b16 %v1030
      %v2964 = vunpack.c.h.b16 %v1030
      %v2965 = vpack.c.b16 %v1705, %v1685
      %v2966 = vpack.c.b16 %v1706, %v1686
      %v2967 = vpack.c.b16 %v1707, %v1687
      %v2968 = vpack.c.b16 %v1708, %v1688
      %v2969 = vpack.c.b16 %v1709, %v1689
      %v2970 = vpack.c.b16 %v1710, %v1690
      %v2971 = vpack.c.b16 %v1711, %v1691
      %v2972 = vpack.c.b16 %v1712, %v1692
      %v2973 = vpack.c.b16 %v1713, %v1693
      %v2974 = vpack.c.b16 %v1714, %v1694
      %v2975 = vpack.c.b16 %v1715, %v1695
      %v2976 = vpack.c.b16 %v1716, %v1696
      %v2977 = vpack.c.b16 %v1717, %v1697
      %v2978 = vpack.c.b16 %v1718, %v1698
      %v2979 = vpack.c.b16 %v1719, %v1699
      %v2980 = vpack.c.b16 %v1720, %v1700
      %v2981 = vpack.c.b16 %v1721, %v1701
      %v2982 = vpack.c.b16 %v1722, %v1702
      %v2983 = vpack.c.b16 %v1723, %v1703
      %v2984 = vpack.c.b16 %v1724, %v1704
      %v2985 = vpack.c.b16 %v1745, %v1725
      %v2986 = vpack.c.b16 %v1746, %v1726
      %v2987 = vpack.c.b16 %v1747, %v1727
      %v2988 = vpack.c.b16 %v1748, %v1728
      %v2989 = vpack.c.b16 %v1749, %v1729
      %v2990 = vpack.c.b16 %v1750, %v1730
      %v2991 = vpack.c.b16 %v1751, %v1731
      %v2992 = vpack.c.b16 %v1752, %v1732
      %v2993 = vpack.c.b16 %v1753, %v1733
      %v2994 = vpack.c.b16 %v1754, %v1734
      %v2995 = vpack.c.b16 %v1755, %v1735
      %v2996 = vpack.c.b16 %v1756, %v1736
      %v2997 = vpack.c.b16 %v1757, %v1737
      %v2998 = vpack.c.b16 %v1758, %v1738
      %v2999 = vpack.c.b16 %v1759, %v1739
      %v3000 = vpack.c.b16 %v1760, %v1740
      %v3001 = vpack.c.b16 %v1761, %v1741
      %v3002 = vpack.c.b16 %v1762, %v1742
      %v3003 = vpack.c.b16 %v1763, %v1743
      %v3004 = vpack.c.b16 %v1764, %v1744
      %v3005 = vpack.c.b16 %v1785, %v1765
      %v3006 = vpack.c.b16 %v1786, %v1766
      %v3007 = vpack.c.b16 %v1787, %v1767
      %v3008 = vpack.c.b16 %v1788, %v1768
      %v3009 = vpack.c.b16 %v1789, %v1769
      %v3010 = vpack.c.b16 %v1790, %v1770
      %v3011 = vpack.c.b16 %v1791, %v1771
      %v3012 = vpack.c.b16 %v1792, %v1772
      %v3013 = vpack.c.b16 %v1793, %v1773
      %v3014 = vpack.c.b16 %v1794, %v1774
      %v3015 = vpack.c.b16 %v1795, %v1775
      %v3016 = vpack.c.b16 %v1796, %v1776
      %v3017 = vpack.c.b16 %v1797, %v1777
      %v3018 = vpack.c.b16 %v1798, %v1778
      %v3019 = vpack.c.b16 %v1799, %v1779
      %v3020 = vpack.c.b16 %v1800, %v1780
      %v3021 = vpack.c.b16 %v1801, %v1781
      %v3022 = vpack.c.b16 %v1802, %v1782
      %v3023 = vpack.c.b16 %v1803, %v1783
      %v3024 = vpack.c.b16 %v1804, %v1784
      %v3025 = vpack.c.b16 %v1825, %v1805
      %v3026 = vpack.c.b16 %v1826, %v1806
      %v3027 = vpack.c.b16 %v1827, %v1807
      %v3028 = vpack.c.b16 %v1828, %v1808
      %v3029 = vpack.c.b16 %v1829, %v1809
      %v3030 = vpack.c.b16 %v1830, %v1810
      %v3031 = vpack.c.b16 %v1831, %v1811
      %v3032 = vpack.c.b16 %v1832, %v1812
      %v3033 = vpack.c.b16 %v1833, %v1813
      %v3034 = vpack.c.b16 %v1834, %v1814
      %v3035 = vpack.c.b16 %v1835, %v1815
      %v3036 = vpack.c.b16 %v1836, %v1816
      %v3037 = vpack.c.b16 %v1837, %v1817
      %v3038 = vpack.c.b16 %v1838, %v1818
      %v3039 = vpack.c.b16 %v1839, %v1819
      %v3040 = vpack.c.b16 %v1840, %v1820
      %v3041 = vpack.c.b16 %v1841, %v1821
      %v3042 = vpack.c.b16 %v1842, %v1822
      %v3043 = vpack.c.b16 %v1843, %v1823
      %v3044 = vpack.c.b16 %v1844, %v1824
      %v3045 = vpack.c.b16 %v1865, %v1845
      %v3046 = vpack.c.b16 %v1866, %v1846
      %v3047 = vpack.c.b16 %v1867, %v1847
      %v3048 = vpack.c.b16 %v1868, %v1848
      %v3049 = vpack.c.b16 %v1869, %v1849
      %v3050 = vpack.c.b16 %v1870, %v1850
      %v3051 = vpack.c.b16 %v1871, %v1851
      %v3052 = vpack.c.b16 %v1872, %v1852
      %v3053 = vpack.c.b16 %v1873, %v1853
      %v3054 = vpack.c.b16 %v1874, %v1854
      %v3055 = vpack.c.b16 %v1875, %v1855
      %v3056 = vpack.c.b16 %v1876, %v1856
      %v3057 = vpack.c.b16 %v1877, %v1857
      %v3058 = vpack.c.b16 %v1878, %v1858
      %v3059 = vpack.c.b16 %v1879, %v1859
      %v3060 = vpack.c.b16 %v1880, %v1860
      %v3061 = vpack.c.b16 %v1881, %v1861
      %v3062 = vpack.c.b16 %v1882, %v1862
      %v3063 = vpack.c.b16 %v1883, %v1863
      %v3064 = vpack.c.b16 %v1884, %v1864
      %v3065 = vpack.c.b16 %v1905, %v1885
      %v3066 = vpack.c.b16 %v1906, %v1886
      %v3067 = vpack.c.b16 %v1907, %v1887
      %v3068 = vpack.c.b16 %v1908, %v1888
      %v3069 = vpack.c.b16 %v1909, %v1889
      %v3070 = vpack.c.b16 %v1910, %v1890
      %v3071 = vpack.c.b16 %v1911, %v1891
      %v3072 = vpack.c.b16 %v1912, %v1892
      %v3073 = vpack.c.b16 %v1913, %v1893
      %v3074 = vpack.c.b16 %v1914, %v1894
      %v3075 = vpack.c.b16 %v1915, %v1895
      %v3076 = vpack.c.b16 %v1916, %v1896
      %v3077 = vpack.c.b16 %v1917, %v1897
      %v3078 = vpack.c.b16 %v1918, %v1898
      %v3079 = vpack.c.b16 %v1919, %v1899
      %v3080 = vpack.c.b16 %v1920, %v1900
      %v3081 = vpack.c.b16 %v1921, %v1901
      %v3082 = vpack.c.b16 %v1922, %v1902
      %v3083 = vpack.c.b16 %v1923, %v1903
      %v3084 = vpack.c.b16 %v1924, %v1904
      %v3085 = vpack.c.b16 %v1945, %v1925
      %v3086 = vpack.c.b16 %v1946, %v1926
      %v3087 = vpack.c.b16 %v1947, %v1927
      %v3088 = vpack.c.b16 %v1948, %v1928
      %v3089 = vpack.c.b16 %v1949, %v1929
      %v3090 = vpack.c.b16 %v1950, %v1930
      %v3091 = vpack.c.b16 %v1951, %v1931
      %v3092 = vpack.c.b16 %v1952, %v1932
      %v3093 = vpack.c.b16 %v1953, %v1933
      %v3094 = vpack.c.b16 %v1954, %v1934
      %v3095 = vpack.c.b16 %v1955, %v1935
      %v3096 = vpack.c.b16 %v1956, %v1936
      %v3097 = vpack.c.b16 %v1957, %v1937
      %v3098 = vpack.c.b16 %v1958, %v1938
      %v3099 = vpack.c.b16 %v1959, %v1939
      %v3100 = vpack.c.b16 %v1960, %v1940
      %v3101 = vpack.c.b16 %v1961, %v1941
      %v3102 = vpack.c.b16 %v1962, %v1942
      %v3103 = vpack.c.b16 %v1963, %v1943
      %v3104 = vpack.c.b16 %v1964, %v1944
      %v3105 = vpack.c.b16 %v1985, %v1965
      %v3106 = vpack.c.b16 %v1986, %v1966
      %v3107 = vpack.c.b16 %v1987, %v1967
      %v3108 = vpack.c.b16 %v1988, %v1968
      %v3109 = vpack.c.b16 %v1989, %v1969
      %v3110 = vpack.c.b16 %v1990, %v1970
      %v3111 = vpack.c.b16 %v1991, %v1971
      %v3112 = vpack.c.b16 %v1992, %v1972
      %v3113 = vpack.c.b16 %v1993, %v1973
      %v3114 = vpack.c.b16 %v1994, %v1974
      %v3115 = vpack.c.b16 %v1995, %v1975
      %v3116 = vpack.c.b16 %v1996, %v1976
      %v3117 = vpack.c.b16 %v1997, %v1977
      %v3118 = vpack.c.b16 %v1998, %v1978
      %v3119 = vpack.c.b16 %v1999, %v1979
      %v3120 = vpack.c.b16 %v2000, %v1980
      %v3121 = vpack.c.b16 %v2001, %v1981
      %v3122 = vpack.c.b16 %v2002, %v1982
      %v3123 = vpack.c.b16 %v2003, %v1983
      %v3124 = vpack.c.b16 %v2004, %v1984
      %v3125 = vpack.c.b16 %v2025, %v2005
      %v3126 = vpack.c.b16 %v2026, %v2006
      %v3127 = vpack.c.b16 %v2027, %v2007
      %v3128 = vpack.c.b16 %v2028, %v2008
      %v3129 = vpack.c.b16 %v2029, %v2009
      %v3130 = vpack.c.b16 %v2030, %v2010
      %v3131 = vpack.c.b16 %v2031, %v2011
      %v3132 = vpack.c.b16 %v2032, %v2012
      %v3133 = vpack.c.b16 %v2033, %v2013
      %v3134 = vpack.c.b16 %v2034, %v2014
      %v3135 = vpack.c.b16 %v2035, %v2015
      %v3136 = vpack.c.b16 %v2036, %v2016
      %v3137 = vpack.c.b16 %v2037, %v2017
      %v3138 = vpack.c.b16 %v2038, %v2018
      %v3139 = vpack.c.b16 %v2039, %v2019
      %v3140 = vpack.c.b16 %v2040, %v2020
      %v3141 = vpack.c.b16 %v2041, %v2021
      %v3142 = vpack.c.b16 %v2042, %v2022
      %v3143 = vpack.c.b16 %v2043, %v2023
      %v3144 = vpack.c.b16 %v2044, %v2024
      %v3145 = vpack.c.b16 %v2065, %v2045
      %v3146 = vpack.c.b16 %v2066, %v2046
      %v3147 = vpack.c.b16 %v2067, %v2047
      %v3148 = vpack.c.b16 %v2068, %v2048
      %v3149 = vpack.c.b16 %v2069, %v2049
      %v3150 = vpack.c.b16 %v2070, %v2050
      %v3151 = vpack.c.b16 %v2071, %v2051
      %v3152 = vpack.c.b16 %v2072, %v2052
      %v3153 = vpack.c.b16 %v2073, %v2053
      %v3154 = vpack.c.b16 %v2074, %v2054
      %v3155 = vpack.c.b16 %v2075, %v2055
      %v3156 = vpack.c.b16 %v2076, %v2056
      %v3157 = vpack.c.b16 %v2077, %v2057
      %v3158 = vpack.c.b16 %v2078, %v2058
      %v3159 = vpack.c.b16 %v2079, %v2059
      %v3160 = vpack.c.b16 %v2080, %v2060
      %v3161 = vpack.c.b16 %v2081, %v2061
      %v3162 = vpack.c.b16 %v2082, %v2062
      %v3163 = vpack.c.b16 %v2083, %v2063
      %v3164 = vpack.c.b16 %v2084, %v2064
      %v3165 = vpack.c.b16 %v2105, %v2085
      %v3166 = vpack.c.b16 %v2106, %v2086
      %v3167 = vpack.c.b16 %v2107, %v2087
      %v3168 = vpack.c.b16 %v2108, %v2088
      %v3169 = vpack.c.b16 %v2109, %v2089
      %v3170 = vpack.c.b16 %v2110, %v2090
      %v3171 = vpack.c.b16 %v2111, %v2091
      %v3172 = vpack.c.b16 %v2112, %v2092
      %v3173 = vpack.c.b16 %v2113, %v2093
      %v3174 = vpack.c.b16 %v2114, %v2094
      %v3175 = vpack.c.b16 %v2115, %v2095
      %v3176 = vpack.c.b16 %v2116, %v2096
      %v3177 = vpack.c.b16 %v2117, %v2097
      %v3178 = vpack.c.b16 %v2118, %v2098
      %v3179 = vpack.c.b16 %v2119, %v2099
      %v3180 = vpack.c.b16 %v2120, %v2100
      %v3181 = vpack.c.b16 %v2121, %v2101
      %v3182 = vpack.c.b16 %v2122, %v2102
      %v3183 = vpack.c.b16 %v2123, %v2103
      %v3184 = vpack.c.b16 %v2124, %v2104
      %v3185 = vpack.c.b16 %v2145, %v2125
      %v3186 = vpack.c.b16 %v2146, %v2126
      %v3187 = vpack.c.b16 %v2147, %v2127
      %v3188 = vpack.c.b16 %v2148, %v2128
      %v3189 = vpack.c.b16 %v2149, %v2129
      %v3190 = vpack.c.b16 %v2150, %v2130
      %v3191 = vpack.c.b16 %v2151, %v2131
      %v3192 = vpack.c.b16 %v2152, %v2132
      %v3193 = vpack.c.b16 %v2153, %v2133
      %v3194 = vpack.c.b16 %v2154, %v2134
      %v3195 = vpack.c.b16 %v2155, %v2135
      %v3196 = vpack.c.b16 %v2156, %v2136
      %v3197 = vpack.c.b16 %v2157, %v2137
      %v3198 = vpack.c.b16 %v2158, %v2138
      %v3199 = vpack.c.b16 %v2159, %v2139
      %v3200 = vpack.c.b16 %v2160, %v2140
      %v3201 = vpack.c.b16 %v2161, %v2141
      %v3202 = vpack.c.b16 %v2162, %v2142
      %v3203 = vpack.c.b16 %v2163, %v2143
      %v3204 = vpack.c.b16 %v2164, %v2144
      %v3205 = vpack.c.b16 %v2185, %v2165
      %v3206 = vpack.c.b16 %v2186, %v2166
      %v3207 = vpack.c.b16 %v2187, %v2167
      %v3208 = vpack.c.b16 %v2188, %v2168
      %v3209 = vpack.c.b16 %v2189, %v2169
      %v3210 = vpack.c.b16 %v2190, %v2170
      %v3211 = vpack.c.b16 %v2191, %v2171
      %v3212 = vpack.c.b16 %v2192, %v2172
      %v3213 = vpack.c.b16 %v2193, %v2173
      %v3214 = vpack.c.b16 %v2194, %v2174
      %v3215 = vpack.c.b16 %v2195, %v2175
      %v3216 = vpack.c.b16 %v2196, %v2176
      %v3217 = vpack.c.b16 %v2197, %v2177
      %v3218 = vpack.c.b16 %v2198, %v2178
      %v3219 = vpack.c.b16 %v2199, %v2179
      %v3220 = vpack.c.b16 %v2200, %v2180
      %v3221 = vpack.c.b16 %v2201, %v2181
      %v3222 = vpack.c.b16 %v2202, %v2182
      %v3223 = vpack.c.b16 %v2203, %v2183
      %v3224 = vpack.c.b16 %v2204, %v2184
      %v3225 = vpack.c.b16 %v2225, %v2205
      %v3226 = vpack.c.b16 %v2226, %v2206
      %v3227 = vpack.c.b16 %v2227, %v2207
      %v3228 = vpack.c.b16 %v2228, %v2208
      %v3229 = vpack.c.b16 %v2229, %v2209
      %v3230 = vpack.c.b16 %v2230, %v2210
      %v3231 = vpack.c.b16 %v2231, %v2211
      %v3232 = vpack.c.b16 %v2232, %v2212
      %v3233 = vpack.c.b16 %v2233, %v2213
      %v3234 = vpack.c.b16 %v2234, %v2214
      %v3235 = vpack.c.b16 %v2235, %v2215
      %v3236 = vpack.c.b16 %v2236, %v2216
      %v3237 = vpack.c.b16 %v2237, %v2217
      %v3238 = vpack.c.b16 %v2238, %v2218
      %v3239 = vpack.c.b16 %v2239, %v2219
      %v3240 = vpack.c.b16 %v2240, %v2220
      %v3241 = vpack.c.b16 %v2241, %v2221
      %v3242 = vpack.c.b16 %v2242, %v2222
      %v3243 = vpack.c.b16 %v2243, %v2223
      %v3244 = vpack.c.b16 %v2244, %v2224
      %v3245 = vpack.c.b16 %v2265, %v2245
      %v3246 = vpack.c.b16 %v2266, %v2246
      %v3247 = vpack.c.b16 %v2267, %v2247
      %v3248 = vpack.c.b16 %v2268, %v2248
      %v3249 = vpack.c.b16 %v2269, %v2249
      %v3250 = vpack.c.b16 %v2270, %v2250
      %v3251 = vpack.c.b16 %v2271, %v2251
      %v3252 = vpack.c.b16 %v2272, %v2252
      %v3253 = vpack.c.b16 %v2273, %v2253
      %v3254 = vpack.c.b16 %v2274, %v2254
      %v3255 = vpack.c.b16 %v2275, %v2255
      %v3256 = vpack.c.b16 %v2276, %v2256
      %v3257 = vpack.c.b16 %v2277, %v2257
      %v3258 = vpack.c.b16 %v2278, %v2258
      %v3259 = vpack.c.b16 %v2279, %v2259
      %v3260 = vpack.c.b16 %v2280, %v2260
      %v3261 = vpack.c.b16 %v2281, %v2261
      %v3262 = vpack.c.b16 %v2282, %v2262
      %v3263 = vpack.c.b16 %v2283, %v2263
      %v3264 = vpack.c.b16 %v2284, %v2264
      %v3265 = vpack.c.b16 %v2305, %v2285
      %v3266 = vpack.c.b16 %v2306, %v2286
      %v3267 = vpack.c.b16 %v2307, %v2287
      %v3268 = vpack.c.b16 %v2308, %v2288
      %v3269 = vpack.c.b16 %v2309, %v2289
      %v3270 = vpack.c.b16 %v2310, %v2290
      %v3271 = vpack.c.b16 %v2311, %v2291
      %v3272 = vpack.c.b16 %v2312, %v2292
      %v3273 = vpack.c.b16 %v2313, %v2293
      %v3274 = vpack.c.b16 %v2314, %v2294
      %v3275 = vpack.c.b16 %v2315, %v2295
      %v3276 = vpack.c.b16 %v2316, %v2296
      %v3277 = vpack.c.b16 %v2317, %v2297
      %v3278 = vpack.c.b16 %v2318, %v2298
      %v3279 = vpack.c.b16 %v2319, %v2299
      %v3280 = vpack.c.b16 %v2320, %v2300
      %v3281 = vpack.c.b16 %v2321, %v2301
      %v3282 = vpack.c.b16 %v2322, %v2302
      %v3283 = vpack.c.b16 %v2323, %v2303
      %v3284 = vpack.c.b16 %v2324, %v2304
      %v3285 = vpack.c.b16 %v2345, %v2325
      %v3286 = vpack.c.b16 %v2346, %v2326
      %v3287 = vpack.c.b16 %v2347, %v2327
      %v3288 = vpack.c.b16 %v2348, %v2328
      %v3289 = vpack.c.b16 %v2349, %v2329
      %v3290 = vpack.c.b16 %v2350, %v2330
      %v3291 = vpack.c.b16 %v2351, %v2331
      %v3292 = vpack.c.b16 %v2352, %v2332
      %v3293 = vpack.c.b16 %v2353, %v2333
      %v3294 = vpack.c.b16 %v2354, %v2334
      %v3295 = vpack.c.b16 %v2355, %v2335
      %v3296 = vpack.c.b16 %v2356, %v2336
      %v3297 = vpack.c.b16 %v2357, %v2337
      %v3298 = vpack.c.b16 %v2358, %v2338
      %v3299 = vpack.c.b16 %v2359, %v2339
      %v3300 = vpack.c.b16 %v2360, %v2340
      %v3301 = vpack.c.b16 %v2361, %v2341
      %v3302 = vpack.c.b16 %v2362, %v2342
      %v3303 = vpack.c.b16 %v2363, %v2343
      %v3304 = vpack.c.b16 %v2364, %v2344
      %v3305 = vpack.c.b16 %v2385, %v2365
      %v3306 = vpack.c.b16 %v2386, %v2366
      %v3307 = vpack.c.b16 %v2387, %v2367
      %v3308 = vpack.c.b16 %v2388, %v2368
      %v3309 = vpack.c.b16 %v2389, %v2369
      %v3310 = vpack.c.b16 %v2390, %v2370
      %v3311 = vpack.c.b16 %v2391, %v2371
      %v3312 = vpack.c.b16 %v2392, %v2372
      %v3313 = vpack.c.b16 %v2393, %v2373
      %v3314 = vpack.c.b16 %v2394, %v2374
      %v3315 = vpack.c.b16 %v2395, %v2375
      %v3316 = vpack.c.b16 %v2396, %v2376
      %v3317 = vpack.c.b16 %v2397, %v2377
      %v3318 = vpack.c.b16 %v2398, %v2378
      %v3319 = vpack.c.b16 %v2399, %v2379
      %v3320 = vpack.c.b16 %v2400, %v2380
      %v3321 = vpack.c.b16 %v2401, %v2381
      %v3322 = vpack.c.b16 %v2402, %v2382
      %v3323 = vpack.c.b16 %v2403, %v2383
      %v3324 = vpack.c.b16 %v2404, %v2384
      %v3325 = vpack.c.b16 %v2425, %v2405
      %v3326 = vpack.c.b16 %v2426, %v2406
      %v3327 = vpack.c.b16 %v2427, %v2407
      %v3328 = vpack.c.b16 %v2428, %v2408
      %v3329 = vpack.c.b16 %v2429, %v2409
      %v3330 = vpack.c.b16 %v2430, %v2410
      %v3331 = vpack.c.b16 %v2431, %v2411
      %v3332 = vpack.c.b16 %v2432, %v2412
      %v3333 = vpack.c.b16 %v2433, %v2413
      %v3334 = vpack.c.b16 %v2434, %v2414
      %v3335 = vpack.c.b16 %v2435, %v2415
      %v3336 = vpack.c.b16 %v2436, %v2416
      %v3337 = vpack.c.b16 %v2437, %v2417
      %v3338 = vpack.c.b16 %v2438, %v2418
      %v3339 = vpack.c.b16 %v2439, %v2419
      %v3340 = vpack.c.b16 %v2440, %v2420
      %v3341 = vpack.c.b16 %v2441, %v2421
      %v3342 = vpack.c.b16 %v2442, %v2422
      %v3343 = vpack.c.b16 %v2443, %v2423
      %v3344 = vpack.c.b16 %v2444, %v2424
      %v3345 = vpack.c.b16 %v2465, %v2445
      %v3346 = vpack.c.b16 %v2466, %v2446
      %v3347 = vpack.c.b16 %v2467, %v2447
      %v3348 = vpack.c.b16 %v2468, %v2448
      %v3349 = vpack.c.b16 %v2469, %v2449
      %v3350 = vpack.c.b16 %v2470, %v2450
      %v3351 = vpack.c.b16 %v2471, %v2451
      %v3352 = vpack.c.b16 %v2472, %v2452
      %v3353 = vpack.c.b16 %v2473, %v2453
      %v3354 = vpack.c.b16 %v2474, %v2454
      %v3355 = vpack.c.b16 %v2475, %v2455
      %v3356 = vpack.c.b16 %v2476, %v2456
      %v3357 = vpack.c.b16 %v2477, %v2457
      %v3358 = vpack.c.b16 %v2478, %v2458
      %v3359 = vpack.c.b16 %v2479, %v2459
      %v3360 = vpack.c.b16 %v2480, %v2460
      %v3361 = vpack.c.b16 %v2481, %v2461
      %v3362 = vpack.c.b16 %v2482, %v2462
      %v3363 = vpack.c.b16 %v2483, %v2463
      %v3364 = vpack.c.b16 %v2484, %v2464
      %v3365 = vpack.c.b16 %v2505, %v2485
      %v3366 = vpack.c.b16 %v2506, %v2486
      %v3367 = vpack.c.b16 %v2507, %v2487
      %v3368 = vpack.c.b16 %v2508, %v2488
      %v3369 = vpack.c.b16 %v2509, %v2489
      %v3370 = vpack.c.b16 %v2510, %v2490
      %v3371 = vpack.c.b16 %v2511, %v2491
      %v3372 = vpack.c.b16 %v2512, %v2492
      %v3373 = vpack.c.b16 %v2513, %v2493
      %v3374 = vpack.c.b16 %v2514, %v2494
      %v3375 = vpack.c.b16 %v2515, %v2495
      %v3376 = vpack.c.b16 %v2516, %v2496
      %v3377 = vpack.c.b16 %v2517, %v2497
      %v3378 = vpack.c.b16 %v2518, %v2498
      %v3379 = vpack.c.b16 %v2519, %v2499
      %v3380 = vpack.c.b16 %v2520, %v2500
      %v3381 = vpack.c.b16 %v2521, %v2501
      %v3382 = vpack.c.b16 %v2522, %v2502
      %v3383 = vpack.c.b16 %v2523, %v2503
      %v3384 = vpack.c.b16 %v2524, %v2504
      %v3385 = vpack.c.b16 %v2545, %v2525
      %v3386 = vpack.c.b16 %v2546, %v2526
      %v3387 = vpack.c.b16 %v2547, %v2527
      %v3388 = vpack.c.b16 %v2548, %v2528
      %v3389 = vpack.c.b16 %v2549, %v2529
      %v3390 = vpack.c.b16 %v2550, %v2530
      %v3391 = vpack.c.b16 %v2551, %v2531
      %v3392 = vpack.c.b16 %v2552, %v2532
      %v3393 = vpack.c.b16 %v2553, %v2533
      %v3394 = vpack.c.b16 %v2554, %v2534
      %v3395 = vpack.c.b16 %v2555, %v2535
      %v3396 = vpack.c.b16 %v2556, %v2536
      %v3397 = vpack.c.b16 %v2557, %v2537
      %v3398 = vpack.c.b16 %v2558, %v2538
      %v3399 = vpack.c.b16 %v2559, %v2539
      %v3400 = vpack.c.b16 %v2560, %v2540
      %v3401 = vpack.c.b16 %v2561, %v2541
      %v3402 = vpack.c.b16 %v2562, %v2542
      %v3403 = vpack.c.b16 %v2563, %v2543
      %v3404 = vpack.c.b16 %v2564, %v2544
      %v3405 = vpack.c.b16 %v2585, %v2565
      %v3406 = vpack.c.b16 %v2586, %v2566
      %v3407 = vpack.c.b16 %v2587, %v2567
      %v3408 = vpack.c.b16 %v2588, %v2568
      %v3409 = vpack.c.b16 %v2589, %v2569
      %v3410 = vpack.c.b16 %v2590, %v2570
      %v3411 = vpack.c.b16 %v2591, %v2571
      %v3412 = vpack.c.b16 %v2592, %v2572
      %v3413 = vpack.c.b16 %v2593, %v2573
      %v3414 = vpack.c.b16 %v2594, %v2574
      %v3415 = vpack.c.b16 %v2595, %v2575
      %v3416 = vpack.c.b16 %v2596, %v2576
      %v3417 = vpack.c.b16 %v2597, %v2577
      %v3418 = vpack.c.b16 %v2598, %v2578
      %v3419 = vpack.c.b16 %v2599, %v2579
      %v3420 = vpack.c.b16 %v2600, %v2580
      %v3421 = vpack.c.b16 %v2601, %v2581
      %v3422 = vpack.c.b16 %v2602, %v2582
      %v3423 = vpack.c.b16 %v2603, %v2583
      %v3424 = vpack.c.b16 %v2604, %v2584
      %v3425 = vpack.c.b16 %v2625, %v2605
      %v3426 = vpack.c.b16 %v2626, %v2606
      %v3427 = vpack.c.b16 %v2627, %v2607
      %v3428 = vpack.c.b16 %v2628, %v2608
      %v3429 = vpack.c.b16 %v2629, %v2609
      %v3430 = vpack.c.b16 %v2630, %v2610
      %v3431 = vpack.c.b16 %v2631, %v2611
      %v3432 = vpack.c.b16 %v2632, %v2612
      %v3433 = vpack.c.b16 %v2633, %v2613
      %v3434 = vpack.c.b16 %v2634, %v2614
      %v3435 = vpack.c.b16 %v2635, %v2615
      %v3436 = vpack.c.b16 %v2636, %v2616
      %v3437 = vpack.c.b16 %v2637, %v2617
      %v3438 = vpack.c.b16 %v2638, %v2618
      %v3439 = vpack.c.b16 %v2639, %v2619
      %v3440 = vpack.c.b16 %v2640, %v2620
      %v3441 = vpack.c.b16 %v2641, %v2621
      %v3442 = vpack.c.b16 %v2642, %v2622
      %v3443 = vpack.c.b16 %v2643, %v2623
      %v3444 = vpack.c.b16 %v2644, %v2624
      %v3445 = vpack.c.b16 %v2665, %v2645
      %v3446 = vpack.c.b16 %v2666, %v2646
      %v3447 = vpack.c.b16 %v2667, %v2647
      %v3448 = vpack.c.b16 %v2668, %v2648
      %v3449 = vpack.c.b16 %v2669, %v2649
      %v3450 = vpack.c.b16 %v2670, %v2650
      %v3451 = vpack.c.b16 %v2671, %v2651
      %v3452 = vpack.c.b16 %v2672, %v2652
      %v3453 = vpack.c.b16 %v2673, %v2653
      %v3454 = vpack.c.b16 %v2674, %v2654
      %v3455 = vpack.c.b16 %v2675, %v2655
      %v3456 = vpack.c.b16 %v2676, %v2656
      %v3457 = vpack.c.b16 %v2677, %v2657
      %v3458 = vpack.c.b16 %v2678, %v2658
      %v3459 = vpack.c.b16 %v2679, %v2659
      %v3460 = vpack.c.b16 %v2680, %v2660
      %v3461 = vpack.c.b16 %v2681, %v2661
      %v3462 = vpack.c.b16 %v2682, %v2662
      %v3463 = vpack.c.b16 %v2683, %v2663
      %v3464 = vpack.c.b16 %v2684, %v2664
      %v3465 = vpack.c.b16 %v2705, %v2685
      %v3466 = vpack.c.b16 %v2706, %v2686
      %v3467 = vpack.c.b16 %v2707, %v2687
      %v3468 = vpack.c.b16 %v2708, %v2688
      %v3469 = vpack.c.b16 %v2709, %v2689
      %v3470 = vpack.c.b16 %v2710, %v2690
      %v3471 = vpack.c.b16 %v2711, %v2691
      %v3472 = vpack.c.b16 %v2712, %v2692
      %v3473 = vpack.c.b16 %v2713, %v2693
      %v3474 = vpack.c.b16 %v2714, %v2694
      %v3475 = vpack.c.b16 %v2715, %v2695
      %v3476 = vpack.c.b16 %v2716, %v2696
      %v3477 = vpack.c.b16 %v2717, %v2697
      %v3478 = vpack.c.b16 %v2718, %v2698
      %v3479 = vpack.c.b16 %v2719, %v2699
      %v3480 = vpack.c.b16 %v2720, %v2700
      %v3481 = vpack.c.b16 %v2721, %v2701
      %v3482 = vpack.c.b16 %v2722, %v2702
      %v3483 = vpack.c.b16 %v2723, %v2703
      %v3484 = vpack.c.b16 %v2724, %v2704
      %v3485 = vpack.c.b16 %v2745, %v2725
      %v3486 = vpack.c.b16 %v2746, %v2726
      %v3487 = vpack.c.b16 %v2747, %v2727
      %v3488 = vpack.c.b16 %v2748, %v2728
      %v3489 = vpack.c.b16 %v2749, %v2729
      %v3490 = vpack.c.b16 %v2750, %v2730
      %v3491 = vpack.c.b16 %v2751, %v2731
      %v3492 = vpack.c.b16 %v2752, %v2732
      %v3493 = vpack.c.b16 %v2753, %v2733
      %v3494 = vpack.c.b16 %v2754, %v2734
      %v3495 = vpack.c.b16 %v2755, %v2735
      %v3496 = vpack.c.b16 %v2756, %v2736
      %v3497 = vpack.c.b16 %v2757, %v2737
      %v3498 = vpack.c.b16 %v2758, %v2738
      %v3499 = vpack.c.b16 %v2759, %v2739
      %v3500 = vpack.c.b16 %v2760, %v2740
      %v3501 = vpack.c.b16 %v2761, %v2741
      %v3502 = vpack.c.b16 %v2762, %v2742
      %v3503 = vpack.c.b16 %v2763, %v2743
      %v3504 = vpack.c.b16 %v2764, %v2744
      %v3505 = vpack.c.b16 %v2785, %v2765
      %v3506 = vpack.c.b16 %v2786, %v2766
      %v3507 = vpack.c.b16 %v2787, %v2767
      %v3508 = vpack.c.b16 %v2788, %v2768
      %v3509 = vpack.c.b16 %v2789, %v2769
      %v3510 = vpack.c.b16 %v2790, %v2770
      %v3511 = vpack.c.b16 %v2791, %v2771
      %v3512 = vpack.c.b16 %v2792, %v2772
      %v3513 = vpack.c.b16 %v2793, %v2773
      %v3514 = vpack.c.b16 %v2794, %v2774
      %v3515 = vpack.c.b16 %v2795, %v2775
      %v3516 = vpack.c.b16 %v2796, %v2776
      %v3517 = vpack.c.b16 %v2797, %v2777
      %v3518 = vpack.c.b16 %v2798, %v2778
      %v3519 = vpack.c.b16 %v2799, %v2779
      %v3520 = vpack.c.b16 %v2800, %v2780
      %v3521 = vpack.c.b16 %v2801, %v2781
      %v3522 = vpack.c.b16 %v2802, %v2782
      %v3523 = vpack.c.b16 %v2803, %v2783
      %v3524 = vpack.c.b16 %v2804, %v2784
      %v3525 = vpack.c.b16 %v2825, %v2805
      %v3526 = vpack.c.b16 %v2826, %v2806
      %v3527 = vpack.c.b16 %v2827, %v2807
      %v3528 = vpack.c.b16 %v2828, %v2808
      %v3529 = vpack.c.b16 %v2829, %v2809
      %v3530 = vpack.c.b16 %v2830, %v2810
      %v3531 = vpack.c.b16 %v2831, %v2811
      %v3532 = vpack.c.b16 %v2832, %v2812
      %v3533 = vpack.c.b16 %v2833, %v2813
      %v3534 = vpack.c.b16 %v2834, %v2814
      %v3535 = vpack.c.b16 %v2835, %v2815
      %v3536 = vpack.c.b16 %v2836, %v2816
      %v3537 = vpack.c.b16 %v2837, %v2817
      %v3538 = vpack.c.b16 %v2838, %v2818
      %v3539 = vpack.c.b16 %v2839, %v2819
      %v3540 = vpack.c.b16 %v2840, %v2820
      %v3541 = vpack.c.b16 %v2841, %v2821
      %v3542 = vpack.c.b16 %v2842, %v2822
      %v3543 = vpack.c.b16 %v2843, %v2823
      %v3544 = vpack.c.b16 %v2844, %v2824
      %v3545 = vpack.c.b16 %v2865, %v2845
      %v3546 = vpack.c.b16 %v2866, %v2846
      %v3547 = vpack.c.b16 %v2867, %v2847
      %v3548 = vpack.c.b16 %v2868, %v2848
      %v3549 = vpack.c.b16 %v2869, %v2849
      %v3550 = vpack.c.b16 %v2870, %v2850
      %v3551 = vpack.c.b16 %v2871, %v2851
      %v3552 = vpack.c.b16 %v2872, %v2852
      %v3553 = vpack.c.b16 %v2873, %v2853
      %v3554 = vpack.c.b16 %v2874, %v2854
      %v3555 = vpack.c.b16 %v2875, %v2855
      %v3556 = vpack.c.b16 %v2876, %v2856
      %v3557 = vpack.c.b16 %v2877, %v2857
      %v3558 = vpack.c.b16 %v2878, %v2858
      %v3559 = vpack.c.b16 %v2879, %v2859
      %v3560 = vpack.c.b16 %v2880, %v2860
      %v3561 = vpack.c.b16 %v2881, %v2861
      %v3562 = vpack.c.b16 %v2882, %v2862
      %v3563 = vpack.c.b16 %v2883, %v2863
      %v3564 = vpack.c.b16 %v2884, %v2864
      %v3565 = vpack.c.b16 %v2905, %v2885
      %v3566 = vpack.c.b16 %v2906, %v2886
      %v3567 = vpack.c.b16 %v2907, %v2887
      %v3568 = vpack.c.b16 %v2908, %v2888
      %v3569 = vpack.c.b16 %v2909, %v2889
      %v3570 = vpack.c.b16 %v2910, %v2890
      %v3571 = vpack.c.b16 %v2911, %v2891
      %v3572 = vpack.c.b16 %v2912, %v2892
      %v3573 = vpack.c.b16 %v2913, %v2893
      %v3574 = vpack.c.b16 %v2914, %v2894
      %v3575 = vpack.c.b16 %v2915, %v2895
      %v3576 = vpack.c.b16 %v2916, %v2896
      %v3577 = vpack.c.b16 %v2917, %v2897
      %v3578 = vpack.c.b16 %v2918, %v2898
      %v3579 = vpack.c.b16 %v2919, %v2899
      %v3580 = vpack.c.b16 %v2920, %v2900
      %v3581 = vpack.c.b16 %v2921, %v2901
      %v3582 = vpack.c.b16 %v2922, %v2902
      %v3583 = vpack.c.b16 %v2923, %v2903
      %v3584 = vpack.c.b16 %v2924, %v2904
      %v3585 = vpack.c.b16 %v2945, %v2925
      %v3586 = vpack.c.b16 %v2946, %v2926
      %v3587 = vpack.c.b16 %v2947, %v2927
      %v3588 = vpack.c.b16 %v2948, %v2928
      %v3589 = vpack.c.b16 %v2949, %v2929
      %v3590 = vpack.c.b16 %v2950, %v2930
      %v3591 = vpack.c.b16 %v2951, %v2931
      %v3592 = vpack.c.b16 %v2952, %v2932
      %v3593 = vpack.c.b16 %v2953, %v2933
      %v3594 = vpack.c.b16 %v2954, %v2934
      %v3595 = vpack.c.b16 %v2955, %v2935
      %v3596 = vpack.c.b16 %v2956, %v2936
      %v3597 = vpack.c.b16 %v2957, %v2937
      %v3598 = vpack.c.b16 %v2958, %v2938
      %v3599 = vpack.c.b16 %v2959, %v2939
      %v3600 = vpack.c.b16 %v2960, %v2940
      %v3601 = vpack.c.b16 %v2961, %v2941
      %v3602 = vpack.c.b16 %v2962, %v2942
      %v3603 = vpack.c.b16 %v2963, %v2943
      %v3604 = vpack.c.b16 %v2964, %v2944
      %4245 = vmatprep.subr.bf16.mxu0 %v3106
      %4246 = vmatpush1.bf16.msra.mxu0 %v3105
      %4247 = vmatprep.subr.bf16.mxu0 %v3086
      %4248 = vmatpush1.bf16.msra.mxu0 %v3085
      %4249 = vmatprep.subr.bf16.mxu0 %v3066
      %4250 = vmatpush1.bf16.msra.mxu0 %v3065
      %4251 = vmatprep.subr.bf16.mxu0 %v3046
      %4252 = vmatpush1.bf16.msra.mxu0 %v3045
      %4253 = vmatprep.subr.bf16.mxu0 %v3026
      %4254 = vmatpush1.bf16.msra.mxu0 %v3025
      %4255 = vmatprep.subr.bf16.mxu0 %v3006
      %4256 = vmatpush1.bf16.msra.mxu0 %v3005
      %4257 = vmatprep.subr.bf16.mxu0 %v2986
      %4258 = vmatpush1.bf16.msra.mxu0 %v2985
      %4259 = vmatprep.subr.bf16.mxu0 %v2966
      %4260 = vmatpush1.bf16.msra.mxu0 %v2965
      %4261 = vmatprep.subr.bf16.mxu0 %v3266
      %4262 = vmatpush2.bf16.msra.mxu0 %v3265
      %4263 = vmatprep.subr.bf16.mxu0 %v3246
      %4264 = vmatpush2.bf16.msra.mxu0 %v3245
      %4265 = vmatprep.subr.bf16.mxu0 %v3226
      %4266 = vmatpush2.bf16.msra.mxu0 %v3225
      %4267 = vmatprep.subr.bf16.mxu0 %v3206
      %4268 = vmatpush2.bf16.msra.mxu0 %v3205
      %4269 = vmatprep.subr.bf16.mxu0 %v3186
      %4270 = vmatpush2.bf16.msra.mxu0 %v3185
      %4271 = vmatprep.subr.bf16.mxu0 %v3166
      %4272 = vmatpush2.bf16.msra.mxu0 %v3165
      %4273 = vmatprep.subr.bf16.mxu0 %v3146
      %4274 = vmatpush2.bf16.msra.mxu0 %v3145
      %4275 = vmatprep.subr.bf16.mxu0 %v3126
      %4276 = vmatpush2.bf16.msra.mxu0 %v3125
      %4277 = vmatprep.mubr.bf16.mxu0 %v1038
      %4278 = vmatmul.mubr.bf16.gmra.mxu0 %v1037
      %v4279 = vpop.f32.mrf.mxu0
      %v4280 = vadd.f32 0.0, %v4279
      %v4281 = vpop.f32.mrf.mxu0
      %v4282 = vadd.f32 0.0, %v4281
      %v4283 = vpop.f32.mrf.mxu0
      %v4284 = vpop.f32.mrf.mxu0
      %4285 = vdwg.mxu0
      %4286 = vmatprep.subr.bf16.mxu0 %v3426
      %4287 = vmatpush1.bf16.msra.mxu0 %v3425
      %4288 = vmatprep.subr.bf16.mxu0 %v3406
      %4289 = vmatpush1.bf16.msra.mxu0 %v3405
      %4290 = vmatprep.subr.bf16.mxu0 %v3386
      %4291 = vmatpush1.bf16.msra.mxu0 %v3385
      %4292 = vmatprep.subr.bf16.mxu0 %v3366
      %4293 = vmatpush1.bf16.msra.mxu0 %v3365
      %4294 = vmatprep.subr.bf16.mxu0 %v3346
      %4295 = vmatpush1.bf16.msra.mxu0 %v3345
      %4296 = vmatprep.subr.bf16.mxu0 %v3326
      %4297 = vmatpush1.bf16.msra.mxu0 %v3325
      %4298 = vmatprep.subr.bf16.mxu0 %v3306
      %4299 = vmatpush1.bf16.msra.mxu0 %v3305
      %4300 = vmatprep.subr.bf16.mxu0 %v3286
      %4301 = vmatpush1.bf16.msra.mxu0 %v3285
      %4302 = vmatprep.subr.bf16.mxu0 %v3586
      %4303 = vmatpush2.bf16.msra.mxu0 %v3585
      %4304 = vmatprep.subr.bf16.mxu0 %v3566
      %4305 = vmatpush2.bf16.msra.mxu0 %v3565
      %4306 = vmatprep.subr.bf16.mxu0 %v3546
      %4307 = vmatpush2.bf16.msra.mxu0 %v3545
      %4308 = vmatprep.subr.bf16.mxu0 %v3526
      %4309 = vmatpush2.bf16.msra.mxu0 %v3525
      %4310 = vmatprep.subr.bf16.mxu0 %v3506
      %4311 = vmatpush2.bf16.msra.mxu0 %v3505
      %4312 = vmatprep.subr.bf16.mxu0 %v3486
      %4313 = vmatpush2.bf16.msra.mxu0 %v3485
      %4314 = vmatprep.subr.bf16.mxu0 %v3466
      %4315 = vmatpush2.bf16.msra.mxu0 %v3465
      %4316 = vmatprep.subr.bf16.mxu0 %v3446
      %4317 = vmatpush2.bf16.msra.mxu0 %v3445
      %4318 = vmatprep.mubr.bf16.mxu0 %v1040
      %4319 = vmatmul.mubr.bf16.gmra.mxu0 %v1039
      %v4320 = vpop.f32.mrf.mxu0
      %v4321 = vadd.f32 %v4280, %v4320
      %v4322 = vpop.f32.mrf.mxu0
      %v4323 = vadd.f32 %v4282, %v4322
      %v4324 = vpop.f32.mrf.mxu0
      %v4325 = vpop.f32.mrf.mxu0
      %4326 = vdwg.mxu0
      %4327 = vmatprep.subr.bf16.mxu0 %v3108
      %4328 = vmatpush1.bf16.msra.mxu0 %v3107
      %4329 = vmatprep.subr.bf16.mxu0 %v3088
      %4330 = vmatpush1.bf16.msra.mxu0 %v3087
      %4331 = vmatprep.subr.bf16.mxu0 %v3068
      %4332 = vmatpush1.bf16.msra.mxu0 %v3067
      %4333 = vmatprep.subr.bf16.mxu0 %v3048
      %4334 = vmatpush1.bf16.msra.mxu0 %v3047
      %4335 = vmatprep.subr.bf16.mxu0 %v3028
      %4336 = vmatpush1.bf16.msra.mxu0 %v3027
      %4337 = vmatprep.subr.bf16.mxu0 %v3008
      %4338 = vmatpush1.bf16.msra.mxu0 %v3007
      %4339 = vmatprep.subr.bf16.mxu0 %v2988
      %4340 = vmatpush1.bf16.msra.mxu0 %v2987
      %4341 = vmatprep.subr.bf16.mxu0 %v2968
      %4342 = vmatpush1.bf16.msra.mxu0 %v2967
      %4343 = vmatprep.subr.bf16.mxu0 %v3268
      %4344 = vmatpush2.bf16.msra.mxu0 %v3267
      %4345 = vmatprep.subr.bf16.mxu0 %v3248
      %4346 = vmatpush2.bf16.msra.mxu0 %v3247
      %4347 = vmatprep.subr.bf16.mxu0 %v3228
      %4348 = vmatpush2.bf16.msra.mxu0 %v3227
      %4349 = vmatprep.subr.bf16.mxu0 %v3208
      %4350 = vmatpush2.bf16.msra.mxu0 %v3207
      %4351 = vmatprep.subr.bf16.mxu0 %v3188
      %4352 = vmatpush2.bf16.msra.mxu0 %v3187
      %4353 = vmatprep.subr.bf16.mxu0 %v3168
      %4354 = vmatpush2.bf16.msra.mxu0 %v3167
      %4355 = vmatprep.subr.bf16.mxu0 %v3148
      %4356 = vmatpush2.bf16.msra.mxu0 %v3147
      %4357 = vmatprep.subr.bf16.mxu0 %v3128
      %4358 = vmatpush2.bf16.msra.mxu0 %v3127
      %4359 = vmatprep.mubr.bf16.mxu0 %v1038
      %4360 = vmatmul.mubr.bf16.gmra.mxu0 %v1037
      %v4361 = vpop.f32.mrf.mxu0
      %v4362 = vadd.f32 0.0, %v4361
      %v4363 = vpop.f32.mrf.mxu0
      %v4364 = vadd.f32 0.0, %v4363
      %v4365 = vpop.f32.mrf.mxu0
      %v4366 = vpop.f32.mrf.mxu0
      %4367 = vdwg.mxu0
      %4368 = vmatprep.subr.bf16.mxu0 %v3428
      %4369 = vmatpush1.bf16.msra.mxu0 %v3427
      %4370 = vmatprep.subr.bf16.mxu0 %v3408
      %4371 = vmatpush1.bf16.msra.mxu0 %v3407
      %4372 = vmatprep.subr.bf16.mxu0 %v3388
      %4373 = vmatpush1.bf16.msra.mxu0 %v3387
      %4374 = vmatprep.subr.bf16.mxu0 %v3368
      %4375 = vmatpush1.bf16.msra.mxu0 %v3367
      %4376 = vmatprep.subr.bf16.mxu0 %v3348
      %4377 = vmatpush1.bf16.msra.mxu0 %v3347
      %4378 = vmatprep.subr.bf16.mxu0 %v3328
      %4379 = vmatpush1.bf16.msra.mxu0 %v3327
      %4380 = vmatprep.subr.bf16.mxu0 %v3308
      %4381 = vmatpush1.bf16.msra.mxu0 %v3307
      %4382 = vmatprep.subr.bf16.mxu0 %v3288
      %4383 = vmatpush1.bf16.msra.mxu0 %v3287
      %4384 = vmatprep.subr.bf16.mxu0 %v3588
      %4385 = vmatpush2.bf16.msra.mxu0 %v3587
      %4386 = vmatprep.subr.bf16.mxu0 %v3568
      %4387 = vmatpush2.bf16.msra.mxu0 %v3567
      %4388 = vmatprep.subr.bf16.mxu0 %v3548
      %4389 = vmatpush2.bf16.msra.mxu0 %v3547
      %4390 = vmatprep.subr.bf16.mxu0 %v3528
      %4391 = vmatpush2.bf16.msra.mxu0 %v3527
      %4392 = vmatprep.subr.bf16.mxu0 %v3508
      %4393 = vmatpush2.bf16.msra.mxu0 %v3507
      %4394 = vmatprep.subr.bf16.mxu0 %v3488
      %4395 = vmatpush2.bf16.msra.mxu0 %v3487
      %4396 = vmatprep.subr.bf16.mxu0 %v3468
      %4397 = vmatpush2.bf16.msra.mxu0 %v3467
      %4398 = vmatprep.subr.bf16.mxu0 %v3448
      %4399 = vmatpush2.bf16.msra.mxu0 %v3447
      %4400 = vmatprep.mubr.bf16.mxu0 %v1040
      %4401 = vmatmul.mubr.bf16.gmra.mxu0 %v1039
      %v4402 = vpop.f32.mrf.mxu0
      %v4403 = vadd.f32 %v4362, %v4402
      %v4404 = vpop.f32.mrf.mxu0
      %v4405 = vadd.f32 %v4364, %v4404
      %v4406 = vpop.f32.mrf.mxu0
      %v4407 = vpop.f32.mrf.mxu0
      %4408 = vdwg.mxu0
      %4409 = vmatprep.subr.bf16.mxu0 %v3110
      %4410 = vmatpush1.bf16.msra.mxu0 %v3109
      %4411 = vmatprep.subr.bf16.mxu0 %v3090
      %4412 = vmatpush1.bf16.msra.mxu0 %v3089
      %4413 = vmatprep.subr.bf16.mxu0 %v3070
      %4414 = vmatpush1.bf16.msra.mxu0 %v3069
      %4415 = vmatprep.subr.bf16.mxu0 %v3050
      %4416 = vmatpush1.bf16.msra.mxu0 %v3049
      %4417 = vmatprep.subr.bf16.mxu0 %v3030
      %4418 = vmatpush1.bf16.msra.mxu0 %v3029
      %4419 = vmatprep.subr.bf16.mxu0 %v3010
      %4420 = vmatpush1.bf16.msra.mxu0 %v3009
      %4421 = vmatprep.subr.bf16.mxu0 %v2990
      %4422 = vmatpush1.bf16.msra.mxu0 %v2989
      %4423 = vmatprep.subr.bf16.mxu0 %v2970
      %4424 = vmatpush1.bf16.msra.mxu0 %v2969
      %4425 = vmatprep.subr.bf16.mxu0 %v3270
      %4426 = vmatpush2.bf16.msra.mxu0 %v3269
      %4427 = vmatprep.subr.bf16.mxu0 %v3250
      %4428 = vmatpush2.bf16.msra.mxu0 %v3249
      %4429 = vmatprep.subr.bf16.mxu0 %v3230
      %4430 = vmatpush2.bf16.msra.mxu0 %v3229
      %4431 = vmatprep.subr.bf16.mxu0 %v3210
      %4432 = vmatpush2.bf16.msra.mxu0 %v3209
      %4433 = vmatprep.subr.bf16.mxu0 %v3190
      %4434 = vmatpush2.bf16.msra.mxu0 %v3189
      %4435 = vmatprep.subr.bf16.mxu0 %v3170
      %4436 = vmatpush2.bf16.msra.mxu0 %v3169
      %4437 = vmatprep.subr.bf16.mxu0 %v3150
      %4438 = vmatpush2.bf16.msra.mxu0 %v3149
      %4439 = vmatprep.subr.bf16.mxu0 %v3130
      %4440 = vmatpush2.bf16.msra.mxu0 %v3129
      %4441 = vmatprep.mubr.bf16.mxu0 %v1038
      %4442 = vmatmul.mubr.bf16.gmra.mxu0 %v1037
      %v4443 = vpop.f32.mrf.mxu0
      %v4444 = vadd.f32 0.0, %v4443
      %v4445 = vpop.f32.mrf.mxu0
      %v4446 = vadd.f32 0.0, %v4445
      %v4447 = vpop.f32.mrf.mxu0
      %v4448 = vpop.f32.mrf.mxu0
      %4449 = vdwg.mxu0
      %4450 = vmatprep.subr.bf16.mxu0 %v3430
      %4451 = vmatpush1.bf16.msra.mxu0 %v3429
      %4452 = vmatprep.subr.bf16.mxu0 %v3410
      %4453 = vmatpush1.bf16.msra.mxu0 %v3409
      %4454 = vmatprep.subr.bf16.mxu0 %v3390
      %4455 = vmatpush1.bf16.msra.mxu0 %v3389
      %4456 = vmatprep.subr.bf16.mxu0 %v3370
      %4457 = vmatpush1.bf16.msra.mxu0 %v3369
      %4458 = vmatprep.subr.bf16.mxu0 %v3350
      %4459 = vmatpush1.bf16.msra.mxu0 %v3349
      %4460 = vmatprep.subr.bf16.mxu0 %v3330
      %4461 = vmatpush1.bf16.msra.mxu0 %v3329
      %4462 = vmatprep.subr.bf16.mxu0 %v3310
      %4463 = vmatpush1.bf16.msra.mxu0 %v3309
      %4464 = vmatprep.subr.bf16.mxu0 %v3290
      %4465 = vmatpush1.bf16.msra.mxu0 %v3289
      %4466 = vmatprep.subr.bf16.mxu0 %v3590
      %4467 = vmatpush2.bf16.msra.mxu0 %v3589
      %4468 = vmatprep.subr.bf16.mxu0 %v3570
      %4469 = vmatpush2.bf16.msra.mxu0 %v3569
      %4470 = vmatprep.subr.bf16.mxu0 %v3550
      %4471 = vmatpush2.bf16.msra.mxu0 %v3549
      %4472 = vmatprep.subr.bf16.mxu0 %v3530
      %4473 = vmatpush2.bf16.msra.mxu0 %v3529
      %4474 = vmatprep.subr.bf16.mxu0 %v3510
      %4475 = vmatpush2.bf16.msra.mxu0 %v3509
      %4476 = vmatprep.subr.bf16.mxu0 %v3490
      %4477 = vmatpush2.bf16.msra.mxu0 %v3489
      %4478 = vmatprep.subr.bf16.mxu0 %v3470
      %4479 = vmatpush2.bf16.msra.mxu0 %v3469
      %4480 = vmatprep.subr.bf16.mxu0 %v3450
      %4481 = vmatpush2.bf16.msra.mxu0 %v3449
      %4482 = vmatprep.mubr.bf16.mxu0 %v1040
      %4483 = vmatmul.mubr.bf16.gmra.mxu0 %v1039
      %v4484 = vpop.f32.mrf.mxu0
      %v4485 = vadd.f32 %v4444, %v4484
      %v4486 = vpop.f32.mrf.mxu0
      %v4487 = vadd.f32 %v4446, %v4486
      %v4488 = vpop.f32.mrf.mxu0
      %v4489 = vpop.f32.mrf.mxu0
      %4490 = vdwg.mxu0
      %4491 = vmatprep.subr.bf16.mxu0 %v3112
      %4492 = vmatpush1.bf16.msra.mxu0 %v3111
      %4493 = vmatprep.subr.bf16.mxu0 %v3092
      %4494 = vmatpush1.bf16.msra.mxu0 %v3091
      %4495 = vmatprep.subr.bf16.mxu0 %v3072
      %4496 = vmatpush1.bf16.msra.mxu0 %v3071
      %4497 = vmatprep.subr.bf16.mxu0 %v3052
      %4498 = vmatpush1.bf16.msra.mxu0 %v3051
      %4499 = vmatprep.subr.bf16.mxu0 %v3032
      %4500 = vmatpush1.bf16.msra.mxu0 %v3031
      %4501 = vmatprep.subr.bf16.mxu0 %v3012
      %4502 = vmatpush1.bf16.msra.mxu0 %v3011
      %4503 = vmatprep.subr.bf16.mxu0 %v2992
      %4504 = vmatpush1.bf16.msra.mxu0 %v2991
      %4505 = vmatprep.subr.bf16.mxu0 %v2972
      %4506 = vmatpush1.bf16.msra.mxu0 %v2971
      %4507 = vmatprep.subr.bf16.mxu0 %v3272
      %4508 = vmatpush2.bf16.msra.mxu0 %v3271
      %4509 = vmatprep.subr.bf16.mxu0 %v3252
      %4510 = vmatpush2.bf16.msra.mxu0 %v3251
      %4511 = vmatprep.subr.bf16.mxu0 %v3232
      %4512 = vmatpush2.bf16.msra.mxu0 %v3231
      %4513 = vmatprep.subr.bf16.mxu0 %v3212
      %4514 = vmatpush2.bf16.msra.mxu0 %v3211
      %4515 = vmatprep.subr.bf16.mxu0 %v3192
      %4516 = vmatpush2.bf16.msra.mxu0 %v3191
      %4517 = vmatprep.subr.bf16.mxu0 %v3172
      %4518 = vmatpush2.bf16.msra.mxu0 %v3171
      %4519 = vmatprep.subr.bf16.mxu0 %v3152
      %4520 = vmatpush2.bf16.msra.mxu0 %v3151
      %4521 = vmatprep.subr.bf16.mxu0 %v3132
      %4522 = vmatpush2.bf16.msra.mxu0 %v3131
      %4523 = vmatprep.mubr.bf16.mxu0 %v1038
      %4524 = vmatmul.mubr.bf16.gmra.mxu0 %v1037
      %v4525 = vpop.f32.mrf.mxu0
      %v4526 = vadd.f32 0.0, %v4525
      %v4527 = vpop.f32.mrf.mxu0
      %v4528 = vadd.f32 0.0, %v4527
      %v4529 = vpop.f32.mrf.mxu0
      %v4530 = vpop.f32.mrf.mxu0
      %4531 = vdwg.mxu0
      %4532 = vmatprep.subr.bf16.mxu0 %v3432
      %4533 = vmatpush1.bf16.msra.mxu0 %v3431
      %4534 = vmatprep.subr.bf16.mxu0 %v3412
      %4535 = vmatpush1.bf16.msra.mxu0 %v3411
      %4536 = vmatprep.subr.bf16.mxu0 %v3392
      %4537 = vmatpush1.bf16.msra.mxu0 %v3391
      %4538 = vmatprep.subr.bf16.mxu0 %v3372
      %4539 = vmatpush1.bf16.msra.mxu0 %v3371
      %4540 = vmatprep.subr.bf16.mxu0 %v3352
      %4541 = vmatpush1.bf16.msra.mxu0 %v3351
      %4542 = vmatprep.subr.bf16.mxu0 %v3332
      %4543 = vmatpush1.bf16.msra.mxu0 %v3331
      %4544 = vmatprep.subr.bf16.mxu0 %v3312
      %4545 = vmatpush1.bf16.msra.mxu0 %v3311
      %4546 = vmatprep.subr.bf16.mxu0 %v3292
      %4547 = vmatpush1.bf16.msra.mxu0 %v3291
      %4548 = vmatprep.subr.bf16.mxu0 %v3592
      %4549 = vmatpush2.bf16.msra.mxu0 %v3591
      %4550 = vmatprep.subr.bf16.mxu0 %v3572
      %4551 = vmatpush2.bf16.msra.mxu0 %v3571
      %4552 = vmatprep.subr.bf16.mxu0 %v3552
      %4553 = vmatpush2.bf16.msra.mxu0 %v3551
      %4554 = vmatprep.subr.bf16.mxu0 %v3532
      %4555 = vmatpush2.bf16.msra.mxu0 %v3531
      %4556 = vmatprep.subr.bf16.mxu0 %v3512
      %4557 = vmatpush2.bf16.msra.mxu0 %v3511
      %4558 = vmatprep.subr.bf16.mxu0 %v3492
      %4559 = vmatpush2.bf16.msra.mxu0 %v3491
      %4560 = vmatprep.subr.bf16.mxu0 %v3472
      %4561 = vmatpush2.bf16.msra.mxu0 %v3471
      %4562 = vmatprep.subr.bf16.mxu0 %v3452
      %4563 = vmatpush2.bf16.msra.mxu0 %v3451
      %4564 = vmatprep.mubr.bf16.mxu0 %v1040
      %4565 = vmatmul.mubr.bf16.gmra.mxu0 %v1039
      %v4566 = vpop.f32.mrf.mxu0
      %v4567 = vadd.f32 %v4526, %v4566
      %v4568 = vpop.f32.mrf.mxu0
      %v4569 = vadd.f32 %v4528, %v4568
      %v4570 = vpop.f32.mrf.mxu0
      %v4571 = vpop.f32.mrf.mxu0
      %4572 = vdwg.mxu0
      %4573 = vmatprep.subr.bf16.mxu0 %v3114
      %4574 = vmatpush1.bf16.msra.mxu0 %v3113
      %4575 = vmatprep.subr.bf16.mxu0 %v3094
      %4576 = vmatpush1.bf16.msra.mxu0 %v3093
      %4577 = vmatprep.subr.bf16.mxu0 %v3074
      %4578 = vmatpush1.bf16.msra.mxu0 %v3073
      %4579 = vmatprep.subr.bf16.mxu0 %v3054
      %4580 = vmatpush1.bf16.msra.mxu0 %v3053
      %4581 = vmatprep.subr.bf16.mxu0 %v3034
      %4582 = vmatpush1.bf16.msra.mxu0 %v3033
      %4583 = vmatprep.subr.bf16.mxu0 %v3014
      %4584 = vmatpush1.bf16.msra.mxu0 %v3013
      %4585 = vmatprep.subr.bf16.mxu0 %v2994
      %4586 = vmatpush1.bf16.msra.mxu0 %v2993
      %4587 = vmatprep.subr.bf16.mxu0 %v2974
      %4588 = vmatpush1.bf16.msra.mxu0 %v2973
      %4589 = vmatprep.subr.bf16.mxu0 %v3274
      %4590 = vmatpush2.bf16.msra.mxu0 %v3273
      %4591 = vmatprep.subr.bf16.mxu0 %v3254
      %4592 = vmatpush2.bf16.msra.mxu0 %v3253
      %4593 = vmatprep.subr.bf16.mxu0 %v3234
      %4594 = vmatpush2.bf16.msra.mxu0 %v3233
      %4595 = vmatprep.subr.bf16.mxu0 %v3214
      %4596 = vmatpush2.bf16.msra.mxu0 %v3213
      %4597 = vmatprep.subr.bf16.mxu0 %v3194
      %4598 = vmatpush2.bf16.msra.mxu0 %v3193
      %4599 = vmatprep.subr.bf16.mxu0 %v3174
      %4600 = vmatpush2.bf16.msra.mxu0 %v3173
      %4601 = vmatprep.subr.bf16.mxu0 %v3154
      %4602 = vmatpush2.bf16.msra.mxu0 %v3153
      %4603 = vmatprep.subr.bf16.mxu0 %v3134
      %4604 = vmatpush2.bf16.msra.mxu0 %v3133
      %4605 = vmatprep.mubr.bf16.mxu0 %v1038
      %4606 = vmatmul.mubr.bf16.gmra.mxu0 %v1037
      %v4607 = vpop.f32.mrf.mxu0
      %v4608 = vadd.f32 0.0, %v4607
      %v4609 = vpop.f32.mrf.mxu0
      %v4610 = vadd.f32 0.0, %v4609
      %v4611 = vpop.f32.mrf.mxu0
      %v4612 = vpop.f32.mrf.mxu0
      %4613 = vdwg.mxu0
      %4614 = vmatprep.subr.bf16.mxu0 %v3434
      %4615 = vmatpush1.bf16.msra.mxu0 %v3433
      %4616 = vmatprep.subr.bf16.mxu0 %v3414
      %4617 = vmatpush1.bf16.msra.mxu0 %v3413
      %4618 = vmatprep.subr.bf16.mxu0 %v3394
      %4619 = vmatpush1.bf16.msra.mxu0 %v3393
      %4620 = vmatprep.subr.bf16.mxu0 %v3374
      %4621 = vmatpush1.bf16.msra.mxu0 %v3373
      %4622 = vmatprep.subr.bf16.mxu0 %v3354
      %4623 = vmatpush1.bf16.msra.mxu0 %v3353
      %4624 = vmatprep.subr.bf16.mxu0 %v3334
      %4625 = vmatpush1.bf16.msra.mxu0 %v3333
      %4626 = vmatprep.subr.bf16.mxu0 %v3314
      %4627 = vmatpush1.bf16.msra.mxu0 %v3313
      %4628 = vmatprep.subr.bf16.mxu0 %v3294
      %4629 = vmatpush1.bf16.msra.mxu0 %v3293
      %4630 = vmatprep.subr.bf16.mxu0 %v3594
      %4631 = vmatpush2.bf16.msra.mxu0 %v3593
      %4632 = vmatprep.subr.bf16.mxu0 %v3574
      %4633 = vmatpush2.bf16.msra.mxu0 %v3573
      %4634 = vmatprep.subr.bf16.mxu0 %v3554
      %4635 = vmatpush2.bf16.msra.mxu0 %v3553
      %4636 = vmatprep.subr.bf16.mxu0 %v3534
      %4637 = vmatpush2.bf16.msra.mxu0 %v3533
      %4638 = vmatprep.subr.bf16.mxu0 %v3514
      %4639 = vmatpush2.bf16.msra.mxu0 %v3513
      %4640 = vmatprep.subr.bf16.mxu0 %v3494
      %4641 = vmatpush2.bf16.msra.mxu0 %v3493
      %4642 = vmatprep.subr.bf16.mxu0 %v3474
      %4643 = vmatpush2.bf16.msra.mxu0 %v3473
      %4644 = vmatprep.subr.bf16.mxu0 %v3454
      %4645 = vmatpush2.bf16.msra.mxu0 %v3453
      %4646 = vmatprep.mubr.bf16.mxu0 %v1040
      %4647 = vmatmul.mubr.bf16.gmra.mxu0 %v1039
      %v4648 = vpop.f32.mrf.mxu0
      %v4649 = vadd.f32 %v4608, %v4648
      %v4650 = vpop.f32.mrf.mxu0
      %v4651 = vadd.f32 %v4610, %v4650
      %v4652 = vpop.f32.mrf.mxu0
      %v4653 = vpop.f32.mrf.mxu0
      %4654 = vdwg.mxu0
      %4655 = vmatprep.subr.bf16.mxu0 %v3116
      %4656 = vmatpush1.bf16.msra.mxu0 %v3115
      %4657 = vmatprep.subr.bf16.mxu0 %v3096
      %4658 = vmatpush1.bf16.msra.mxu0 %v3095
      %4659 = vmatprep.subr.bf16.mxu0 %v3076
      %4660 = vmatpush1.bf16.msra.mxu0 %v3075
      %4661 = vmatprep.subr.bf16.mxu0 %v3056
      %4662 = vmatpush1.bf16.msra.mxu0 %v3055
      %4663 = vmatprep.subr.bf16.mxu0 %v3036
      %4664 = vmatpush1.bf16.msra.mxu0 %v3035
      %4665 = vmatprep.subr.bf16.mxu0 %v3016
      %4666 = vmatpush1.bf16.msra.mxu0 %v3015
      %4667 = vmatprep.subr.bf16.mxu0 %v2996
      %4668 = vmatpush1.bf16.msra.mxu0 %v2995
      %4669 = vmatprep.subr.bf16.mxu0 %v2976
      %4670 = vmatpush1.bf16.msra.mxu0 %v2975
      %4671 = vmatprep.subr.bf16.mxu0 %v3276
      %4672 = vmatpush2.bf16.msra.mxu0 %v3275
      %4673 = vmatprep.subr.bf16.mxu0 %v3256
      %4674 = vmatpush2.bf16.msra.mxu0 %v3255
      %4675 = vmatprep.subr.bf16.mxu0 %v3236
      %4676 = vmatpush2.bf16.msra.mxu0 %v3235
      %4677 = vmatprep.subr.bf16.mxu0 %v3216
      %4678 = vmatpush2.bf16.msra.mxu0 %v3215
      %4679 = vmatprep.subr.bf16.mxu0 %v3196
      %4680 = vmatpush2.bf16.msra.mxu0 %v3195
      %4681 = vmatprep.subr.bf16.mxu0 %v3176
      %4682 = vmatpush2.bf16.msra.mxu0 %v3175
      %4683 = vmatprep.subr.bf16.mxu0 %v3156
      %4684 = vmatpush2.bf16.msra.mxu0 %v3155
      %4685 = vmatprep.subr.bf16.mxu0 %v3136
      %4686 = vmatpush2.bf16.msra.mxu0 %v3135
      %4687 = vmatprep.mubr.bf16.mxu0 %v1038
      %4688 = vmatmul.mubr.bf16.gmra.mxu0 %v1037
      %v4689 = vpop.f32.mrf.mxu0
      %v4690 = vadd.f32 0.0, %v4689
      %v4691 = vpop.f32.mrf.mxu0
      %v4692 = vadd.f32 0.0, %v4691
      %v4693 = vpop.f32.mrf.mxu0
      %v4694 = vpop.f32.mrf.mxu0
      %4695 = vdwg.mxu0
      %4696 = vmatprep.subr.bf16.mxu0 %v3436
      %4697 = vmatpush1.bf16.msra.mxu0 %v3435
      %4698 = vmatprep.subr.bf16.mxu0 %v3416
      %4699 = vmatpush1.bf16.msra.mxu0 %v3415
      %4700 = vmatprep.subr.bf16.mxu0 %v3396
      %4701 = vmatpush1.bf16.msra.mxu0 %v3395
      %4702 = vmatprep.subr.bf16.mxu0 %v3376
      %4703 = vmatpush1.bf16.msra.mxu0 %v3375
      %4704 = vmatprep.subr.bf16.mxu0 %v3356
      %4705 = vmatpush1.bf16.msra.mxu0 %v3355
      %4706 = vmatprep.subr.bf16.mxu0 %v3336
      %4707 = vmatpush1.bf16.msra.mxu0 %v3335
      %4708 = vmatprep.subr.bf16.mxu0 %v3316
      %4709 = vmatpush1.bf16.msra.mxu0 %v3315
      %4710 = vmatprep.subr.bf16.mxu0 %v3296
      %4711 = vmatpush1.bf16.msra.mxu0 %v3295
      %4712 = vmatprep.subr.bf16.mxu0 %v3596
      %4713 = vmatpush2.bf16.msra.mxu0 %v3595
      %4714 = vmatprep.subr.bf16.mxu0 %v3576
      %4715 = vmatpush2.bf16.msra.mxu0 %v3575
      %4716 = vmatprep.subr.bf16.mxu0 %v3556
      %4717 = vmatpush2.bf16.msra.mxu0 %v3555
      %4718 = vmatprep.subr.bf16.mxu0 %v3536
      %4719 = vmatpush2.bf16.msra.mxu0 %v3535
      %4720 = vmatprep.subr.bf16.mxu0 %v3516
      %4721 = vmatpush2.bf16.msra.mxu0 %v3515
      %4722 = vmatprep.subr.bf16.mxu0 %v3496
      %4723 = vmatpush2.bf16.msra.mxu0 %v3495
      %4724 = vmatprep.subr.bf16.mxu0 %v3476
      %4725 = vmatpush2.bf16.msra.mxu0 %v3475
      %4726 = vmatprep.subr.bf16.mxu0 %v3456
      %4727 = vmatpush2.bf16.msra.mxu0 %v3455
      %4728 = vmatprep.mubr.bf16.mxu0 %v1040
      %4729 = vmatmul.mubr.bf16.gmra.mxu0 %v1039
      %v4730 = vpop.f32.mrf.mxu0
      %v4731 = vadd.f32 %v4690, %v4730
      %v4732 = vpop.f32.mrf.mxu0
      %v4733 = vadd.f32 %v4692, %v4732
      %v4734 = vpop.f32.mrf.mxu0
      %v4735 = vpop.f32.mrf.mxu0
      %4736 = vdwg.mxu0
      %4737 = vmatprep.subr.bf16.mxu0 %v3118
      %4738 = vmatpush1.bf16.msra.mxu0 %v3117
      %4739 = vmatprep.subr.bf16.mxu0 %v3098
      %4740 = vmatpush1.bf16.msra.mxu0 %v3097
      %4741 = vmatprep.subr.bf16.mxu0 %v3078
      %4742 = vmatpush1.bf16.msra.mxu0 %v3077
      %4743 = vmatprep.subr.bf16.mxu0 %v3058
      %4744 = vmatpush1.bf16.msra.mxu0 %v3057
      %4745 = vmatprep.subr.bf16.mxu0 %v3038
      %4746 = vmatpush1.bf16.msra.mxu0 %v3037
      %4747 = vmatprep.subr.bf16.mxu0 %v3018
      %4748 = vmatpush1.bf16.msra.mxu0 %v3017
      %4749 = vmatprep.subr.bf16.mxu0 %v2998
      %4750 = vmatpush1.bf16.msra.mxu0 %v2997
      %4751 = vmatprep.subr.bf16.mxu0 %v2978
      %4752 = vmatpush1.bf16.msra.mxu0 %v2977
      %4753 = vmatprep.subr.bf16.mxu0 %v3278
      %4754 = vmatpush2.bf16.msra.mxu0 %v3277
      %4755 = vmatprep.subr.bf16.mxu0 %v3258
      %4756 = vmatpush2.bf16.msra.mxu0 %v3257
      %4757 = vmatprep.subr.bf16.mxu0 %v3238
      %4758 = vmatpush2.bf16.msra.mxu0 %v3237
      %4759 = vmatprep.subr.bf16.mxu0 %v3218
      %4760 = vmatpush2.bf16.msra.mxu0 %v3217
      %4761 = vmatprep.subr.bf16.mxu0 %v3198
      %4762 = vmatpush2.bf16.msra.mxu0 %v3197
      %4763 = vmatprep.subr.bf16.mxu0 %v3178
      %4764 = vmatpush2.bf16.msra.mxu0 %v3177
      %4765 = vmatprep.subr.bf16.mxu0 %v3158
      %4766 = vmatpush2.bf16.msra.mxu0 %v3157
      %4767 = vmatprep.subr.bf16.mxu0 %v3138
      %4768 = vmatpush2.bf16.msra.mxu0 %v3137
      %4769 = vmatprep.mubr.bf16.mxu0 %v1038
      %4770 = vmatmul.mubr.bf16.gmra.mxu0 %v1037
      %v4771 = vpop.f32.mrf.mxu0
      %v4772 = vadd.f32 0.0, %v4771
      %v4773 = vpop.f32.mrf.mxu0
      %v4774 = vadd.f32 0.0, %v4773
      %v4775 = vpop.f32.mrf.mxu0
      %v4776 = vpop.f32.mrf.mxu0
      %4777 = vdwg.mxu0
      %4778 = vmatprep.subr.bf16.mxu0 %v3438
      %4779 = vmatpush1.bf16.msra.mxu0 %v3437
      %4780 = vmatprep.subr.bf16.mxu0 %v3418
      %4781 = vmatpush1.bf16.msra.mxu0 %v3417
      %4782 = vmatprep.subr.bf16.mxu0 %v3398
      %4783 = vmatpush1.bf16.msra.mxu0 %v3397
      %4784 = vmatprep.subr.bf16.mxu0 %v3378
      %4785 = vmatpush1.bf16.msra.mxu0 %v3377
      %4786 = vmatprep.subr.bf16.mxu0 %v3358
      %4787 = vmatpush1.bf16.msra.mxu0 %v3357
      %4788 = vmatprep.subr.bf16.mxu0 %v3338
      %4789 = vmatpush1.bf16.msra.mxu0 %v3337
      %4790 = vmatprep.subr.bf16.mxu0 %v3318
      %4791 = vmatpush1.bf16.msra.mxu0 %v3317
      %4792 = vmatprep.subr.bf16.mxu0 %v3298
      %4793 = vmatpush1.bf16.msra.mxu0 %v3297
      %4794 = vmatprep.subr.bf16.mxu0 %v3598
      %4795 = vmatpush2.bf16.msra.mxu0 %v3597
      %4796 = vmatprep.subr.bf16.mxu0 %v3578
      %4797 = vmatpush2.bf16.msra.mxu0 %v3577
      %4798 = vmatprep.subr.bf16.mxu0 %v3558
      %4799 = vmatpush2.bf16.msra.mxu0 %v3557
      %4800 = vmatprep.subr.bf16.mxu0 %v3538
      %4801 = vmatpush2.bf16.msra.mxu0 %v3537
      %4802 = vmatprep.subr.bf16.mxu0 %v3518
      %4803 = vmatpush2.bf16.msra.mxu0 %v3517
      %4804 = vmatprep.subr.bf16.mxu0 %v3498
      %4805 = vmatpush2.bf16.msra.mxu0 %v3497
      %4806 = vmatprep.subr.bf16.mxu0 %v3478
      %4807 = vmatpush2.bf16.msra.mxu0 %v3477
      %4808 = vmatprep.subr.bf16.mxu0 %v3458
      %4809 = vmatpush2.bf16.msra.mxu0 %v3457
      %4810 = vmatprep.mubr.bf16.mxu0 %v1040
      %4811 = vmatmul.mubr.bf16.gmra.mxu0 %v1039
      %v4812 = vpop.f32.mrf.mxu0
      %v4813 = vadd.f32 %v4772, %v4812
      %v4814 = vpop.f32.mrf.mxu0
      %v4815 = vadd.f32 %v4774, %v4814
      %v4816 = vpop.f32.mrf.mxu0
      %v4817 = vpop.f32.mrf.mxu0
      %4818 = vdwg.mxu0
      %4819 = vmatprep.subr.bf16.mxu0 %v3120
      %4820 = vmatpush1.bf16.msra.mxu0 %v3119
      %4821 = vmatprep.subr.bf16.mxu0 %v3100
      %4822 = vmatpush1.bf16.msra.mxu0 %v3099
      %4823 = vmatprep.subr.bf16.mxu0 %v3080
      %4824 = vmatpush1.bf16.msra.mxu0 %v3079
      %4825 = vmatprep.subr.bf16.mxu0 %v3060
      %4826 = vmatpush1.bf16.msra.mxu0 %v3059
      %4827 = vmatprep.subr.bf16.mxu0 %v3040
      %4828 = vmatpush1.bf16.msra.mxu0 %v3039
      %4829 = vmatprep.subr.bf16.mxu0 %v3020
      %4830 = vmatpush1.bf16.msra.mxu0 %v3019
      %4831 = vmatprep.subr.bf16.mxu0 %v3000
      %4832 = vmatpush1.bf16.msra.mxu0 %v2999
      %4833 = vmatprep.subr.bf16.mxu0 %v2980
      %4834 = vmatpush1.bf16.msra.mxu0 %v2979
      %4835 = vmatprep.subr.bf16.mxu0 %v3280
      %4836 = vmatpush2.bf16.msra.mxu0 %v3279
      %4837 = vmatprep.subr.bf16.mxu0 %v3260
      %4838 = vmatpush2.bf16.msra.mxu0 %v3259
      %4839 = vmatprep.subr.bf16.mxu0 %v3240
      %4840 = vmatpush2.bf16.msra.mxu0 %v3239
      %4841 = vmatprep.subr.bf16.mxu0 %v3220
      %4842 = vmatpush2.bf16.msra.mxu0 %v3219
      %4843 = vmatprep.subr.bf16.mxu0 %v3200
      %4844 = vmatpush2.bf16.msra.mxu0 %v3199
      %4845 = vmatprep.subr.bf16.mxu0 %v3180
      %4846 = vmatpush2.bf16.msra.mxu0 %v3179
      %4847 = vmatprep.subr.bf16.mxu0 %v3160
      %4848 = vmatpush2.bf16.msra.mxu0 %v3159
      %4849 = vmatprep.subr.bf16.mxu0 %v3140
      %4850 = vmatpush2.bf16.msra.mxu0 %v3139
      %4851 = vmatprep.mubr.bf16.mxu0 %v1038
      %4852 = vmatmul.mubr.bf16.gmra.mxu0 %v1037
      %v4853 = vpop.f32.mrf.mxu0
      %v4854 = vadd.f32 0.0, %v4853
      %v4855 = vpop.f32.mrf.mxu0
      %v4856 = vadd.f32 0.0, %v4855
      %v4857 = vpop.f32.mrf.mxu0
      %v4858 = vpop.f32.mrf.mxu0
      %4859 = vdwg.mxu0
      %4860 = vmatprep.subr.bf16.mxu0 %v3440
      %4861 = vmatpush1.bf16.msra.mxu0 %v3439
      %4862 = vmatprep.subr.bf16.mxu0 %v3420
      %4863 = vmatpush1.bf16.msra.mxu0 %v3419
      %4864 = vmatprep.subr.bf16.mxu0 %v3400
      %4865 = vmatpush1.bf16.msra.mxu0 %v3399
      %4866 = vmatprep.subr.bf16.mxu0 %v3380
      %4867 = vmatpush1.bf16.msra.mxu0 %v3379
      %4868 = vmatprep.subr.bf16.mxu0 %v3360
      %4869 = vmatpush1.bf16.msra.mxu0 %v3359
      %4870 = vmatprep.subr.bf16.mxu0 %v3340
      %4871 = vmatpush1.bf16.msra.mxu0 %v3339
      %4872 = vmatprep.subr.bf16.mxu0 %v3320
      %4873 = vmatpush1.bf16.msra.mxu0 %v3319
      %4874 = vmatprep.subr.bf16.mxu0 %v3300
      %4875 = vmatpush1.bf16.msra.mxu0 %v3299
      %4876 = vmatprep.subr.bf16.mxu0 %v3600
      %4877 = vmatpush2.bf16.msra.mxu0 %v3599
      %4878 = vmatprep.subr.bf16.mxu0 %v3580
      %4879 = vmatpush2.bf16.msra.mxu0 %v3579
      %4880 = vmatprep.subr.bf16.mxu0 %v3560
      %4881 = vmatpush2.bf16.msra.mxu0 %v3559
      %4882 = vmatprep.subr.bf16.mxu0 %v3540
      %4883 = vmatpush2.bf16.msra.mxu0 %v3539
      %4884 = vmatprep.subr.bf16.mxu0 %v3520
      %4885 = vmatpush2.bf16.msra.mxu0 %v3519
      %4886 = vmatprep.subr.bf16.mxu0 %v3500
      %4887 = vmatpush2.bf16.msra.mxu0 %v3499
      %4888 = vmatprep.subr.bf16.mxu0 %v3480
      %4889 = vmatpush2.bf16.msra.mxu0 %v3479
      %4890 = vmatprep.subr.bf16.mxu0 %v3460
      %4891 = vmatpush2.bf16.msra.mxu0 %v3459
      %4892 = vmatprep.mubr.bf16.mxu0 %v1040
      %4893 = vmatmul.mubr.bf16.gmra.mxu0 %v1039
      %v4894 = vpop.f32.mrf.mxu0
      %v4895 = vadd.f32 %v4854, %v4894
      %v4896 = vpop.f32.mrf.mxu0
      %v4897 = vadd.f32 %v4856, %v4896
      %v4898 = vpop.f32.mrf.mxu0
      %v4899 = vpop.f32.mrf.mxu0
      %4900 = vdwg.mxu0
      %4901 = vmatprep.subr.bf16.mxu0 %v3122
      %4902 = vmatpush1.bf16.msra.mxu0 %v3121
      %4903 = vmatprep.subr.bf16.mxu0 %v3102
      %4904 = vmatpush1.bf16.msra.mxu0 %v3101
      %4905 = vmatprep.subr.bf16.mxu0 %v3082
      %4906 = vmatpush1.bf16.msra.mxu0 %v3081
      %4907 = vmatprep.subr.bf16.mxu0 %v3062
      %4908 = vmatpush1.bf16.msra.mxu0 %v3061
      %4909 = vmatprep.subr.bf16.mxu0 %v3042
      %4910 = vmatpush1.bf16.msra.mxu0 %v3041
      %4911 = vmatprep.subr.bf16.mxu0 %v3022
      %4912 = vmatpush1.bf16.msra.mxu0 %v3021
      %4913 = vmatprep.subr.bf16.mxu0 %v3002
      %4914 = vmatpush1.bf16.msra.mxu0 %v3001
      %4915 = vmatprep.subr.bf16.mxu0 %v2982
      %4916 = vmatpush1.bf16.msra.mxu0 %v2981
      %4917 = vmatprep.subr.bf16.mxu0 %v3282
      %4918 = vmatpush2.bf16.msra.mxu0 %v3281
      %4919 = vmatprep.subr.bf16.mxu0 %v3262
      %4920 = vmatpush2.bf16.msra.mxu0 %v3261
      %4921 = vmatprep.subr.bf16.mxu0 %v3242
      %4922 = vmatpush2.bf16.msra.mxu0 %v3241
      %4923 = vmatprep.subr.bf16.mxu0 %v3222
      %4924 = vmatpush2.bf16.msra.mxu0 %v3221
      %4925 = vmatprep.subr.bf16.mxu0 %v3202
      %4926 = vmatpush2.bf16.msra.mxu0 %v3201
      %4927 = vmatprep.subr.bf16.mxu0 %v3182
      %4928 = vmatpush2.bf16.msra.mxu0 %v3181
      %4929 = vmatprep.subr.bf16.mxu0 %v3162
      %4930 = vmatpush2.bf16.msra.mxu0 %v3161
      %4931 = vmatprep.subr.bf16.mxu0 %v3142
      %4932 = vmatpush2.bf16.msra.mxu0 %v3141
      %4933 = vmatprep.mubr.bf16.mxu0 %v1038
      %4934 = vmatmul.mubr.bf16.gmra.mxu0 %v1037
      %v4935 = vpop.f32.mrf.mxu0
      %v4936 = vadd.f32 0.0, %v4935
      %v4937 = vpop.f32.mrf.mxu0
      %v4938 = vadd.f32 0.0, %v4937
      %v4939 = vpop.f32.mrf.mxu0
      %v4940 = vpop.f32.mrf.mxu0
      %4941 = vdwg.mxu0
      %4942 = vmatprep.subr.bf16.mxu0 %v3442
      %4943 = vmatpush1.bf16.msra.mxu0 %v3441
      %4944 = vmatprep.subr.bf16.mxu0 %v3422
      %4945 = vmatpush1.bf16.msra.mxu0 %v3421
      %4946 = vmatprep.subr.bf16.mxu0 %v3402
      %4947 = vmatpush1.bf16.msra.mxu0 %v3401
      %4948 = vmatprep.subr.bf16.mxu0 %v3382
      %4949 = vmatpush1.bf16.msra.mxu0 %v3381
      %4950 = vmatprep.subr.bf16.mxu0 %v3362
      %4951 = vmatpush1.bf16.msra.mxu0 %v3361
      %4952 = vmatprep.subr.bf16.mxu0 %v3342
      %4953 = vmatpush1.bf16.msra.mxu0 %v3341
      %4954 = vmatprep.subr.bf16.mxu0 %v3322
      %4955 = vmatpush1.bf16.msra.mxu0 %v3321
      %4956 = vmatprep.subr.bf16.mxu0 %v3302
      %4957 = vmatpush1.bf16.msra.mxu0 %v3301
      %4958 = vmatprep.subr.bf16.mxu0 %v3602
      %4959 = vmatpush2.bf16.msra.mxu0 %v3601
      %4960 = vmatprep.subr.bf16.mxu0 %v3582
      %4961 = vmatpush2.bf16.msra.mxu0 %v3581
      %4962 = vmatprep.subr.bf16.mxu0 %v3562
      %4963 = vmatpush2.bf16.msra.mxu0 %v3561
      %4964 = vmatprep.subr.bf16.mxu0 %v3542
      %4965 = vmatpush2.bf16.msra.mxu0 %v3541
      %4966 = vmatprep.subr.bf16.mxu0 %v3522
      %4967 = vmatpush2.bf16.msra.mxu0 %v3521
      %4968 = vmatprep.subr.bf16.mxu0 %v3502
      %4969 = vmatpush2.bf16.msra.mxu0 %v3501
      %4970 = vmatprep.subr.bf16.mxu0 %v3482
      %4971 = vmatpush2.bf16.msra.mxu0 %v3481
      %4972 = vmatprep.subr.bf16.mxu0 %v3462
      %4973 = vmatpush2.bf16.msra.mxu0 %v3461
      %4974 = vmatprep.mubr.bf16.mxu0 %v1040
      %4975 = vmatmul.mubr.bf16.gmra.mxu0 %v1039
      %v4976 = vpop.f32.mrf.mxu0
      %v4977 = vadd.f32 %v4936, %v4976
      %v4978 = vpop.f32.mrf.mxu0
      %v4979 = vadd.f32 %v4938, %v4978
      %v4980 = vpop.f32.mrf.mxu0
      %v4981 = vpop.f32.mrf.mxu0
      %4982 = vdwg.mxu0
      %4983 = vmatprep.subr.bf16.mxu0 %v3124
      %4984 = vmatpush1.bf16.msra.mxu0 %v3123
      %4985 = vmatprep.subr.bf16.mxu0 %v3104
      %4986 = vmatpush1.bf16.msra.mxu0 %v3103
      %4987 = vmatprep.subr.bf16.mxu0 %v3084
      %4988 = vmatpush1.bf16.msra.mxu0 %v3083
      %4989 = vmatprep.subr.bf16.mxu0 %v3064
      %4990 = vmatpush1.bf16.msra.mxu0 %v3063
      %4991 = vmatprep.subr.bf16.mxu0 %v3044
      %4992 = vmatpush1.bf16.msra.mxu0 %v3043
      %4993 = vmatprep.subr.bf16.mxu0 %v3024
      %4994 = vmatpush1.bf16.msra.mxu0 %v3023
      %4995 = vmatprep.subr.bf16.mxu0 %v3004
      %4996 = vmatpush1.bf16.msra.mxu0 %v3003
      %4997 = vmatprep.subr.bf16.mxu0 %v2984
      %4998 = vmatpush1.bf16.msra.mxu0 %v2983
      %4999 = vmatprep.subr.bf16.mxu0 %v3284
      %5000 = vmatpush2.bf16.msra.mxu0 %v3283
      %5001 = vmatprep.subr.bf16.mxu0 %v3264
      %5002 = vmatpush2.bf16.msra.mxu0 %v3263
      %5003 = vmatprep.subr.bf16.mxu0 %v3244
      %5004 = vmatpush2.bf16.msra.mxu0 %v3243
      %5005 = vmatprep.subr.bf16.mxu0 %v3224
      %5006 = vmatpush2.bf16.msra.mxu0 %v3223
      %5007 = vmatprep.subr.bf16.mxu0 %v3204
      %5008 = vmatpush2.bf16.msra.mxu0 %v3203
      %5009 = vmatprep.subr.bf16.mxu0 %v3184
      %5010 = vmatpush2.bf16.msra.mxu0 %v3183
      %5011 = vmatprep.subr.bf16.mxu0 %v3164
      %5012 = vmatpush2.bf16.msra.mxu0 %v3163
      %5013 = vmatprep.subr.bf16.mxu0 %v3144
      %5014 = vmatpush2.bf16.msra.mxu0 %v3143
      %5015 = vmatprep.mubr.bf16.mxu0 %v1038
      %5016 = vmatmul.mubr.bf16.gmra.mxu0 %v1037
      %v5017 = vpop.f32.mrf.mxu0
      %v5018 = vadd.f32 0.0, %v5017
      %v5019 = vpop.f32.mrf.mxu0
      %v5020 = vadd.f32 0.0, %v5019
      %v5021 = vpop.f32.mrf.mxu0
      %v5022 = vpop.f32.mrf.mxu0
      %5023 = vdwg.mxu0
      %5024 = vmatprep.subr.bf16.mxu0 %v3444
      %5025 = vmatpush1.bf16.msra.mxu0 %v3443
      %5026 = vmatprep.subr.bf16.mxu0 %v3424
      %5027 = vmatpush1.bf16.msra.mxu0 %v3423
      %5028 = vmatprep.subr.bf16.mxu0 %v3404
      %5029 = vmatpush1.bf16.msra.mxu0 %v3403
      %5030 = vmatprep.subr.bf16.mxu0 %v3384
      %5031 = vmatpush1.bf16.msra.mxu0 %v3383
      %5032 = vmatprep.subr.bf16.mxu0 %v3364
      %5033 = vmatpush1.bf16.msra.mxu0 %v3363
      %5034 = vmatprep.subr.bf16.mxu0 %v3344
      %5035 = vmatpush1.bf16.msra.mxu0 %v3343
      %5036 = vmatprep.subr.bf16.mxu0 %v3324
      %5037 = vmatpush1.bf16.msra.mxu0 %v3323
      %5038 = vmatprep.subr.bf16.mxu0 %v3304
      %5039 = vmatpush1.bf16.msra.mxu0 %v3303
      %5040 = vmatprep.subr.bf16.mxu0 %v3604
      %5041 = vmatpush2.bf16.msra.mxu0 %v3603
      %5042 = vmatprep.subr.bf16.mxu0 %v3584
      %5043 = vmatpush2.bf16.msra.mxu0 %v3583
      %5044 = vmatprep.subr.bf16.mxu0 %v3564
      %5045 = vmatpush2.bf16.msra.mxu0 %v3563
      %5046 = vmatprep.subr.bf16.mxu0 %v3544
      %5047 = vmatpush2.bf16.msra.mxu0 %v3543
      %5048 = vmatprep.subr.bf16.mxu0 %v3524
      %5049 = vmatpush2.bf16.msra.mxu0 %v3523
      %5050 = vmatprep.subr.bf16.mxu0 %v3504
      %5051 = vmatpush2.bf16.msra.mxu0 %v3503
      %5052 = vmatprep.subr.bf16.mxu0 %v3484
      %5053 = vmatpush2.bf16.msra.mxu0 %v3483
      %5054 = vmatprep.subr.bf16.mxu0 %v3464
      %5055 = vmatpush2.bf16.msra.mxu0 %v3463
      %5056 = vmatprep.mubr.bf16.mxu0 %v1040
      %5057 = vmatmul.mubr.bf16.gmra.mxu0 %v1039
      %v5058 = vpop.f32.mrf.mxu0
      %v5059 = vadd.f32 %v5018, %v5058
      %v5060 = vpop.f32.mrf.mxu0
      %v5061 = vadd.f32 %v5020, %v5060
      %v5062 = vpop.f32.mrf.mxu0
      %v5063 = vpop.f32.mrf.mxu0
      %5064 = vdwg.mxu0
      %v5065 = vadd.f32 %v369, %v4321
      %v5066 = vadd.f32 %v370, %v4323
      %v5067 = vadd.f32 %v371, %v4403
      %v5068 = vadd.f32 %v372, %v4405
      %v5069 = vadd.f32 %v373, %v4485
      %v5070 = vadd.f32 %v374, %v4487
      %v5071 = vadd.f32 %v375, %v4567
      %v5072 = vadd.f32 %v376, %v4569
      %v5073 = vadd.f32 %v377, %v4649
      %v5074 = vadd.f32 %v378, %v4651
      %v5075 = vadd.f32 %v379, %v4731
      %v5076 = vadd.f32 %v380, %v4733
      %v5077 = vadd.f32 %v381, %v4813
      %v5078 = vadd.f32 %v382, %v4815
      %v5079 = vadd.f32 %v383, %v4895
      %v5080 = vadd.f32 %v384, %v4897
      %v5081 = vadd.f32 %v385, %v4977
      %v5082 = vadd.f32 %v386, %v4979
      %v5083 = vadd.f32 %v387, %v5059
      %v5084 = vadd.f32 %v388, %v5061
      %5085 = vst [vmem:[#allocation2] sm:$0xff] %v5065
      %5086 = vst [vmem:[#allocation2 + $0x8] sm:$0xff] %v5066
      %5087 = vst [vmem:[#allocation2 + $0x10] sm:$0xff] %v5067
      %5088 = vst [vmem:[#allocation2 + $0x18] sm:$0xff] %v5068
      %5089 = vst [vmem:[#allocation2 + $0x20] sm:$0xff] %v5069
      %5090 = vst [vmem:[#allocation2 + $0x28] sm:$0xff] %v5070
      %5091 = vst [vmem:[#allocation2 + $0x30] sm:$0xff] %v5071
      %5092 = vst [vmem:[#allocation2 + $0x38] sm:$0xff] %v5072
      %5093 = vst [vmem:[#allocation2 + $0x40] sm:$0xff] %v5073
      %5094 = vst [vmem:[#allocation2 + $0x48] sm:$0xff] %v5074
      %5095 = vst [vmem:[#allocation2 + $0x50] sm:$0xff] %v5075
      %5096 = vst [vmem:[#allocation2 + $0x58] sm:$0xff] %v5076
      %5097 = vst [vmem:[#allocation2 + $0x60] sm:$0xff] %v5077
      %5098 = vst [vmem:[#allocation2 + $0x68] sm:$0xff] %v5078
      %5099 = vst [vmem:[#allocation2 + $0x70] sm:$0xff] %v5079
      %5100 = vst [vmem:[#allocation2 + $0x78] sm:$0xff] %v5080
      %5101 = vst [vmem:[#allocation2 + $0x80] sm:$0xff] %v5081
      %5102 = vst [vmem:[#allocation2 + $0x88] sm:$0xff] %v5082
      %5103 = vst [vmem:[#allocation2 + $0x90] sm:$0xff] %v5083
      %5104 = vst [vmem:[#allocation2 + $0x98] sm:$0xff] %v5084
      %p5105 = scmp.eq.s32.totalorder %s20, 1
      // Predicated region
      $region61: #{baseline_adapter_transformer.1} parent=55 // pred_check
        %p5106 = pneg %p5105
      $region62: #{baseline_adapter_transformer.1} parent=55 // pred_check_branch
        %5108 = sbr.rel (%p5106) target = $region64
      $region63: #{baseline_adapter_transformer.1} parent=55 // pred_region
        %v5109 = vld [vmem:[#allocation2] sm:$0xff]
        %v5110 = vld [vmem:[#allocation2 + $0x8] sm:$0xff]
        %v5111 = vld [vmem:[#allocation2 + $0x10] sm:$0xff]
        %v5112 = vld [vmem:[#allocation2 + $0x18] sm:$0xff]
        %v5113 = vld [vmem:[#allocation2 + $0x20] sm:$0xff]
        %v5114 = vld [vmem:[#allocation2 + $0x28] sm:$0xff]
        %v5115 = vld [vmem:[#allocation2 + $0x30] sm:$0xff]
        %v5116 = vld [vmem:[#allocation2 + $0x38] sm:$0xff]
        %v5117 = vld [vmem:[#allocation2 + $0x40] sm:$0xff]
        %v5118 = vld [vmem:[#allocation2 + $0x48] sm:$0xff]
        %v5119 = vld [vmem:[#allocation2 + $0x50] sm:$0xff]
        %v5120 = vld [vmem:[#allocation2 + $0x58] sm:$0xff]
        %v5121 = vld [vmem:[#allocation2 + $0x60] sm:$0xff]
        %v5122 = vld [vmem:[#allocation2 + $0x68] sm:$0xff]
        %v5123 = vld [vmem:[#allocation2 + $0x70] sm:$0xff]
        %v5124 = vld [vmem:[#allocation2 + $0x78] sm:$0xff]
        %v5125 = vld [vmem:[#allocation2 + $0x80] sm:$0xff]
        %v5126 = vld [vmem:[#allocation2 + $0x88] sm:$0xff]
        %v5127 = vld [vmem:[#allocation2 + $0x90] sm:$0xff]
        %v5128 = vld [vmem:[#allocation2 + $0x98] sm:$0xff]
        %v5129 = vld [vmem:[%s2] sm:$0xff]
        %v5130 = vld [vmem:[%s2 + $0x8] sm:$0xff]
        %v5131 = vld [vmem:[%s2 + $0x10] sm:$0xf]
        %v5135 = vlaneseq
        %v5136 = vshrl.u32 %v5135, 7
        %v5137 = vsub.s32 0, %v5136
        %v5138 = vrot.slane %v5129, %v5137
        %v5139 = vlaneseq
        %v5140 = vshrl.u32 %v5139, 7
        %v5141 = vsub.s32 1, %v5140
        %v5142 = vrot.slane %v5129, %v5141
        %v5143 = vlaneseq
        %v5144 = vshrl.u32 %v5143, 7
        %v5145 = vsub.s32 2, %v5144
        %v5146 = vrot.slane %v5129, %v5145
        %v5147 = vlaneseq
        %v5148 = vshrl.u32 %v5147, 7
        %v5149 = vsub.s32 3, %v5148
        %v5150 = vrot.slane %v5129, %v5149
        %v5151 = vlaneseq
        %v5152 = vshrl.u32 %v5151, 7
        %v5153 = vsub.s32 4, %v5152
        %v5154 = vrot.slane %v5129, %v5153
        %v5155 = vlaneseq
        %v5156 = vshrl.u32 %v5155, 7
        %v5157 = vsub.s32 5, %v5156
        %v5158 = vrot.slane %v5129, %v5157
        %v5159 = vlaneseq
        %v5160 = vshrl.u32 %v5159, 7
        %v5161 = vsub.s32 6, %v5160
        %v5162 = vrot.slane %v5129, %v5161
        %v5163 = vlaneseq
        %v5164 = vshrl.u32 %v5163, 7
        %v5165 = vsub.s32 7, %v5164
        %v5166 = vrot.slane %v5129, %v5165
        %v5167 = vlaneseq
        %v5168 = vshrl.u32 %v5167, 7
        %v5169 = vsub.s32 0, %v5168
        %v5170 = vrot.slane %v5130, %v5169
        %v5171 = vlaneseq
        %v5172 = vshrl.u32 %v5171, 7
        %v5173 = vsub.s32 1, %v5172
        %v5174 = vrot.slane %v5130, %v5173
        %v5175 = vlaneseq
        %v5176 = vshrl.u32 %v5175, 7
        %v5177 = vsub.s32 2, %v5176
        %v5178 = vrot.slane %v5130, %v5177
        %v5179 = vlaneseq
        %v5180 = vshrl.u32 %v5179, 7
        %v5181 = vsub.s32 3, %v5180
        %v5182 = vrot.slane %v5130, %v5181
        %v5183 = vlaneseq
        %v5184 = vshrl.u32 %v5183, 7
        %v5185 = vsub.s32 4, %v5184
        %v5186 = vrot.slane %v5130, %v5185
        %v5187 = vlaneseq
        %v5188 = vshrl.u32 %v5187, 7
        %v5189 = vsub.s32 5, %v5188
        %v5190 = vrot.slane %v5130, %v5189
        %v5191 = vlaneseq
        %v5192 = vshrl.u32 %v5191, 7
        %v5193 = vsub.s32 6, %v5192
        %v5194 = vrot.slane %v5130, %v5193
        %v5195 = vlaneseq
        %v5196 = vshrl.u32 %v5195, 7
        %v5197 = vsub.s32 7, %v5196
        %v5198 = vrot.slane %v5130, %v5197
        %v5199 = vlaneseq
        %v5200 = vshrl.u32 %v5199, 7
        %v5201 = vsub.s32 0, %v5200
        %v5202 = vrot.slane %v5131, %v5201
        %v5203 = vlaneseq
        %v5204 = vshrl.u32 %v5203, 7
        %v5205 = vsub.s32 1, %v5204
        %v5206 = vrot.slane %v5131, %v5205
        %v5207 = vlaneseq
        %v5208 = vshrl.u32 %v5207, 7
        %v5209 = vsub.s32 2, %v5208
        %v5210 = vrot.slane %v5131, %v5209
        %v5211 = vlaneseq
        %v5212 = vshrl.u32 %v5211, 7
        %v5213 = vsub.s32 3, %v5212
        %v5214 = vrot.slane %v5131, %v5213
        %v5235 = vadd.f32 %v5109, %v5138
        %v5236 = vadd.f32 %v5110, %v5142
        %v5237 = vadd.f32 %v5111, %v5146
        %v5238 = vadd.f32 %v5112, %v5150
        %v5239 = vadd.f32 %v5113, %v5154
        %v5240 = vadd.f32 %v5114, %v5158
        %v5241 = vadd.f32 %v5115, %v5162
        %v5242 = vadd.f32 %v5116, %v5166
        %v5243 = vadd.f32 %v5117, %v5170
        %v5244 = vadd.f32 %v5118, %v5174
        %v5245 = vadd.f32 %v5119, %v5178
        %v5246 = vadd.f32 %v5120, %v5182
        %v5247 = vadd.f32 %v5121, %v5186
        %v5248 = vadd.f32 %v5122, %v5190
        %v5249 = vadd.f32 %v5123, %v5194
        %v5250 = vadd.f32 %v5124, %v5198
        %v5251 = vadd.f32 %v5125, %v5202
        %v5252 = vadd.f32 %v5126, %v5206
        %v5253 = vadd.f32 %v5127, %v5210
        %v5254 = vadd.f32 %v5128, %v5214
        %v5255 = vld [vmem:[%s3] sm:$0xff]
        %v5256 = vld [vmem:[%s3 + $0x8] sm:$0xff]
        %v5257 = vld [vmem:[%s3 + $0x10] sm:$0xff]
        %v5258 = vld [vmem:[%s3 + $0x18] sm:$0xff]
        %v5259 = vld [vmem:[%s3 + $0x20] sm:$0xff]
        %v5260 = vld [vmem:[%s3 + $0x28] sm:$0xff]
        %v5261 = vld [vmem:[%s3 + $0x30] sm:$0xff]
        %v5262 = vld [vmem:[%s3 + $0x38] sm:$0xff]
        %v5263 = vld [vmem:[%s3 + $0x40] sm:$0xff]
        %v5264 = vld [vmem:[%s3 + $0x48] sm:$0xff]
        %v5265 = vld [vmem:[%s3 + $0x50] sm:$0xff]
        %v5266 = vld [vmem:[%s3 + $0x58] sm:$0xff]
        %v5267 = vld [vmem:[%s3 + $0x60] sm:$0xff]
        %v5268 = vld [vmem:[%s3 + $0x68] sm:$0xff]
        %v5269 = vld [vmem:[%s3 + $0x70] sm:$0xff]
        %v5270 = vld [vmem:[%s3 + $0x78] sm:$0xff]
        %v5271 = vld [vmem:[%s3 + $0x80] sm:$0xff]
        %v5272 = vld [vmem:[%s3 + $0x88] sm:$0xff]
        %v5273 = vld [vmem:[%s3 + $0x90] sm:$0xff]
        %v5274 = vld [vmem:[%s3 + $0x98] sm:$0xff]
        %v5275 = vld [vmem:[%s3 + $0xa0] sm:$0xff]
        %v5276 = vld [vmem:[%s3 + $0xa8] sm:$0xff]
        %v5277 = vld [vmem:[%s3 + $0xb0] sm:$0xff]
        %v5278 = vld [vmem:[%s3 + $0xb8] sm:$0xff]
        %v5279 = vld [vmem:[%s3 + $0xc0] sm:$0xff]
        %v5280 = vld [vmem:[%s3 + $0xc8] sm:$0xff]
        %v5281 = vld [vmem:[%s3 + $0xd0] sm:$0xff]
        %v5282 = vld [vmem:[%s3 + $0xd8] sm:$0xff]
        %v5283 = vld [vmem:[%s3 + $0xe0] sm:$0xff]
        %v5284 = vld [vmem:[%s3 + $0xe8] sm:$0xff]
        %v5285 = vld [vmem:[%s3 + $0xf0] sm:$0xff]
        %v5286 = vld [vmem:[%s3 + $0xf8] sm:$0xff]
        %v5287 = vld [vmem:[%s3 + $0x100] sm:$0xff]
        %v5288 = vld [vmem:[%s3 + $0x108] sm:$0xff]
        %v5289 = vld [vmem:[%s3 + $0x110] sm:$0xff]
        %v5290 = vld [vmem:[%s3 + $0x118] sm:$0xff]
        %v5291 = vld [vmem:[%s3 + $0x120] sm:$0xff]
        %v5292 = vld [vmem:[%s3 + $0x128] sm:$0xff]
        %v5293 = vld [vmem:[%s3 + $0x130] sm:$0xff]
        %v5294 = vld [vmem:[%s3 + $0x138] sm:$0xff]
        %v5295 = vld [vmem:[%s3 + $0x140] sm:$0xff]
        %v5296 = vld [vmem:[%s3 + $0x148] sm:$0xff]
        %v5297 = vld [vmem:[%s3 + $0x150] sm:$0xff]
        %v5298 = vld [vmem:[%s3 + $0x158] sm:$0xff]
        %v5299 = vld [vmem:[%s3 + $0x160] sm:$0xff]
        %v5300 = vld [vmem:[%s3 + $0x168] sm:$0xff]
        %v5301 = vld [vmem:[%s3 + $0x170] sm:$0xff]
        %v5302 = vld [vmem:[%s3 + $0x178] sm:$0xff]
        %v5303 = vld [vmem:[%s3 + $0x180] sm:$0xff]
        %v5304 = vld [vmem:[%s3 + $0x188] sm:$0xff]
        %v5305 = vld [vmem:[%s3 + $0x190] sm:$0xff]
        %v5306 = vld [vmem:[%s3 + $0x198] sm:$0xff]
        %v5307 = vld [vmem:[%s3 + $0x1a0] sm:$0xff]
        %v5308 = vld [vmem:[%s3 + $0x1a8] sm:$0xff]
        %v5309 = vld [vmem:[%s3 + $0x1b0] sm:$0xff]
        %v5310 = vld [vmem:[%s3 + $0x1b8] sm:$0xff]
        %v5311 = vld [vmem:[%s3 + $0x1c0] sm:$0xff]
        %v5312 = vld [vmem:[%s3 + $0x1c8] sm:$0xff]
        %v5313 = vld [vmem:[%s3 + $0x1d0] sm:$0xff]
        %v5314 = vld [vmem:[%s3 + $0x1d8] sm:$0xff]
        %v5315 = vld [vmem:[%s3 + $0x1e0] sm:$0xff]
        %v5316 = vld [vmem:[%s3 + $0x1e8] sm:$0xff]
        %v5317 = vld [vmem:[%s3 + $0x1f0] sm:$0xff]
        %v5318 = vld [vmem:[%s3 + $0x1f8] sm:$0xff]
        %v5319 = vld [vmem:[%s3 + $0x200] sm:$0xff]
        %v5320 = vld [vmem:[%s3 + $0x208] sm:$0xff]
        %v5321 = vld [vmem:[%s3 + $0x210] sm:$0xff]
        %v5322 = vld [vmem:[%s3 + $0x218] sm:$0xff]
        %v5323 = vld [vmem:[%s3 + $0x220] sm:$0xff]
        %v5324 = vld [vmem:[%s3 + $0x228] sm:$0xff]
        %v5325 = vld [vmem:[%s3 + $0x230] sm:$0xff]
        %v5326 = vld [vmem:[%s3 + $0x238] sm:$0xff]
        %v5327 = vld [vmem:[%s3 + $0x240] sm:$0xff]
        %v5328 = vld [vmem:[%s3 + $0x248] sm:$0xff]
        %v5329 = vld [vmem:[%s3 + $0x250] sm:$0xff]
        %v5330 = vld [vmem:[%s3 + $0x258] sm:$0xff]
        %v5331 = vld [vmem:[%s3 + $0x260] sm:$0xff]
        %v5332 = vld [vmem:[%s3 + $0x268] sm:$0xff]
        %v5333 = vld [vmem:[%s3 + $0x270] sm:$0xff]
        %v5334 = vld [vmem:[%s3 + $0x278] sm:$0xff]
        %v5335 = vld [vmem:[%s3 + $0x280] sm:$0xff]
        %v5336 = vld [vmem:[%s3 + $0x288] sm:$0xff]
        %v5337 = vld [vmem:[%s3 + $0x290] sm:$0xff]
        %v5338 = vld [vmem:[%s3 + $0x298] sm:$0xff]
        %v5339 = vld [vmem:[%s3 + $0x2a0] sm:$0xff]
        %v5340 = vld [vmem:[%s3 + $0x2a8] sm:$0xff]
        %v5341 = vld [vmem:[%s3 + $0x2b0] sm:$0xff]
        %v5342 = vld [vmem:[%s3 + $0x2b8] sm:$0xff]
        %v5343 = vld [vmem:[%s3 + $0x2c0] sm:$0xff]
        %v5344 = vld [vmem:[%s3 + $0x2c8] sm:$0xff]
        %v5345 = vld [vmem:[%s3 + $0x2d0] sm:$0xff]
        %v5346 = vld [vmem:[%s3 + $0x2d8] sm:$0xff]
        %v5347 = vld [vmem:[%s3 + $0x2e0] sm:$0xff]
        %v5348 = vld [vmem:[%s3 + $0x2e8] sm:$0xff]
        %v5349 = vld [vmem:[%s3 + $0x2f0] sm:$0xff]
        %v5350 = vld [vmem:[%s3 + $0x2f8] sm:$0xff]
        %v5351 = vld [vmem:[%s3 + $0x300] sm:$0xff]
        %v5352 = vld [vmem:[%s3 + $0x308] sm:$0xff]
        %v5353 = vld [vmem:[%s3 + $0x310] sm:$0xff]
        %v5354 = vld [vmem:[%s3 + $0x318] sm:$0xff]
        %v5355 = vld [vmem:[%s3 + $0x320] sm:$0xff]
        %v5356 = vld [vmem:[%s3 + $0x328] sm:$0xff]
        %v5357 = vld [vmem:[%s3 + $0x330] sm:$0xff]
        %v5358 = vld [vmem:[%s3 + $0x338] sm:$0xff]
        %v5359 = vld [vmem:[%s3 + $0x340] sm:$0xff]
        %v5360 = vld [vmem:[%s3 + $0x348] sm:$0xff]
        %v5361 = vld [vmem:[%s3 + $0x350] sm:$0xff]
        %v5362 = vld [vmem:[%s3 + $0x358] sm:$0xff]
        %v5363 = vld [vmem:[%s3 + $0x360] sm:$0xff]
        %v5364 = vld [vmem:[%s3 + $0x368] sm:$0xff]
        %v5365 = vld [vmem:[%s3 + $0x370] sm:$0xff]
        %v5366 = vld [vmem:[%s3 + $0x378] sm:$0xff]
        %v5367 = vld [vmem:[%s3 + $0x380] sm:$0xff]
        %v5368 = vld [vmem:[%s3 + $0x388] sm:$0xff]
        %v5369 = vld [vmem:[%s3 + $0x390] sm:$0xff]
        %v5370 = vld [vmem:[%s3 + $0x398] sm:$0xff]
        %v5371 = vld [vmem:[%s3 + $0x3a0] sm:$0xff]
        %v5372 = vld [vmem:[%s3 + $0x3a8] sm:$0xff]
        %v5373 = vld [vmem:[%s3 + $0x3b0] sm:$0xff]
        %v5374 = vld [vmem:[%s3 + $0x3b8] sm:$0xff]
        %v5375 = vld [vmem:[%s3 + $0x3c0] sm:$0xff]
        %v5376 = vld [vmem:[%s3 + $0x3c8] sm:$0xff]
        %v5377 = vld [vmem:[%s3 + $0x3d0] sm:$0xff]
        %v5378 = vld [vmem:[%s3 + $0x3d8] sm:$0xff]
        %v5379 = vld [vmem:[%s3 + $0x3e0] sm:$0xff]
        %v5380 = vld [vmem:[%s3 + $0x3e8] sm:$0xff]
        %v5381 = vld [vmem:[%s3 + $0x3f0] sm:$0xff]
        %v5382 = vld [vmem:[%s3 + $0x3f8] sm:$0xff]
        %v5383 = vld [vmem:[%s3 + $0x400] sm:$0xff]
        %v5384 = vld [vmem:[%s3 + $0x408] sm:$0xff]
        %v5385 = vld [vmem:[%s3 + $0x410] sm:$0xff]
        %v5386 = vld [vmem:[%s3 + $0x418] sm:$0xff]
        %v5387 = vld [vmem:[%s3 + $0x420] sm:$0xff]
        %v5388 = vld [vmem:[%s3 + $0x428] sm:$0xff]
        %v5389 = vld [vmem:[%s3 + $0x430] sm:$0xff]
        %v5390 = vld [vmem:[%s3 + $0x438] sm:$0xff]
        %v5391 = vld [vmem:[%s3 + $0x440] sm:$0xff]
        %v5392 = vld [vmem:[%s3 + $0x448] sm:$0xff]
        %v5393 = vld [vmem:[%s3 + $0x450] sm:$0xff]
        %v5394 = vld [vmem:[%s3 + $0x458] sm:$0xff]
        %v5395 = vld [vmem:[%s3 + $0x460] sm:$0xff]
        %v5396 = vld [vmem:[%s3 + $0x468] sm:$0xff]
        %v5397 = vld [vmem:[%s3 + $0x470] sm:$0xff]
        %v5398 = vld [vmem:[%s3 + $0x478] sm:$0xff]
        %v5399 = vld [vmem:[%s3 + $0x480] sm:$0xff]
        %v5400 = vld [vmem:[%s3 + $0x488] sm:$0xff]
        %v5401 = vld [vmem:[%s3 + $0x490] sm:$0xff]
        %v5402 = vld [vmem:[%s3 + $0x498] sm:$0xff]
        %v5403 = vld [vmem:[%s3 + $0x4a0] sm:$0xff]
        %v5404 = vld [vmem:[%s3 + $0x4a8] sm:$0xff]
        %v5405 = vld [vmem:[%s3 + $0x4b0] sm:$0xff]
        %v5406 = vld [vmem:[%s3 + $0x4b8] sm:$0xff]
        %v5407 = vld [vmem:[%s3 + $0x4c0] sm:$0xff]
        %v5408 = vld [vmem:[%s3 + $0x4c8] sm:$0xff]
        %v5409 = vld [vmem:[%s3 + $0x4d0] sm:$0xff]
        %v5410 = vld [vmem:[%s3 + $0x4d8] sm:$0xff]
        %v5411 = vld [vmem:[%s3 + $0x4e0] sm:$0xff]
        %v5412 = vld [vmem:[%s3 + $0x4e8] sm:$0xff]
        %v5413 = vld [vmem:[%s3 + $0x4f0] sm:$0xff]
        %v5414 = vld [vmem:[%s3 + $0x4f8] sm:$0xff]
        %v5415 = vld [vmem:[%s3 + $0x500] sm:$0xff]
        %v5416 = vld [vmem:[%s3 + $0x508] sm:$0xff]
        %v5417 = vld [vmem:[%s3 + $0x510] sm:$0xff]
        %v5418 = vld [vmem:[%s3 + $0x518] sm:$0xff]
        %v5419 = vld [vmem:[%s3 + $0x520] sm:$0xff]
        %v5420 = vld [vmem:[%s3 + $0x528] sm:$0xff]
        %v5421 = vld [vmem:[%s3 + $0x530] sm:$0xff]
        %v5422 = vld [vmem:[%s3 + $0x538] sm:$0xff]
        %v5423 = vld [vmem:[%s3 + $0x540] sm:$0xff]
        %v5424 = vld [vmem:[%s3 + $0x548] sm:$0xff]
        %v5425 = vld [vmem:[%s3 + $0x550] sm:$0xff]
        %v5426 = vld [vmem:[%s3 + $0x558] sm:$0xff]
        %v5427 = vld [vmem:[%s3 + $0x560] sm:$0xff]
        %v5428 = vld [vmem:[%s3 + $0x568] sm:$0xff]
        %v5429 = vld [vmem:[%s3 + $0x570] sm:$0xff]
        %v5430 = vld [vmem:[%s3 + $0x578] sm:$0xff]
        %v5431 = vld [vmem:[%s3 + $0x580] sm:$0xff]
        %v5432 = vld [vmem:[%s3 + $0x588] sm:$0xff]
        %v5433 = vld [vmem:[%s3 + $0x590] sm:$0xff]
        %v5434 = vld [vmem:[%s3 + $0x598] sm:$0xff]
        %v5435 = vld [vmem:[%s3 + $0x5a0] sm:$0xff]
        %v5436 = vld [vmem:[%s3 + $0x5a8] sm:$0xff]
        %v5437 = vld [vmem:[%s3 + $0x5b0] sm:$0xff]
        %v5438 = vld [vmem:[%s3 + $0x5b8] sm:$0xff]
        %v5439 = vld [vmem:[%s3 + $0x5c0] sm:$0xff]
        %v5440 = vld [vmem:[%s3 + $0x5c8] sm:$0xff]
        %v5441 = vld [vmem:[%s3 + $0x5d0] sm:$0xff]
        %v5442 = vld [vmem:[%s3 + $0x5d8] sm:$0xff]
        %v5443 = vld [vmem:[%s3 + $0x5e0] sm:$0xff]
        %v5444 = vld [vmem:[%s3 + $0x5e8] sm:$0xff]
        %v5445 = vld [vmem:[%s3 + $0x5f0] sm:$0xff]
        %v5446 = vld [vmem:[%s3 + $0x5f8] sm:$0xff]
        %v5447 = vld [vmem:[%s3 + $0x600] sm:$0xff]
        %v5448 = vld [vmem:[%s3 + $0x608] sm:$0xff]
        %v5449 = vld [vmem:[%s3 + $0x610] sm:$0xff]
        %v5450 = vld [vmem:[%s3 + $0x618] sm:$0xff]
        %v5451 = vld [vmem:[%s3 + $0x620] sm:$0xff]
        %v5452 = vld [vmem:[%s3 + $0x628] sm:$0xff]
        %v5453 = vld [vmem:[%s3 + $0x630] sm:$0xff]
        %v5454 = vld [vmem:[%s3 + $0x638] sm:$0xff]
        %v5455 = vld [vmem:[%s3 + $0x640] sm:$0xff]
        %v5456 = vld [vmem:[%s3 + $0x648] sm:$0xff]
        %v5457 = vld [vmem:[%s3 + $0x650] sm:$0xff]
        %v5458 = vld [vmem:[%s3 + $0x658] sm:$0xff]
        %v5459 = vld [vmem:[%s3 + $0x660] sm:$0xff]
        %v5460 = vld [vmem:[%s3 + $0x668] sm:$0xff]
        %v5461 = vld [vmem:[%s3 + $0x670] sm:$0xff]
        %v5462 = vld [vmem:[%s3 + $0x678] sm:$0xff]
        %v5463 = vld [vmem:[%s3 + $0x680] sm:$0xff]
        %v5464 = vld [vmem:[%s3 + $0x688] sm:$0xff]
        %v5465 = vld [vmem:[%s3 + $0x690] sm:$0xff]
        %v5466 = vld [vmem:[%s3 + $0x698] sm:$0xff]
        %v5467 = vld [vmem:[%s3 + $0x6a0] sm:$0xff]
        %v5468 = vld [vmem:[%s3 + $0x6a8] sm:$0xff]
        %v5469 = vld [vmem:[%s3 + $0x6b0] sm:$0xff]
        %v5470 = vld [vmem:[%s3 + $0x6b8] sm:$0xff]
        %v5471 = vld [vmem:[%s3 + $0x6c0] sm:$0xff]
        %v5472 = vld [vmem:[%s3 + $0x6c8] sm:$0xff]
        %v5473 = vld [vmem:[%s3 + $0x6d0] sm:$0xff]
        %v5474 = vld [vmem:[%s3 + $0x6d8] sm:$0xff]
        %v5475 = vld [vmem:[%s3 + $0x6e0] sm:$0xff]
        %v5476 = vld [vmem:[%s3 + $0x6e8] sm:$0xff]
        %v5477 = vld [vmem:[%s3 + $0x6f0] sm:$0xff]
        %v5478 = vld [vmem:[%s3 + $0x6f8] sm:$0xff]
        %v5479 = vld [vmem:[%s3 + $0x700] sm:$0xff]
        %v5480 = vld [vmem:[%s3 + $0x708] sm:$0xff]
        %v5481 = vld [vmem:[%s3 + $0x710] sm:$0xff]
        %v5482 = vld [vmem:[%s3 + $0x718] sm:$0xff]
        %v5483 = vld [vmem:[%s3 + $0x720] sm:$0xff]
        %v5484 = vld [vmem:[%s3 + $0x728] sm:$0xff]
        %v5485 = vld [vmem:[%s3 + $0x730] sm:$0xff]
        %v5486 = vld [vmem:[%s3 + $0x738] sm:$0xff]
        %v5487 = vld [vmem:[%s3 + $0x740] sm:$0xff]
        %v5488 = vld [vmem:[%s3 + $0x748] sm:$0xff]
        %v5489 = vld [vmem:[%s3 + $0x750] sm:$0xff]
        %v5490 = vld [vmem:[%s3 + $0x758] sm:$0xff]
        %v5491 = vld [vmem:[%s3 + $0x760] sm:$0xff]
        %v5492 = vld [vmem:[%s3 + $0x768] sm:$0xff]
        %v5493 = vld [vmem:[%s3 + $0x770] sm:$0xff]
        %v5494 = vld [vmem:[%s3 + $0x778] sm:$0xff]
        %v5495 = vld [vmem:[%s3 + $0x780] sm:$0xff]
        %v5496 = vld [vmem:[%s3 + $0x788] sm:$0xff]
        %v5497 = vld [vmem:[%s3 + $0x790] sm:$0xff]
        %v5498 = vld [vmem:[%s3 + $0x798] sm:$0xff]
        %v5499 = vld [vmem:[%s3 + $0x7a0] sm:$0xff]
        %v5500 = vld [vmem:[%s3 + $0x7a8] sm:$0xff]
        %v5501 = vld [vmem:[%s3 + $0x7b0] sm:$0xff]
        %v5502 = vld [vmem:[%s3 + $0x7b8] sm:$0xff]
        %v5503 = vld [vmem:[%s3 + $0x7c0] sm:$0xff]
        %v5504 = vld [vmem:[%s3 + $0x7c8] sm:$0xff]
        %v5505 = vld [vmem:[%s3 + $0x7d0] sm:$0xff]
        %v5506 = vld [vmem:[%s3 + $0x7d8] sm:$0xff]
        %v5507 = vld [vmem:[%s3 + $0x7e0] sm:$0xff]
        %v5508 = vld [vmem:[%s3 + $0x7e8] sm:$0xff]
        %v5509 = vld [vmem:[%s3 + $0x7f0] sm:$0xff]
        %v5510 = vld [vmem:[%s3 + $0x7f8] sm:$0xff]
        %v5511 = vld [vmem:[%s3 + $0x800] sm:$0xff]
        %v5512 = vld [vmem:[%s3 + $0x808] sm:$0xff]
        %v5513 = vld [vmem:[%s3 + $0x810] sm:$0xff]
        %v5514 = vld [vmem:[%s3 + $0x818] sm:$0xff]
        %v5515 = vld [vmem:[%s3 + $0x820] sm:$0xff]
        %v5516 = vld [vmem:[%s3 + $0x828] sm:$0xff]
        %v5517 = vld [vmem:[%s3 + $0x830] sm:$0xff]
        %v5518 = vld [vmem:[%s3 + $0x838] sm:$0xff]
        %v5519 = vld [vmem:[%s3 + $0x840] sm:$0xff]
        %v5520 = vld [vmem:[%s3 + $0x848] sm:$0xff]
        %v5521 = vld [vmem:[%s3 + $0x850] sm:$0xff]
        %v5522 = vld [vmem:[%s3 + $0x858] sm:$0xff]
        %v5523 = vld [vmem:[%s3 + $0x860] sm:$0xff]
        %v5524 = vld [vmem:[%s3 + $0x868] sm:$0xff]
        %v5525 = vld [vmem:[%s3 + $0x870] sm:$0xff]
        %v5526 = vld [vmem:[%s3 + $0x878] sm:$0xff]
        %v5527 = vld [vmem:[%s3 + $0x880] sm:$0xff]
        %v5528 = vld [vmem:[%s3 + $0x888] sm:$0xff]
        %v5529 = vld [vmem:[%s3 + $0x890] sm:$0xff]
        %v5530 = vld [vmem:[%s3 + $0x898] sm:$0xff]
        %v5531 = vld [vmem:[%s3 + $0x8a0] sm:$0xff]
        %v5532 = vld [vmem:[%s3 + $0x8a8] sm:$0xff]
        %v5533 = vld [vmem:[%s3 + $0x8b0] sm:$0xff]
        %v5534 = vld [vmem:[%s3 + $0x8b8] sm:$0xff]
        %v5535 = vld [vmem:[%s3 + $0x8c0] sm:$0xff]
        %v5536 = vld [vmem:[%s3 + $0x8c8] sm:$0xff]
        %v5537 = vld [vmem:[%s3 + $0x8d0] sm:$0xff]
        %v5538 = vld [vmem:[%s3 + $0x8d8] sm:$0xff]
        %v5539 = vld [vmem:[%s3 + $0x8e0] sm:$0xff]
        %v5540 = vld [vmem:[%s3 + $0x8e8] sm:$0xff]
        %v5541 = vld [vmem:[%s3 + $0x8f0] sm:$0xff]
        %v5542 = vld [vmem:[%s3 + $0x8f8] sm:$0xff]
        %v5543 = vld [vmem:[%s3 + $0x900] sm:$0xff]
        %v5544 = vld [vmem:[%s3 + $0x908] sm:$0xff]
        %v5545 = vld [vmem:[%s3 + $0x910] sm:$0xff]
        %v5546 = vld [vmem:[%s3 + $0x918] sm:$0xff]
        %v5547 = vld [vmem:[%s3 + $0x920] sm:$0xff]
        %v5548 = vld [vmem:[%s3 + $0x928] sm:$0xff]
        %v5549 = vld [vmem:[%s3 + $0x930] sm:$0xff]
        %v5550 = vld [vmem:[%s3 + $0x938] sm:$0xff]
        %v5551 = vld [vmem:[%s3 + $0x940] sm:$0xff]
        %v5552 = vld [vmem:[%s3 + $0x948] sm:$0xff]
        %v5553 = vld [vmem:[%s3 + $0x950] sm:$0xff]
        %v5554 = vld [vmem:[%s3 + $0x958] sm:$0xff]
        %v5555 = vld [vmem:[%s3 + $0x960] sm:$0xff]
        %v5556 = vld [vmem:[%s3 + $0x968] sm:$0xff]
        %v5557 = vld [vmem:[%s3 + $0x970] sm:$0xff]
        %v5558 = vld [vmem:[%s3 + $0x978] sm:$0xff]
        %v5559 = vld [vmem:[%s3 + $0x980] sm:$0xff]
        %v5560 = vld [vmem:[%s3 + $0x988] sm:$0xff]
        %v5561 = vld [vmem:[%s3 + $0x990] sm:$0xff]
        %v5562 = vld [vmem:[%s3 + $0x998] sm:$0xff]
        %v5563 = vld [vmem:[%s3 + $0x9a0] sm:$0xff]
        %v5564 = vld [vmem:[%s3 + $0x9a8] sm:$0xff]
        %v5565 = vld [vmem:[%s3 + $0x9b0] sm:$0xff]
        %v5566 = vld [vmem:[%s3 + $0x9b8] sm:$0xff]
        %v5567 = vld [vmem:[%s3 + $0x9c0] sm:$0xff]
        %v5568 = vld [vmem:[%s3 + $0x9c8] sm:$0xff]
        %v5569 = vld [vmem:[%s3 + $0x9d0] sm:$0xff]
        %v5570 = vld [vmem:[%s3 + $0x9d8] sm:$0xff]
        %v5571 = vld [vmem:[%s3 + $0x9e0] sm:$0xff]
        %v5572 = vld [vmem:[%s3 + $0x9e8] sm:$0xff]
        %v5573 = vld [vmem:[%s3 + $0x9f0] sm:$0xff]
        %v5574 = vld [vmem:[%s3 + $0x9f8] sm:$0xff]
        %v5575 = vld [vmem:[%s4] sm:$0x1]
        %v5577 = vlaneseq
        %v5578 = vshrl.u32 %v5577, 7
        %v5579 = vsub.s32 0, %v5578
        %v5580 = vrot.slane %v5575, %v5579
        %5582 = vmatprep.subr.mxu0 0.0
        %5583 = vmatpush1.msra.mxu0 %v5270
        %5584 = vmatprep.subr.mxu0 0.0
        %5585 = vmatpush1.msra.mxu0 %v5269
        %5586 = vmatprep.subr.mxu0 0.0
        %5587 = vmatpush1.msra.mxu0 %v5268
        %5588 = vmatprep.subr.mxu0 0.0
        %5589 = vmatpush1.msra.mxu0 %v5267
        %5590 = vmatprep.subr.mxu0 0.0
        %5591 = vmatpush1.msra.mxu0 %v5266
        %5592 = vmatprep.subr.mxu0 0.0
        %5593 = vmatpush1.msra.mxu0 %v5265
        %5594 = vmatprep.subr.mxu0 0.0
        %5595 = vmatpush1.msra.mxu0 %v5264
        %5596 = vmatprep.subr.mxu0 0.0
        %5597 = vmatpush1.msra.mxu0 %v5263
        %5598 = vmatprep.subr.mxu0 0.0
        %5599 = vmatpush1.msra.mxu0 %v5262
        %5600 = vmatprep.subr.mxu0 0.0
        %5601 = vmatpush1.msra.mxu0 %v5261
        %5602 = vmatprep.subr.mxu0 0.0
        %5603 = vmatpush1.msra.mxu0 %v5260
        %5604 = vmatprep.subr.mxu0 0.0
        %5605 = vmatpush1.msra.mxu0 %v5259
        %5606 = vmatprep.subr.mxu0 0.0
        %5607 = vmatpush1.msra.mxu0 %v5258
        %5608 = vmatprep.subr.mxu0 0.0
        %5609 = vmatpush1.msra.mxu0 %v5257
        %5610 = vmatprep.subr.mxu0 0.0
        %5611 = vmatpush1.msra.mxu0 %v5256
        %5612 = vmatprep.subr.mxu0 0.0
        %5613 = vmatpush1.msra.mxu0 %v5255
        %5614 = vmatprep.subr.mxu0 0.0
        %5615 = vmatpush2.msra.mxu0 %v5286
        %5616 = vmatprep.subr.mxu0 0.0
        %5617 = vmatpush2.msra.mxu0 %v5285
        %5618 = vmatprep.subr.mxu0 0.0
        %5619 = vmatpush2.msra.mxu0 %v5284
        %5620 = vmatprep.subr.mxu0 0.0
        %5621 = vmatpush2.msra.mxu0 %v5283
        %5622 = vmatprep.subr.mxu0 0.0
        %5623 = vmatpush2.msra.mxu0 %v5282
        %5624 = vmatprep.subr.mxu0 0.0
        %5625 = vmatpush2.msra.mxu0 %v5281
        %5626 = vmatprep.subr.mxu0 0.0
        %5627 = vmatpush2.msra.mxu0 %v5280
        %5628 = vmatprep.subr.mxu0 0.0
        %5629 = vmatpush2.msra.mxu0 %v5279
        %5630 = vmatprep.subr.mxu0 0.0
        %5631 = vmatpush2.msra.mxu0 %v5278
        %5632 = vmatprep.subr.mxu0 0.0
        %5633 = vmatpush2.msra.mxu0 %v5277
        %5634 = vmatprep.subr.mxu0 0.0
        %5635 = vmatpush2.msra.mxu0 %v5276
        %5636 = vmatprep.subr.mxu0 0.0
        %5637 = vmatpush2.msra.mxu0 %v5275
        %5638 = vmatprep.subr.mxu0 0.0
        %5639 = vmatpush2.msra.mxu0 %v5274
        %5640 = vmatprep.subr.mxu0 0.0
        %5641 = vmatpush2.msra.mxu0 %v5273
        %5642 = vmatprep.subr.mxu0 0.0
        %5643 = vmatpush2.msra.mxu0 %v5272
        %5644 = vmatprep.subr.mxu0 0.0
        %5645 = vmatpush2.msra.mxu0 %v5271
        %5646 = vmatprep.mubr.f32.mxu0 %v5236
        %5647 = vmatmul.mubr.f32.gmra.mxu0 %v5235
        %v5648 = vpop.f32.mrf.mxu0
        %v5649 = vadd.f32 %v5580, %v5648
        %v5650 = vpop.f32.mrf.mxu0
        %5651 = vdwg.mxu0
        %5652 = vmatprep.subr.mxu0 0.0
        %5653 = vmatpush1.msra.mxu0 %v5302
        %5654 = vmatprep.subr.mxu0 0.0
        %5655 = vmatpush1.msra.mxu0 %v5301
        %5656 = vmatprep.subr.mxu0 0.0
        %5657 = vmatpush1.msra.mxu0 %v5300
        %5658 = vmatprep.subr.mxu0 0.0
        %5659 = vmatpush1.msra.mxu0 %v5299
        %5660 = vmatprep.subr.mxu0 0.0
        %5661 = vmatpush1.msra.mxu0 %v5298
        %5662 = vmatprep.subr.mxu0 0.0
        %5663 = vmatpush1.msra.mxu0 %v5297
        %5664 = vmatprep.subr.mxu0 0.0
        %5665 = vmatpush1.msra.mxu0 %v5296
        %5666 = vmatprep.subr.mxu0 0.0
        %5667 = vmatpush1.msra.mxu0 %v5295
        %5668 = vmatprep.subr.mxu0 0.0
        %5669 = vmatpush1.msra.mxu0 %v5294
        %5670 = vmatprep.subr.mxu0 0.0
        %5671 = vmatpush1.msra.mxu0 %v5293
        %5672 = vmatprep.subr.mxu0 0.0
        %5673 = vmatpush1.msra.mxu0 %v5292
        %5674 = vmatprep.subr.mxu0 0.0
        %5675 = vmatpush1.msra.mxu0 %v5291
        %5676 = vmatprep.subr.mxu0 0.0
        %5677 = vmatpush1.msra.mxu0 %v5290
        %5678 = vmatprep.subr.mxu0 0.0
        %5679 = vmatpush1.msra.mxu0 %v5289
        %5680 = vmatprep.subr.mxu0 0.0
        %5681 = vmatpush1.msra.mxu0 %v5288
        %5682 = vmatprep.subr.mxu0 0.0
        %5683 = vmatpush1.msra.mxu0 %v5287
        %5684 = vmatprep.subr.mxu0 0.0
        %5685 = vmatpush2.msra.mxu0 %v5318
        %5686 = vmatprep.subr.mxu0 0.0
        %5687 = vmatpush2.msra.mxu0 %v5317
        %5688 = vmatprep.subr.mxu0 0.0
        %5689 = vmatpush2.msra.mxu0 %v5316
        %5690 = vmatprep.subr.mxu0 0.0
        %5691 = vmatpush2.msra.mxu0 %v5315
        %5692 = vmatprep.subr.mxu0 0.0
        %5693 = vmatpush2.msra.mxu0 %v5314
        %5694 = vmatprep.subr.mxu0 0.0
        %5695 = vmatpush2.msra.mxu0 %v5313
        %5696 = vmatprep.subr.mxu0 0.0
        %5697 = vmatpush2.msra.mxu0 %v5312
        %5698 = vmatprep.subr.mxu0 0.0
        %5699 = vmatpush2.msra.mxu0 %v5311
        %5700 = vmatprep.subr.mxu0 0.0
        %5701 = vmatpush2.msra.mxu0 %v5310
        %5702 = vmatprep.subr.mxu0 0.0
        %5703 = vmatpush2.msra.mxu0 %v5309
        %5704 = vmatprep.subr.mxu0 0.0
        %5705 = vmatpush2.msra.mxu0 %v5308
        %5706 = vmatprep.subr.mxu0 0.0
        %5707 = vmatpush2.msra.mxu0 %v5307
        %5708 = vmatprep.subr.mxu0 0.0
        %5709 = vmatpush2.msra.mxu0 %v5306
        %5710 = vmatprep.subr.mxu0 0.0
        %5711 = vmatpush2.msra.mxu0 %v5305
        %5712 = vmatprep.subr.mxu0 0.0
        %5713 = vmatpush2.msra.mxu0 %v5304
        %5714 = vmatprep.subr.mxu0 0.0
        %5715 = vmatpush2.msra.mxu0 %v5303
        %5716 = vmatprep.mubr.f32.mxu0 %v5238
        %5717 = vmatmul.mubr.f32.gmra.mxu0 %v5237
        %v5718 = vpop.f32.mrf.mxu0
        %v5719 = vadd.f32 %v5649, %v5718
        %v5720 = vpop.f32.mrf.mxu0
        %5721 = vdwg.mxu0
        %5722 = vmatprep.subr.mxu0 0.0
        %5723 = vmatpush1.msra.mxu0 %v5334
        %5724 = vmatprep.subr.mxu0 0.0
        %5725 = vmatpush1.msra.mxu0 %v5333
        %5726 = vmatprep.subr.mxu0 0.0
        %5727 = vmatpush1.msra.mxu0 %v5332
        %5728 = vmatprep.subr.mxu0 0.0
        %5729 = vmatpush1.msra.mxu0 %v5331
        %5730 = vmatprep.subr.mxu0 0.0
        %5731 = vmatpush1.msra.mxu0 %v5330
        %5732 = vmatprep.subr.mxu0 0.0
        %5733 = vmatpush1.msra.mxu0 %v5329
        %5734 = vmatprep.subr.mxu0 0.0
        %5735 = vmatpush1.msra.mxu0 %v5328
        %5736 = vmatprep.subr.mxu0 0.0
        %5737 = vmatpush1.msra.mxu0 %v5327
        %5738 = vmatprep.subr.mxu0 0.0
        %5739 = vmatpush1.msra.mxu0 %v5326
        %5740 = vmatprep.subr.mxu0 0.0
        %5741 = vmatpush1.msra.mxu0 %v5325
        %5742 = vmatprep.subr.mxu0 0.0
        %5743 = vmatpush1.msra.mxu0 %v5324
        %5744 = vmatprep.subr.mxu0 0.0
        %5745 = vmatpush1.msra.mxu0 %v5323
        %5746 = vmatprep.subr.mxu0 0.0
        %5747 = vmatpush1.msra.mxu0 %v5322
        %5748 = vmatprep.subr.mxu0 0.0
        %5749 = vmatpush1.msra.mxu0 %v5321
        %5750 = vmatprep.subr.mxu0 0.0
        %5751 = vmatpush1.msra.mxu0 %v5320
        %5752 = vmatprep.subr.mxu0 0.0
        %5753 = vmatpush1.msra.mxu0 %v5319
        %5754 = vmatprep.subr.mxu0 0.0
        %5755 = vmatpush2.msra.mxu0 %v5350
        %5756 = vmatprep.subr.mxu0 0.0
        %5757 = vmatpush2.msra.mxu0 %v5349
        %5758 = vmatprep.subr.mxu0 0.0
        %5759 = vmatpush2.msra.mxu0 %v5348
        %5760 = vmatprep.subr.mxu0 0.0
        %5761 = vmatpush2.msra.mxu0 %v5347
        %5762 = vmatprep.subr.mxu0 0.0
        %5763 = vmatpush2.msra.mxu0 %v5346
        %5764 = vmatprep.subr.mxu0 0.0
        %5765 = vmatpush2.msra.mxu0 %v5345
        %5766 = vmatprep.subr.mxu0 0.0
        %5767 = vmatpush2.msra.mxu0 %v5344
        %5768 = vmatprep.subr.mxu0 0.0
        %5769 = vmatpush2.msra.mxu0 %v5343
        %5770 = vmatprep.subr.mxu0 0.0
        %5771 = vmatpush2.msra.mxu0 %v5342
        %5772 = vmatprep.subr.mxu0 0.0
        %5773 = vmatpush2.msra.mxu0 %v5341
        %5774 = vmatprep.subr.mxu0 0.0
        %5775 = vmatpush2.msra.mxu0 %v5340
        %5776 = vmatprep.subr.mxu0 0.0
        %5777 = vmatpush2.msra.mxu0 %v5339
        %5778 = vmatprep.subr.mxu0 0.0
        %5779 = vmatpush2.msra.mxu0 %v5338
        %5780 = vmatprep.subr.mxu0 0.0
        %5781 = vmatpush2.msra.mxu0 %v5337
        %5782 = vmatprep.subr.mxu0 0.0
        %5783 = vmatpush2.msra.mxu0 %v5336
        %5784 = vmatprep.subr.mxu0 0.0
        %5785 = vmatpush2.msra.mxu0 %v5335
        %5786 = vmatprep.mubr.f32.mxu0 %v5240
        %5787 = vmatmul.mubr.f32.gmra.mxu0 %v5239
        %v5788 = vpop.f32.mrf.mxu0
        %v5789 = vadd.f32 %v5719, %v5788
        %v5790 = vpop.f32.mrf.mxu0
        %5791 = vdwg.mxu0
        %5792 = vmatprep.subr.mxu0 0.0
        %5793 = vmatpush1.msra.mxu0 %v5366
        %5794 = vmatprep.subr.mxu0 0.0
        %5795 = vmatpush1.msra.mxu0 %v5365
        %5796 = vmatprep.subr.mxu0 0.0
        %5797 = vmatpush1.msra.mxu0 %v5364
        %5798 = vmatprep.subr.mxu0 0.0
        %5799 = vmatpush1.msra.mxu0 %v5363
        %5800 = vmatprep.subr.mxu0 0.0
        %5801 = vmatpush1.msra.mxu0 %v5362
        %5802 = vmatprep.subr.mxu0 0.0
        %5803 = vmatpush1.msra.mxu0 %v5361
        %5804 = vmatprep.subr.mxu0 0.0
        %5805 = vmatpush1.msra.mxu0 %v5360
        %5806 = vmatprep.subr.mxu0 0.0
        %5807 = vmatpush1.msra.mxu0 %v5359
        %5808 = vmatprep.subr.mxu0 0.0
        %5809 = vmatpush1.msra.mxu0 %v5358
        %5810 = vmatprep.subr.mxu0 0.0
        %5811 = vmatpush1.msra.mxu0 %v5357
        %5812 = vmatprep.subr.mxu0 0.0
        %5813 = vmatpush1.msra.mxu0 %v5356
        %5814 = vmatprep.subr.mxu0 0.0
        %5815 = vmatpush1.msra.mxu0 %v5355
        %5816 = vmatprep.subr.mxu0 0.0
        %5817 = vmatpush1.msra.mxu0 %v5354
        %5818 = vmatprep.subr.mxu0 0.0
        %5819 = vmatpush1.msra.mxu0 %v5353
        %5820 = vmatprep.subr.mxu0 0.0
        %5821 = vmatpush1.msra.mxu0 %v5352
        %5822 = vmatprep.subr.mxu0 0.0
        %5823 = vmatpush1.msra.mxu0 %v5351
        %5824 = vmatprep.subr.mxu0 0.0
        %5825 = vmatpush2.msra.mxu0 %v5382
        %5826 = vmatprep.subr.mxu0 0.0
        %5827 = vmatpush2.msra.mxu0 %v5381
        %5828 = vmatprep.subr.mxu0 0.0
        %5829 = vmatpush2.msra.mxu0 %v5380
        %5830 = vmatprep.subr.mxu0 0.0
        %5831 = vmatpush2.msra.mxu0 %v5379
        %5832 = vmatprep.subr.mxu0 0.0
        %5833 = vmatpush2.msra.mxu0 %v5378
        %5834 = vmatprep.subr.mxu0 0.0
        %5835 = vmatpush2.msra.mxu0 %v5377
        %5836 = vmatprep.subr.mxu0 0.0
        %5837 = vmatpush2.msra.mxu0 %v5376
        %5838 = vmatprep.subr.mxu0 0.0
        %5839 = vmatpush2.msra.mxu0 %v5375
        %5840 = vmatprep.subr.mxu0 0.0
        %5841 = vmatpush2.msra.mxu0 %v5374
        %5842 = vmatprep.subr.mxu0 0.0
        %5843 = vmatpush2.msra.mxu0 %v5373
        %5844 = vmatprep.subr.mxu0 0.0
        %5845 = vmatpush2.msra.mxu0 %v5372
        %5846 = vmatprep.subr.mxu0 0.0
        %5847 = vmatpush2.msra.mxu0 %v5371
        %5848 = vmatprep.subr.mxu0 0.0
        %5849 = vmatpush2.msra.mxu0 %v5370
        %5850 = vmatprep.subr.mxu0 0.0
        %5851 = vmatpush2.msra.mxu0 %v5369
        %5852 = vmatprep.subr.mxu0 0.0
        %5853 = vmatpush2.msra.mxu0 %v5368
        %5854 = vmatprep.subr.mxu0 0.0
        %5855 = vmatpush2.msra.mxu0 %v5367
        %5856 = vmatprep.mubr.f32.mxu0 %v5242
        %5857 = vmatmul.mubr.f32.gmra.mxu0 %v5241
        %v5858 = vpop.f32.mrf.mxu0
        %v5859 = vadd.f32 %v5789, %v5858
        %v5860 = vpop.f32.mrf.mxu0
        %5861 = vdwg.mxu0
        %5862 = vmatprep.subr.mxu0 0.0
        %5863 = vmatpush1.msra.mxu0 %v5398
        %5864 = vmatprep.subr.mxu0 0.0
        %5865 = vmatpush1.msra.mxu0 %v5397
        %5866 = vmatprep.subr.mxu0 0.0
        %5867 = vmatpush1.msra.mxu0 %v5396
        %5868 = vmatprep.subr.mxu0 0.0
        %5869 = vmatpush1.msra.mxu0 %v5395
        %5870 = vmatprep.subr.mxu0 0.0
        %5871 = vmatpush1.msra.mxu0 %v5394
        %5872 = vmatprep.subr.mxu0 0.0
        %5873 = vmatpush1.msra.mxu0 %v5393
        %5874 = vmatprep.subr.mxu0 0.0
        %5875 = vmatpush1.msra.mxu0 %v5392
        %5876 = vmatprep.subr.mxu0 0.0
        %5877 = vmatpush1.msra.mxu0 %v5391
        %5878 = vmatprep.subr.mxu0 0.0
        %5879 = vmatpush1.msra.mxu0 %v5390
        %5880 = vmatprep.subr.mxu0 0.0
        %5881 = vmatpush1.msra.mxu0 %v5389
        %5882 = vmatprep.subr.mxu0 0.0
        %5883 = vmatpush1.msra.mxu0 %v5388
        %5884 = vmatprep.subr.mxu0 0.0
        %5885 = vmatpush1.msra.mxu0 %v5387
        %5886 = vmatprep.subr.mxu0 0.0
        %5887 = vmatpush1.msra.mxu0 %v5386
        %5888 = vmatprep.subr.mxu0 0.0
        %5889 = vmatpush1.msra.mxu0 %v5385
        %5890 = vmatprep.subr.mxu0 0.0
        %5891 = vmatpush1.msra.mxu0 %v5384
        %5892 = vmatprep.subr.mxu0 0.0
        %5893 = vmatpush1.msra.mxu0 %v5383
        %5894 = vmatprep.subr.mxu0 0.0
        %5895 = vmatpush2.msra.mxu0 %v5414
        %5896 = vmatprep.subr.mxu0 0.0
        %5897 = vmatpush2.msra.mxu0 %v5413
        %5898 = vmatprep.subr.mxu0 0.0
        %5899 = vmatpush2.msra.mxu0 %v5412
        %5900 = vmatprep.subr.mxu0 0.0
        %5901 = vmatpush2.msra.mxu0 %v5411
        %5902 = vmatprep.subr.mxu0 0.0
        %5903 = vmatpush2.msra.mxu0 %v5410
        %5904 = vmatprep.subr.mxu0 0.0
        %5905 = vmatpush2.msra.mxu0 %v5409
        %5906 = vmatprep.subr.mxu0 0.0
        %5907 = vmatpush2.msra.mxu0 %v5408
        %5908 = vmatprep.subr.mxu0 0.0
        %5909 = vmatpush2.msra.mxu0 %v5407
        %5910 = vmatprep.subr.mxu0 0.0
        %5911 = vmatpush2.msra.mxu0 %v5406
        %5912 = vmatprep.subr.mxu0 0.0
        %5913 = vmatpush2.msra.mxu0 %v5405
        %5914 = vmatprep.subr.mxu0 0.0
        %5915 = vmatpush2.msra.mxu0 %v5404
        %5916 = vmatprep.subr.mxu0 0.0
        %5917 = vmatpush2.msra.mxu0 %v5403
        %5918 = vmatprep.subr.mxu0 0.0
        %5919 = vmatpush2.msra.mxu0 %v5402
        %5920 = vmatprep.subr.mxu0 0.0
        %5921 = vmatpush2.msra.mxu0 %v5401
        %5922 = vmatprep.subr.mxu0 0.0
        %5923 = vmatpush2.msra.mxu0 %v5400
        %5924 = vmatprep.subr.mxu0 0.0
        %5925 = vmatpush2.msra.mxu0 %v5399
        %5926 = vmatprep.mubr.f32.mxu0 %v5244
        %5927 = vmatmul.mubr.f32.gmra.mxu0 %v5243
        %v5928 = vpop.f32.mrf.mxu0
        %v5929 = vadd.f32 %v5859, %v5928
        %v5930 = vpop.f32.mrf.mxu0
        %5931 = vdwg.mxu0
        %5932 = vmatprep.subr.mxu0 0.0
        %5933 = vmatpush1.msra.mxu0 %v5430
        %5934 = vmatprep.subr.mxu0 0.0
        %5935 = vmatpush1.msra.mxu0 %v5429
        %5936 = vmatprep.subr.mxu0 0.0
        %5937 = vmatpush1.msra.mxu0 %v5428
        %5938 = vmatprep.subr.mxu0 0.0
        %5939 = vmatpush1.msra.mxu0 %v5427
        %5940 = vmatprep.subr.mxu0 0.0
        %5941 = vmatpush1.msra.mxu0 %v5426
        %5942 = vmatprep.subr.mxu0 0.0
        %5943 = vmatpush1.msra.mxu0 %v5425
        %5944 = vmatprep.subr.mxu0 0.0
        %5945 = vmatpush1.msra.mxu0 %v5424
        %5946 = vmatprep.subr.mxu0 0.0
        %5947 = vmatpush1.msra.mxu0 %v5423
        %5948 = vmatprep.subr.mxu0 0.0
        %5949 = vmatpush1.msra.mxu0 %v5422
        %5950 = vmatprep.subr.mxu0 0.0
        %5951 = vmatpush1.msra.mxu0 %v5421
        %5952 = vmatprep.subr.mxu0 0.0
        %5953 = vmatpush1.msra.mxu0 %v5420
        %5954 = vmatprep.subr.mxu0 0.0
        %5955 = vmatpush1.msra.mxu0 %v5419
        %5956 = vmatprep.subr.mxu0 0.0
        %5957 = vmatpush1.msra.mxu0 %v5418
        %5958 = vmatprep.subr.mxu0 0.0
        %5959 = vmatpush1.msra.mxu0 %v5417
        %5960 = vmatprep.subr.mxu0 0.0
        %5961 = vmatpush1.msra.mxu0 %v5416
        %5962 = vmatprep.subr.mxu0 0.0
        %5963 = vmatpush1.msra.mxu0 %v5415
        %5964 = vmatprep.subr.mxu0 0.0
        %5965 = vmatpush2.msra.mxu0 %v5446
        %5966 = vmatprep.subr.mxu0 0.0
        %5967 = vmatpush2.msra.mxu0 %v5445
        %5968 = vmatprep.subr.mxu0 0.0
        %5969 = vmatpush2.msra.mxu0 %v5444
        %5970 = vmatprep.subr.mxu0 0.0
        %5971 = vmatpush2.msra.mxu0 %v5443
        %5972 = vmatprep.subr.mxu0 0.0
        %5973 = vmatpush2.msra.mxu0 %v5442
        %5974 = vmatprep.subr.mxu0 0.0
        %5975 = vmatpush2.msra.mxu0 %v5441
        %5976 = vmatprep.subr.mxu0 0.0
        %5977 = vmatpush2.msra.mxu0 %v5440
        %5978 = vmatprep.subr.mxu0 0.0
        %5979 = vmatpush2.msra.mxu0 %v5439
        %5980 = vmatprep.subr.mxu0 0.0
        %5981 = vmatpush2.msra.mxu0 %v5438
        %5982 = vmatprep.subr.mxu0 0.0
        %5983 = vmatpush2.msra.mxu0 %v5437
        %5984 = vmatprep.subr.mxu0 0.0
        %5985 = vmatpush2.msra.mxu0 %v5436
        %5986 = vmatprep.subr.mxu0 0.0
        %5987 = vmatpush2.msra.mxu0 %v5435
        %5988 = vmatprep.subr.mxu0 0.0
        %5989 = vmatpush2.msra.mxu0 %v5434
        %5990 = vmatprep.subr.mxu0 0.0
        %5991 = vmatpush2.msra.mxu0 %v5433
        %5992 = vmatprep.subr.mxu0 0.0
        %5993 = vmatpush2.msra.mxu0 %v5432
        %5994 = vmatprep.subr.mxu0 0.0
        %5995 = vmatpush2.msra.mxu0 %v5431
        %5996 = vmatprep.mubr.f32.mxu0 %v5246
        %5997 = vmatmul.mubr.f32.gmra.mxu0 %v5245
        %v5998 = vpop.f32.mrf.mxu0
        %v5999 = vadd.f32 %v5929, %v5998
        %v6000 = vpop.f32.mrf.mxu0
        %6001 = vdwg.mxu0
        %6002 = vmatprep.subr.mxu0 0.0
        %6003 = vmatpush1.msra.mxu0 %v5462
        %6004 = vmatprep.subr.mxu0 0.0
        %6005 = vmatpush1.msra.mxu0 %v5461
        %6006 = vmatprep.subr.mxu0 0.0
        %6007 = vmatpush1.msra.mxu0 %v5460
        %6008 = vmatprep.subr.mxu0 0.0
        %6009 = vmatpush1.msra.mxu0 %v5459
        %6010 = vmatprep.subr.mxu0 0.0
        %6011 = vmatpush1.msra.mxu0 %v5458
        %6012 = vmatprep.subr.mxu0 0.0
        %6013 = vmatpush1.msra.mxu0 %v5457
        %6014 = vmatprep.subr.mxu0 0.0
        %6015 = vmatpush1.msra.mxu0 %v5456
        %6016 = vmatprep.subr.mxu0 0.0
        %6017 = vmatpush1.msra.mxu0 %v5455
        %6018 = vmatprep.subr.mxu0 0.0
        %6019 = vmatpush1.msra.mxu0 %v5454
        %6020 = vmatprep.subr.mxu0 0.0
        %6021 = vmatpush1.msra.mxu0 %v5453
        %6022 = vmatprep.subr.mxu0 0.0
        %6023 = vmatpush1.msra.mxu0 %v5452
        %6024 = vmatprep.subr.mxu0 0.0
        %6025 = vmatpush1.msra.mxu0 %v5451
        %6026 = vmatprep.subr.mxu0 0.0
        %6027 = vmatpush1.msra.mxu0 %v5450
        %6028 = vmatprep.subr.mxu0 0.0
        %6029 = vmatpush1.msra.mxu0 %v5449
        %6030 = vmatprep.subr.mxu0 0.0
        %6031 = vmatpush1.msra.mxu0 %v5448
        %6032 = vmatprep.subr.mxu0 0.0
        %6033 = vmatpush1.msra.mxu0 %v5447
        %6034 = vmatprep.subr.mxu0 0.0
        %6035 = vmatpush2.msra.mxu0 %v5478
        %6036 = vmatprep.subr.mxu0 0.0
        %6037 = vmatpush2.msra.mxu0 %v5477
        %6038 = vmatprep.subr.mxu0 0.0
        %6039 = vmatpush2.msra.mxu0 %v5476
        %6040 = vmatprep.subr.mxu0 0.0
        %6041 = vmatpush2.msra.mxu0 %v5475
        %6042 = vmatprep.subr.mxu0 0.0
        %6043 = vmatpush2.msra.mxu0 %v5474
        %6044 = vmatprep.subr.mxu0 0.0
        %6045 = vmatpush2.msra.mxu0 %v5473
        %6046 = vmatprep.subr.mxu0 0.0
        %6047 = vmatpush2.msra.mxu0 %v5472
        %6048 = vmatprep.subr.mxu0 0.0
        %6049 = vmatpush2.msra.mxu0 %v5471
        %6050 = vmatprep.subr.mxu0 0.0
        %6051 = vmatpush2.msra.mxu0 %v5470
        %6052 = vmatprep.subr.mxu0 0.0
        %6053 = vmatpush2.msra.mxu0 %v5469
        %6054 = vmatprep.subr.mxu0 0.0
        %6055 = vmatpush2.msra.mxu0 %v5468
        %6056 = vmatprep.subr.mxu0 0.0
        %6057 = vmatpush2.msra.mxu0 %v5467
        %6058 = vmatprep.subr.mxu0 0.0
        %6059 = vmatpush2.msra.mxu0 %v5466
        %6060 = vmatprep.subr.mxu0 0.0
        %6061 = vmatpush2.msra.mxu0 %v5465
        %6062 = vmatprep.subr.mxu0 0.0
        %6063 = vmatpush2.msra.mxu0 %v5464
        %6064 = vmatprep.subr.mxu0 0.0
        %6065 = vmatpush2.msra.mxu0 %v5463
        %6066 = vmatprep.mubr.f32.mxu0 %v5248
        %6067 = vmatmul.mubr.f32.gmra.mxu0 %v5247
        %v6068 = vpop.f32.mrf.mxu0
        %v6069 = vadd.f32 %v5999, %v6068
        %v6070 = vpop.f32.mrf.mxu0
        %6071 = vdwg.mxu0
        %6072 = vmatprep.subr.mxu0 0.0
        %6073 = vmatpush1.msra.mxu0 %v5494
        %6074 = vmatprep.subr.mxu0 0.0
        %6075 = vmatpush1.msra.mxu0 %v5493
        %6076 = vmatprep.subr.mxu0 0.0
        %6077 = vmatpush1.msra.mxu0 %v5492
        %6078 = vmatprep.subr.mxu0 0.0
        %6079 = vmatpush1.msra.mxu0 %v5491
        %6080 = vmatprep.subr.mxu0 0.0
        %6081 = vmatpush1.msra.mxu0 %v5490
        %6082 = vmatprep.subr.mxu0 0.0
        %6083 = vmatpush1.msra.mxu0 %v5489
        %6084 = vmatprep.subr.mxu0 0.0
        %6085 = vmatpush1.msra.mxu0 %v5488
        %6086 = vmatprep.subr.mxu0 0.0
        %6087 = vmatpush1.msra.mxu0 %v5487
        %6088 = vmatprep.subr.mxu0 0.0
        %6089 = vmatpush1.msra.mxu0 %v5486
        %6090 = vmatprep.subr.mxu0 0.0
        %6091 = vmatpush1.msra.mxu0 %v5485
        %6092 = vmatprep.subr.mxu0 0.0
        %6093 = vmatpush1.msra.mxu0 %v5484
        %6094 = vmatprep.subr.mxu0 0.0
        %6095 = vmatpush1.msra.mxu0 %v5483
        %6096 = vmatprep.subr.mxu0 0.0
        %6097 = vmatpush1.msra.mxu0 %v5482
        %6098 = vmatprep.subr.mxu0 0.0
        %6099 = vmatpush1.msra.mxu0 %v5481
        %6100 = vmatprep.subr.mxu0 0.0
        %6101 = vmatpush1.msra.mxu0 %v5480
        %6102 = vmatprep.subr.mxu0 0.0
        %6103 = vmatpush1.msra.mxu0 %v5479
        %6104 = vmatprep.subr.mxu0 0.0
        %6105 = vmatpush2.msra.mxu0 %v5510
        %6106 = vmatprep.subr.mxu0 0.0
        %6107 = vmatpush2.msra.mxu0 %v5509
        %6108 = vmatprep.subr.mxu0 0.0
        %6109 = vmatpush2.msra.mxu0 %v5508
        %6110 = vmatprep.subr.mxu0 0.0
        %6111 = vmatpush2.msra.mxu0 %v5507
        %6112 = vmatprep.subr.mxu0 0.0
        %6113 = vmatpush2.msra.mxu0 %v5506
        %6114 = vmatprep.subr.mxu0 0.0
        %6115 = vmatpush2.msra.mxu0 %v5505
        %6116 = vmatprep.subr.mxu0 0.0
        %6117 = vmatpush2.msra.mxu0 %v5504
        %6118 = vmatprep.subr.mxu0 0.0
        %6119 = vmatpush2.msra.mxu0 %v5503
        %6120 = vmatprep.subr.mxu0 0.0
        %6121 = vmatpush2.msra.mxu0 %v5502
        %6122 = vmatprep.subr.mxu0 0.0
        %6123 = vmatpush2.msra.mxu0 %v5501
        %6124 = vmatprep.subr.mxu0 0.0
        %6125 = vmatpush2.msra.mxu0 %v5500
        %6126 = vmatprep.subr.mxu0 0.0
        %6127 = vmatpush2.msra.mxu0 %v5499
        %6128 = vmatprep.subr.mxu0 0.0
        %6129 = vmatpush2.msra.mxu0 %v5498
        %6130 = vmatprep.subr.mxu0 0.0
        %6131 = vmatpush2.msra.mxu0 %v5497
        %6132 = vmatprep.subr.mxu0 0.0
        %6133 = vmatpush2.msra.mxu0 %v5496
        %6134 = vmatprep.subr.mxu0 0.0
        %6135 = vmatpush2.msra.mxu0 %v5495
        %6136 = vmatprep.mubr.f32.mxu0 %v5250
        %6137 = vmatmul.mubr.f32.gmra.mxu0 %v5249
        %v6138 = vpop.f32.mrf.mxu0
        %v6139 = vadd.f32 %v6069, %v6138
        %v6140 = vpop.f32.mrf.mxu0
        %6141 = vdwg.mxu0
        %6142 = vmatprep.subr.mxu0 0.0
        %6143 = vmatpush1.msra.mxu0 %v5526
        %6144 = vmatprep.subr.mxu0 0.0
        %6145 = vmatpush1.msra.mxu0 %v5525
        %6146 = vmatprep.subr.mxu0 0.0
        %6147 = vmatpush1.msra.mxu0 %v5524
        %6148 = vmatprep.subr.mxu0 0.0
        %6149 = vmatpush1.msra.mxu0 %v5523
        %6150 = vmatprep.subr.mxu0 0.0
        %6151 = vmatpush1.msra.mxu0 %v5522
        %6152 = vmatprep.subr.mxu0 0.0
        %6153 = vmatpush1.msra.mxu0 %v5521
        %6154 = vmatprep.subr.mxu0 0.0
        %6155 = vmatpush1.msra.mxu0 %v5520
        %6156 = vmatprep.subr.mxu0 0.0
        %6157 = vmatpush1.msra.mxu0 %v5519
        %6158 = vmatprep.subr.mxu0 0.0
        %6159 = vmatpush1.msra.mxu0 %v5518
        %6160 = vmatprep.subr.mxu0 0.0
        %6161 = vmatpush1.msra.mxu0 %v5517
        %6162 = vmatprep.subr.mxu0 0.0
        %6163 = vmatpush1.msra.mxu0 %v5516
        %6164 = vmatprep.subr.mxu0 0.0
        %6165 = vmatpush1.msra.mxu0 %v5515
        %6166 = vmatprep.subr.mxu0 0.0
        %6167 = vmatpush1.msra.mxu0 %v5514
        %6168 = vmatprep.subr.mxu0 0.0
        %6169 = vmatpush1.msra.mxu0 %v5513
        %6170 = vmatprep.subr.mxu0 0.0
        %6171 = vmatpush1.msra.mxu0 %v5512
        %6172 = vmatprep.subr.mxu0 0.0
        %6173 = vmatpush1.msra.mxu0 %v5511
        %6174 = vmatprep.subr.mxu0 0.0
        %6175 = vmatpush2.msra.mxu0 %v5542
        %6176 = vmatprep.subr.mxu0 0.0
        %6177 = vmatpush2.msra.mxu0 %v5541
        %6178 = vmatprep.subr.mxu0 0.0
        %6179 = vmatpush2.msra.mxu0 %v5540
        %6180 = vmatprep.subr.mxu0 0.0
        %6181 = vmatpush2.msra.mxu0 %v5539
        %6182 = vmatprep.subr.mxu0 0.0
        %6183 = vmatpush2.msra.mxu0 %v5538
        %6184 = vmatprep.subr.mxu0 0.0
        %6185 = vmatpush2.msra.mxu0 %v5537
        %6186 = vmatprep.subr.mxu0 0.0
        %6187 = vmatpush2.msra.mxu0 %v5536
        %6188 = vmatprep.subr.mxu0 0.0
        %6189 = vmatpush2.msra.mxu0 %v5535
        %6190 = vmatprep.subr.mxu0 0.0
        %6191 = vmatpush2.msra.mxu0 %v5534
        %6192 = vmatprep.subr.mxu0 0.0
        %6193 = vmatpush2.msra.mxu0 %v5533
        %6194 = vmatprep.subr.mxu0 0.0
        %6195 = vmatpush2.msra.mxu0 %v5532
        %6196 = vmatprep.subr.mxu0 0.0
        %6197 = vmatpush2.msra.mxu0 %v5531
        %6198 = vmatprep.subr.mxu0 0.0
        %6199 = vmatpush2.msra.mxu0 %v5530
        %6200 = vmatprep.subr.mxu0 0.0
        %6201 = vmatpush2.msra.mxu0 %v5529
        %6202 = vmatprep.subr.mxu0 0.0
        %6203 = vmatpush2.msra.mxu0 %v5528
        %6204 = vmatprep.subr.mxu0 0.0
        %6205 = vmatpush2.msra.mxu0 %v5527
        %6206 = vmatprep.mubr.f32.mxu0 %v5252
        %6207 = vmatmul.mubr.f32.gmra.mxu0 %v5251
        %v6208 = vpop.f32.mrf.mxu0
        %v6209 = vadd.f32 %v6139, %v6208
        %v6210 = vpop.f32.mrf.mxu0
        %6211 = vdwg.mxu0
        %6212 = vmatprep.subr.mxu0 0.0
        %6213 = vmatpush1.msra.mxu0 %v5558
        %6214 = vmatprep.subr.mxu0 0.0
        %6215 = vmatpush1.msra.mxu0 %v5557
        %6216 = vmatprep.subr.mxu0 0.0
        %6217 = vmatpush1.msra.mxu0 %v5556
        %6218 = vmatprep.subr.mxu0 0.0
        %6219 = vmatpush1.msra.mxu0 %v5555
        %6220 = vmatprep.subr.mxu0 0.0
        %6221 = vmatpush1.msra.mxu0 %v5554
        %6222 = vmatprep.subr.mxu0 0.0
        %6223 = vmatpush1.msra.mxu0 %v5553
        %6224 = vmatprep.subr.mxu0 0.0
        %6225 = vmatpush1.msra.mxu0 %v5552
        %6226 = vmatprep.subr.mxu0 0.0
        %6227 = vmatpush1.msra.mxu0 %v5551
        %6228 = vmatprep.subr.mxu0 0.0
        %6229 = vmatpush1.msra.mxu0 %v5550
        %6230 = vmatprep.subr.mxu0 0.0
        %6231 = vmatpush1.msra.mxu0 %v5549
        %6232 = vmatprep.subr.mxu0 0.0
        %6233 = vmatpush1.msra.mxu0 %v5548
        %6234 = vmatprep.subr.mxu0 0.0
        %6235 = vmatpush1.msra.mxu0 %v5547
        %6236 = vmatprep.subr.mxu0 0.0
        %6237 = vmatpush1.msra.mxu0 %v5546
        %6238 = vmatprep.subr.mxu0 0.0
        %6239 = vmatpush1.msra.mxu0 %v5545
        %6240 = vmatprep.subr.mxu0 0.0
        %6241 = vmatpush1.msra.mxu0 %v5544
        %6242 = vmatprep.subr.mxu0 0.0
        %6243 = vmatpush1.msra.mxu0 %v5543
        %6244 = vmatprep.subr.mxu0 0.0
        %6245 = vmatpush2.msra.mxu0 %v5574
        %6246 = vmatprep.subr.mxu0 0.0
        %6247 = vmatpush2.msra.mxu0 %v5573
        %6248 = vmatprep.subr.mxu0 0.0
        %6249 = vmatpush2.msra.mxu0 %v5572
        %6250 = vmatprep.subr.mxu0 0.0
        %6251 = vmatpush2.msra.mxu0 %v5571
        %6252 = vmatprep.subr.mxu0 0.0
        %6253 = vmatpush2.msra.mxu0 %v5570
        %6254 = vmatprep.subr.mxu0 0.0
        %6255 = vmatpush2.msra.mxu0 %v5569
        %6256 = vmatprep.subr.mxu0 0.0
        %6257 = vmatpush2.msra.mxu0 %v5568
        %6258 = vmatprep.subr.mxu0 0.0
        %6259 = vmatpush2.msra.mxu0 %v5567
        %6260 = vmatprep.subr.mxu0 0.0
        %6261 = vmatpush2.msra.mxu0 %v5566
        %6262 = vmatprep.subr.mxu0 0.0
        %6263 = vmatpush2.msra.mxu0 %v5565
        %6264 = vmatprep.subr.mxu0 0.0
        %6265 = vmatpush2.msra.mxu0 %v5564
        %6266 = vmatprep.subr.mxu0 0.0
        %6267 = vmatpush2.msra.mxu0 %v5563
        %6268 = vmatprep.subr.mxu0 0.0
        %6269 = vmatpush2.msra.mxu0 %v5562
        %6270 = vmatprep.subr.mxu0 0.0
        %6271 = vmatpush2.msra.mxu0 %v5561
        %6272 = vmatprep.subr.mxu0 0.0
        %6273 = vmatpush2.msra.mxu0 %v5560
        %6274 = vmatprep.subr.mxu0 0.0
        %6275 = vmatpush2.msra.mxu0 %v5559
        %6276 = vmatprep.mubr.f32.mxu0 %v5254
        %6277 = vmatmul.mubr.f32.gmra.mxu0 %v5253
        %v6278 = vpop.f32.mrf.mxu0
        %v6279 = vadd.f32 %v6209, %v6278
        %v6280 = vpop.f32.mrf.mxu0
        %6281 = vdwg.mxu0
        %v6282 = vmax.f32 %v6279, 0.0
        %v6283 = vld [vmem:[%s5] sm:$0xff]
        %v6284 = vld [vmem:[%s5 + $0x8] sm:$0xff]
        %v6285 = vld [vmem:[%s5 + $0x10] sm:$0xff]
        %v6286 = vld [vmem:[%s5 + $0x18] sm:$0xff]
        %v6287 = vld [vmem:[%s5 + $0x20] sm:$0xff]
        %v6288 = vld [vmem:[%s5 + $0x28] sm:$0xff]
        %v6289 = vld [vmem:[%s5 + $0x30] sm:$0xff]
        %v6290 = vld [vmem:[%s5 + $0x38] sm:$0xff]
        %v6291 = vld [vmem:[%s5 + $0x40] sm:$0xff]
        %v6292 = vld [vmem:[%s5 + $0x48] sm:$0xff]
        %v6293 = vld [vmem:[%s5 + $0x50] sm:$0xff]
        %v6294 = vld [vmem:[%s5 + $0x58] sm:$0xff]
        %v6295 = vld [vmem:[%s5 + $0x60] sm:$0xff]
        %v6296 = vld [vmem:[%s5 + $0x68] sm:$0xff]
        %v6297 = vld [vmem:[%s5 + $0x70] sm:$0xff]
        %v6298 = vld [vmem:[%s5 + $0x78] sm:$0xff]
        %v6299 = vld [vmem:[%s5 + $0x80] sm:$0xff]
        %v6300 = vld [vmem:[%s5 + $0x88] sm:$0xff]
        %v6301 = vld [vmem:[%s5 + $0x90] sm:$0xff]
        %v6302 = vld [vmem:[%s5 + $0x98] sm:$0xff]
        %v6303 = vld [vmem:[%s5 + $0xa0] sm:$0xff]
        %v6304 = vld [vmem:[%s5 + $0xa8] sm:$0xff]
        %v6305 = vld [vmem:[%s5 + $0xb0] sm:$0xff]
        %v6306 = vld [vmem:[%s5 + $0xb8] sm:$0xff]
        %v6307 = vld [vmem:[%s5 + $0xc0] sm:$0xff]
        %v6308 = vld [vmem:[%s5 + $0xc8] sm:$0xff]
        %v6309 = vld [vmem:[%s5 + $0xd0] sm:$0xff]
        %v6310 = vld [vmem:[%s5 + $0xd8] sm:$0xff]
        %v6311 = vld [vmem:[%s5 + $0xe0] sm:$0xff]
        %v6312 = vld [vmem:[%s5 + $0xe8] sm:$0xff]
        %v6313 = vld [vmem:[%s5 + $0xf0] sm:$0xff]
        %v6314 = vld [vmem:[%s5 + $0xf8] sm:$0xff]
        %v6315 = vld [vmem:[%s5 + $0x100] sm:$0xff]
        %v6316 = vld [vmem:[%s5 + $0x108] sm:$0xff]
        %v6317 = vld [vmem:[%s5 + $0x110] sm:$0xff]
        %v6318 = vld [vmem:[%s5 + $0x118] sm:$0xff]
        %v6319 = vld [vmem:[%s5 + $0x120] sm:$0xff]
        %v6320 = vld [vmem:[%s5 + $0x128] sm:$0xff]
        %v6321 = vld [vmem:[%s5 + $0x130] sm:$0xff]
        %v6322 = vld [vmem:[%s5 + $0x138] sm:$0xff]
        %v6323 = vld [vmem:[%s5 + $0x140] sm:$0xff]
        %v6324 = vld [vmem:[%s5 + $0x148] sm:$0xff]
        %v6325 = vld [vmem:[%s5 + $0x150] sm:$0xff]
        %v6326 = vld [vmem:[%s5 + $0x158] sm:$0xff]
        %v6327 = vld [vmem:[%s5 + $0x160] sm:$0xff]
        %v6328 = vld [vmem:[%s5 + $0x168] sm:$0xff]
        %v6329 = vld [vmem:[%s5 + $0x170] sm:$0xff]
        %v6330 = vld [vmem:[%s5 + $0x178] sm:$0xff]
        %v6331 = vld [vmem:[%s5 + $0x180] sm:$0xff]
        %v6332 = vld [vmem:[%s5 + $0x188] sm:$0xff]
        %v6333 = vld [vmem:[%s5 + $0x190] sm:$0xff]
        %v6334 = vld [vmem:[%s5 + $0x198] sm:$0xff]
        %v6335 = vld [vmem:[%s5 + $0x1a0] sm:$0xff]
        %v6336 = vld [vmem:[%s5 + $0x1a8] sm:$0xff]
        %v6337 = vld [vmem:[%s5 + $0x1b0] sm:$0xff]
        %v6338 = vld [vmem:[%s5 + $0x1b8] sm:$0xff]
        %v6339 = vld [vmem:[%s5 + $0x1c0] sm:$0xff]
        %v6340 = vld [vmem:[%s5 + $0x1c8] sm:$0xff]
        %v6341 = vld [vmem:[%s5 + $0x1d0] sm:$0xff]
        %v6342 = vld [vmem:[%s5 + $0x1d8] sm:$0xff]
        %v6343 = vld [vmem:[%s5 + $0x1e0] sm:$0xff]
        %v6344 = vld [vmem:[%s5 + $0x1e8] sm:$0xff]
        %v6345 = vld [vmem:[%s5 + $0x1f0] sm:$0xff]
        %v6346 = vld [vmem:[%s5 + $0x1f8] sm:$0xff]
        %v6347 = vld [vmem:[%s5 + $0x200] sm:$0xff]
        %v6348 = vld [vmem:[%s5 + $0x208] sm:$0xff]
        %v6349 = vld [vmem:[%s5 + $0x210] sm:$0xff]
        %v6350 = vld [vmem:[%s5 + $0x218] sm:$0xff]
        %v6351 = vld [vmem:[%s5 + $0x220] sm:$0xff]
        %v6352 = vld [vmem:[%s5 + $0x228] sm:$0xff]
        %v6353 = vld [vmem:[%s5 + $0x230] sm:$0xff]
        %v6354 = vld [vmem:[%s5 + $0x238] sm:$0xff]
        %v6355 = vld [vmem:[%s5 + $0x240] sm:$0xff]
        %v6356 = vld [vmem:[%s5 + $0x248] sm:$0xff]
        %v6357 = vld [vmem:[%s5 + $0x250] sm:$0xff]
        %v6358 = vld [vmem:[%s5 + $0x258] sm:$0xff]
        %v6359 = vld [vmem:[%s5 + $0x260] sm:$0xff]
        %v6360 = vld [vmem:[%s5 + $0x268] sm:$0xff]
        %v6361 = vld [vmem:[%s5 + $0x270] sm:$0xff]
        %v6362 = vld [vmem:[%s5 + $0x278] sm:$0xff]
        %v6363 = vld [vmem:[%s5 + $0x280] sm:$0xff]
        %v6364 = vld [vmem:[%s5 + $0x288] sm:$0xff]
        %v6365 = vld [vmem:[%s5 + $0x290] sm:$0xff]
        %v6366 = vld [vmem:[%s5 + $0x298] sm:$0xff]
        %v6367 = vld [vmem:[%s5 + $0x2a0] sm:$0xff]
        %v6368 = vld [vmem:[%s5 + $0x2a8] sm:$0xff]
        %v6369 = vld [vmem:[%s5 + $0x2b0] sm:$0xff]
        %v6370 = vld [vmem:[%s5 + $0x2b8] sm:$0xff]
        %v6371 = vld [vmem:[%s5 + $0x2c0] sm:$0xff]
        %v6372 = vld [vmem:[%s5 + $0x2c8] sm:$0xff]
        %v6373 = vld [vmem:[%s5 + $0x2d0] sm:$0xff]
        %v6374 = vld [vmem:[%s5 + $0x2d8] sm:$0xff]
        %v6375 = vld [vmem:[%s5 + $0x2e0] sm:$0xff]
        %v6376 = vld [vmem:[%s5 + $0x2e8] sm:$0xff]
        %v6377 = vld [vmem:[%s5 + $0x2f0] sm:$0xff]
        %v6378 = vld [vmem:[%s5 + $0x2f8] sm:$0xff]
        %v6379 = vld [vmem:[%s5 + $0x300] sm:$0xff]
        %v6380 = vld [vmem:[%s5 + $0x308] sm:$0xff]
        %v6381 = vld [vmem:[%s5 + $0x310] sm:$0xff]
        %v6382 = vld [vmem:[%s5 + $0x318] sm:$0xff]
        %v6383 = vld [vmem:[%s5 + $0x320] sm:$0xff]
        %v6384 = vld [vmem:[%s5 + $0x328] sm:$0xff]
        %v6385 = vld [vmem:[%s5 + $0x330] sm:$0xff]
        %v6386 = vld [vmem:[%s5 + $0x338] sm:$0xff]
        %v6387 = vld [vmem:[%s5 + $0x340] sm:$0xff]
        %v6388 = vld [vmem:[%s5 + $0x348] sm:$0xff]
        %v6389 = vld [vmem:[%s5 + $0x350] sm:$0xff]
        %v6390 = vld [vmem:[%s5 + $0x358] sm:$0xff]
        %v6391 = vld [vmem:[%s5 + $0x360] sm:$0xff]
        %v6392 = vld [vmem:[%s5 + $0x368] sm:$0xff]
        %v6393 = vld [vmem:[%s5 + $0x370] sm:$0xff]
        %v6394 = vld [vmem:[%s5 + $0x378] sm:$0xff]
        %v6395 = vld [vmem:[%s5 + $0x380] sm:$0xff]
        %v6396 = vld [vmem:[%s5 + $0x388] sm:$0xff]
        %v6397 = vld [vmem:[%s5 + $0x390] sm:$0xff]
        %v6398 = vld [vmem:[%s5 + $0x398] sm:$0xff]
        %v6399 = vld [vmem:[%s5 + $0x3a0] sm:$0xff]
        %v6400 = vld [vmem:[%s5 + $0x3a8] sm:$0xff]
        %v6401 = vld [vmem:[%s5 + $0x3b0] sm:$0xff]
        %v6402 = vld [vmem:[%s5 + $0x3b8] sm:$0xff]
        %v6403 = vld [vmem:[%s5 + $0x3c0] sm:$0xff]
        %v6404 = vld [vmem:[%s5 + $0x3c8] sm:$0xff]
        %v6405 = vld [vmem:[%s5 + $0x3d0] sm:$0xff]
        %v6406 = vld [vmem:[%s5 + $0x3d8] sm:$0xff]
        %v6407 = vld [vmem:[%s5 + $0x3e0] sm:$0xff]
        %v6408 = vld [vmem:[%s5 + $0x3e8] sm:$0xff]
        %v6409 = vld [vmem:[%s5 + $0x3f0] sm:$0xff]
        %v6410 = vld [vmem:[%s5 + $0x3f8] sm:$0xff]
        %v6411 = vld [vmem:[%s5 + $0x400] sm:$0xff]
        %v6412 = vld [vmem:[%s5 + $0x408] sm:$0xff]
        %v6413 = vld [vmem:[%s5 + $0x410] sm:$0xff]
        %v6414 = vld [vmem:[%s5 + $0x418] sm:$0xff]
        %v6415 = vld [vmem:[%s5 + $0x420] sm:$0xff]
        %v6416 = vld [vmem:[%s5 + $0x428] sm:$0xff]
        %v6417 = vld [vmem:[%s5 + $0x430] sm:$0xff]
        %v6418 = vld [vmem:[%s5 + $0x438] sm:$0xff]
        %v6419 = vld [vmem:[%s5 + $0x440] sm:$0xff]
        %v6420 = vld [vmem:[%s5 + $0x448] sm:$0xff]
        %v6421 = vld [vmem:[%s5 + $0x450] sm:$0xff]
        %v6422 = vld [vmem:[%s5 + $0x458] sm:$0xff]
        %v6423 = vld [vmem:[%s5 + $0x460] sm:$0xff]
        %v6424 = vld [vmem:[%s5 + $0x468] sm:$0xff]
        %v6425 = vld [vmem:[%s5 + $0x470] sm:$0xff]
        %v6426 = vld [vmem:[%s5 + $0x478] sm:$0xff]
        %v6427 = vld [vmem:[%s5 + $0x480] sm:$0xff]
        %v6428 = vld [vmem:[%s5 + $0x488] sm:$0xff]
        %v6429 = vld [vmem:[%s5 + $0x490] sm:$0xff]
        %v6430 = vld [vmem:[%s5 + $0x498] sm:$0xff]
        %v6431 = vld [vmem:[%s5 + $0x4a0] sm:$0xff]
        %v6432 = vld [vmem:[%s5 + $0x4a8] sm:$0xff]
        %v6433 = vld [vmem:[%s5 + $0x4b0] sm:$0xff]
        %v6434 = vld [vmem:[%s5 + $0x4b8] sm:$0xff]
        %v6435 = vld [vmem:[%s5 + $0x4c0] sm:$0xff]
        %v6436 = vld [vmem:[%s5 + $0x4c8] sm:$0xff]
        %v6437 = vld [vmem:[%s5 + $0x4d0] sm:$0xff]
        %v6438 = vld [vmem:[%s5 + $0x4d8] sm:$0xff]
        %v6439 = vld [vmem:[%s5 + $0x4e0] sm:$0xff]
        %v6440 = vld [vmem:[%s5 + $0x4e8] sm:$0xff]
        %v6441 = vld [vmem:[%s5 + $0x4f0] sm:$0xff]
        %v6442 = vld [vmem:[%s5 + $0x4f8] sm:$0xff]
        %v6443 = vld [vmem:[%s5 + $0x500] sm:$0xff]
        %v6444 = vld [vmem:[%s5 + $0x508] sm:$0xff]
        %v6445 = vld [vmem:[%s5 + $0x510] sm:$0xff]
        %v6446 = vld [vmem:[%s5 + $0x518] sm:$0xff]
        %v6447 = vld [vmem:[%s5 + $0x520] sm:$0xff]
        %v6448 = vld [vmem:[%s5 + $0x528] sm:$0xff]
        %v6449 = vld [vmem:[%s5 + $0x530] sm:$0xff]
        %v6450 = vld [vmem:[%s5 + $0x538] sm:$0xff]
        %v6451 = vld [vmem:[%s5 + $0x540] sm:$0xff]
        %v6452 = vld [vmem:[%s5 + $0x548] sm:$0xff]
        %v6453 = vld [vmem:[%s5 + $0x550] sm:$0xff]
        %v6454 = vld [vmem:[%s5 + $0x558] sm:$0xff]
        %v6455 = vld [vmem:[%s5 + $0x560] sm:$0xff]
        %v6456 = vld [vmem:[%s5 + $0x568] sm:$0xff]
        %v6457 = vld [vmem:[%s5 + $0x570] sm:$0xff]
        %v6458 = vld [vmem:[%s5 + $0x578] sm:$0xff]
        %v6459 = vld [vmem:[%s5 + $0x580] sm:$0xff]
        %v6460 = vld [vmem:[%s5 + $0x588] sm:$0xff]
        %v6461 = vld [vmem:[%s5 + $0x590] sm:$0xff]
        %v6462 = vld [vmem:[%s5 + $0x598] sm:$0xff]
        %v6463 = vld [vmem:[%s5 + $0x5a0] sm:$0xff]
        %v6464 = vld [vmem:[%s5 + $0x5a8] sm:$0xff]
        %v6465 = vld [vmem:[%s5 + $0x5b0] sm:$0xff]
        %v6466 = vld [vmem:[%s5 + $0x5b8] sm:$0xff]
        %v6467 = vld [vmem:[%s5 + $0x5c0] sm:$0xff]
        %v6468 = vld [vmem:[%s5 + $0x5c8] sm:$0xff]
        %v6469 = vld [vmem:[%s5 + $0x5d0] sm:$0xff]
        %v6470 = vld [vmem:[%s5 + $0x5d8] sm:$0xff]
        %v6471 = vld [vmem:[%s5 + $0x5e0] sm:$0xff]
        %v6472 = vld [vmem:[%s5 + $0x5e8] sm:$0xff]
        %v6473 = vld [vmem:[%s5 + $0x5f0] sm:$0xff]
        %v6474 = vld [vmem:[%s5 + $0x5f8] sm:$0xff]
        %v6475 = vld [vmem:[%s5 + $0x600] sm:$0xff]
        %v6476 = vld [vmem:[%s5 + $0x608] sm:$0xff]
        %v6477 = vld [vmem:[%s5 + $0x610] sm:$0xff]
        %v6478 = vld [vmem:[%s5 + $0x618] sm:$0xff]
        %v6479 = vld [vmem:[%s5 + $0x620] sm:$0xff]
        %v6480 = vld [vmem:[%s5 + $0x628] sm:$0xff]
        %v6481 = vld [vmem:[%s5 + $0x630] sm:$0xff]
        %v6482 = vld [vmem:[%s5 + $0x638] sm:$0xff]
        %v6483 = vld [vmem:[%s5 + $0x640] sm:$0xff]
        %v6484 = vld [vmem:[%s5 + $0x648] sm:$0xff]
        %v6485 = vld [vmem:[%s5 + $0x650] sm:$0xff]
        %v6486 = vld [vmem:[%s5 + $0x658] sm:$0xff]
        %v6487 = vld [vmem:[%s5 + $0x660] sm:$0xff]
        %v6488 = vld [vmem:[%s5 + $0x668] sm:$0xff]
        %v6489 = vld [vmem:[%s5 + $0x670] sm:$0xff]
        %v6490 = vld [vmem:[%s5 + $0x678] sm:$0xff]
        %v6491 = vld [vmem:[%s5 + $0x680] sm:$0xff]
        %v6492 = vld [vmem:[%s5 + $0x688] sm:$0xff]
        %v6493 = vld [vmem:[%s5 + $0x690] sm:$0xff]
        %v6494 = vld [vmem:[%s5 + $0x698] sm:$0xff]
        %v6495 = vld [vmem:[%s5 + $0x6a0] sm:$0xff]
        %v6496 = vld [vmem:[%s5 + $0x6a8] sm:$0xff]
        %v6497 = vld [vmem:[%s5 + $0x6b0] sm:$0xff]
        %v6498 = vld [vmem:[%s5 + $0x6b8] sm:$0xff]
        %v6499 = vld [vmem:[%s5 + $0x6c0] sm:$0xff]
        %v6500 = vld [vmem:[%s5 + $0x6c8] sm:$0xff]
        %v6501 = vld [vmem:[%s5 + $0x6d0] sm:$0xff]
        %v6502 = vld [vmem:[%s5 + $0x6d8] sm:$0xff]
        %v6503 = vld [vmem:[%s5 + $0x6e0] sm:$0xff]
        %v6504 = vld [vmem:[%s5 + $0x6e8] sm:$0xff]
        %v6505 = vld [vmem:[%s5 + $0x6f0] sm:$0xff]
        %v6506 = vld [vmem:[%s5 + $0x6f8] sm:$0xff]
        %v6507 = vld [vmem:[%s5 + $0x700] sm:$0xff]
        %v6508 = vld [vmem:[%s5 + $0x708] sm:$0xff]
        %v6509 = vld [vmem:[%s5 + $0x710] sm:$0xff]
        %v6510 = vld [vmem:[%s5 + $0x718] sm:$0xff]
        %v6511 = vld [vmem:[%s5 + $0x720] sm:$0xff]
        %v6512 = vld [vmem:[%s5 + $0x728] sm:$0xff]
        %v6513 = vld [vmem:[%s5 + $0x730] sm:$0xff]
        %v6514 = vld [vmem:[%s5 + $0x738] sm:$0xff]
        %v6515 = vld [vmem:[%s5 + $0x740] sm:$0xff]
        %v6516 = vld [vmem:[%s5 + $0x748] sm:$0xff]
        %v6517 = vld [vmem:[%s5 + $0x750] sm:$0xff]
        %v6518 = vld [vmem:[%s5 + $0x758] sm:$0xff]
        %v6519 = vld [vmem:[%s5 + $0x760] sm:$0xff]
        %v6520 = vld [vmem:[%s5 + $0x768] sm:$0xff]
        %v6521 = vld [vmem:[%s5 + $0x770] sm:$0xff]
        %v6522 = vld [vmem:[%s5 + $0x778] sm:$0xff]
        %v6523 = vld [vmem:[%s5 + $0x780] sm:$0xff]
        %v6524 = vld [vmem:[%s5 + $0x788] sm:$0xff]
        %v6525 = vld [vmem:[%s5 + $0x790] sm:$0xff]
        %v6526 = vld [vmem:[%s5 + $0x798] sm:$0xff]
        %v6527 = vld [vmem:[%s5 + $0x7a0] sm:$0xff]
        %v6528 = vld [vmem:[%s5 + $0x7a8] sm:$0xff]
        %v6529 = vld [vmem:[%s5 + $0x7b0] sm:$0xff]
        %v6530 = vld [vmem:[%s5 + $0x7b8] sm:$0xff]
        %v6531 = vld [vmem:[%s5 + $0x7c0] sm:$0xff]
        %v6532 = vld [vmem:[%s5 + $0x7c8] sm:$0xff]
        %v6533 = vld [vmem:[%s5 + $0x7d0] sm:$0xff]
        %v6534 = vld [vmem:[%s5 + $0x7d8] sm:$0xff]
        %v6535 = vld [vmem:[%s5 + $0x7e0] sm:$0xff]
        %v6536 = vld [vmem:[%s5 + $0x7e8] sm:$0xff]
        %v6537 = vld [vmem:[%s5 + $0x7f0] sm:$0xff]
        %v6538 = vld [vmem:[%s5 + $0x7f8] sm:$0xff]
        %v6539 = vld [vmem:[%s5 + $0x800] sm:$0xff]
        %v6540 = vld [vmem:[%s5 + $0x808] sm:$0xff]
        %v6541 = vld [vmem:[%s5 + $0x810] sm:$0xff]
        %v6542 = vld [vmem:[%s5 + $0x818] sm:$0xff]
        %v6543 = vld [vmem:[%s5 + $0x820] sm:$0xff]
        %v6544 = vld [vmem:[%s5 + $0x828] sm:$0xff]
        %v6545 = vld [vmem:[%s5 + $0x830] sm:$0xff]
        %v6546 = vld [vmem:[%s5 + $0x838] sm:$0xff]
        %v6547 = vld [vmem:[%s5 + $0x840] sm:$0xff]
        %v6548 = vld [vmem:[%s5 + $0x848] sm:$0xff]
        %v6549 = vld [vmem:[%s5 + $0x850] sm:$0xff]
        %v6550 = vld [vmem:[%s5 + $0x858] sm:$0xff]
        %v6551 = vld [vmem:[%s5 + $0x860] sm:$0xff]
        %v6552 = vld [vmem:[%s5 + $0x868] sm:$0xff]
        %v6553 = vld [vmem:[%s5 + $0x870] sm:$0xff]
        %v6554 = vld [vmem:[%s5 + $0x878] sm:$0xff]
        %v6555 = vld [vmem:[%s5 + $0x880] sm:$0xff]
        %v6556 = vld [vmem:[%s5 + $0x888] sm:$0xff]
        %v6557 = vld [vmem:[%s5 + $0x890] sm:$0xff]
        %v6558 = vld [vmem:[%s5 + $0x898] sm:$0xff]
        %v6559 = vld [vmem:[%s5 + $0x8a0] sm:$0xff]
        %v6560 = vld [vmem:[%s5 + $0x8a8] sm:$0xff]
        %v6561 = vld [vmem:[%s5 + $0x8b0] sm:$0xff]
        %v6562 = vld [vmem:[%s5 + $0x8b8] sm:$0xff]
        %v6563 = vld [vmem:[%s5 + $0x8c0] sm:$0xff]
        %v6564 = vld [vmem:[%s5 + $0x8c8] sm:$0xff]
        %v6565 = vld [vmem:[%s5 + $0x8d0] sm:$0xff]
        %v6566 = vld [vmem:[%s5 + $0x8d8] sm:$0xff]
        %v6567 = vld [vmem:[%s5 + $0x8e0] sm:$0xff]
        %v6568 = vld [vmem:[%s5 + $0x8e8] sm:$0xff]
        %v6569 = vld [vmem:[%s5 + $0x8f0] sm:$0xff]
        %v6570 = vld [vmem:[%s5 + $0x8f8] sm:$0xff]
        %v6571 = vld [vmem:[%s5 + $0x900] sm:$0xff]
        %v6572 = vld [vmem:[%s5 + $0x908] sm:$0xff]
        %v6573 = vld [vmem:[%s5 + $0x910] sm:$0xff]
        %v6574 = vld [vmem:[%s5 + $0x918] sm:$0xff]
        %v6575 = vld [vmem:[%s5 + $0x920] sm:$0xff]
        %v6576 = vld [vmem:[%s5 + $0x928] sm:$0xff]
        %v6577 = vld [vmem:[%s5 + $0x930] sm:$0xff]
        %v6578 = vld [vmem:[%s5 + $0x938] sm:$0xff]
        %v6579 = vld [vmem:[%s5 + $0x940] sm:$0xff]
        %v6580 = vld [vmem:[%s5 + $0x948] sm:$0xff]
        %v6581 = vld [vmem:[%s5 + $0x950] sm:$0xff]
        %v6582 = vld [vmem:[%s5 + $0x958] sm:$0xff]
        %v6583 = vld [vmem:[%s5 + $0x960] sm:$0xff]
        %v6584 = vld [vmem:[%s5 + $0x968] sm:$0xff]
        %v6585 = vld [vmem:[%s5 + $0x970] sm:$0xff]
        %v6586 = vld [vmem:[%s5 + $0x978] sm:$0xff]
        %v6587 = vld [vmem:[%s5 + $0x980] sm:$0xff]
        %v6588 = vld [vmem:[%s5 + $0x988] sm:$0xff]
        %v6589 = vld [vmem:[%s5 + $0x990] sm:$0xff]
        %v6590 = vld [vmem:[%s5 + $0x998] sm:$0xff]
        %v6591 = vld [vmem:[%s5 + $0x9a0] sm:$0xff]
        %v6592 = vld [vmem:[%s5 + $0x9a8] sm:$0xff]
        %v6593 = vld [vmem:[%s5 + $0x9b0] sm:$0xff]
        %v6594 = vld [vmem:[%s5 + $0x9b8] sm:$0xff]
        %v6595 = vld [vmem:[%s5 + $0x9c0] sm:$0xff]
        %v6596 = vld [vmem:[%s5 + $0x9c8] sm:$0xff]
        %v6597 = vld [vmem:[%s5 + $0x9d0] sm:$0xff]
        %v6598 = vld [vmem:[%s5 + $0x9d8] sm:$0xff]
        %v6599 = vld [vmem:[%s5 + $0x9e0] sm:$0xff]
        %v6600 = vld [vmem:[%s5 + $0x9e8] sm:$0xff]
        %v6601 = vld [vmem:[%s5 + $0x9f0] sm:$0xff]
        %v6602 = vld [vmem:[%s5 + $0x9f8] sm:$0xff]
        %v6603 = vld [vmem:[%s6] sm:$0xff]
        %v6604 = vld [vmem:[%s6 + $0x8] sm:$0xff]
        %v6605 = vld [vmem:[%s6 + $0x10] sm:$0xf]
        %v6609 = vlaneseq
        %v6610 = vshrl.u32 %v6609, 7
        %v6611 = vsub.s32 0, %v6610
        %v6612 = vrot.slane %v6603, %v6611
        %v6613 = vlaneseq
        %v6614 = vshrl.u32 %v6613, 7
        %v6615 = vsub.s32 1, %v6614
        %v6616 = vrot.slane %v6603, %v6615
        %v6617 = vlaneseq
        %v6618 = vshrl.u32 %v6617, 7
        %v6619 = vsub.s32 2, %v6618
        %v6620 = vrot.slane %v6603, %v6619
        %v6621 = vlaneseq
        %v6622 = vshrl.u32 %v6621, 7
        %v6623 = vsub.s32 3, %v6622
        %v6624 = vrot.slane %v6603, %v6623
        %v6625 = vlaneseq
        %v6626 = vshrl.u32 %v6625, 7
        %v6627 = vsub.s32 4, %v6626
        %v6628 = vrot.slane %v6603, %v6627
        %v6629 = vlaneseq
        %v6630 = vshrl.u32 %v6629, 7
        %v6631 = vsub.s32 5, %v6630
        %v6632 = vrot.slane %v6603, %v6631
        %v6633 = vlaneseq
        %v6634 = vshrl.u32 %v6633, 7
        %v6635 = vsub.s32 6, %v6634
        %v6636 = vrot.slane %v6603, %v6635
        %v6637 = vlaneseq
        %v6638 = vshrl.u32 %v6637, 7
        %v6639 = vsub.s32 7, %v6638
        %v6640 = vrot.slane %v6603, %v6639
        %v6641 = vlaneseq
        %v6642 = vshrl.u32 %v6641, 7
        %v6643 = vsub.s32 0, %v6642
        %v6644 = vrot.slane %v6604, %v6643
        %v6645 = vlaneseq
        %v6646 = vshrl.u32 %v6645, 7
        %v6647 = vsub.s32 1, %v6646
        %v6648 = vrot.slane %v6604, %v6647
        %v6649 = vlaneseq
        %v6650 = vshrl.u32 %v6649, 7
        %v6651 = vsub.s32 2, %v6650
        %v6652 = vrot.slane %v6604, %v6651
        %v6653 = vlaneseq
        %v6654 = vshrl.u32 %v6653, 7
        %v6655 = vsub.s32 3, %v6654
        %v6656 = vrot.slane %v6604, %v6655
        %v6657 = vlaneseq
        %v6658 = vshrl.u32 %v6657, 7
        %v6659 = vsub.s32 4, %v6658
        %v6660 = vrot.slane %v6604, %v6659
        %v6661 = vlaneseq
        %v6662 = vshrl.u32 %v6661, 7
        %v6663 = vsub.s32 5, %v6662
        %v6664 = vrot.slane %v6604, %v6663
        %v6665 = vlaneseq
        %v6666 = vshrl.u32 %v6665, 7
        %v6667 = vsub.s32 6, %v6666
        %v6668 = vrot.slane %v6604, %v6667
        %v6669 = vlaneseq
        %v6670 = vshrl.u32 %v6669, 7
        %v6671 = vsub.s32 7, %v6670
        %v6672 = vrot.slane %v6604, %v6671
        %v6673 = vlaneseq
        %v6674 = vshrl.u32 %v6673, 7
        %v6675 = vsub.s32 0, %v6674
        %v6676 = vrot.slane %v6605, %v6675
        %v6677 = vlaneseq
        %v6678 = vshrl.u32 %v6677, 7
        %v6679 = vsub.s32 1, %v6678
        %v6680 = vrot.slane %v6605, %v6679
        %v6681 = vlaneseq
        %v6682 = vshrl.u32 %v6681, 7
        %v6683 = vsub.s32 2, %v6682
        %v6684 = vrot.slane %v6605, %v6683
        %v6685 = vlaneseq
        %v6686 = vshrl.u32 %v6685, 7
        %v6687 = vsub.s32 3, %v6686
        %v6688 = vrot.slane %v6605, %v6687
        %6709 = vmatprep.subr.mxu0 %v6584
        %6710 = vmatpush1.msra.mxu0 %v6583
        %6711 = vmatprep.subr.mxu0 %v6564
        %6712 = vmatpush1.msra.mxu0 %v6563
        %6713 = vmatprep.subr.mxu0 %v6544
        %6714 = vmatpush1.msra.mxu0 %v6543
        %6715 = vmatprep.subr.mxu0 %v6524
        %6716 = vmatpush1.msra.mxu0 %v6523
        %6717 = vmatprep.subr.mxu0 %v6504
        %6718 = vmatpush1.msra.mxu0 %v6503
        %6719 = vmatprep.subr.mxu0 %v6484
        %6720 = vmatpush1.msra.mxu0 %v6483
        %6721 = vmatprep.subr.mxu0 %v6464
        %6722 = vmatpush1.msra.mxu0 %v6463
        %6723 = vmatprep.subr.mxu0 %v6444
        %6724 = vmatpush1.msra.mxu0 %v6443
        %6725 = vmatprep.subr.mxu0 %v6424
        %6726 = vmatpush1.msra.mxu0 %v6423
        %6727 = vmatprep.subr.mxu0 %v6404
        %6728 = vmatpush1.msra.mxu0 %v6403
        %6729 = vmatprep.subr.mxu0 %v6384
        %6730 = vmatpush1.msra.mxu0 %v6383
        %6731 = vmatprep.subr.mxu0 %v6364
        %6732 = vmatpush1.msra.mxu0 %v6363
        %6733 = vmatprep.subr.mxu0 %v6344
        %6734 = vmatpush1.msra.mxu0 %v6343
        %6735 = vmatprep.subr.mxu0 %v6324
        %6736 = vmatpush1.msra.mxu0 %v6323
        %6737 = vmatprep.subr.mxu0 %v6304
        %6738 = vmatpush1.msra.mxu0 %v6303
        %6739 = vmatprep.subr.mxu0 %v6284
        %6740 = vmatpush1.msra.mxu0 %v6283
        %6741 = vmatprep.subr.mxu0 0.0
        %6742 = vmatpush2.msra.mxu0 0.0
        %6743 = vmatprep.subr.mxu0 0.0
        %6744 = vmatpush2.msra.mxu0 0.0
        %6745 = vmatprep.subr.mxu0 0.0
        %6746 = vmatpush2.msra.mxu0 0.0
        %6747 = vmatprep.subr.mxu0 0.0
        %6748 = vmatpush2.msra.mxu0 0.0
        %6749 = vmatprep.subr.mxu0 0.0
        %6750 = vmatpush2.msra.mxu0 0.0
        %6751 = vmatprep.subr.mxu0 0.0
        %6752 = vmatpush2.msra.mxu0 0.0
        %6753 = vmatprep.subr.mxu0 0.0
        %6754 = vmatpush2.msra.mxu0 0.0
        %6755 = vmatprep.subr.mxu0 0.0
        %6756 = vmatpush2.msra.mxu0 0.0
        %6757 = vmatprep.subr.mxu0 0.0
        %6758 = vmatpush2.msra.mxu0 0.0
        %6759 = vmatprep.subr.mxu0 0.0
        %6760 = vmatpush2.msra.mxu0 0.0
        %6761 = vmatprep.subr.mxu0 0.0
        %6762 = vmatpush2.msra.mxu0 0.0
        %6763 = vmatprep.subr.mxu0 0.0
        %6764 = vmatpush2.msra.mxu0 0.0
        %6765 = vmatprep.subr.mxu0 0.0
        %6766 = vmatpush2.msra.mxu0 0.0
        %6767 = vmatprep.subr.mxu0 0.0
        %6768 = vmatpush2.msra.mxu0 0.0
        %6769 = vmatprep.subr.mxu0 0.0
        %6770 = vmatpush2.msra.mxu0 0.0
        %6771 = vmatprep.subr.mxu0 0.0
        %6772 = vmatpush2.msra.mxu0 0.0
        %6773 = vmatprep.mubr.f32.mxu0 0.0
        %6774 = vmatmul.mubr.f32.gmra.mxu0 %v6282
        %v6775 = vpop.f32.mrf.mxu0
        %v6776 = vadd.f32 %v6612, %v6775
        %v6777 = vpop.f32.mrf.mxu0
        %v6778 = vadd.f32 %v6616, %v6777
        %6779 = vdwg.mxu0
        %6780 = vmatprep.subr.mxu0 %v6586
        %6781 = vmatpush1.msra.mxu0 %v6585
        %6782 = vmatprep.subr.mxu0 %v6566
        %6783 = vmatpush1.msra.mxu0 %v6565
        %6784 = vmatprep.subr.mxu0 %v6546
        %6785 = vmatpush1.msra.mxu0 %v6545
        %6786 = vmatprep.subr.mxu0 %v6526
        %6787 = vmatpush1.msra.mxu0 %v6525
        %6788 = vmatprep.subr.mxu0 %v6506
        %6789 = vmatpush1.msra.mxu0 %v6505
        %6790 = vmatprep.subr.mxu0 %v6486
        %6791 = vmatpush1.msra.mxu0 %v6485
        %6792 = vmatprep.subr.mxu0 %v6466
        %6793 = vmatpush1.msra.mxu0 %v6465
        %6794 = vmatprep.subr.mxu0 %v6446
        %6795 = vmatpush1.msra.mxu0 %v6445
        %6796 = vmatprep.subr.mxu0 %v6426
        %6797 = vmatpush1.msra.mxu0 %v6425
        %6798 = vmatprep.subr.mxu0 %v6406
        %6799 = vmatpush1.msra.mxu0 %v6405
        %6800 = vmatprep.subr.mxu0 %v6386
        %6801 = vmatpush1.msra.mxu0 %v6385
        %6802 = vmatprep.subr.mxu0 %v6366
        %6803 = vmatpush1.msra.mxu0 %v6365
        %6804 = vmatprep.subr.mxu0 %v6346
        %6805 = vmatpush1.msra.mxu0 %v6345
        %6806 = vmatprep.subr.mxu0 %v6326
        %6807 = vmatpush1.msra.mxu0 %v6325
        %6808 = vmatprep.subr.mxu0 %v6306
        %6809 = vmatpush1.msra.mxu0 %v6305
        %6810 = vmatprep.subr.mxu0 %v6286
        %6811 = vmatpush1.msra.mxu0 %v6285
        %6812 = vmatprep.subr.mxu0 0.0
        %6813 = vmatpush2.msra.mxu0 0.0
        %6814 = vmatprep.subr.mxu0 0.0
        %6815 = vmatpush2.msra.mxu0 0.0
        %6816 = vmatprep.subr.mxu0 0.0
        %6817 = vmatpush2.msra.mxu0 0.0
        %6818 = vmatprep.subr.mxu0 0.0
        %6819 = vmatpush2.msra.mxu0 0.0
        %6820 = vmatprep.subr.mxu0 0.0
        %6821 = vmatpush2.msra.mxu0 0.0
        %6822 = vmatprep.subr.mxu0 0.0
        %6823 = vmatpush2.msra.mxu0 0.0
        %6824 = vmatprep.subr.mxu0 0.0
        %6825 = vmatpush2.msra.mxu0 0.0
        %6826 = vmatprep.subr.mxu0 0.0
        %6827 = vmatpush2.msra.mxu0 0.0
        %6828 = vmatprep.subr.mxu0 0.0
        %6829 = vmatpush2.msra.mxu0 0.0
        %6830 = vmatprep.subr.mxu0 0.0
        %6831 = vmatpush2.msra.mxu0 0.0
        %6832 = vmatprep.subr.mxu0 0.0
        %6833 = vmatpush2.msra.mxu0 0.0
        %6834 = vmatprep.subr.mxu0 0.0
        %6835 = vmatpush2.msra.mxu0 0.0
        %6836 = vmatprep.subr.mxu0 0.0
        %6837 = vmatpush2.msra.mxu0 0.0
        %6838 = vmatprep.subr.mxu0 0.0
        %6839 = vmatpush2.msra.mxu0 0.0
        %6840 = vmatprep.subr.mxu0 0.0
        %6841 = vmatpush2.msra.mxu0 0.0
        %6842 = vmatprep.subr.mxu0 0.0
        %6843 = vmatpush2.msra.mxu0 0.0
        %6844 = vmatprep.mubr.f32.mxu0 0.0
        %6845 = vmatmul.mubr.f32.gmra.mxu0 %v6282
        %v6846 = vpop.f32.mrf.mxu0
        %v6847 = vadd.f32 %v6620, %v6846
        %v6848 = vpop.f32.mrf.mxu0
        %v6849 = vadd.f32 %v6624, %v6848
        %6850 = vdwg.mxu0
        %6851 = vmatprep.subr.mxu0 %v6588
        %6852 = vmatpush1.msra.mxu0 %v6587
        %6853 = vmatprep.subr.mxu0 %v6568
        %6854 = vmatpush1.msra.mxu0 %v6567
        %6855 = vmatprep.subr.mxu0 %v6548
        %6856 = vmatpush1.msra.mxu0 %v6547
        %6857 = vmatprep.subr.mxu0 %v6528
        %6858 = vmatpush1.msra.mxu0 %v6527
        %6859 = vmatprep.subr.mxu0 %v6508
        %6860 = vmatpush1.msra.mxu0 %v6507
        %6861 = vmatprep.subr.mxu0 %v6488
        %6862 = vmatpush1.msra.mxu0 %v6487
        %6863 = vmatprep.subr.mxu0 %v6468
        %6864 = vmatpush1.msra.mxu0 %v6467
        %6865 = vmatprep.subr.mxu0 %v6448
        %6866 = vmatpush1.msra.mxu0 %v6447
        %6867 = vmatprep.subr.mxu0 %v6428
        %6868 = vmatpush1.msra.mxu0 %v6427
        %6869 = vmatprep.subr.mxu0 %v6408
        %6870 = vmatpush1.msra.mxu0 %v6407
        %6871 = vmatprep.subr.mxu0 %v6388
        %6872 = vmatpush1.msra.mxu0 %v6387
        %6873 = vmatprep.subr.mxu0 %v6368
        %6874 = vmatpush1.msra.mxu0 %v6367
        %6875 = vmatprep.subr.mxu0 %v6348
        %6876 = vmatpush1.msra.mxu0 %v6347
        %6877 = vmatprep.subr.mxu0 %v6328
        %6878 = vmatpush1.msra.mxu0 %v6327
        %6879 = vmatprep.subr.mxu0 %v6308
        %6880 = vmatpush1.msra.mxu0 %v6307
        %6881 = vmatprep.subr.mxu0 %v6288
        %6882 = vmatpush1.msra.mxu0 %v6287
        %6883 = vmatprep.subr.mxu0 0.0
        %6884 = vmatpush2.msra.mxu0 0.0
        %6885 = vmatprep.subr.mxu0 0.0
        %6886 = vmatpush2.msra.mxu0 0.0
        %6887 = vmatprep.subr.mxu0 0.0
        %6888 = vmatpush2.msra.mxu0 0.0
        %6889 = vmatprep.subr.mxu0 0.0
        %6890 = vmatpush2.msra.mxu0 0.0
        %6891 = vmatprep.subr.mxu0 0.0
        %6892 = vmatpush2.msra.mxu0 0.0
        %6893 = vmatprep.subr.mxu0 0.0
        %6894 = vmatpush2.msra.mxu0 0.0
        %6895 = vmatprep.subr.mxu0 0.0
        %6896 = vmatpush2.msra.mxu0 0.0
        %6897 = vmatprep.subr.mxu0 0.0
        %6898 = vmatpush2.msra.mxu0 0.0
        %6899 = vmatprep.subr.mxu0 0.0
        %6900 = vmatpush2.msra.mxu0 0.0
        %6901 = vmatprep.subr.mxu0 0.0
        %6902 = vmatpush2.msra.mxu0 0.0
        %6903 = vmatprep.subr.mxu0 0.0
        %6904 = vmatpush2.msra.mxu0 0.0
        %6905 = vmatprep.subr.mxu0 0.0
        %6906 = vmatpush2.msra.mxu0 0.0
        %6907 = vmatprep.subr.mxu0 0.0
        %6908 = vmatpush2.msra.mxu0 0.0
        %6909 = vmatprep.subr.mxu0 0.0
        %6910 = vmatpush2.msra.mxu0 0.0
        %6911 = vmatprep.subr.mxu0 0.0
        %6912 = vmatpush2.msra.mxu0 0.0
        %6913 = vmatprep.subr.mxu0 0.0
        %6914 = vmatpush2.msra.mxu0 0.0
        %6915 = vmatprep.mubr.f32.mxu0 0.0
        %6916 = vmatmul.mubr.f32.gmra.mxu0 %v6282
        %v6917 = vpop.f32.mrf.mxu0
        %v6918 = vadd.f32 %v6628, %v6917
        %v6919 = vpop.f32.mrf.mxu0
        %v6920 = vadd.f32 %v6632, %v6919
        %6921 = vdwg.mxu0
        %6922 = vmatprep.subr.mxu0 %v6590
        %6923 = vmatpush1.msra.mxu0 %v6589
        %6924 = vmatprep.subr.mxu0 %v6570
        %6925 = vmatpush1.msra.mxu0 %v6569
        %6926 = vmatprep.subr.mxu0 %v6550
        %6927 = vmatpush1.msra.mxu0 %v6549
        %6928 = vmatprep.subr.mxu0 %v6530
        %6929 = vmatpush1.msra.mxu0 %v6529
        %6930 = vmatprep.subr.mxu0 %v6510
        %6931 = vmatpush1.msra.mxu0 %v6509
        %6932 = vmatprep.subr.mxu0 %v6490
        %6933 = vmatpush1.msra.mxu0 %v6489
        %6934 = vmatprep.subr.mxu0 %v6470
        %6935 = vmatpush1.msra.mxu0 %v6469
        %6936 = vmatprep.subr.mxu0 %v6450
        %6937 = vmatpush1.msra.mxu0 %v6449
        %6938 = vmatprep.subr.mxu0 %v6430
        %6939 = vmatpush1.msra.mxu0 %v6429
        %6940 = vmatprep.subr.mxu0 %v6410
        %6941 = vmatpush1.msra.mxu0 %v6409
        %6942 = vmatprep.subr.mxu0 %v6390
        %6943 = vmatpush1.msra.mxu0 %v6389
        %6944 = vmatprep.subr.mxu0 %v6370
        %6945 = vmatpush1.msra.mxu0 %v6369
        %6946 = vmatprep.subr.mxu0 %v6350
        %6947 = vmatpush1.msra.mxu0 %v6349
        %6948 = vmatprep.subr.mxu0 %v6330
        %6949 = vmatpush1.msra.mxu0 %v6329
        %6950 = vmatprep.subr.mxu0 %v6310
        %6951 = vmatpush1.msra.mxu0 %v6309
        %6952 = vmatprep.subr.mxu0 %v6290
        %6953 = vmatpush1.msra.mxu0 %v6289
        %6954 = vmatprep.subr.mxu0 0.0
        %6955 = vmatpush2.msra.mxu0 0.0
        %6956 = vmatprep.subr.mxu0 0.0
        %6957 = vmatpush2.msra.mxu0 0.0
        %6958 = vmatprep.subr.mxu0 0.0
        %6959 = vmatpush2.msra.mxu0 0.0
        %6960 = vmatprep.subr.mxu0 0.0
        %6961 = vmatpush2.msra.mxu0 0.0
        %6962 = vmatprep.subr.mxu0 0.0
        %6963 = vmatpush2.msra.mxu0 0.0
        %6964 = vmatprep.subr.mxu0 0.0
        %6965 = vmatpush2.msra.mxu0 0.0
        %6966 = vmatprep.subr.mxu0 0.0
        %6967 = vmatpush2.msra.mxu0 0.0
        %6968 = vmatprep.subr.mxu0 0.0
        %6969 = vmatpush2.msra.mxu0 0.0
        %6970 = vmatprep.subr.mxu0 0.0
        %6971 = vmatpush2.msra.mxu0 0.0
        %6972 = vmatprep.subr.mxu0 0.0
        %6973 = vmatpush2.msra.mxu0 0.0
        %6974 = vmatprep.subr.mxu0 0.0
        %6975 = vmatpush2.msra.mxu0 0.0
        %6976 = vmatprep.subr.mxu0 0.0
        %6977 = vmatpush2.msra.mxu0 0.0
        %6978 = vmatprep.subr.mxu0 0.0
        %6979 = vmatpush2.msra.mxu0 0.0
        %6980 = vmatprep.subr.mxu0 0.0
        %6981 = vmatpush2.msra.mxu0 0.0
        %6982 = vmatprep.subr.mxu0 0.0
        %6983 = vmatpush2.msra.mxu0 0.0
        %6984 = vmatprep.subr.mxu0 0.0
        %6985 = vmatpush2.msra.mxu0 0.0
        %6986 = vmatprep.mubr.f32.mxu0 0.0
        %6987 = vmatmul.mubr.f32.gmra.mxu0 %v6282
        %v6988 = vpop.f32.mrf.mxu0
        %v6989 = vadd.f32 %v6636, %v6988
        %v6990 = vpop.f32.mrf.mxu0
        %v6991 = vadd.f32 %v6640, %v6990
        %6992 = vdwg.mxu0
        %6993 = vmatprep.subr.mxu0 %v6592
        %6994 = vmatpush1.msra.mxu0 %v6591
        %6995 = vmatprep.subr.mxu0 %v6572
        %6996 = vmatpush1.msra.mxu0 %v6571
        %6997 = vmatprep.subr.mxu0 %v6552
        %6998 = vmatpush1.msra.mxu0 %v6551
        %6999 = vmatprep.subr.mxu0 %v6532
        %7000 = vmatpush1.msra.mxu0 %v6531
        %7001 = vmatprep.subr.mxu0 %v6512
        %7002 = vmatpush1.msra.mxu0 %v6511
        %7003 = vmatprep.subr.mxu0 %v6492
        %7004 = vmatpush1.msra.mxu0 %v6491
        %7005 = vmatprep.subr.mxu0 %v6472
        %7006 = vmatpush1.msra.mxu0 %v6471
        %7007 = vmatprep.subr.mxu0 %v6452
        %7008 = vmatpush1.msra.mxu0 %v6451
        %7009 = vmatprep.subr.mxu0 %v6432
        %7010 = vmatpush1.msra.mxu0 %v6431
        %7011 = vmatprep.subr.mxu0 %v6412
        %7012 = vmatpush1.msra.mxu0 %v6411
        %7013 = vmatprep.subr.mxu0 %v6392
        %7014 = vmatpush1.msra.mxu0 %v6391
        %7015 = vmatprep.subr.mxu0 %v6372
        %7016 = vmatpush1.msra.mxu0 %v6371
        %7017 = vmatprep.subr.mxu0 %v6352
        %7018 = vmatpush1.msra.mxu0 %v6351
        %7019 = vmatprep.subr.mxu0 %v6332
        %7020 = vmatpush1.msra.mxu0 %v6331
        %7021 = vmatprep.subr.mxu0 %v6312
        %7022 = vmatpush1.msra.mxu0 %v6311
        %7023 = vmatprep.subr.mxu0 %v6292
        %7024 = vmatpush1.msra.mxu0 %v6291
        %7025 = vmatprep.subr.mxu0 0.0
        %7026 = vmatpush2.msra.mxu0 0.0
        %7027 = vmatprep.subr.mxu0 0.0
        %7028 = vmatpush2.msra.mxu0 0.0
        %7029 = vmatprep.subr.mxu0 0.0
        %7030 = vmatpush2.msra.mxu0 0.0
        %7031 = vmatprep.subr.mxu0 0.0
        %7032 = vmatpush2.msra.mxu0 0.0
        %7033 = vmatprep.subr.mxu0 0.0
        %7034 = vmatpush2.msra.mxu0 0.0
        %7035 = vmatprep.subr.mxu0 0.0
        %7036 = vmatpush2.msra.mxu0 0.0
        %7037 = vmatprep.subr.mxu0 0.0
        %7038 = vmatpush2.msra.mxu0 0.0
        %7039 = vmatprep.subr.mxu0 0.0
        %7040 = vmatpush2.msra.mxu0 0.0
        %7041 = vmatprep.subr.mxu0 0.0
        %7042 = vmatpush2.msra.mxu0 0.0
        %7043 = vmatprep.subr.mxu0 0.0
        %7044 = vmatpush2.msra.mxu0 0.0
        %7045 = vmatprep.subr.mxu0 0.0
        %7046 = vmatpush2.msra.mxu0 0.0
        %7047 = vmatprep.subr.mxu0 0.0
        %7048 = vmatpush2.msra.mxu0 0.0
        %7049 = vmatprep.subr.mxu0 0.0
        %7050 = vmatpush2.msra.mxu0 0.0
        %7051 = vmatprep.subr.mxu0 0.0
        %7052 = vmatpush2.msra.mxu0 0.0
        %7053 = vmatprep.subr.mxu0 0.0
        %7054 = vmatpush2.msra.mxu0 0.0
        %7055 = vmatprep.subr.mxu0 0.0
        %7056 = vmatpush2.msra.mxu0 0.0
        %7057 = vmatprep.mubr.f32.mxu0 0.0
        %7058 = vmatmul.mubr.f32.gmra.mxu0 %v6282
        %v7059 = vpop.f32.mrf.mxu0
        %v7060 = vadd.f32 %v6644, %v7059
        %v7061 = vpop.f32.mrf.mxu0
        %v7062 = vadd.f32 %v6648, %v7061
        %7063 = vdwg.mxu0
        %7064 = vmatprep.subr.mxu0 %v6594
        %7065 = vmatpush1.msra.mxu0 %v6593
        %7066 = vmatprep.subr.mxu0 %v6574
        %7067 = vmatpush1.msra.mxu0 %v6573
        %7068 = vmatprep.subr.mxu0 %v6554
        %7069 = vmatpush1.msra.mxu0 %v6553
        %7070 = vmatprep.subr.mxu0 %v6534
        %7071 = vmatpush1.msra.mxu0 %v6533
        %7072 = vmatprep.subr.mxu0 %v6514
        %7073 = vmatpush1.msra.mxu0 %v6513
        %7074 = vmatprep.subr.mxu0 %v6494
        %7075 = vmatpush1.msra.mxu0 %v6493
        %7076 = vmatprep.subr.mxu0 %v6474
        %7077 = vmatpush1.msra.mxu0 %v6473
        %7078 = vmatprep.subr.mxu0 %v6454
        %7079 = vmatpush1.msra.mxu0 %v6453
        %7080 = vmatprep.subr.mxu0 %v6434
        %7081 = vmatpush1.msra.mxu0 %v6433
        %7082 = vmatprep.subr.mxu0 %v6414
        %7083 = vmatpush1.msra.mxu0 %v6413
        %7084 = vmatprep.subr.mxu0 %v6394
        %7085 = vmatpush1.msra.mxu0 %v6393
        %7086 = vmatprep.subr.mxu0 %v6374
        %7087 = vmatpush1.msra.mxu0 %v6373
        %7088 = vmatprep.subr.mxu0 %v6354
        %7089 = vmatpush1.msra.mxu0 %v6353
        %7090 = vmatprep.subr.mxu0 %v6334
        %7091 = vmatpush1.msra.mxu0 %v6333
        %7092 = vmatprep.subr.mxu0 %v6314
        %7093 = vmatpush1.msra.mxu0 %v6313
        %7094 = vmatprep.subr.mxu0 %v6294
        %7095 = vmatpush1.msra.mxu0 %v6293
        %7096 = vmatprep.subr.mxu0 0.0
        %7097 = vmatpush2.msra.mxu0 0.0
        %7098 = vmatprep.subr.mxu0 0.0
        %7099 = vmatpush2.msra.mxu0 0.0
        %7100 = vmatprep.subr.mxu0 0.0
        %7101 = vmatpush2.msra.mxu0 0.0
        %7102 = vmatprep.subr.mxu0 0.0
        %7103 = vmatpush2.msra.mxu0 0.0
        %7104 = vmatprep.subr.mxu0 0.0
        %7105 = vmatpush2.msra.mxu0 0.0
        %7106 = vmatprep.subr.mxu0 0.0
        %7107 = vmatpush2.msra.mxu0 0.0
        %7108 = vmatprep.subr.mxu0 0.0
        %7109 = vmatpush2.msra.mxu0 0.0
        %7110 = vmatprep.subr.mxu0 0.0
        %7111 = vmatpush2.msra.mxu0 0.0
        %7112 = vmatprep.subr.mxu0 0.0
        %7113 = vmatpush2.msra.mxu0 0.0
        %7114 = vmatprep.subr.mxu0 0.0
        %7115 = vmatpush2.msra.mxu0 0.0
        %7116 = vmatprep.subr.mxu0 0.0
        %7117 = vmatpush2.msra.mxu0 0.0
        %7118 = vmatprep.subr.mxu0 0.0
        %7119 = vmatpush2.msra.mxu0 0.0
        %7120 = vmatprep.subr.mxu0 0.0
        %7121 = vmatpush2.msra.mxu0 0.0
        %7122 = vmatprep.subr.mxu0 0.0
        %7123 = vmatpush2.msra.mxu0 0.0
        %7124 = vmatprep.subr.mxu0 0.0
        %7125 = vmatpush2.msra.mxu0 0.0
        %7126 = vmatprep.subr.mxu0 0.0
        %7127 = vmatpush2.msra.mxu0 0.0
        %7128 = vmatprep.mubr.f32.mxu0 0.0
        %7129 = vmatmul.mubr.f32.gmra.mxu0 %v6282
        %v7130 = vpop.f32.mrf.mxu0
        %v7131 = vadd.f32 %v6652, %v7130
        %v7132 = vpop.f32.mrf.mxu0
        %v7133 = vadd.f32 %v6656, %v7132
        %7134 = vdwg.mxu0
        %7135 = vmatprep.subr.mxu0 %v6596
        %7136 = vmatpush1.msra.mxu0 %v6595
        %7137 = vmatprep.subr.mxu0 %v6576
        %7138 = vmatpush1.msra.mxu0 %v6575
        %7139 = vmatprep.subr.mxu0 %v6556
        %7140 = vmatpush1.msra.mxu0 %v6555
        %7141 = vmatprep.subr.mxu0 %v6536
        %7142 = vmatpush1.msra.mxu0 %v6535
        %7143 = vmatprep.subr.mxu0 %v6516
        %7144 = vmatpush1.msra.mxu0 %v6515
        %7145 = vmatprep.subr.mxu0 %v6496
        %7146 = vmatpush1.msra.mxu0 %v6495
        %7147 = vmatprep.subr.mxu0 %v6476
        %7148 = vmatpush1.msra.mxu0 %v6475
        %7149 = vmatprep.subr.mxu0 %v6456
        %7150 = vmatpush1.msra.mxu0 %v6455
        %7151 = vmatprep.subr.mxu0 %v6436
        %7152 = vmatpush1.msra.mxu0 %v6435
        %7153 = vmatprep.subr.mxu0 %v6416
        %7154 = vmatpush1.msra.mxu0 %v6415
        %7155 = vmatprep.subr.mxu0 %v6396
        %7156 = vmatpush1.msra.mxu0 %v6395
        %7157 = vmatprep.subr.mxu0 %v6376
        %7158 = vmatpush1.msra.mxu0 %v6375
        %7159 = vmatprep.subr.mxu0 %v6356
        %7160 = vmatpush1.msra.mxu0 %v6355
        %7161 = vmatprep.subr.mxu0 %v6336
        %7162 = vmatpush1.msra.mxu0 %v6335
        %7163 = vmatprep.subr.mxu0 %v6316
        %7164 = vmatpush1.msra.mxu0 %v6315
        %7165 = vmatprep.subr.mxu0 %v6296
        %7166 = vmatpush1.msra.mxu0 %v6295
        %7167 = vmatprep.subr.mxu0 0.0
        %7168 = vmatpush2.msra.mxu0 0.0
        %7169 = vmatprep.subr.mxu0 0.0
        %7170 = vmatpush2.msra.mxu0 0.0
        %7171 = vmatprep.subr.mxu0 0.0
        %7172 = vmatpush2.msra.mxu0 0.0
        %7173 = vmatprep.subr.mxu0 0.0
        %7174 = vmatpush2.msra.mxu0 0.0
        %7175 = vmatprep.subr.mxu0 0.0
        %7176 = vmatpush2.msra.mxu0 0.0
        %7177 = vmatprep.subr.mxu0 0.0
        %7178 = vmatpush2.msra.mxu0 0.0
        %7179 = vmatprep.subr.mxu0 0.0
        %7180 = vmatpush2.msra.mxu0 0.0
        %7181 = vmatprep.subr.mxu0 0.0
        %7182 = vmatpush2.msra.mxu0 0.0
        %7183 = vmatprep.subr.mxu0 0.0
        %7184 = vmatpush2.msra.mxu0 0.0
        %7185 = vmatprep.subr.mxu0 0.0
        %7186 = vmatpush2.msra.mxu0 0.0
        %7187 = vmatprep.subr.mxu0 0.0
        %7188 = vmatpush2.msra.mxu0 0.0
        %7189 = vmatprep.subr.mxu0 0.0
        %7190 = vmatpush2.msra.mxu0 0.0
        %7191 = vmatprep.subr.mxu0 0.0
        %7192 = vmatpush2.msra.mxu0 0.0
        %7193 = vmatprep.subr.mxu0 0.0
        %7194 = vmatpush2.msra.mxu0 0.0
        %7195 = vmatprep.subr.mxu0 0.0
        %7196 = vmatpush2.msra.mxu0 0.0
        %7197 = vmatprep.subr.mxu0 0.0
        %7198 = vmatpush2.msra.mxu0 0.0
        %7199 = vmatprep.mubr.f32.mxu0 0.0
        %7200 = vmatmul.mubr.f32.gmra.mxu0 %v6282
        %v7201 = vpop.f32.mrf.mxu0
        %v7202 = vadd.f32 %v6660, %v7201
        %v7203 = vpop.f32.mrf.mxu0
        %v7204 = vadd.f32 %v6664, %v7203
        %7205 = vdwg.mxu0
        %7206 = vmatprep.subr.mxu0 %v6598
        %7207 = vmatpush1.msra.mxu0 %v6597
        %7208 = vmatprep.subr.mxu0 %v6578
        %7209 = vmatpush1.msra.mxu0 %v6577
        %7210 = vmatprep.subr.mxu0 %v6558
        %7211 = vmatpush1.msra.mxu0 %v6557
        %7212 = vmatprep.subr.mxu0 %v6538
        %7213 = vmatpush1.msra.mxu0 %v6537
        %7214 = vmatprep.subr.mxu0 %v6518
        %7215 = vmatpush1.msra.mxu0 %v6517
        %7216 = vmatprep.subr.mxu0 %v6498
        %7217 = vmatpush1.msra.mxu0 %v6497
        %7218 = vmatprep.subr.mxu0 %v6478
        %7219 = vmatpush1.msra.mxu0 %v6477
        %7220 = vmatprep.subr.mxu0 %v6458
        %7221 = vmatpush1.msra.mxu0 %v6457
        %7222 = vmatprep.subr.mxu0 %v6438
        %7223 = vmatpush1.msra.mxu0 %v6437
        %7224 = vmatprep.subr.mxu0 %v6418
        %7225 = vmatpush1.msra.mxu0 %v6417
        %7226 = vmatprep.subr.mxu0 %v6398
        %7227 = vmatpush1.msra.mxu0 %v6397
        %7228 = vmatprep.subr.mxu0 %v6378
        %7229 = vmatpush1.msra.mxu0 %v6377
        %7230 = vmatprep.subr.mxu0 %v6358
        %7231 = vmatpush1.msra.mxu0 %v6357
        %7232 = vmatprep.subr.mxu0 %v6338
        %7233 = vmatpush1.msra.mxu0 %v6337
        %7234 = vmatprep.subr.mxu0 %v6318
        %7235 = vmatpush1.msra.mxu0 %v6317
        %7236 = vmatprep.subr.mxu0 %v6298
        %7237 = vmatpush1.msra.mxu0 %v6297
        %7238 = vmatprep.subr.mxu0 0.0
        %7239 = vmatpush2.msra.mxu0 0.0
        %7240 = vmatprep.subr.mxu0 0.0
        %7241 = vmatpush2.msra.mxu0 0.0
        %7242 = vmatprep.subr.mxu0 0.0
        %7243 = vmatpush2.msra.mxu0 0.0
        %7244 = vmatprep.subr.mxu0 0.0
        %7245 = vmatpush2.msra.mxu0 0.0
        %7246 = vmatprep.subr.mxu0 0.0
        %7247 = vmatpush2.msra.mxu0 0.0
        %7248 = vmatprep.subr.mxu0 0.0
        %7249 = vmatpush2.msra.mxu0 0.0
        %7250 = vmatprep.subr.mxu0 0.0
        %7251 = vmatpush2.msra.mxu0 0.0
        %7252 = vmatprep.subr.mxu0 0.0
        %7253 = vmatpush2.msra.mxu0 0.0
        %7254 = vmatprep.subr.mxu0 0.0
        %7255 = vmatpush2.msra.mxu0 0.0
        %7256 = vmatprep.subr.mxu0 0.0
        %7257 = vmatpush2.msra.mxu0 0.0
        %7258 = vmatprep.subr.mxu0 0.0
        %7259 = vmatpush2.msra.mxu0 0.0
        %7260 = vmatprep.subr.mxu0 0.0
        %7261 = vmatpush2.msra.mxu0 0.0
        %7262 = vmatprep.subr.mxu0 0.0
        %7263 = vmatpush2.msra.mxu0 0.0
        %7264 = vmatprep.subr.mxu0 0.0
        %7265 = vmatpush2.msra.mxu0 0.0
        %7266 = vmatprep.subr.mxu0 0.0
        %7267 = vmatpush2.msra.mxu0 0.0
        %7268 = vmatprep.subr.mxu0 0.0
        %7269 = vmatpush2.msra.mxu0 0.0
        %7270 = vmatprep.mubr.f32.mxu0 0.0
        %7271 = vmatmul.mubr.f32.gmra.mxu0 %v6282
        %v7272 = vpop.f32.mrf.mxu0
        %v7273 = vadd.f32 %v6668, %v7272
        %v7274 = vpop.f32.mrf.mxu0
        %v7275 = vadd.f32 %v6672, %v7274
        %7276 = vdwg.mxu0
        %7277 = vmatprep.subr.mxu0 %v6600
        %7278 = vmatpush1.msra.mxu0 %v6599
        %7279 = vmatprep.subr.mxu0 %v6580
        %7280 = vmatpush1.msra.mxu0 %v6579
        %7281 = vmatprep.subr.mxu0 %v6560
        %7282 = vmatpush1.msra.mxu0 %v6559
        %7283 = vmatprep.subr.mxu0 %v6540
        %7284 = vmatpush1.msra.mxu0 %v6539
        %7285 = vmatprep.subr.mxu0 %v6520
        %7286 = vmatpush1.msra.mxu0 %v6519
        %7287 = vmatprep.subr.mxu0 %v6500
        %7288 = vmatpush1.msra.mxu0 %v6499
        %7289 = vmatprep.subr.mxu0 %v6480
        %7290 = vmatpush1.msra.mxu0 %v6479
        %7291 = vmatprep.subr.mxu0 %v6460
        %7292 = vmatpush1.msra.mxu0 %v6459
        %7293 = vmatprep.subr.mxu0 %v6440
        %7294 = vmatpush1.msra.mxu0 %v6439
        %7295 = vmatprep.subr.mxu0 %v6420
        %7296 = vmatpush1.msra.mxu0 %v6419
        %7297 = vmatprep.subr.mxu0 %v6400
        %7298 = vmatpush1.msra.mxu0 %v6399
        %7299 = vmatprep.subr.mxu0 %v6380
        %7300 = vmatpush1.msra.mxu0 %v6379
        %7301 = vmatprep.subr.mxu0 %v6360
        %7302 = vmatpush1.msra.mxu0 %v6359
        %7303 = vmatprep.subr.mxu0 %v6340
        %7304 = vmatpush1.msra.mxu0 %v6339
        %7305 = vmatprep.subr.mxu0 %v6320
        %7306 = vmatpush1.msra.mxu0 %v6319
        %7307 = vmatprep.subr.mxu0 %v6300
        %7308 = vmatpush1.msra.mxu0 %v6299
        %7309 = vmatprep.subr.mxu0 0.0
        %7310 = vmatpush2.msra.mxu0 0.0
        %7311 = vmatprep.subr.mxu0 0.0
        %7312 = vmatpush2.msra.mxu0 0.0
        %7313 = vmatprep.subr.mxu0 0.0
        %7314 = vmatpush2.msra.mxu0 0.0
        %7315 = vmatprep.subr.mxu0 0.0
        %7316 = vmatpush2.msra.mxu0 0.0
        %7317 = vmatprep.subr.mxu0 0.0
        %7318 = vmatpush2.msra.mxu0 0.0
        %7319 = vmatprep.subr.mxu0 0.0
        %7320 = vmatpush2.msra.mxu0 0.0
        %7321 = vmatprep.subr.mxu0 0.0
        %7322 = vmatpush2.msra.mxu0 0.0
        %7323 = vmatprep.subr.mxu0 0.0
        %7324 = vmatpush2.msra.mxu0 0.0
        %7325 = vmatprep.subr.mxu0 0.0
        %7326 = vmatpush2.msra.mxu0 0.0
        %7327 = vmatprep.subr.mxu0 0.0
        %7328 = vmatpush2.msra.mxu0 0.0
        %7329 = vmatprep.subr.mxu0 0.0
        %7330 = vmatpush2.msra.mxu0 0.0
        %7331 = vmatprep.subr.mxu0 0.0
        %7332 = vmatpush2.msra.mxu0 0.0
        %7333 = vmatprep.subr.mxu0 0.0
        %7334 = vmatpush2.msra.mxu0 0.0
        %7335 = vmatprep.subr.mxu0 0.0
        %7336 = vmatpush2.msra.mxu0 0.0
        %7337 = vmatprep.subr.mxu0 0.0
        %7338 = vmatpush2.msra.mxu0 0.0
        %7339 = vmatprep.subr.mxu0 0.0
        %7340 = vmatpush2.msra.mxu0 0.0
        %7341 = vmatprep.mubr.f32.mxu0 0.0
        %7342 = vmatmul.mubr.f32.gmra.mxu0 %v6282
        %v7343 = vpop.f32.mrf.mxu0
        %v7344 = vadd.f32 %v6676, %v7343
        %v7345 = vpop.f32.mrf.mxu0
        %v7346 = vadd.f32 %v6680, %v7345
        %7347 = vdwg.mxu0
        %7348 = vmatprep.subr.mxu0 %v6602
        %7349 = vmatpush1.msra.mxu0 %v6601
        %7350 = vmatprep.subr.mxu0 %v6582
        %7351 = vmatpush1.msra.mxu0 %v6581
        %7352 = vmatprep.subr.mxu0 %v6562
        %7353 = vmatpush1.msra.mxu0 %v6561
        %7354 = vmatprep.subr.mxu0 %v6542
        %7355 = vmatpush1.msra.mxu0 %v6541
        %7356 = vmatprep.subr.mxu0 %v6522
        %7357 = vmatpush1.msra.mxu0 %v6521
        %7358 = vmatprep.subr.mxu0 %v6502
        %7359 = vmatpush1.msra.mxu0 %v6501
        %7360 = vmatprep.subr.mxu0 %v6482
        %7361 = vmatpush1.msra.mxu0 %v6481
        %7362 = vmatprep.subr.mxu0 %v6462
        %7363 = vmatpush1.msra.mxu0 %v6461
        %7364 = vmatprep.subr.mxu0 %v6442
        %7365 = vmatpush1.msra.mxu0 %v6441
        %7366 = vmatprep.subr.mxu0 %v6422
        %7367 = vmatpush1.msra.mxu0 %v6421
        %7368 = vmatprep.subr.mxu0 %v6402
        %7369 = vmatpush1.msra.mxu0 %v6401
        %7370 = vmatprep.subr.mxu0 %v6382
        %7371 = vmatpush1.msra.mxu0 %v6381
        %7372 = vmatprep.subr.mxu0 %v6362
        %7373 = vmatpush1.msra.mxu0 %v6361
        %7374 = vmatprep.subr.mxu0 %v6342
        %7375 = vmatpush1.msra.mxu0 %v6341
        %7376 = vmatprep.subr.mxu0 %v6322
        %7377 = vmatpush1.msra.mxu0 %v6321
        %7378 = vmatprep.subr.mxu0 %v6302
        %7379 = vmatpush1.msra.mxu0 %v6301
        %7380 = vmatprep.subr.mxu0 0.0
        %7381 = vmatpush2.msra.mxu0 0.0
        %7382 = vmatprep.subr.mxu0 0.0
        %7383 = vmatpush2.msra.mxu0 0.0
        %7384 = vmatprep.subr.mxu0 0.0
        %7385 = vmatpush2.msra.mxu0 0.0
        %7386 = vmatprep.subr.mxu0 0.0
        %7387 = vmatpush2.msra.mxu0 0.0
        %7388 = vmatprep.subr.mxu0 0.0
        %7389 = vmatpush2.msra.mxu0 0.0
        %7390 = vmatprep.subr.mxu0 0.0
        %7391 = vmatpush2.msra.mxu0 0.0
        %7392 = vmatprep.subr.mxu0 0.0
        %7393 = vmatpush2.msra.mxu0 0.0
        %7394 = vmatprep.subr.mxu0 0.0
        %7395 = vmatpush2.msra.mxu0 0.0
        %7396 = vmatprep.subr.mxu0 0.0
        %7397 = vmatpush2.msra.mxu0 0.0
        %7398 = vmatprep.subr.mxu0 0.0
        %7399 = vmatpush2.msra.mxu0 0.0
        %7400 = vmatprep.subr.mxu0 0.0
        %7401 = vmatpush2.msra.mxu0 0.0
        %7402 = vmatprep.subr.mxu0 0.0
        %7403 = vmatpush2.msra.mxu0 0.0
        %7404 = vmatprep.subr.mxu0 0.0
        %7405 = vmatpush2.msra.mxu0 0.0
        %7406 = vmatprep.subr.mxu0 0.0
        %7407 = vmatpush2.msra.mxu0 0.0
        %7408 = vmatprep.subr.mxu0 0.0
        %7409 = vmatpush2.msra.mxu0 0.0
        %7410 = vmatprep.subr.mxu0 0.0
        %7411 = vmatpush2.msra.mxu0 0.0
        %7412 = vmatprep.mubr.f32.mxu0 0.0
        %7413 = vmatmul.mubr.f32.gmra.mxu0 %v6282
        %v7414 = vpop.f32.mrf.mxu0
        %v7415 = vadd.f32 %v6684, %v7414
        %v7416 = vpop.f32.mrf.mxu0
        %v7417 = vadd.f32 %v6688, %v7416
        %7418 = vdwg.mxu0
        %v7419 = vmax.f32 %v6776, 0.0
        %v7420 = vmax.f32 %v6778, 0.0
        %v7421 = vmax.f32 %v6847, 0.0
        %v7422 = vmax.f32 %v6849, 0.0
        %v7423 = vmax.f32 %v6918, 0.0
        %v7424 = vmax.f32 %v6920, 0.0
        %v7425 = vmax.f32 %v6989, 0.0
        %v7426 = vmax.f32 %v6991, 0.0
        %v7427 = vmax.f32 %v7060, 0.0
        %v7428 = vmax.f32 %v7062, 0.0
        %v7429 = vmax.f32 %v7131, 0.0
        %v7430 = vmax.f32 %v7133, 0.0
        %v7431 = vmax.f32 %v7202, 0.0
        %v7432 = vmax.f32 %v7204, 0.0
        %v7433 = vmax.f32 %v7273, 0.0
        %v7434 = vmax.f32 %v7275, 0.0
        %v7435 = vmax.f32 %v7344, 0.0
        %v7436 = vmax.f32 %v7346, 0.0
        %v7437 = vmax.f32 %v7415, 0.0
        %v7438 = vmax.f32 %v7417, 0.0
        %v7439 = vld [vmem:[%s7] sm:$0xff]
        %v7440 = vld [vmem:[%s7 + $0x8] sm:$0xff]
        %v7441 = vld [vmem:[%s7 + $0x10] sm:$0xff]
        %v7442 = vld [vmem:[%s7 + $0x18] sm:$0xff]
        %v7443 = vld [vmem:[%s7 + $0x20] sm:$0xff]
        %v7444 = vld [vmem:[%s7 + $0x28] sm:$0xff]
        %v7445 = vld [vmem:[%s7 + $0x30] sm:$0xff]
        %v7446 = vld [vmem:[%s7 + $0x38] sm:$0xff]
        %v7447 = vld [vmem:[%s7 + $0x40] sm:$0xff]
        %v7448 = vld [vmem:[%s7 + $0x48] sm:$0xff]
        %v7449 = vld [vmem:[%s7 + $0x50] sm:$0xff]
        %v7450 = vld [vmem:[%s7 + $0x58] sm:$0xff]
        %v7451 = vld [vmem:[%s7 + $0x60] sm:$0xff]
        %v7452 = vld [vmem:[%s7 + $0x68] sm:$0xff]
        %v7453 = vld [vmem:[%s7 + $0x70] sm:$0xff]
        %v7454 = vld [vmem:[%s7 + $0x78] sm:$0xff]
        %v7455 = vld [vmem:[%s7 + $0x80] sm:$0xff]
        %v7456 = vld [vmem:[%s7 + $0x88] sm:$0xff]
        %v7457 = vld [vmem:[%s7 + $0x90] sm:$0xff]
        %v7458 = vld [vmem:[%s7 + $0x98] sm:$0xff]
        %v7459 = vld [vmem:[%s7 + $0xa0] sm:$0xff]
        %v7460 = vld [vmem:[%s7 + $0xa8] sm:$0xff]
        %v7461 = vld [vmem:[%s7 + $0xb0] sm:$0xff]
        %v7462 = vld [vmem:[%s7 + $0xb8] sm:$0xff]
        %v7463 = vld [vmem:[%s7 + $0xc0] sm:$0xff]
        %v7464 = vld [vmem:[%s7 + $0xc8] sm:$0xff]
        %v7465 = vld [vmem:[%s7 + $0xd0] sm:$0xff]
        %v7466 = vld [vmem:[%s7 + $0xd8] sm:$0xff]
        %v7467 = vld [vmem:[%s7 + $0xe0] sm:$0xff]
        %v7468 = vld [vmem:[%s7 + $0xe8] sm:$0xff]
        %v7469 = vld [vmem:[%s7 + $0xf0] sm:$0xff]
        %v7470 = vld [vmem:[%s7 + $0xf8] sm:$0xff]
        %v7471 = vld [vmem:[%s7 + $0x100] sm:$0xff]
        %v7472 = vld [vmem:[%s7 + $0x108] sm:$0xff]
        %v7473 = vld [vmem:[%s7 + $0x110] sm:$0xff]
        %v7474 = vld [vmem:[%s7 + $0x118] sm:$0xff]
        %v7475 = vld [vmem:[%s7 + $0x120] sm:$0xff]
        %v7476 = vld [vmem:[%s7 + $0x128] sm:$0xff]
        %v7477 = vld [vmem:[%s7 + $0x130] sm:$0xff]
        %v7478 = vld [vmem:[%s7 + $0x138] sm:$0xff]
        %v7479 = vld [vmem:[%s7 + $0x140] sm:$0xff]
        %v7480 = vld [vmem:[%s7 + $0x148] sm:$0xff]
        %v7481 = vld [vmem:[%s7 + $0x150] sm:$0xff]
        %v7482 = vld [vmem:[%s7 + $0x158] sm:$0xff]
        %v7483 = vld [vmem:[%s7 + $0x160] sm:$0xff]
        %v7484 = vld [vmem:[%s7 + $0x168] sm:$0xff]
        %v7485 = vld [vmem:[%s7 + $0x170] sm:$0xff]
        %v7486 = vld [vmem:[%s7 + $0x178] sm:$0xff]
        %v7487 = vld [vmem:[%s7 + $0x180] sm:$0xff]
        %v7488 = vld [vmem:[%s7 + $0x188] sm:$0xff]
        %v7489 = vld [vmem:[%s7 + $0x190] sm:$0xff]
        %v7490 = vld [vmem:[%s7 + $0x198] sm:$0xff]
        %v7491 = vld [vmem:[%s7 + $0x1a0] sm:$0xff]
        %v7492 = vld [vmem:[%s7 + $0x1a8] sm:$0xff]
        %v7493 = vld [vmem:[%s7 + $0x1b0] sm:$0xff]
        %v7494 = vld [vmem:[%s7 + $0x1b8] sm:$0xff]
        %v7495 = vld [vmem:[%s7 + $0x1c0] sm:$0xff]
        %v7496 = vld [vmem:[%s7 + $0x1c8] sm:$0xff]
        %v7497 = vld [vmem:[%s7 + $0x1d0] sm:$0xff]
        %v7498 = vld [vmem:[%s7 + $0x1d8] sm:$0xff]
        %v7499 = vld [vmem:[%s7 + $0x1e0] sm:$0xff]
        %v7500 = vld [vmem:[%s7 + $0x1e8] sm:$0xff]
        %v7501 = vld [vmem:[%s7 + $0x1f0] sm:$0xff]
        %v7502 = vld [vmem:[%s7 + $0x1f8] sm:$0xff]
        %v7503 = vld [vmem:[%s7 + $0x200] sm:$0xff]
        %v7504 = vld [vmem:[%s7 + $0x208] sm:$0xff]
        %v7505 = vld [vmem:[%s7 + $0x210] sm:$0xff]
        %v7506 = vld [vmem:[%s7 + $0x218] sm:$0xff]
        %v7507 = vld [vmem:[%s7 + $0x220] sm:$0xff]
        %v7508 = vld [vmem:[%s7 + $0x228] sm:$0xff]
        %v7509 = vld [vmem:[%s7 + $0x230] sm:$0xff]
        %v7510 = vld [vmem:[%s7 + $0x238] sm:$0xff]
        %v7511 = vld [vmem:[%s7 + $0x240] sm:$0xff]
        %v7512 = vld [vmem:[%s7 + $0x248] sm:$0xff]
        %v7513 = vld [vmem:[%s7 + $0x250] sm:$0xff]
        %v7514 = vld [vmem:[%s7 + $0x258] sm:$0xff]
        %v7515 = vld [vmem:[%s7 + $0x260] sm:$0xff]
        %v7516 = vld [vmem:[%s7 + $0x268] sm:$0xff]
        %v7517 = vld [vmem:[%s7 + $0x270] sm:$0xff]
        %v7518 = vld [vmem:[%s7 + $0x278] sm:$0xff]
        %v7519 = vld [vmem:[%s7 + $0x280] sm:$0xff]
        %v7520 = vld [vmem:[%s7 + $0x288] sm:$0xff]
        %v7521 = vld [vmem:[%s7 + $0x290] sm:$0xff]
        %v7522 = vld [vmem:[%s7 + $0x298] sm:$0xff]
        %v7523 = vld [vmem:[%s7 + $0x2a0] sm:$0xff]
        %v7524 = vld [vmem:[%s7 + $0x2a8] sm:$0xff]
        %v7525 = vld [vmem:[%s7 + $0x2b0] sm:$0xff]
        %v7526 = vld [vmem:[%s7 + $0x2b8] sm:$0xff]
        %v7527 = vld [vmem:[%s7 + $0x2c0] sm:$0xff]
        %v7528 = vld [vmem:[%s7 + $0x2c8] sm:$0xff]
        %v7529 = vld [vmem:[%s7 + $0x2d0] sm:$0xff]
        %v7530 = vld [vmem:[%s7 + $0x2d8] sm:$0xff]
        %v7531 = vld [vmem:[%s7 + $0x2e0] sm:$0xff]
        %v7532 = vld [vmem:[%s7 + $0x2e8] sm:$0xff]
        %v7533 = vld [vmem:[%s7 + $0x2f0] sm:$0xff]
        %v7534 = vld [vmem:[%s7 + $0x2f8] sm:$0xff]
        %v7535 = vld [vmem:[%s7 + $0x300] sm:$0xff]
        %v7536 = vld [vmem:[%s7 + $0x308] sm:$0xff]
        %v7537 = vld [vmem:[%s7 + $0x310] sm:$0xff]
        %v7538 = vld [vmem:[%s7 + $0x318] sm:$0xff]
        %v7539 = vld [vmem:[%s7 + $0x320] sm:$0xff]
        %v7540 = vld [vmem:[%s7 + $0x328] sm:$0xff]
        %v7541 = vld [vmem:[%s7 + $0x330] sm:$0xff]
        %v7542 = vld [vmem:[%s7 + $0x338] sm:$0xff]
        %v7543 = vld [vmem:[%s7 + $0x340] sm:$0xff]
        %v7544 = vld [vmem:[%s7 + $0x348] sm:$0xff]
        %v7545 = vld [vmem:[%s7 + $0x350] sm:$0xff]
        %v7546 = vld [vmem:[%s7 + $0x358] sm:$0xff]
        %v7547 = vld [vmem:[%s7 + $0x360] sm:$0xff]
        %v7548 = vld [vmem:[%s7 + $0x368] sm:$0xff]
        %v7549 = vld [vmem:[%s7 + $0x370] sm:$0xff]
        %v7550 = vld [vmem:[%s7 + $0x378] sm:$0xff]
        %v7551 = vld [vmem:[%s7 + $0x380] sm:$0xff]
        %v7552 = vld [vmem:[%s7 + $0x388] sm:$0xff]
        %v7553 = vld [vmem:[%s7 + $0x390] sm:$0xff]
        %v7554 = vld [vmem:[%s7 + $0x398] sm:$0xff]
        %v7555 = vld [vmem:[%s7 + $0x3a0] sm:$0xff]
        %v7556 = vld [vmem:[%s7 + $0x3a8] sm:$0xff]
        %v7557 = vld [vmem:[%s7 + $0x3b0] sm:$0xff]
        %v7558 = vld [vmem:[%s7 + $0x3b8] sm:$0xff]
        %v7559 = vld [vmem:[%s7 + $0x3c0] sm:$0xff]
        %v7560 = vld [vmem:[%s7 + $0x3c8] sm:$0xff]
        %v7561 = vld [vmem:[%s7 + $0x3d0] sm:$0xff]
        %v7562 = vld [vmem:[%s7 + $0x3d8] sm:$0xff]
        %v7563 = vld [vmem:[%s7 + $0x3e0] sm:$0xff]
        %v7564 = vld [vmem:[%s7 + $0x3e8] sm:$0xff]
        %v7565 = vld [vmem:[%s7 + $0x3f0] sm:$0xff]
        %v7566 = vld [vmem:[%s7 + $0x3f8] sm:$0xff]
        %v7567 = vld [vmem:[%s7 + $0x400] sm:$0xff]
        %v7568 = vld [vmem:[%s7 + $0x408] sm:$0xff]
        %v7569 = vld [vmem:[%s7 + $0x410] sm:$0xff]
        %v7570 = vld [vmem:[%s7 + $0x418] sm:$0xff]
        %v7571 = vld [vmem:[%s7 + $0x420] sm:$0xff]
        %v7572 = vld [vmem:[%s7 + $0x428] sm:$0xff]
        %v7573 = vld [vmem:[%s7 + $0x430] sm:$0xff]
        %v7574 = vld [vmem:[%s7 + $0x438] sm:$0xff]
        %v7575 = vld [vmem:[%s7 + $0x440] sm:$0xff]
        %v7576 = vld [vmem:[%s7 + $0x448] sm:$0xff]
        %v7577 = vld [vmem:[%s7 + $0x450] sm:$0xff]
        %v7578 = vld [vmem:[%s7 + $0x458] sm:$0xff]
        %v7579 = vld [vmem:[%s7 + $0x460] sm:$0xff]
        %v7580 = vld [vmem:[%s7 + $0x468] sm:$0xff]
        %v7581 = vld [vmem:[%s7 + $0x470] sm:$0xff]
        %v7582 = vld [vmem:[%s7 + $0x478] sm:$0xff]
        %v7583 = vld [vmem:[%s7 + $0x480] sm:$0xff]
        %v7584 = vld [vmem:[%s7 + $0x488] sm:$0xff]
        %v7585 = vld [vmem:[%s7 + $0x490] sm:$0xff]
        %v7586 = vld [vmem:[%s7 + $0x498] sm:$0xff]
        %v7587 = vld [vmem:[%s7 + $0x4a0] sm:$0xff]
        %v7588 = vld [vmem:[%s7 + $0x4a8] sm:$0xff]
        %v7589 = vld [vmem:[%s7 + $0x4b0] sm:$0xff]
        %v7590 = vld [vmem:[%s7 + $0x4b8] sm:$0xff]
        %v7591 = vld [vmem:[%s7 + $0x4c0] sm:$0xff]
        %v7592 = vld [vmem:[%s7 + $0x4c8] sm:$0xff]
        %v7593 = vld [vmem:[%s7 + $0x4d0] sm:$0xff]
        %v7594 = vld [vmem:[%s7 + $0x4d8] sm:$0xff]
        %v7595 = vld [vmem:[%s7 + $0x4e0] sm:$0xff]
        %v7596 = vld [vmem:[%s7 + $0x4e8] sm:$0xff]
        %v7597 = vld [vmem:[%s7 + $0x4f0] sm:$0xff]
        %v7598 = vld [vmem:[%s7 + $0x4f8] sm:$0xff]
        %v7599 = vld [vmem:[%s7 + $0x500] sm:$0xff]
        %v7600 = vld [vmem:[%s7 + $0x508] sm:$0xff]
        %v7601 = vld [vmem:[%s7 + $0x510] sm:$0xff]
        %v7602 = vld [vmem:[%s7 + $0x518] sm:$0xff]
        %v7603 = vld [vmem:[%s7 + $0x520] sm:$0xff]
        %v7604 = vld [vmem:[%s7 + $0x528] sm:$0xff]
        %v7605 = vld [vmem:[%s7 + $0x530] sm:$0xff]
        %v7606 = vld [vmem:[%s7 + $0x538] sm:$0xff]
        %v7607 = vld [vmem:[%s7 + $0x540] sm:$0xff]
        %v7608 = vld [vmem:[%s7 + $0x548] sm:$0xff]
        %v7609 = vld [vmem:[%s7 + $0x550] sm:$0xff]
        %v7610 = vld [vmem:[%s7 + $0x558] sm:$0xff]
        %v7611 = vld [vmem:[%s7 + $0x560] sm:$0xff]
        %v7612 = vld [vmem:[%s7 + $0x568] sm:$0xff]
        %v7613 = vld [vmem:[%s7 + $0x570] sm:$0xff]
        %v7614 = vld [vmem:[%s7 + $0x578] sm:$0xff]
        %v7615 = vld [vmem:[%s7 + $0x580] sm:$0xff]
        %v7616 = vld [vmem:[%s7 + $0x588] sm:$0xff]
        %v7617 = vld [vmem:[%s7 + $0x590] sm:$0xff]
        %v7618 = vld [vmem:[%s7 + $0x598] sm:$0xff]
        %v7619 = vld [vmem:[%s7 + $0x5a0] sm:$0xff]
        %v7620 = vld [vmem:[%s7 + $0x5a8] sm:$0xff]
        %v7621 = vld [vmem:[%s7 + $0x5b0] sm:$0xff]
        %v7622 = vld [vmem:[%s7 + $0x5b8] sm:$0xff]
        %v7623 = vld [vmem:[%s7 + $0x5c0] sm:$0xff]
        %v7624 = vld [vmem:[%s7 + $0x5c8] sm:$0xff]
        %v7625 = vld [vmem:[%s7 + $0x5d0] sm:$0xff]
        %v7626 = vld [vmem:[%s7 + $0x5d8] sm:$0xff]
        %v7627 = vld [vmem:[%s7 + $0x5e0] sm:$0xff]
        %v7628 = vld [vmem:[%s7 + $0x5e8] sm:$0xff]
        %v7629 = vld [vmem:[%s7 + $0x5f0] sm:$0xff]
        %v7630 = vld [vmem:[%s7 + $0x5f8] sm:$0xff]
        %v7631 = vld [vmem:[%s7 + $0x600] sm:$0xff]
        %v7632 = vld [vmem:[%s7 + $0x608] sm:$0xff]
        %v7633 = vld [vmem:[%s7 + $0x610] sm:$0xff]
        %v7634 = vld [vmem:[%s7 + $0x618] sm:$0xff]
        %v7635 = vld [vmem:[%s7 + $0x620] sm:$0xff]
        %v7636 = vld [vmem:[%s7 + $0x628] sm:$0xff]
        %v7637 = vld [vmem:[%s7 + $0x630] sm:$0xff]
        %v7638 = vld [vmem:[%s7 + $0x638] sm:$0xff]
        %v7639 = vld [vmem:[%s7 + $0x640] sm:$0xff]
        %v7640 = vld [vmem:[%s7 + $0x648] sm:$0xff]
        %v7641 = vld [vmem:[%s7 + $0x650] sm:$0xff]
        %v7642 = vld [vmem:[%s7 + $0x658] sm:$0xff]
        %v7643 = vld [vmem:[%s7 + $0x660] sm:$0xff]
        %v7644 = vld [vmem:[%s7 + $0x668] sm:$0xff]
        %v7645 = vld [vmem:[%s7 + $0x670] sm:$0xff]
        %v7646 = vld [vmem:[%s7 + $0x678] sm:$0xff]
        %v7647 = vld [vmem:[%s7 + $0x680] sm:$0xff]
        %v7648 = vld [vmem:[%s7 + $0x688] sm:$0xff]
        %v7649 = vld [vmem:[%s7 + $0x690] sm:$0xff]
        %v7650 = vld [vmem:[%s7 + $0x698] sm:$0xff]
        %v7651 = vld [vmem:[%s7 + $0x6a0] sm:$0xff]
        %v7652 = vld [vmem:[%s7 + $0x6a8] sm:$0xff]
        %v7653 = vld [vmem:[%s7 + $0x6b0] sm:$0xff]
        %v7654 = vld [vmem:[%s7 + $0x6b8] sm:$0xff]
        %v7655 = vld [vmem:[%s7 + $0x6c0] sm:$0xff]
        %v7656 = vld [vmem:[%s7 + $0x6c8] sm:$0xff]
        %v7657 = vld [vmem:[%s7 + $0x6d0] sm:$0xff]
        %v7658 = vld [vmem:[%s7 + $0x6d8] sm:$0xff]
        %v7659 = vld [vmem:[%s7 + $0x6e0] sm:$0xff]
        %v7660 = vld [vmem:[%s7 + $0x6e8] sm:$0xff]
        %v7661 = vld [vmem:[%s7 + $0x6f0] sm:$0xff]
        %v7662 = vld [vmem:[%s7 + $0x6f8] sm:$0xff]
        %v7663 = vld [vmem:[%s7 + $0x700] sm:$0xff]
        %v7664 = vld [vmem:[%s7 + $0x708] sm:$0xff]
        %v7665 = vld [vmem:[%s7 + $0x710] sm:$0xff]
        %v7666 = vld [vmem:[%s7 + $0x718] sm:$0xff]
        %v7667 = vld [vmem:[%s7 + $0x720] sm:$0xff]
        %v7668 = vld [vmem:[%s7 + $0x728] sm:$0xff]
        %v7669 = vld [vmem:[%s7 + $0x730] sm:$0xff]
        %v7670 = vld [vmem:[%s7 + $0x738] sm:$0xff]
        %v7671 = vld [vmem:[%s7 + $0x740] sm:$0xff]
        %v7672 = vld [vmem:[%s7 + $0x748] sm:$0xff]
        %v7673 = vld [vmem:[%s7 + $0x750] sm:$0xff]
        %v7674 = vld [vmem:[%s7 + $0x758] sm:$0xff]
        %v7675 = vld [vmem:[%s7 + $0x760] sm:$0xff]
        %v7676 = vld [vmem:[%s7 + $0x768] sm:$0xff]
        %v7677 = vld [vmem:[%s7 + $0x770] sm:$0xff]
        %v7678 = vld [vmem:[%s7 + $0x778] sm:$0xff]
        %v7679 = vld [vmem:[%s7 + $0x780] sm:$0xff]
        %v7680 = vld [vmem:[%s7 + $0x788] sm:$0xff]
        %v7681 = vld [vmem:[%s7 + $0x790] sm:$0xff]
        %v7682 = vld [vmem:[%s7 + $0x798] sm:$0xff]
        %v7683 = vld [vmem:[%s7 + $0x7a0] sm:$0xff]
        %v7684 = vld [vmem:[%s7 + $0x7a8] sm:$0xff]
        %v7685 = vld [vmem:[%s7 + $0x7b0] sm:$0xff]
        %v7686 = vld [vmem:[%s7 + $0x7b8] sm:$0xff]
        %v7687 = vld [vmem:[%s7 + $0x7c0] sm:$0xff]
        %v7688 = vld [vmem:[%s7 + $0x7c8] sm:$0xff]
        %v7689 = vld [vmem:[%s7 + $0x7d0] sm:$0xff]
        %v7690 = vld [vmem:[%s7 + $0x7d8] sm:$0xff]
        %v7691 = vld [vmem:[%s7 + $0x7e0] sm:$0xff]
        %v7692 = vld [vmem:[%s7 + $0x7e8] sm:$0xff]
        %v7693 = vld [vmem:[%s7 + $0x7f0] sm:$0xff]
        %v7694 = vld [vmem:[%s7 + $0x7f8] sm:$0xff]
        %v7695 = vld [vmem:[%s7 + $0x800] sm:$0xff]
        %v7696 = vld [vmem:[%s7 + $0x808] sm:$0xff]
        %v7697 = vld [vmem:[%s7 + $0x810] sm:$0xff]
        %v7698 = vld [vmem:[%s7 + $0x818] sm:$0xff]
        %v7699 = vld [vmem:[%s7 + $0x820] sm:$0xff]
        %v7700 = vld [vmem:[%s7 + $0x828] sm:$0xff]
        %v7701 = vld [vmem:[%s7 + $0x830] sm:$0xff]
        %v7702 = vld [vmem:[%s7 + $0x838] sm:$0xff]
        %v7703 = vld [vmem:[%s7 + $0x840] sm:$0xff]
        %v7704 = vld [vmem:[%s7 + $0x848] sm:$0xff]
        %v7705 = vld [vmem:[%s7 + $0x850] sm:$0xff]
        %v7706 = vld [vmem:[%s7 + $0x858] sm:$0xff]
        %v7707 = vld [vmem:[%s7 + $0x860] sm:$0xff]
        %v7708 = vld [vmem:[%s7 + $0x868] sm:$0xff]
        %v7709 = vld [vmem:[%s7 + $0x870] sm:$0xff]
        %v7710 = vld [vmem:[%s7 + $0x878] sm:$0xff]
        %v7711 = vld [vmem:[%s7 + $0x880] sm:$0xff]
        %v7712 = vld [vmem:[%s7 + $0x888] sm:$0xff]
        %v7713 = vld [vmem:[%s7 + $0x890] sm:$0xff]
        %v7714 = vld [vmem:[%s7 + $0x898] sm:$0xff]
        %v7715 = vld [vmem:[%s7 + $0x8a0] sm:$0xff]
        %v7716 = vld [vmem:[%s7 + $0x8a8] sm:$0xff]
        %v7717 = vld [vmem:[%s7 + $0x8b0] sm:$0xff]
        %v7718 = vld [vmem:[%s7 + $0x8b8] sm:$0xff]
        %v7719 = vld [vmem:[%s7 + $0x8c0] sm:$0xff]
        %v7720 = vld [vmem:[%s7 + $0x8c8] sm:$0xff]
        %v7721 = vld [vmem:[%s7 + $0x8d0] sm:$0xff]
        %v7722 = vld [vmem:[%s7 + $0x8d8] sm:$0xff]
        %v7723 = vld [vmem:[%s7 + $0x8e0] sm:$0xff]
        %v7724 = vld [vmem:[%s7 + $0x8e8] sm:$0xff]
        %v7725 = vld [vmem:[%s7 + $0x8f0] sm:$0xff]
        %v7726 = vld [vmem:[%s7 + $0x8f8] sm:$0xff]
        %v7727 = vld [vmem:[%s7 + $0x900] sm:$0xff]
        %v7728 = vld [vmem:[%s7 + $0x908] sm:$0xff]
        %v7729 = vld [vmem:[%s7 + $0x910] sm:$0xff]
        %v7730 = vld [vmem:[%s7 + $0x918] sm:$0xff]
        %v7731 = vld [vmem:[%s7 + $0x920] sm:$0xff]
        %v7732 = vld [vmem:[%s7 + $0x928] sm:$0xff]
        %v7733 = vld [vmem:[%s7 + $0x930] sm:$0xff]
        %v7734 = vld [vmem:[%s7 + $0x938] sm:$0xff]
        %v7735 = vld [vmem:[%s7 + $0x940] sm:$0xff]
        %v7736 = vld [vmem:[%s7 + $0x948] sm:$0xff]
        %v7737 = vld [vmem:[%s7 + $0x950] sm:$0xff]
        %v7738 = vld [vmem:[%s7 + $0x958] sm:$0xff]
        %v7739 = vld [vmem:[%s7 + $0x960] sm:$0xff]
        %v7740 = vld [vmem:[%s7 + $0x968] sm:$0xff]
        %v7741 = vld [vmem:[%s7 + $0x970] sm:$0xff]
        %v7742 = vld [vmem:[%s7 + $0x978] sm:$0xff]
        %v7743 = vld [vmem:[%s7 + $0x980] sm:$0xff]
        %v7744 = vld [vmem:[%s7 + $0x988] sm:$0xff]
        %v7745 = vld [vmem:[%s7 + $0x990] sm:$0xff]
        %v7746 = vld [vmem:[%s7 + $0x998] sm:$0xff]
        %v7747 = vld [vmem:[%s7 + $0x9a0] sm:$0xff]
        %v7748 = vld [vmem:[%s7 + $0x9a8] sm:$0xff]
        %v7749 = vld [vmem:[%s7 + $0x9b0] sm:$0xff]
        %v7750 = vld [vmem:[%s7 + $0x9b8] sm:$0xff]
        %v7751 = vld [vmem:[%s7 + $0x9c0] sm:$0xff]
        %v7752 = vld [vmem:[%s7 + $0x9c8] sm:$0xff]
        %v7753 = vld [vmem:[%s7 + $0x9d0] sm:$0xff]
        %v7754 = vld [vmem:[%s7 + $0x9d8] sm:$0xff]
        %v7755 = vld [vmem:[%s7 + $0x9e0] sm:$0xff]
        %v7756 = vld [vmem:[%s7 + $0x9e8] sm:$0xff]
        %v7757 = vld [vmem:[%s7 + $0x9f0] sm:$0xff]
        %v7758 = vld [vmem:[%s7 + $0x9f8] sm:$0xff]
        %v7759 = vld [vmem:[%s8] sm:$0x1]
        %v7761 = vlaneseq
        %v7762 = vshrl.u32 %v7761, 7
        %v7763 = vsub.s32 0, %v7762
        %v7764 = vrot.slane %v7759, %v7763
        %7766 = vmatprep.subr.mxu0 0.0
        %7767 = vmatpush1.msra.mxu0 %v7454
        %7768 = vmatprep.subr.mxu0 0.0
        %7769 = vmatpush1.msra.mxu0 %v7453
        %7770 = vmatprep.subr.mxu0 0.0
        %7771 = vmatpush1.msra.mxu0 %v7452
        %7772 = vmatprep.subr.mxu0 0.0
        %7773 = vmatpush1.msra.mxu0 %v7451
        %7774 = vmatprep.subr.mxu0 0.0
        %7775 = vmatpush1.msra.mxu0 %v7450
        %7776 = vmatprep.subr.mxu0 0.0
        %7777 = vmatpush1.msra.mxu0 %v7449
        %7778 = vmatprep.subr.mxu0 0.0
        %7779 = vmatpush1.msra.mxu0 %v7448
        %7780 = vmatprep.subr.mxu0 0.0
        %7781 = vmatpush1.msra.mxu0 %v7447
        %7782 = vmatprep.subr.mxu0 0.0
        %7783 = vmatpush1.msra.mxu0 %v7446
        %7784 = vmatprep.subr.mxu0 0.0
        %7785 = vmatpush1.msra.mxu0 %v7445
        %7786 = vmatprep.subr.mxu0 0.0
        %7787 = vmatpush1.msra.mxu0 %v7444
        %7788 = vmatprep.subr.mxu0 0.0
        %7789 = vmatpush1.msra.mxu0 %v7443
        %7790 = vmatprep.subr.mxu0 0.0
        %7791 = vmatpush1.msra.mxu0 %v7442
        %7792 = vmatprep.subr.mxu0 0.0
        %7793 = vmatpush1.msra.mxu0 %v7441
        %7794 = vmatprep.subr.mxu0 0.0
        %7795 = vmatpush1.msra.mxu0 %v7440
        %7796 = vmatprep.subr.mxu0 0.0
        %7797 = vmatpush1.msra.mxu0 %v7439
        %7798 = vmatprep.subr.mxu0 0.0
        %7799 = vmatpush2.msra.mxu0 %v7470
        %7800 = vmatprep.subr.mxu0 0.0
        %7801 = vmatpush2.msra.mxu0 %v7469
        %7802 = vmatprep.subr.mxu0 0.0
        %7803 = vmatpush2.msra.mxu0 %v7468
        %7804 = vmatprep.subr.mxu0 0.0
        %7805 = vmatpush2.msra.mxu0 %v7467
        %7806 = vmatprep.subr.mxu0 0.0
        %7807 = vmatpush2.msra.mxu0 %v7466
        %7808 = vmatprep.subr.mxu0 0.0
        %7809 = vmatpush2.msra.mxu0 %v7465
        %7810 = vmatprep.subr.mxu0 0.0
        %7811 = vmatpush2.msra.mxu0 %v7464
        %7812 = vmatprep.subr.mxu0 0.0
        %7813 = vmatpush2.msra.mxu0 %v7463
        %7814 = vmatprep.subr.mxu0 0.0
        %7815 = vmatpush2.msra.mxu0 %v7462
        %7816 = vmatprep.subr.mxu0 0.0
        %7817 = vmatpush2.msra.mxu0 %v7461
        %7818 = vmatprep.subr.mxu0 0.0
        %7819 = vmatpush2.msra.mxu0 %v7460
        %7820 = vmatprep.subr.mxu0 0.0
        %7821 = vmatpush2.msra.mxu0 %v7459
        %7822 = vmatprep.subr.mxu0 0.0
        %7823 = vmatpush2.msra.mxu0 %v7458
        %7824 = vmatprep.subr.mxu0 0.0
        %7825 = vmatpush2.msra.mxu0 %v7457
        %7826 = vmatprep.subr.mxu0 0.0
        %7827 = vmatpush2.msra.mxu0 %v7456
        %7828 = vmatprep.subr.mxu0 0.0
        %7829 = vmatpush2.msra.mxu0 %v7455
        %7830 = vmatprep.mubr.f32.mxu0 %v7420
        %7831 = vmatmul.mubr.f32.gmra.mxu0 %v7419
        %v7832 = vpop.f32.mrf.mxu0
        %v7833 = vadd.f32 %v7764, %v7832
        %v7834 = vpop.f32.mrf.mxu0
        %7835 = vdwg.mxu0
        %7836 = vmatprep.subr.mxu0 0.0
        %7837 = vmatpush1.msra.mxu0 %v7486
        %7838 = vmatprep.subr.mxu0 0.0
        %7839 = vmatpush1.msra.mxu0 %v7485
        %7840 = vmatprep.subr.mxu0 0.0
        %7841 = vmatpush1.msra.mxu0 %v7484
        %7842 = vmatprep.subr.mxu0 0.0
        %7843 = vmatpush1.msra.mxu0 %v7483
        %7844 = vmatprep.subr.mxu0 0.0
        %7845 = vmatpush1.msra.mxu0 %v7482
        %7846 = vmatprep.subr.mxu0 0.0
        %7847 = vmatpush1.msra.mxu0 %v7481
        %7848 = vmatprep.subr.mxu0 0.0
        %7849 = vmatpush1.msra.mxu0 %v7480
        %7850 = vmatprep.subr.mxu0 0.0
        %7851 = vmatpush1.msra.mxu0 %v7479
        %7852 = vmatprep.subr.mxu0 0.0
        %7853 = vmatpush1.msra.mxu0 %v7478
        %7854 = vmatprep.subr.mxu0 0.0
        %7855 = vmatpush1.msra.mxu0 %v7477
        %7856 = vmatprep.subr.mxu0 0.0
        %7857 = vmatpush1.msra.mxu0 %v7476
        %7858 = vmatprep.subr.mxu0 0.0
        %7859 = vmatpush1.msra.mxu0 %v7475
        %7860 = vmatprep.subr.mxu0 0.0
        %7861 = vmatpush1.msra.mxu0 %v7474
        %7862 = vmatprep.subr.mxu0 0.0
        %7863 = vmatpush1.msra.mxu0 %v7473
        %7864 = vmatprep.subr.mxu0 0.0
        %7865 = vmatpush1.msra.mxu0 %v7472
        %7866 = vmatprep.subr.mxu0 0.0
        %7867 = vmatpush1.msra.mxu0 %v7471
        %7868 = vmatprep.subr.mxu0 0.0
        %7869 = vmatpush2.msra.mxu0 %v7502
        %7870 = vmatprep.subr.mxu0 0.0
        %7871 = vmatpush2.msra.mxu0 %v7501
        %7872 = vmatprep.subr.mxu0 0.0
        %7873 = vmatpush2.msra.mxu0 %v7500
        %7874 = vmatprep.subr.mxu0 0.0
        %7875 = vmatpush2.msra.mxu0 %v7499
        %7876 = vmatprep.subr.mxu0 0.0
        %7877 = vmatpush2.msra.mxu0 %v7498
        %7878 = vmatprep.subr.mxu0 0.0
        %7879 = vmatpush2.msra.mxu0 %v7497
        %7880 = vmatprep.subr.mxu0 0.0
        %7881 = vmatpush2.msra.mxu0 %v7496
        %7882 = vmatprep.subr.mxu0 0.0
        %7883 = vmatpush2.msra.mxu0 %v7495
        %7884 = vmatprep.subr.mxu0 0.0
        %7885 = vmatpush2.msra.mxu0 %v7494
        %7886 = vmatprep.subr.mxu0 0.0
        %7887 = vmatpush2.msra.mxu0 %v7493
        %7888 = vmatprep.subr.mxu0 0.0
        %7889 = vmatpush2.msra.mxu0 %v7492
        %7890 = vmatprep.subr.mxu0 0.0
        %7891 = vmatpush2.msra.mxu0 %v7491
        %7892 = vmatprep.subr.mxu0 0.0
        %7893 = vmatpush2.msra.mxu0 %v7490
        %7894 = vmatprep.subr.mxu0 0.0
        %7895 = vmatpush2.msra.mxu0 %v7489
        %7896 = vmatprep.subr.mxu0 0.0
        %7897 = vmatpush2.msra.mxu0 %v7488
        %7898 = vmatprep.subr.mxu0 0.0
        %7899 = vmatpush2.msra.mxu0 %v7487
        %7900 = vmatprep.mubr.f32.mxu0 %v7422
        %7901 = vmatmul.mubr.f32.gmra.mxu0 %v7421
        %v7902 = vpop.f32.mrf.mxu0
        %v7903 = vadd.f32 %v7833, %v7902
        %v7904 = vpop.f32.mrf.mxu0
        %7905 = vdwg.mxu0
        %7906 = vmatprep.subr.mxu0 0.0
        %7907 = vmatpush1.msra.mxu0 %v7518
        %7908 = vmatprep.subr.mxu0 0.0
        %7909 = vmatpush1.msra.mxu0 %v7517
        %7910 = vmatprep.subr.mxu0 0.0
        %7911 = vmatpush1.msra.mxu0 %v7516
        %7912 = vmatprep.subr.mxu0 0.0
        %7913 = vmatpush1.msra.mxu0 %v7515
        %7914 = vmatprep.subr.mxu0 0.0
        %7915 = vmatpush1.msra.mxu0 %v7514
        %7916 = vmatprep.subr.mxu0 0.0
        %7917 = vmatpush1.msra.mxu0 %v7513
        %7918 = vmatprep.subr.mxu0 0.0
        %7919 = vmatpush1.msra.mxu0 %v7512
        %7920 = vmatprep.subr.mxu0 0.0
        %7921 = vmatpush1.msra.mxu0 %v7511
        %7922 = vmatprep.subr.mxu0 0.0
        %7923 = vmatpush1.msra.mxu0 %v7510
        %7924 = vmatprep.subr.mxu0 0.0
        %7925 = vmatpush1.msra.mxu0 %v7509
        %7926 = vmatprep.subr.mxu0 0.0
        %7927 = vmatpush1.msra.mxu0 %v7508
        %7928 = vmatprep.subr.mxu0 0.0
        %7929 = vmatpush1.msra.mxu0 %v7507
        %7930 = vmatprep.subr.mxu0 0.0
        %7931 = vmatpush1.msra.mxu0 %v7506
        %7932 = vmatprep.subr.mxu0 0.0
        %7933 = vmatpush1.msra.mxu0 %v7505
        %7934 = vmatprep.subr.mxu0 0.0
        %7935 = vmatpush1.msra.mxu0 %v7504
        %7936 = vmatprep.subr.mxu0 0.0
        %7937 = vmatpush1.msra.mxu0 %v7503
        %7938 = vmatprep.subr.mxu0 0.0
        %7939 = vmatpush2.msra.mxu0 %v7534
        %7940 = vmatprep.subr.mxu0 0.0
        %7941 = vmatpush2.msra.mxu0 %v7533
        %7942 = vmatprep.subr.mxu0 0.0
        %7943 = vmatpush2.msra.mxu0 %v7532
        %7944 = vmatprep.subr.mxu0 0.0
        %7945 = vmatpush2.msra.mxu0 %v7531
        %7946 = vmatprep.subr.mxu0 0.0
        %7947 = vmatpush2.msra.mxu0 %v7530
        %7948 = vmatprep.subr.mxu0 0.0
        %7949 = vmatpush2.msra.mxu0 %v7529
        %7950 = vmatprep.subr.mxu0 0.0
        %7951 = vmatpush2.msra.mxu0 %v7528
        %7952 = vmatprep.subr.mxu0 0.0
        %7953 = vmatpush2.msra.mxu0 %v7527
        %7954 = vmatprep.subr.mxu0 0.0
        %7955 = vmatpush2.msra.mxu0 %v7526
        %7956 = vmatprep.subr.mxu0 0.0
        %7957 = vmatpush2.msra.mxu0 %v7525
        %7958 = vmatprep.subr.mxu0 0.0
        %7959 = vmatpush2.msra.mxu0 %v7524
        %7960 = vmatprep.subr.mxu0 0.0
        %7961 = vmatpush2.msra.mxu0 %v7523
        %7962 = vmatprep.subr.mxu0 0.0
        %7963 = vmatpush2.msra.mxu0 %v7522
        %7964 = vmatprep.subr.mxu0 0.0
        %7965 = vmatpush2.msra.mxu0 %v7521
        %7966 = vmatprep.subr.mxu0 0.0
        %7967 = vmatpush2.msra.mxu0 %v7520
        %7968 = vmatprep.subr.mxu0 0.0
        %7969 = vmatpush2.msra.mxu0 %v7519
        %7970 = vmatprep.mubr.f32.mxu0 %v7424
        %7971 = vmatmul.mubr.f32.gmra.mxu0 %v7423
        %v7972 = vpop.f32.mrf.mxu0
        %v7973 = vadd.f32 %v7903, %v7972
        %v7974 = vpop.f32.mrf.mxu0
        %7975 = vdwg.mxu0
        %7976 = vmatprep.subr.mxu0 0.0
        %7977 = vmatpush1.msra.mxu0 %v7550
        %7978 = vmatprep.subr.mxu0 0.0
        %7979 = vmatpush1.msra.mxu0 %v7549
        %7980 = vmatprep.subr.mxu0 0.0
        %7981 = vmatpush1.msra.mxu0 %v7548
        %7982 = vmatprep.subr.mxu0 0.0
        %7983 = vmatpush1.msra.mxu0 %v7547
        %7984 = vmatprep.subr.mxu0 0.0
        %7985 = vmatpush1.msra.mxu0 %v7546
        %7986 = vmatprep.subr.mxu0 0.0
        %7987 = vmatpush1.msra.mxu0 %v7545
        %7988 = vmatprep.subr.mxu0 0.0
        %7989 = vmatpush1.msra.mxu0 %v7544
        %7990 = vmatprep.subr.mxu0 0.0
        %7991 = vmatpush1.msra.mxu0 %v7543
        %7992 = vmatprep.subr.mxu0 0.0
        %7993 = vmatpush1.msra.mxu0 %v7542
        %7994 = vmatprep.subr.mxu0 0.0
        %7995 = vmatpush1.msra.mxu0 %v7541
        %7996 = vmatprep.subr.mxu0 0.0
        %7997 = vmatpush1.msra.mxu0 %v7540
        %7998 = vmatprep.subr.mxu0 0.0
        %7999 = vmatpush1.msra.mxu0 %v7539
        %8000 = vmatprep.subr.mxu0 0.0
        %8001 = vmatpush1.msra.mxu0 %v7538
        %8002 = vmatprep.subr.mxu0 0.0
        %8003 = vmatpush1.msra.mxu0 %v7537
        %8004 = vmatprep.subr.mxu0 0.0
        %8005 = vmatpush1.msra.mxu0 %v7536
        %8006 = vmatprep.subr.mxu0 0.0
        %8007 = vmatpush1.msra.mxu0 %v7535
        %8008 = vmatprep.subr.mxu0 0.0
        %8009 = vmatpush2.msra.mxu0 %v7566
        %8010 = vmatprep.subr.mxu0 0.0
        %8011 = vmatpush2.msra.mxu0 %v7565
        %8012 = vmatprep.subr.mxu0 0.0
        %8013 = vmatpush2.msra.mxu0 %v7564
        %8014 = vmatprep.subr.mxu0 0.0
        %8015 = vmatpush2.msra.mxu0 %v7563
        %8016 = vmatprep.subr.mxu0 0.0
        %8017 = vmatpush2.msra.mxu0 %v7562
        %8018 = vmatprep.subr.mxu0 0.0
        %8019 = vmatpush2.msra.mxu0 %v7561
        %8020 = vmatprep.subr.mxu0 0.0
        %8021 = vmatpush2.msra.mxu0 %v7560
        %8022 = vmatprep.subr.mxu0 0.0
        %8023 = vmatpush2.msra.mxu0 %v7559
        %8024 = vmatprep.subr.mxu0 0.0
        %8025 = vmatpush2.msra.mxu0 %v7558
        %8026 = vmatprep.subr.mxu0 0.0
        %8027 = vmatpush2.msra.mxu0 %v7557
        %8028 = vmatprep.subr.mxu0 0.0
        %8029 = vmatpush2.msra.mxu0 %v7556
        %8030 = vmatprep.subr.mxu0 0.0
        %8031 = vmatpush2.msra.mxu0 %v7555
        %8032 = vmatprep.subr.mxu0 0.0
        %8033 = vmatpush2.msra.mxu0 %v7554
        %8034 = vmatprep.subr.mxu0 0.0
        %8035 = vmatpush2.msra.mxu0 %v7553
        %8036 = vmatprep.subr.mxu0 0.0
        %8037 = vmatpush2.msra.mxu0 %v7552
        %8038 = vmatprep.subr.mxu0 0.0
        %8039 = vmatpush2.msra.mxu0 %v7551
        %8040 = vmatprep.mubr.f32.mxu0 %v7426
        %8041 = vmatmul.mubr.f32.gmra.mxu0 %v7425
        %v8042 = vpop.f32.mrf.mxu0
        %v8043 = vadd.f32 %v7973, %v8042
        %v8044 = vpop.f32.mrf.mxu0
        %8045 = vdwg.mxu0
        %8046 = vmatprep.subr.mxu0 0.0
        %8047 = vmatpush1.msra.mxu0 %v7582
        %8048 = vmatprep.subr.mxu0 0.0
        %8049 = vmatpush1.msra.mxu0 %v7581
        %8050 = vmatprep.subr.mxu0 0.0
        %8051 = vmatpush1.msra.mxu0 %v7580
        %8052 = vmatprep.subr.mxu0 0.0
        %8053 = vmatpush1.msra.mxu0 %v7579
        %8054 = vmatprep.subr.mxu0 0.0
        %8055 = vmatpush1.msra.mxu0 %v7578
        %8056 = vmatprep.subr.mxu0 0.0
        %8057 = vmatpush1.msra.mxu0 %v7577
        %8058 = vmatprep.subr.mxu0 0.0
        %8059 = vmatpush1.msra.mxu0 %v7576
        %8060 = vmatprep.subr.mxu0 0.0
        %8061 = vmatpush1.msra.mxu0 %v7575
        %8062 = vmatprep.subr.mxu0 0.0
        %8063 = vmatpush1.msra.mxu0 %v7574
        %8064 = vmatprep.subr.mxu0 0.0
        %8065 = vmatpush1.msra.mxu0 %v7573
        %8066 = vmatprep.subr.mxu0 0.0
        %8067 = vmatpush1.msra.mxu0 %v7572
        %8068 = vmatprep.subr.mxu0 0.0
        %8069 = vmatpush1.msra.mxu0 %v7571
        %8070 = vmatprep.subr.mxu0 0.0
        %8071 = vmatpush1.msra.mxu0 %v7570
        %8072 = vmatprep.subr.mxu0 0.0
        %8073 = vmatpush1.msra.mxu0 %v7569
        %8074 = vmatprep.subr.mxu0 0.0
        %8075 = vmatpush1.msra.mxu0 %v7568
        %8076 = vmatprep.subr.mxu0 0.0
        %8077 = vmatpush1.msra.mxu0 %v7567
        %8078 = vmatprep.subr.mxu0 0.0
        %8079 = vmatpush2.msra.mxu0 %v7598
        %8080 = vmatprep.subr.mxu0 0.0
        %8081 = vmatpush2.msra.mxu0 %v7597
        %8082 = vmatprep.subr.mxu0 0.0
        %8083 = vmatpush2.msra.mxu0 %v7596
        %8084 = vmatprep.subr.mxu0 0.0
        %8085 = vmatpush2.msra.mxu0 %v7595
        %8086 = vmatprep.subr.mxu0 0.0
        %8087 = vmatpush2.msra.mxu0 %v7594
        %8088 = vmatprep.subr.mxu0 0.0
        %8089 = vmatpush2.msra.mxu0 %v7593
        %8090 = vmatprep.subr.mxu0 0.0
        %8091 = vmatpush2.msra.mxu0 %v7592
        %8092 = vmatprep.subr.mxu0 0.0
        %8093 = vmatpush2.msra.mxu0 %v7591
        %8094 = vmatprep.subr.mxu0 0.0
        %8095 = vmatpush2.msra.mxu0 %v7590
        %8096 = vmatprep.subr.mxu0 0.0
        %8097 = vmatpush2.msra.mxu0 %v7589
        %8098 = vmatprep.subr.mxu0 0.0
        %8099 = vmatpush2.msra.mxu0 %v7588
        %8100 = vmatprep.subr.mxu0 0.0
        %8101 = vmatpush2.msra.mxu0 %v7587
        %8102 = vmatprep.subr.mxu0 0.0
        %8103 = vmatpush2.msra.mxu0 %v7586
        %8104 = vmatprep.subr.mxu0 0.0
        %8105 = vmatpush2.msra.mxu0 %v7585
        %8106 = vmatprep.subr.mxu0 0.0
        %8107 = vmatpush2.msra.mxu0 %v7584
        %8108 = vmatprep.subr.mxu0 0.0
        %8109 = vmatpush2.msra.mxu0 %v7583
        %8110 = vmatprep.mubr.f32.mxu0 %v7428
        %8111 = vmatmul.mubr.f32.gmra.mxu0 %v7427
        %v8112 = vpop.f32.mrf.mxu0
        %v8113 = vadd.f32 %v8043, %v8112
        %v8114 = vpop.f32.mrf.mxu0
        %8115 = vdwg.mxu0
        %8116 = vmatprep.subr.mxu0 0.0
        %8117 = vmatpush1.msra.mxu0 %v7614
        %8118 = vmatprep.subr.mxu0 0.0
        %8119 = vmatpush1.msra.mxu0 %v7613
        %8120 = vmatprep.subr.mxu0 0.0
        %8121 = vmatpush1.msra.mxu0 %v7612
        %8122 = vmatprep.subr.mxu0 0.0
        %8123 = vmatpush1.msra.mxu0 %v7611
        %8124 = vmatprep.subr.mxu0 0.0
        %8125 = vmatpush1.msra.mxu0 %v7610
        %8126 = vmatprep.subr.mxu0 0.0
        %8127 = vmatpush1.msra.mxu0 %v7609
        %8128 = vmatprep.subr.mxu0 0.0
        %8129 = vmatpush1.msra.mxu0 %v7608
        %8130 = vmatprep.subr.mxu0 0.0
        %8131 = vmatpush1.msra.mxu0 %v7607
        %8132 = vmatprep.subr.mxu0 0.0
        %8133 = vmatpush1.msra.mxu0 %v7606
        %8134 = vmatprep.subr.mxu0 0.0
        %8135 = vmatpush1.msra.mxu0 %v7605
        %8136 = vmatprep.subr.mxu0 0.0
        %8137 = vmatpush1.msra.mxu0 %v7604
        %8138 = vmatprep.subr.mxu0 0.0
        %8139 = vmatpush1.msra.mxu0 %v7603
        %8140 = vmatprep.subr.mxu0 0.0
        %8141 = vmatpush1.msra.mxu0 %v7602
        %8142 = vmatprep.subr.mxu0 0.0
        %8143 = vmatpush1.msra.mxu0 %v7601
        %8144 = vmatprep.subr.mxu0 0.0
        %8145 = vmatpush1.msra.mxu0 %v7600
        %8146 = vmatprep.subr.mxu0 0.0
        %8147 = vmatpush1.msra.mxu0 %v7599
        %8148 = vmatprep.subr.mxu0 0.0
        %8149 = vmatpush2.msra.mxu0 %v7630
        %8150 = vmatprep.subr.mxu0 0.0
        %8151 = vmatpush2.msra.mxu0 %v7629
        %8152 = vmatprep.subr.mxu0 0.0
        %8153 = vmatpush2.msra.mxu0 %v7628
        %8154 = vmatprep.subr.mxu0 0.0
        %8155 = vmatpush2.msra.mxu0 %v7627
        %8156 = vmatprep.subr.mxu0 0.0
        %8157 = vmatpush2.msra.mxu0 %v7626
        %8158 = vmatprep.subr.mxu0 0.0
        %8159 = vmatpush2.msra.mxu0 %v7625
        %8160 = vmatprep.subr.mxu0 0.0
        %8161 = vmatpush2.msra.mxu0 %v7624
        %8162 = vmatprep.subr.mxu0 0.0
        %8163 = vmatpush2.msra.mxu0 %v7623
        %8164 = vmatprep.subr.mxu0 0.0
        %8165 = vmatpush2.msra.mxu0 %v7622
        %8166 = vmatprep.subr.mxu0 0.0
        %8167 = vmatpush2.msra.mxu0 %v7621
        %8168 = vmatprep.subr.mxu0 0.0
        %8169 = vmatpush2.msra.mxu0 %v7620
        %8170 = vmatprep.subr.mxu0 0.0
        %8171 = vmatpush2.msra.mxu0 %v7619
        %8172 = vmatprep.subr.mxu0 0.0
        %8173 = vmatpush2.msra.mxu0 %v7618
        %8174 = vmatprep.subr.mxu0 0.0
        %8175 = vmatpush2.msra.mxu0 %v7617
        %8176 = vmatprep.subr.mxu0 0.0
        %8177 = vmatpush2.msra.mxu0 %v7616
        %8178 = vmatprep.subr.mxu0 0.0
        %8179 = vmatpush2.msra.mxu0 %v7615
        %8180 = vmatprep.mubr.f32.mxu0 %v7430
        %8181 = vmatmul.mubr.f32.gmra.mxu0 %v7429
        %v8182 = vpop.f32.mrf.mxu0
        %v8183 = vadd.f32 %v8113, %v8182
        %v8184 = vpop.f32.mrf.mxu0
        %8185 = vdwg.mxu0
        %8186 = vmatprep.subr.mxu0 0.0
        %8187 = vmatpush1.msra.mxu0 %v7646
        %8188 = vmatprep.subr.mxu0 0.0
        %8189 = vmatpush1.msra.mxu0 %v7645
        %8190 = vmatprep.subr.mxu0 0.0
        %8191 = vmatpush1.msra.mxu0 %v7644
        %8192 = vmatprep.subr.mxu0 0.0
        %8193 = vmatpush1.msra.mxu0 %v7643
        %8194 = vmatprep.subr.mxu0 0.0
        %8195 = vmatpush1.msra.mxu0 %v7642
        %8196 = vmatprep.subr.mxu0 0.0
        %8197 = vmatpush1.msra.mxu0 %v7641
        %8198 = vmatprep.subr.mxu0 0.0
        %8199 = vmatpush1.msra.mxu0 %v7640
        %8200 = vmatprep.subr.mxu0 0.0
        %8201 = vmatpush1.msra.mxu0 %v7639
        %8202 = vmatprep.subr.mxu0 0.0
        %8203 = vmatpush1.msra.mxu0 %v7638
        %8204 = vmatprep.subr.mxu0 0.0
        %8205 = vmatpush1.msra.mxu0 %v7637
        %8206 = vmatprep.subr.mxu0 0.0
        %8207 = vmatpush1.msra.mxu0 %v7636
        %8208 = vmatprep.subr.mxu0 0.0
        %8209 = vmatpush1.msra.mxu0 %v7635
        %8210 = vmatprep.subr.mxu0 0.0
        %8211 = vmatpush1.msra.mxu0 %v7634
        %8212 = vmatprep.subr.mxu0 0.0
        %8213 = vmatpush1.msra.mxu0 %v7633
        %8214 = vmatprep.subr.mxu0 0.0
        %8215 = vmatpush1.msra.mxu0 %v7632
        %8216 = vmatprep.subr.mxu0 0.0
        %8217 = vmatpush1.msra.mxu0 %v7631
        %8218 = vmatprep.subr.mxu0 0.0
        %8219 = vmatpush2.msra.mxu0 %v7662
        %8220 = vmatprep.subr.mxu0 0.0
        %8221 = vmatpush2.msra.mxu0 %v7661
        %8222 = vmatprep.subr.mxu0 0.0
        %8223 = vmatpush2.msra.mxu0 %v7660
        %8224 = vmatprep.subr.mxu0 0.0
        %8225 = vmatpush2.msra.mxu0 %v7659
        %8226 = vmatprep.subr.mxu0 0.0
        %8227 = vmatpush2.msra.mxu0 %v7658
        %8228 = vmatprep.subr.mxu0 0.0
        %8229 = vmatpush2.msra.mxu0 %v7657
        %8230 = vmatprep.subr.mxu0 0.0
        %8231 = vmatpush2.msra.mxu0 %v7656
        %8232 = vmatprep.subr.mxu0 0.0
        %8233 = vmatpush2.msra.mxu0 %v7655
        %8234 = vmatprep.subr.mxu0 0.0
        %8235 = vmatpush2.msra.mxu0 %v7654
        %8236 = vmatprep.subr.mxu0 0.0
        %8237 = vmatpush2.msra.mxu0 %v7653
        %8238 = vmatprep.subr.mxu0 0.0
        %8239 = vmatpush2.msra.mxu0 %v7652
        %8240 = vmatprep.subr.mxu0 0.0
        %8241 = vmatpush2.msra.mxu0 %v7651
        %8242 = vmatprep.subr.mxu0 0.0
        %8243 = vmatpush2.msra.mxu0 %v7650
        %8244 = vmatprep.subr.mxu0 0.0
        %8245 = vmatpush2.msra.mxu0 %v7649
        %8246 = vmatprep.subr.mxu0 0.0
        %8247 = vmatpush2.msra.mxu0 %v7648
        %8248 = vmatprep.subr.mxu0 0.0
        %8249 = vmatpush2.msra.mxu0 %v7647
        %8250 = vmatprep.mubr.f32.mxu0 %v7432
        %8251 = vmatmul.mubr.f32.gmra.mxu0 %v7431
        %v8252 = vpop.f32.mrf.mxu0
        %v8253 = vadd.f32 %v8183, %v8252
        %v8254 = vpop.f32.mrf.mxu0
        %8255 = vdwg.mxu0
        %8256 = vmatprep.subr.mxu0 0.0
        %8257 = vmatpush1.msra.mxu0 %v7678
        %8258 = vmatprep.subr.mxu0 0.0
        %8259 = vmatpush1.msra.mxu0 %v7677
        %8260 = vmatprep.subr.mxu0 0.0
        %8261 = vmatpush1.msra.mxu0 %v7676
        %8262 = vmatprep.subr.mxu0 0.0
        %8263 = vmatpush1.msra.mxu0 %v7675
        %8264 = vmatprep.subr.mxu0 0.0
        %8265 = vmatpush1.msra.mxu0 %v7674
        %8266 = vmatprep.subr.mxu0 0.0
        %8267 = vmatpush1.msra.mxu0 %v7673
        %8268 = vmatprep.subr.mxu0 0.0
        %8269 = vmatpush1.msra.mxu0 %v7672
        %8270 = vmatprep.subr.mxu0 0.0
        %8271 = vmatpush1.msra.mxu0 %v7671
        %8272 = vmatprep.subr.mxu0 0.0
        %8273 = vmatpush1.msra.mxu0 %v7670
        %8274 = vmatprep.subr.mxu0 0.0
        %8275 = vmatpush1.msra.mxu0 %v7669
        %8276 = vmatprep.subr.mxu0 0.0
        %8277 = vmatpush1.msra.mxu0 %v7668
        %8278 = vmatprep.subr.mxu0 0.0
        %8279 = vmatpush1.msra.mxu0 %v7667
        %8280 = vmatprep.subr.mxu0 0.0
        %8281 = vmatpush1.msra.mxu0 %v7666
        %8282 = vmatprep.subr.mxu0 0.0
        %8283 = vmatpush1.msra.mxu0 %v7665
        %8284 = vmatprep.subr.mxu0 0.0
        %8285 = vmatpush1.msra.mxu0 %v7664
        %8286 = vmatprep.subr.mxu0 0.0
        %8287 = vmatpush1.msra.mxu0 %v7663
        %8288 = vmatprep.subr.mxu0 0.0
        %8289 = vmatpush2.msra.mxu0 %v7694
        %8290 = vmatprep.subr.mxu0 0.0
        %8291 = vmatpush2.msra.mxu0 %v7693
        %8292 = vmatprep.subr.mxu0 0.0
        %8293 = vmatpush2.msra.mxu0 %v7692
        %8294 = vmatprep.subr.mxu0 0.0
        %8295 = vmatpush2.msra.mxu0 %v7691
        %8296 = vmatprep.subr.mxu0 0.0
        %8297 = vmatpush2.msra.mxu0 %v7690
        %8298 = vmatprep.subr.mxu0 0.0
        %8299 = vmatpush2.msra.mxu0 %v7689
        %8300 = vmatprep.subr.mxu0 0.0
        %8301 = vmatpush2.msra.mxu0 %v7688
        %8302 = vmatprep.subr.mxu0 0.0
        %8303 = vmatpush2.msra.mxu0 %v7687
        %8304 = vmatprep.subr.mxu0 0.0
        %8305 = vmatpush2.msra.mxu0 %v7686
        %8306 = vmatprep.subr.mxu0 0.0
        %8307 = vmatpush2.msra.mxu0 %v7685
        %8308 = vmatprep.subr.mxu0 0.0
        %8309 = vmatpush2.msra.mxu0 %v7684
        %8310 = vmatprep.subr.mxu0 0.0
        %8311 = vmatpush2.msra.mxu0 %v7683
        %8312 = vmatprep.subr.mxu0 0.0
        %8313 = vmatpush2.msra.mxu0 %v7682
        %8314 = vmatprep.subr.mxu0 0.0
        %8315 = vmatpush2.msra.mxu0 %v7681
        %8316 = vmatprep.subr.mxu0 0.0
        %8317 = vmatpush2.msra.mxu0 %v7680
        %8318 = vmatprep.subr.mxu0 0.0
        %8319 = vmatpush2.msra.mxu0 %v7679
        %8320 = vmatprep.mubr.f32.mxu0 %v7434
        %8321 = vmatmul.mubr.f32.gmra.mxu0 %v7433
        %v8322 = vpop.f32.mrf.mxu0
        %v8323 = vadd.f32 %v8253, %v8322
        %v8324 = vpop.f32.mrf.mxu0
        %8325 = vdwg.mxu0
        %8326 = vmatprep.subr.mxu0 0.0
        %8327 = vmatpush1.msra.mxu0 %v7710
        %8328 = vmatprep.subr.mxu0 0.0
        %8329 = vmatpush1.msra.mxu0 %v7709
        %8330 = vmatprep.subr.mxu0 0.0
        %8331 = vmatpush1.msra.mxu0 %v7708
        %8332 = vmatprep.subr.mxu0 0.0
        %8333 = vmatpush1.msra.mxu0 %v7707
        %8334 = vmatprep.subr.mxu0 0.0
        %8335 = vmatpush1.msra.mxu0 %v7706
        %8336 = vmatprep.subr.mxu0 0.0
        %8337 = vmatpush1.msra.mxu0 %v7705
        %8338 = vmatprep.subr.mxu0 0.0
        %8339 = vmatpush1.msra.mxu0 %v7704
        %8340 = vmatprep.subr.mxu0 0.0
        %8341 = vmatpush1.msra.mxu0 %v7703
        %8342 = vmatprep.subr.mxu0 0.0
        %8343 = vmatpush1.msra.mxu0 %v7702
        %8344 = vmatprep.subr.mxu0 0.0
        %8345 = vmatpush1.msra.mxu0 %v7701
        %8346 = vmatprep.subr.mxu0 0.0
        %8347 = vmatpush1.msra.mxu0 %v7700
        %8348 = vmatprep.subr.mxu0 0.0
        %8349 = vmatpush1.msra.mxu0 %v7699
        %8350 = vmatprep.subr.mxu0 0.0
        %8351 = vmatpush1.msra.mxu0 %v7698
        %8352 = vmatprep.subr.mxu0 0.0
        %8353 = vmatpush1.msra.mxu0 %v7697
        %8354 = vmatprep.subr.mxu0 0.0
        %8355 = vmatpush1.msra.mxu0 %v7696
        %8356 = vmatprep.subr.mxu0 0.0
        %8357 = vmatpush1.msra.mxu0 %v7695
        %8358 = vmatprep.subr.mxu0 0.0
        %8359 = vmatpush2.msra.mxu0 %v7726
        %8360 = vmatprep.subr.mxu0 0.0
        %8361 = vmatpush2.msra.mxu0 %v7725
        %8362 = vmatprep.subr.mxu0 0.0
        %8363 = vmatpush2.msra.mxu0 %v7724
        %8364 = vmatprep.subr.mxu0 0.0
        %8365 = vmatpush2.msra.mxu0 %v7723
        %8366 = vmatprep.subr.mxu0 0.0
        %8367 = vmatpush2.msra.mxu0 %v7722
        %8368 = vmatprep.subr.mxu0 0.0
        %8369 = vmatpush2.msra.mxu0 %v7721
        %8370 = vmatprep.subr.mxu0 0.0
        %8371 = vmatpush2.msra.mxu0 %v7720
        %8372 = vmatprep.subr.mxu0 0.0
        %8373 = vmatpush2.msra.mxu0 %v7719
        %8374 = vmatprep.subr.mxu0 0.0
        %8375 = vmatpush2.msra.mxu0 %v7718
        %8376 = vmatprep.subr.mxu0 0.0
        %8377 = vmatpush2.msra.mxu0 %v7717
        %8378 = vmatprep.subr.mxu0 0.0
        %8379 = vmatpush2.msra.mxu0 %v7716
        %8380 = vmatprep.subr.mxu0 0.0
        %8381 = vmatpush2.msra.mxu0 %v7715
        %8382 = vmatprep.subr.mxu0 0.0
        %8383 = vmatpush2.msra.mxu0 %v7714
        %8384 = vmatprep.subr.mxu0 0.0
        %8385 = vmatpush2.msra.mxu0 %v7713
        %8386 = vmatprep.subr.mxu0 0.0
        %8387 = vmatpush2.msra.mxu0 %v7712
        %8388 = vmatprep.subr.mxu0 0.0
        %8389 = vmatpush2.msra.mxu0 %v7711
        %8390 = vmatprep.mubr.f32.mxu0 %v7436
        %8391 = vmatmul.mubr.f32.gmra.mxu0 %v7435
        %v8392 = vpop.f32.mrf.mxu0
        %v8393 = vadd.f32 %v8323, %v8392
        %v8394 = vpop.f32.mrf.mxu0
        %8395 = vdwg.mxu0
        %8396 = vmatprep.subr.mxu0 0.0
        %8397 = vmatpush1.msra.mxu0 %v7742
        %8398 = vmatprep.subr.mxu0 0.0
        %8399 = vmatpush1.msra.mxu0 %v7741
        %8400 = vmatprep.subr.mxu0 0.0
        %8401 = vmatpush1.msra.mxu0 %v7740
        %8402 = vmatprep.subr.mxu0 0.0
        %8403 = vmatpush1.msra.mxu0 %v7739
        %8404 = vmatprep.subr.mxu0 0.0
        %8405 = vmatpush1.msra.mxu0 %v7738
        %8406 = vmatprep.subr.mxu0 0.0
        %8407 = vmatpush1.msra.mxu0 %v7737
        %8408 = vmatprep.subr.mxu0 0.0
        %8409 = vmatpush1.msra.mxu0 %v7736
        %8410 = vmatprep.subr.mxu0 0.0
        %8411 = vmatpush1.msra.mxu0 %v7735
        %8412 = vmatprep.subr.mxu0 0.0
        %8413 = vmatpush1.msra.mxu0 %v7734
        %8414 = vmatprep.subr.mxu0 0.0
        %8415 = vmatpush1.msra.mxu0 %v7733
        %8416 = vmatprep.subr.mxu0 0.0
        %8417 = vmatpush1.msra.mxu0 %v7732
        %8418 = vmatprep.subr.mxu0 0.0
        %8419 = vmatpush1.msra.mxu0 %v7731
        %8420 = vmatprep.subr.mxu0 0.0
        %8421 = vmatpush1.msra.mxu0 %v7730
        %8422 = vmatprep.subr.mxu0 0.0
        %8423 = vmatpush1.msra.mxu0 %v7729
        %8424 = vmatprep.subr.mxu0 0.0
        %8425 = vmatpush1.msra.mxu0 %v7728
        %8426 = vmatprep.subr.mxu0 0.0
        %8427 = vmatpush1.msra.mxu0 %v7727
        %8428 = vmatprep.subr.mxu0 0.0
        %8429 = vmatpush2.msra.mxu0 %v7758
        %8430 = vmatprep.subr.mxu0 0.0
        %8431 = vmatpush2.msra.mxu0 %v7757
        %8432 = vmatprep.subr.mxu0 0.0
        %8433 = vmatpush2.msra.mxu0 %v7756
        %8434 = vmatprep.subr.mxu0 0.0
        %8435 = vmatpush2.msra.mxu0 %v7755
        %8436 = vmatprep.subr.mxu0 0.0
        %8437 = vmatpush2.msra.mxu0 %v7754
        %8438 = vmatprep.subr.mxu0 0.0
        %8439 = vmatpush2.msra.mxu0 %v7753
        %8440 = vmatprep.subr.mxu0 0.0
        %8441 = vmatpush2.msra.mxu0 %v7752
        %8442 = vmatprep.subr.mxu0 0.0
        %8443 = vmatpush2.msra.mxu0 %v7751
        %8444 = vmatprep.subr.mxu0 0.0
        %8445 = vmatpush2.msra.mxu0 %v7750
        %8446 = vmatprep.subr.mxu0 0.0
        %8447 = vmatpush2.msra.mxu0 %v7749
        %8448 = vmatprep.subr.mxu0 0.0
        %8449 = vmatpush2.msra.mxu0 %v7748
        %8450 = vmatprep.subr.mxu0 0.0
        %8451 = vmatpush2.msra.mxu0 %v7747
        %8452 = vmatprep.subr.mxu0 0.0
        %8453 = vmatpush2.msra.mxu0 %v7746
        %8454 = vmatprep.subr.mxu0 0.0
        %8455 = vmatpush2.msra.mxu0 %v7745
        %8456 = vmatprep.subr.mxu0 0.0
        %8457 = vmatpush2.msra.mxu0 %v7744
        %8458 = vmatprep.subr.mxu0 0.0
        %8459 = vmatpush2.msra.mxu0 %v7743
        %8460 = vmatprep.mubr.f32.mxu0 %v7438
        %8461 = vmatmul.mubr.f32.gmra.mxu0 %v7437
        %v8462 = vpop.f32.mrf.mxu0
        %v8463 = vadd.f32 %v8393, %v8462
        %v8464 = vpop.f32.mrf.mxu0
        %8465 = vdwg.mxu0
        %8466 = vst [vmem:[%s9] sm:$0xff] %v8463
      $region64: #{baseline_adapter_transformer.1} parent=55 // pred_fallthru
        _
      // Predicated region
      $region65: #{baseline_adapter_transformer.1} parent=55 // pred_check
        %p8467 = pneg %p232
      $region66: #{baseline_adapter_transformer.1} parent=55 // pred_check_branch
        %8469 = sbr.rel (%p8467) target = $region68
      $region67: #{baseline_adapter_transformer.1} parent=55 // pred_region
        _
      $region68: #{baseline_adapter_transformer.1} parent=55 // pred_fallthru
        _
      // Predicated region
      $region69: #{baseline_adapter_transformer.1} parent=55 // pred_check
        %p8470 = pneg %p232
      $region70: #{baseline_adapter_transformer.1} parent=55 // pred_check_branch
        %8472 = sbr.rel (%p8470) target = $region72
      $region71: #{baseline_adapter_transformer.1} parent=55 // pred_region
        _
      $region72: #{baseline_adapter_transformer.1} parent=55 // pred_fallthru
        _
    $region56: #{baseline_adapter_transformer.1} parent=5 // pred_fallthru
      _
    %p8473 = scmp.le.s32.totalorder 2, %s15
    // Predicated region
    $region73: #{baseline_adapter_transformer.1} parent=5 // pred_check
      %p8474 = pneg %p8473
    $region74: #{baseline_adapter_transformer.1} parent=5 // pred_check_branch
      %8476 = sbr.rel (%p8474) target = $region76
    $region75: #{baseline_adapter_transformer.1} parent=5 // pred_region
      %s8477 = ssub.s32 %s15, 2
    $region76: #{baseline_adapter_transformer.1} parent=5 // pred_fallthru
      _
  $region6: #{baseline_adapter_transformer.1} parent=0 // loop_footer
    %s19 = sadd.s32 1, %s15
  $region7: #{baseline_adapter_transformer.1} parent=0 // loop_footer_branch
    %14 = sbr.rel target = $region3
  $region8: #{baseline_adapter_transformer.1} parent=0 // loop_exit
    _

</llo_original>
